<compile_context>
chip_gen: v7x
topology: tpu7x:2x2x1
jax: 0.10.0
libtpu: 0.0.40
codegen_flags: <defaults>
</compile_context>

<pallas_src>
import math
import functools

import jax
import jax.numpy as jnp
from jax.experimental import pallas as pl
from jax.experimental.pallas import tpu as pltpu


# ----------------------------------------------------------------------------
# Fused Pallas kernel: one grid step == `block_batch` sequences, whole forward.
# ----------------------------------------------------------------------------

def _decoder_kernel(x_ref, pe_ref, bias_ref,
                    w_in_ref, b_in_ref,
                    w_qkv_ref, b_qkv_ref, w_o_ref, b_o_ref,
                    ln1_g_ref, ln1_b_ref,
                    w_ff1_ref, b_ff1_ref, w_ff2_ref, b_ff2_ref,
                    ln2_g_ref, ln2_b_ref,
                    w_out_ref, b_out_ref, w_attn_ref, b_attn_ref,
                    o_ref, *, num_layers, num_heads, block_batch, seq_len,
                    eps, pool_scale):
    D = w_o_ref.shape[-1]
    hd = D // num_heads
    attn_scale = 1.0 / math.sqrt(hd)

    def mm(a, w):
        # bf16 x bf16 on the MXU with f32 accumulation.
        return jnp.dot(a.astype(jnp.bfloat16), w.astype(jnp.bfloat16),
                       preferred_element_type=jnp.float32)

    def layernorm(y, g, b):
        m = jnp.mean(y, axis=-1, keepdims=True)
        v = jnp.mean((y - m) ** 2, axis=-1, keepdims=True)
        return (y - m) * jax.lax.rsqrt(v + eps) * g + b

    # ---- input_fc + ReLU + positional encoding ------------------------------
    h = mm(x_ref[0], w_in_ref[...]) + b_in_ref[...]            # (R, D) f32
    h = jnp.maximum(h, 0.0) + pe_ref[...]

    bias = bias_ref[...]          # (R, R) block-diagonal mask: 0 / -1e30

    # ---- transformer encoder layers (post-norm, ReLU FFN, eval dropout) -----
    for l in range(num_layers):
        # fused QKV projection: a single lane-dense (R,D)x(D,3D) matmul
        qkv = mm(h, w_qkv_ref[l]) + b_qkv_ref[l]               # (R, 3D) f32

        heads = []
        for hh in range(num_heads):
            q = qkv[:, hh * hd:(hh + 1) * hd]                  # (R, hd)
            k = qkv[:, D + hh * hd:D + (hh + 1) * hd]          # (R, hd)
            v = qkv[:, 2 * D + hh * hd:2 * D + (hh + 1) * hd]  # (R, hd)

            # scores: contract on the last dim of q and k (no explicit T)
            s = jax.lax.dot_general(
                q.astype(jnp.bfloat16), k.astype(jnp.bfloat16),
                (((1,), (1,)), ((), ())),
                preferred_element_type=jnp.float32) * attn_scale   # (R, R)
            s = s + bias            # sequences in a block don't see each other
            s = s - jnp.max(s, axis=-1, keepdims=True)
            p = jnp.exp(s)
            p = p * pl.reciprocal(jnp.sum(p, axis=-1, keepdims=True),
                                  approx=True)
            heads.append(mm(p, v))                             # (R, hd)

        # head-concat + output projection as a single K=D matmul
        attn = mm(jnp.concatenate(heads, axis=-1), w_o_ref[l]) + b_o_ref[l]
        h = layernorm(h + attn, ln1_g_ref[l], ln1_b_ref[l])

        ff = jnp.maximum(mm(h, w_ff1_ref[l]) + b_ff1_ref[l], 0.0)  # (R, F)
        ff = mm(ff, w_ff2_ref[l]) + b_ff2_ref[l]
        h = layernorm(h + ff, ln2_g_ref[l], ln2_b_ref[l])

    # ---- output_fc + attention-based pooling over time -----------------------
    y = mm(h, w_out_ref[...]) + b_out_ref[...]                 # (R, OUT) f32

    # pooling scores via VPU multiply + lane reduction (avoids N=1 matmul)
    s_all = jnp.sum(y * w_attn_ref[...], axis=-1, keepdims=True)   # (R, 1)
    s_all = (s_all + b_attn_ref[...]) * pool_scale

    # segmented softmax + pooled sum per sequence (T rows each)
    pooled = []
    for b in range(block_batch):
        sb = s_all[b * seq_len:(b + 1) * seq_len, :]           # (T, 1)
        yb = y[b * seq_len:(b + 1) * seq_len, :]               # (T, OUT)
        sb = sb - jnp.max(sb, axis=0, keepdims=True)
        pb = jnp.exp(sb)
        pb = pb * pl.reciprocal(jnp.sum(pb, axis=0, keepdims=True),
                                approx=True)
        pooled.append(jnp.sum(yb * pb, axis=0, keepdims=True))  # (1, OUT)
    o_ref[0] = jnp.concatenate(pooled, axis=0)                  # (Bb, OUT)


# ----------------------------------------------------------------------------
# Wrapper
# ----------------------------------------------------------------------------

def _choose_block_batch(batch, seq_len, target_rows=128):
    bb = max(1, target_rows // max(seq_len, 1))   # fill M toward 128 rows
    bb = min(bb, batch)
    if batch >= 2:
        bb = min(bb, -(-batch // 2))              # keep >= 2 grid steps (v7x)
    return max(bb, 1)


def sentence_decoder_forward(x, params, *, num_heads, num_layers):
    B, T, IN = x.shape
    D = params["w_in"].shape[1]
    OUT = params["w_out"].shape[1]

    bb = _choose_block_batch(B, T)
    n_blk = -(-B // bb)
    b_pad = n_blk * bb
    if b_pad != B:
        x = jnp.concatenate(
            [x, jnp.zeros((b_pad - B, T, IN), x.dtype)], axis=0)

    # activations DMA'd in bf16; one (bb*T, IN) slab per grid step
    x_blocks = x.astype(jnp.bfloat16).reshape(n_blk, bb * T, IN)

    # positional encoding tiled across the bb sequences of a block
    pe_tile = jnp.tile(params["pe"][0, :T, :], (bb, 1))          # (bb*T, D)

    # block-diagonal attention bias so sequences sharing a block stay isolated
    seg = jnp.arange(bb * T, dtype=jnp.int32) // T
    attn_bias = jnp.where(seg[:, None] == seg[None, :],
                          0.0, -1e30).astype(jnp.float32)        # (bb*T, bb*T)

    weight_keys = ["w_in", "b_in", "w_qkv", "b_qkv", "w_o", "b_o",
                   "ln1_g", "ln1_b", "w_ff1", "b_ff1", "w_ff2", "b_ff2",
                   "ln2_g", "ln2_b", "w_out", "b_out", "w_attn", "b_attn"]
    weights = [params[k] for k in weight_keys]

    def full_spec(a):
        return pl.BlockSpec(a.shape, lambda b, _nd=a.ndim: (0,) * _nd)

    in_specs = ([pl.BlockSpec((1, bb * T, IN), lambda b: (b, 0, 0)),
                 full_spec(pe_tile), full_spec(attn_bias)]
                + [full_spec(a) for a in weights])

    kernel = functools.partial(
        _decoder_kernel, num_layers=num_layers, num_heads=num_heads,
        block_batch=bb, seq_len=T, eps=1e-5,
        # The PyTorch forward hardcodes 768 ** 0.5 regardless of output_dim;
        # here OUT == 768 so this is identical.
        pool_scale=1.0 / (768.0 ** 0.5))

    out = pl.pallas_call(
        kernel,
        out_shape=jax.ShapeDtypeStruct((n_blk, bb, OUT), jnp.float32),
        grid=(n_blk,),
        in_specs=in_specs,
        out_specs=pl.BlockSpec((1, bb, OUT), lambda b: (b, 0, 0)),
        compiler_params=pltpu.CompilerParams(
            dimension_semantics=("parallel",),
            vmem_limit_bytes=32 * 1024 * 1024),
    )(x_blocks, pe_tile, attn_bias, *weights)

    return out.reshape(b_pad, OUT)[:B]


# ----------------------------------------------------------------------------
# Parameters (matmul weights in bf16, fused QKV layout: [Q | K | V] columns,
# each split into num_heads contiguous hd-wide per-head column blocks)
# ----------------------------------------------------------------------------

def make_positional_encoding(max_len, d_model):
    position = jnp.arange(max_len, dtype=jnp.float32)[:, None]
    div_term = jnp.exp(jnp.arange(0, d_model, 2, dtype=jnp.float32)
                       * (-math.log(10000.0) / d_model))
    pe = jnp.zeros((max_len, d_model), dtype=jnp.float32)
    pe = pe.at[:, 0::2].set(jnp.sin(position * div_term))
    pe = pe.at[:, 1::2].set(jnp.cos(position * div_term))
    return pe[None]  # (1, max_len, d_model)


def init_params(seed=0, input_dim=64, hidden_dim=256, num_heads=4,
                num_layers=3, ffn_dim=512, output_dim=768, max_len=64):
    key = jax.random.PRNGKey(seed)

    def nk():
        nonlocal key
        key, sub = jax.random.split(key)
        return sub

    def w(shape, scale=0.05, dtype=jnp.bfloat16):
        return (scale * jax.random.normal(nk(), shape, dtype=jnp.float32)
                ).astype(dtype)

    L, D, F = num_layers, hidden_dim, ffn_dim
    return {
        "w_in": w((input_dim, D)),
        "b_in": w((1, D), 0.02, jnp.float32),
        "pe": make_positional_encoding(max_len, D),
        "w_qkv": w((L, D, 3 * D)),
        "b_qkv": w((L, 1, 3 * D), 0.02, jnp.float32),
        "w_o": w((L, D, D)),
        "b_o": w((L, 1, D), 0.02, jnp.float32),
        "ln1_g": jnp.ones((L, 1, D), jnp.float32),
        "ln1_b": jnp.zeros((L, 1, D), jnp.float32),
        "w_ff1": w((L, D, F)), "b_ff1": w((L, 1, F), 0.02, jnp.float32),
        "w_ff2": w((L, F, D)), "b_ff2": w((L, 1, D), 0.02, jnp.float32),
        "ln2_g": jnp.ones((L, 1, D), jnp.float32),
        "ln2_b": jnp.zeros((L, 1, D), jnp.float32),
        "w_out": w((D, output_dim)),
        "b_out": w((1, output_dim), 0.02, jnp.float32),
        "w_attn": w((1, output_dim), 0.05, jnp.float32),
        "b_attn": w((1, 1), 0.02, jnp.float32),
    }


# ----------------------------------------------------------------------------
# Pure-JAX f32 reference (same fused-QKV weight layout; upcasts bf16 weights)
# ----------------------------------------------------------------------------

def _ref_forward(x, params, *, num_heads, num_layers):
    hi = jax.lax.Precision.HIGHEST
    f32 = lambda a: a.astype(jnp.float32)
    B, T, _ = x.shape
    D = params["w_in"].shape[1]
    hd = D // num_heads

    def ln(y, g, b, eps=1e-5):
        m = jnp.mean(y, axis=-1, keepdims=True)
        v = jnp.mean((y - m) ** 2, axis=-1, keepdims=True)
        return (y - m) / jnp.sqrt(v + eps) * g + b

    h = jax.nn.relu(jnp.dot(x, f32(params["w_in"]), precision=hi)
                    + params["b_in"])
    h = h + params["pe"][:, :T, :]
    for l in range(num_layers):
        qkv = jnp.dot(h, f32(params["w_qkv"][l]), precision=hi) + params["b_qkv"][l]
        heads = []
        for hh in range(num_heads):
            q = qkv[..., hh * hd:(hh + 1) * hd]
            k = qkv[..., D + hh * hd:D + (hh + 1) * hd]
            v = qkv[..., 2 * D + hh * hd:2 * D + (hh + 1) * hd]
            s = jnp.einsum("btd,bsd->bts", q, k, precision=hi) / math.sqrt(hd)
            p = jax.nn.softmax(s, axis=-1)
            heads.append(jnp.einsum("bts,bsd->btd", p, v, precision=hi))
        a = jnp.concatenate(heads, axis=-1)
        attn = jnp.dot(a, f32(params["w_o"][l]), precision=hi) + params["b_o"][l]
        h = ln(h + attn, params["ln1_g"][l], params["ln1_b"][l])
        ff = jax.nn.relu(jnp.dot(h, f32(params["w_ff1"][l]), precision=hi)
                         + params["b_ff1"][l])
        ff = jnp.dot(ff, f32(params["w_ff2"][l]), precision=hi) + params["b_ff2"][l]
        h = ln(h + ff, params["ln2_g"][l], params["ln2_b"][l])
    y = jnp.dot(h, f32(params["w_out"]), precision=hi) + params["b_out"]
    s = (jnp.sum(y * params["w_attn"], axis=-1)
         + params["b_attn"][0, 0]) / 768.0 ** 0.5
    wgt = jax.nn.softmax(s, axis=1)
    return jnp.sum(y * wgt[..., None], axis=1)


# ----------------------------------------------------------------------------

if __name__ == "__main__":
    INPUT_DIM, NUM_HEADS, NUM_LAYERS, T = 64, 4, 3, 8

    params = init_params(seed=0, input_dim=INPUT_DIM, num_heads=NUM_HEADS,
                         num_layers=NUM_LAYERS, max_len=max(T, 16))

    fwd = jax.jit(functools.partial(sentence_decoder_forward,
                                    num_heads=NUM_HEADS,
                                    num_layers=NUM_LAYERS))

    key = jax.random.PRNGKey(0)
    # Small batch (bb=1, grid=2) and a larger batch exercising the batched
    # block-diagonal path (bb=16 -> M=128 rows per step, plus batch padding).
    for B in (2, 40):
        key, sub = jax.random.split(key)
        x = jax.random.normal(sub, (B, T, INPUT_DIM), dtype=jnp.float32)

        out = jax.block_until_ready(fwd(x, params))
        assert out.shape == (B, 768), out.shape
        assert bool(jnp.all(jnp.isfinite(out)))

        ref = _ref_forward(x, params, num_heads=NUM_HEADS,
                           num_layers=NUM_LAYERS)
        # Tolerance reflects bf16 activation casts + approx softmax reciprocal.
        if not bool(jnp.allclose(out, ref, atol=7.5e-2, rtol=7.5e-2)):
            err = float(jnp.max(jnp.abs(out - ref)))
            raise AssertionError(
                f"B={B}: Pallas output diverges from reference (max abs err {err})")

    print("KERNEL_OK")
</pallas_src>

<mosaic_0001>
module attributes {stable_mosaic.version = 11 : i64} {
  func.func @_decoder_kernel(%arg0: i32, %arg1: memref<1x8x64xbf16, #tpu.memory_space<vmem>>, %arg2: memref<8x256xf32, #tpu.memory_space<vmem>>, %arg3: memref<8x8xf32, #tpu.memory_space<vmem>>, %arg4: memref<64x256xbf16, #tpu.memory_space<vmem>>, %arg5: memref<1x256xf32, #tpu.memory_space<vmem>>, %arg6: memref<3x256x768xbf16, #tpu.memory_space<vmem>>, %arg7: memref<3x1x768xf32, #tpu.memory_space<vmem>>, %arg8: memref<3x256x256xbf16, #tpu.memory_space<vmem>>, %arg9: memref<3x1x256xf32, #tpu.memory_space<vmem>>, %arg10: memref<3x1x256xf32, #tpu.memory_space<vmem>>, %arg11: memref<3x1x256xf32, #tpu.memory_space<vmem>>, %arg12: memref<3x256x512xbf16, #tpu.memory_space<vmem>>, %arg13: memref<3x1x512xf32, #tpu.memory_space<vmem>>, %arg14: memref<3x512x256xbf16, #tpu.memory_space<vmem>>, %arg15: memref<3x1x256xf32, #tpu.memory_space<vmem>>, %arg16: memref<3x1x256xf32, #tpu.memory_space<vmem>>, %arg17: memref<3x1x256xf32, #tpu.memory_space<vmem>>, %arg18: memref<256x768xbf16, #tpu.memory_space<vmem>>, %arg19: memref<1x768xf32, #tpu.memory_space<vmem>>, %arg20: memref<1x768xf32, #tpu.memory_space<vmem>>, %arg21: memref<1x1xf32, #tpu.memory_space<vmem>>, %arg22: memref<1x1x768xf32, #tpu.memory_space<vmem>>) attributes {dimension_semantics = [#tpu.dimension_semantics<parallel>], iteration_bounds = array<i64: 2>, scalar_prefetch = 0 : i64, scratch_operands = 0 : i64, tpu.core_type = #tpu.core_type<tc>, window_params = [{transform_indices = @transform_0, window_bounds = array<i64: 1, 8, 64>}, {pipeline_mode = #tpu.pipeline_mode<synchronous>, transform_indices = @transform_1, window_bounds = array<i64: 8, 256>}, {pipeline_mode = #tpu.pipeline_mode<synchronous>, transform_indices = @transform_2, window_bounds = array<i64: 8, 8>}, {pipeline_mode = #tpu.pipeline_mode<synchronous>, transform_indices = @transform_3, window_bounds = array<i64: 64, 256>}, {pipeline_mode = #tpu.pipeline_mode<synchronous>, transform_indices = @transform_4, window_bounds = array<i64: 1, 256>}, {pipeline_mode = #tpu.pipeline_mode<synchronous>, transform_indices = @transform_5, window_bounds = array<i64: 3, 256, 768>}, {pipeline_mode = #tpu.pipeline_mode<synchronous>, transform_indices = @transform_6, window_bounds = array<i64: 3, 1, 768>}, {pipeline_mode = #tpu.pipeline_mode<synchronous>, transform_indices = @transform_7, window_bounds = array<i64: 3, 256, 256>}, {pipeline_mode = #tpu.pipeline_mode<synchronous>, transform_indices = @transform_8, window_bounds = array<i64: 3, 1, 256>}, {pipeline_mode = #tpu.pipeline_mode<synchronous>, transform_indices = @transform_9, window_bounds = array<i64: 3, 1, 256>}, {pipeline_mode = #tpu.pipeline_mode<synchronous>, transform_indices = @transform_10, window_bounds = array<i64: 3, 1, 256>}, {pipeline_mode = #tpu.pipeline_mode<synchronous>, transform_indices = @transform_11, window_bounds = array<i64: 3, 256, 512>}, {pipeline_mode = #tpu.pipeline_mode<synchronous>, transform_indices = @transform_12, window_bounds = array<i64: 3, 1, 512>}, {pipeline_mode = #tpu.pipeline_mode<synchronous>, transform_indices = @transform_13, window_bounds = array<i64: 3, 512, 256>}, {pipeline_mode = #tpu.pipeline_mode<synchronous>, transform_indices = @transform_14, window_bounds = array<i64: 3, 1, 256>}, {pipeline_mode = #tpu.pipeline_mode<synchronous>, transform_indices = @transform_15, window_bounds = array<i64: 3, 1, 256>}, {pipeline_mode = #tpu.pipeline_mode<synchronous>, transform_indices = @transform_16, window_bounds = array<i64: 3, 1, 256>}, {pipeline_mode = #tpu.pipeline_mode<synchronous>, transform_indices = @transform_17, window_bounds = array<i64: 256, 768>}, {pipeline_mode = #tpu.pipeline_mode<synchronous>, transform_indices = @transform_18, window_bounds = array<i64: 1, 768>}, {pipeline_mode = #tpu.pipeline_mode<synchronous>, transform_indices = @transform_19, window_bounds = array<i64: 1, 768>}, {pipeline_mode = #tpu.pipeline_mode<synchronous>, transform_indices = @transform_20, window_bounds = array<i64: 1, 1>}, {transform_indices = @transform_21, window_bounds = array<i64: 1, 1, 768>}]} {
    %c0 = arith.constant 0 : index
    %c0_0 = arith.constant 0 : index
    %c0_1 = arith.constant 0 : index
    %0 = vector.load %arg1[%c0, %c0_0, %c0_1] : memref<1x8x64xbf16, #tpu.memory_space<vmem>>, vector<1x8x64xbf16>
    %1 = vector.shape_cast %0 : vector<1x8x64xbf16> to vector<8x64xbf16>
    %c0_2 = arith.constant 0 : index
    %c0_3 = arith.constant 0 : index
    %2 = vector.load %arg4[%c0_2, %c0_3] : memref<64x256xbf16, #tpu.memory_space<vmem>>, vector<64x256xbf16>
    %cst = arith.constant dense<0.000000e+00> : vector<8x256xf32>
    %3 = tpu.matmul %1, %2, %cst {dimension_numbers = #tpu.dot_dimension_numbers<[1], [0], [0], [1], [0, 0, 1, 1], [], []>} : vector<8x64xbf16>, vector<64x256xbf16>, vector<8x256xf32> -> vector<8x256xf32>
    %c0_4 = arith.constant 0 : index
    %c0_5 = arith.constant 0 : index
    %4 = vector.load %arg5[%c0_4, %c0_5] : memref<1x256xf32, #tpu.memory_space<vmem>>, vector<1x256xf32>
    %5 = vector.broadcast %4 : vector<1x256xf32> to vector<8x256xf32>
    %6 = arith.addf %3, %5 : vector<8x256xf32>
    %cst_6 = arith.constant 0.000000e+00 : f32
    %7 = vector.broadcast %cst_6 : f32 to vector<8x256xf32>
    %8 = arith.maximumf %6, %7 : vector<8x256xf32>
    %c0_7 = arith.constant 0 : index
    %c0_8 = arith.constant 0 : index
    %9 = vector.load %arg2[%c0_7, %c0_8] : memref<8x256xf32, #tpu.memory_space<vmem>>, vector<8x256xf32>
    %10 = arith.addf %8, %9 : vector<8x256xf32>
    %c0_9 = arith.constant 0 : index
    %c0_10 = arith.constant 0 : index
    %11 = vector.load %arg3[%c0_9, %c0_10] : memref<8x8xf32, #tpu.memory_space<vmem>>, vector<8x8xf32>
    %c0_11 = arith.constant 0 : index
    %c0_12 = arith.constant 0 : index
    %c0_13 = arith.constant 0 : index
    %12 = vector.load %arg6[%c0_11, %c0_12, %c0_13] : memref<3x256x768xbf16, #tpu.memory_space<vmem>>, vector<1x256x768xbf16>
    %13 = vector.shape_cast %12 : vector<1x256x768xbf16> to vector<256x768xbf16>
    %14 = arith.truncf %10 : vector<8x256xf32> to vector<8x256xbf16>
    %cst_14 = arith.constant dense<0.000000e+00> : vector<8x768xf32>
    %15 = tpu.matmul %14, %13, %cst_14 {dimension_numbers = #tpu.dot_dimension_numbers<[1], [0], [0], [1], [0, 0, 1, 1], [], []>} : vector<8x256xbf16>, vector<256x768xbf16>, vector<8x768xf32> -> vector<8x768xf32>
    %c0_15 = arith.constant 0 : index
    %c0_16 = arith.constant 0 : index
    %c0_17 = arith.constant 0 : index
    %16 = vector.load %arg7[%c0_15, %c0_16, %c0_17] : memref<3x1x768xf32, #tpu.memory_space<vmem>>, vector<1x1x768xf32>
    %17 = vector.shape_cast %16 : vector<1x1x768xf32> to vector<1x768xf32>
    %18 = vector.broadcast %17 : vector<1x768xf32> to vector<8x768xf32>
    %19 = arith.addf %15, %18 : vector<8x768xf32>
    %20 = vector.extract_strided_slice %19 {offsets = [0, 0], sizes = [8, 64], strides = [1, 1]} : vector<8x768xf32> to vector<8x64xf32>
    %21 = vector.extract_strided_slice %19 {offsets = [0, 256], sizes = [8, 64], strides = [1, 1]} : vector<8x768xf32> to vector<8x64xf32>
    %22 = vector.extract_strided_slice %19 {offsets = [0, 512], sizes = [8, 64], strides = [1, 1]} : vector<8x768xf32> to vector<8x64xf32>
    %23 = arith.truncf %20 : vector<8x64xf32> to vector<8x64xbf16>
    %24 = arith.truncf %21 : vector<8x64xf32> to vector<8x64xbf16>
    %cst_18 = arith.constant dense<0.000000e+00> : vector<8x8xf32>
    %25 = tpu.matmul %23, %24, %cst_18 {dimension_numbers = #tpu.dot_dimension_numbers<[1], [1], [0], [0], [0, 0, 1, 0], [], []>} : vector<8x64xbf16>, vector<8x64xbf16>, vector<8x8xf32> -> vector<8x8xf32>
    %cst_19 = arith.constant 1.250000e-01 : f32
    %26 = vector.broadcast %cst_19 : f32 to vector<8x8xf32>
    %27 = arith.mulf %25, %26 : vector<8x8xf32>
    %28 = arith.addf %27, %11 : vector<8x8xf32>
    %cst_20 = arith.constant dense<0xFF800000> : vector<8xf32>
    %29 = vector.multi_reduction <maximumf>, %28, %cst_20 [1] : vector<8x8xf32> to vector<8xf32>
    %30 = vector.shape_cast %29 : vector<8xf32> to vector<8x1xf32>
    %31 = vector.broadcast %30 : vector<8x1xf32> to vector<8x8xf32>
    %32 = arith.subf %28, %31 : vector<8x8xf32>
    %33 = math.exp %32 : vector<8x8xf32>
    %cst_21 = arith.constant dense<0.000000e+00> : vector<8xf32>
    %34 = vector.multi_reduction <add>, %33, %cst_21 [1] : vector<8x8xf32> to vector<8xf32>
    %35 = vector.shape_cast %34 : vector<8xf32> to vector<8x1xf32>
    %36 = tpu.reciprocal %35 {approx = true} : vector<8x1xf32> -> vector<8x1xf32>
    %37 = vector.broadcast %36 : vector<8x1xf32> to vector<8x8xf32>
    %38 = arith.mulf %33, %37 : vector<8x8xf32>
    %39 = arith.truncf %38 : vector<8x8xf32> to vector<8x8xbf16>
    %40 = arith.truncf %22 : vector<8x64xf32> to vector<8x64xbf16>
    %cst_22 = arith.constant dense<0.000000e+00> : vector<8x64xf32>
    %41 = tpu.matmul %39, %40, %cst_22 {dimension_numbers = #tpu.dot_dimension_numbers<[1], [0], [0], [1], [0, 0, 1, 1], [], []>} : vector<8x8xbf16>, vector<8x64xbf16>, vector<8x64xf32> -> vector<8x64xf32>
    %42 = vector.extract_strided_slice %19 {offsets = [0, 64], sizes = [8, 64], strides = [1, 1]} : vector<8x768xf32> to vector<8x64xf32>
    %43 = vector.extract_strided_slice %19 {offsets = [0, 320], sizes = [8, 64], strides = [1, 1]} : vector<8x768xf32> to vector<8x64xf32>
    %44 = vector.extract_strided_slice %19 {offsets = [0, 576], sizes = [8, 64], strides = [1, 1]} : vector<8x768xf32> to vector<8x64xf32>
    %45 = arith.truncf %42 : vector<8x64xf32> to vector<8x64xbf16>
    %46 = arith.truncf %43 : vector<8x64xf32> to vector<8x64xbf16>
    %cst_23 = arith.constant dense<0.000000e+00> : vector<8x8xf32>
    %47 = tpu.matmul %45, %46, %cst_23 {dimension_numbers = #tpu.dot_dimension_numbers<[1], [1], [0], [0], [0, 0, 1, 0], [], []>} : vector<8x64xbf16>, vector<8x64xbf16>, vector<8x8xf32> -> vector<8x8xf32>
    %cst_24 = arith.constant 1.250000e-01 : f32
    %48 = vector.broadcast %cst_24 : f32 to vector<8x8xf32>
    %49 = arith.mulf %47, %48 : vector<8x8xf32>
    %50 = arith.addf %49, %11 : vector<8x8xf32>
    %cst_25 = arith.constant dense<0xFF800000> : vector<8xf32>
    %51 = vector.multi_reduction <maximumf>, %50, %cst_25 [1] : vector<8x8xf32> to vector<8xf32>
    %52 = vector.shape_cast %51 : vector<8xf32> to vector<8x1xf32>
    %53 = vector.broadcast %52 : vector<8x1xf32> to vector<8x8xf32>
    %54 = arith.subf %50, %53 : vector<8x8xf32>
    %55 = math.exp %54 : vector<8x8xf32>
    %cst_26 = arith.constant dense<0.000000e+00> : vector<8xf32>
    %56 = vector.multi_reduction <add>, %55, %cst_26 [1] : vector<8x8xf32> to vector<8xf32>
    %57 = vector.shape_cast %56 : vector<8xf32> to vector<8x1xf32>
    %58 = tpu.reciprocal %57 {approx = true} : vector<8x1xf32> -> vector<8x1xf32>
    %59 = vector.broadcast %58 : vector<8x1xf32> to vector<8x8xf32>
    %60 = arith.mulf %55, %59 : vector<8x8xf32>
    %61 = arith.truncf %60 : vector<8x8xf32> to vector<8x8xbf16>
    %62 = arith.truncf %44 : vector<8x64xf32> to vector<8x64xbf16>
    %cst_27 = arith.constant dense<0.000000e+00> : vector<8x64xf32>
    %63 = tpu.matmul %61, %62, %cst_27 {dimension_numbers = #tpu.dot_dimension_numbers<[1], [0], [0], [1], [0, 0, 1, 1], [], []>} : vector<8x8xbf16>, vector<8x64xbf16>, vector<8x64xf32> -> vector<8x64xf32>
    %64 = vector.extract_strided_slice %19 {offsets = [0, 128], sizes = [8, 64], strides = [1, 1]} : vector<8x768xf32> to vector<8x64xf32>
    %65 = vector.extract_strided_slice %19 {offsets = [0, 384], sizes = [8, 64], strides = [1, 1]} : vector<8x768xf32> to vector<8x64xf32>
    %66 = vector.extract_strided_slice %19 {offsets = [0, 640], sizes = [8, 64], strides = [1, 1]} : vector<8x768xf32> to vector<8x64xf32>
    %67 = arith.truncf %64 : vector<8x64xf32> to vector<8x64xbf16>
    %68 = arith.truncf %65 : vector<8x64xf32> to vector<8x64xbf16>
    %cst_28 = arith.constant dense<0.000000e+00> : vector<8x8xf32>
    %69 = tpu.matmul %67, %68, %cst_28 {dimension_numbers = #tpu.dot_dimension_numbers<[1], [1], [0], [0], [0, 0, 1, 0], [], []>} : vector<8x64xbf16>, vector<8x64xbf16>, vector<8x8xf32> -> vector<8x8xf32>
    %cst_29 = arith.constant 1.250000e-01 : f32
    %70 = vector.broadcast %cst_29 : f32 to vector<8x8xf32>
    %71 = arith.mulf %69, %70 : vector<8x8xf32>
    %72 = arith.addf %71, %11 : vector<8x8xf32>
    %cst_30 = arith.constant dense<0xFF800000> : vector<8xf32>
    %73 = vector.multi_reduction <maximumf>, %72, %cst_30 [1] : vector<8x8xf32> to vector<8xf32>
    %74 = vector.shape_cast %73 : vector<8xf32> to vector<8x1xf32>
    %75 = vector.broadcast %74 : vector<8x1xf32> to vector<8x8xf32>
    %76 = arith.subf %72, %75 : vector<8x8xf32>
    %77 = math.exp %76 : vector<8x8xf32>
    %cst_31 = arith.constant dense<0.000000e+00> : vector<8xf32>
    %78 = vector.multi_reduction <add>, %77, %cst_31 [1] : vector<8x8xf32> to vector<8xf32>
    %79 = vector.shape_cast %78 : vector<8xf32> to vector<8x1xf32>
    %80 = tpu.reciprocal %79 {approx = true} : vector<8x1xf32> -> vector<8x1xf32>
    %81 = vector.broadcast %80 : vector<8x1xf32> to vector<8x8xf32>
    %82 = arith.mulf %77, %81 : vector<8x8xf32>
    %83 = arith.truncf %82 : vector<8x8xf32> to vector<8x8xbf16>
    %84 = arith.truncf %66 : vector<8x64xf32> to vector<8x64xbf16>
    %cst_32 = arith.constant dense<0.000000e+00> : vector<8x64xf32>
    %85 = tpu.matmul %83, %84, %cst_32 {dimension_numbers = #tpu.dot_dimension_numbers<[1], [0], [0], [1], [0, 0, 1, 1], [], []>} : vector<8x8xbf16>, vector<8x64xbf16>, vector<8x64xf32> -> vector<8x64xf32>
    %86 = vector.extract_strided_slice %19 {offsets = [0, 192], sizes = [8, 64], strides = [1, 1]} : vector<8x768xf32> to vector<8x64xf32>
    %87 = vector.extract_strided_slice %19 {offsets = [0, 448], sizes = [8, 64], strides = [1, 1]} : vector<8x768xf32> to vector<8x64xf32>
    %88 = vector.extract_strided_slice %19 {offsets = [0, 704], sizes = [8, 64], strides = [1, 1]} : vector<8x768xf32> to vector<8x64xf32>
    %89 = arith.truncf %86 : vector<8x64xf32> to vector<8x64xbf16>
    %90 = arith.truncf %87 : vector<8x64xf32> to vector<8x64xbf16>
    %cst_33 = arith.constant dense<0.000000e+00> : vector<8x8xf32>
    %91 = tpu.matmul %89, %90, %cst_33 {dimension_numbers = #tpu.dot_dimension_numbers<[1], [1], [0], [0], [0, 0, 1, 0], [], []>} : vector<8x64xbf16>, vector<8x64xbf16>, vector<8x8xf32> -> vector<8x8xf32>
    %cst_34 = arith.constant 1.250000e-01 : f32
    %92 = vector.broadcast %cst_34 : f32 to vector<8x8xf32>
    %93 = arith.mulf %91, %92 : vector<8x8xf32>
    %94 = arith.addf %93, %11 : vector<8x8xf32>
    %cst_35 = arith.constant dense<0xFF800000> : vector<8xf32>
    %95 = vector.multi_reduction <maximumf>, %94, %cst_35 [1] : vector<8x8xf32> to vector<8xf32>
    %96 = vector.shape_cast %95 : vector<8xf32> to vector<8x1xf32>
    %97 = vector.broadcast %96 : vector<8x1xf32> to vector<8x8xf32>
    %98 = arith.subf %94, %97 : vector<8x8xf32>
    %99 = math.exp %98 : vector<8x8xf32>
    %cst_36 = arith.constant dense<0.000000e+00> : vector<8xf32>
    %100 = vector.multi_reduction <add>, %99, %cst_36 [1] : vector<8x8xf32> to vector<8xf32>
    %101 = vector.shape_cast %100 : vector<8xf32> to vector<8x1xf32>
    %102 = tpu.reciprocal %101 {approx = true} : vector<8x1xf32> -> vector<8x1xf32>
    %103 = vector.broadcast %102 : vector<8x1xf32> to vector<8x8xf32>
    %104 = arith.mulf %99, %103 : vector<8x8xf32>
    %105 = arith.truncf %104 : vector<8x8xf32> to vector<8x8xbf16>
    %106 = arith.truncf %88 : vector<8x64xf32> to vector<8x64xbf16>
    %cst_37 = arith.constant dense<0.000000e+00> : vector<8x64xf32>
    %107 = tpu.matmul %105, %106, %cst_37 {dimension_numbers = #tpu.dot_dimension_numbers<[1], [0], [0], [1], [0, 0, 1, 1], [], []>} : vector<8x8xbf16>, vector<8x64xbf16>, vector<8x64xf32> -> vector<8x64xf32>
    %108 = tpu.concatenate %41, %63, %85, %107 in 1 : vector<8x64xf32>, vector<8x64xf32>, vector<8x64xf32>, vector<8x64xf32> -> vector<8x256xf32>
    %c0_38 = arith.constant 0 : index
    %c0_39 = arith.constant 0 : index
    %c0_40 = arith.constant 0 : index
    %109 = vector.load %arg8[%c0_38, %c0_39, %c0_40] : memref<3x256x256xbf16, #tpu.memory_space<vmem>>, vector<1x256x256xbf16>
    %110 = vector.shape_cast %109 : vector<1x256x256xbf16> to vector<256x256xbf16>
    %111 = arith.truncf %108 : vector<8x256xf32> to vector<8x256xbf16>
    %cst_41 = arith.constant dense<0.000000e+00> : vector<8x256xf32>
    %112 = tpu.matmul %111, %110, %cst_41 {dimension_numbers = #tpu.dot_dimension_numbers<[1], [0], [0], [1], [0, 0, 1, 1], [], []>} : vector<8x256xbf16>, vector<256x256xbf16>, vector<8x256xf32> -> vector<8x256xf32>
    %c0_42 = arith.constant 0 : index
    %c0_43 = arith.constant 0 : index
    %c0_44 = arith.constant 0 : index
    %113 = vector.load %arg9[%c0_42, %c0_43, %c0_44] : memref<3x1x256xf32, #tpu.memory_space<vmem>>, vector<1x1x256xf32>
    %114 = vector.shape_cast %113 : vector<1x1x256xf32> to vector<1x256xf32>
    %115 = vector.broadcast %114 : vector<1x256xf32> to vector<8x256xf32>
    %116 = arith.addf %112, %115 : vector<8x256xf32>
    %117 = arith.addf %10, %116 : vector<8x256xf32>
    %c0_45 = arith.constant 0 : index
    %c0_46 = arith.constant 0 : index
    %c0_47 = arith.constant 0 : index
    %118 = vector.load %arg10[%c0_45, %c0_46, %c0_47] : memref<3x1x256xf32, #tpu.memory_space<vmem>>, vector<1x1x256xf32>
    %119 = vector.shape_cast %118 : vector<1x1x256xf32> to vector<1x256xf32>
    %c0_48 = arith.constant 0 : index
    %c0_49 = arith.constant 0 : index
    %c0_50 = arith.constant 0 : index
    %120 = vector.load %arg11[%c0_48, %c0_49, %c0_50] : memref<3x1x256xf32, #tpu.memory_space<vmem>>, vector<1x1x256xf32>
    %121 = vector.shape_cast %120 : vector<1x1x256xf32> to vector<1x256xf32>
    %cst_51 = arith.constant dense<0.000000e+00> : vector<8xf32>
    %122 = vector.multi_reduction <add>, %117, %cst_51 [1] : vector<8x256xf32> to vector<8xf32>
    %123 = vector.shape_cast %122 : vector<8xf32> to vector<8x1xf32>
    %cst_52 = arith.constant 2.560000e+02 : f32
    %124 = vector.broadcast %cst_52 : f32 to vector<8x1xf32>
    %125 = arith.divf %123, %124 : vector<8x1xf32>
    %126 = vector.broadcast %125 : vector<8x1xf32> to vector<8x256xf32>
    %127 = arith.subf %117, %126 : vector<8x256xf32>
    %128 = arith.mulf %127, %127 : vector<8x256xf32>
    %cst_53 = arith.constant dense<0.000000e+00> : vector<8xf32>
    %129 = vector.multi_reduction <add>, %128, %cst_53 [1] : vector<8x256xf32> to vector<8xf32>
    %130 = vector.shape_cast %129 : vector<8xf32> to vector<8x1xf32>
    %cst_54 = arith.constant 2.560000e+02 : f32
    %131 = vector.broadcast %cst_54 : f32 to vector<8x1xf32>
    %132 = arith.divf %130, %131 : vector<8x1xf32>
    %133 = vector.broadcast %125 : vector<8x1xf32> to vector<8x256xf32>
    %134 = arith.subf %117, %133 : vector<8x256xf32>
    %cst_55 = arith.constant 9.99999974E-6 : f32
    %135 = vector.broadcast %cst_55 : f32 to vector<8x1xf32>
    %136 = arith.addf %132, %135 : vector<8x1xf32>
    %137 = math.rsqrt %136 : vector<8x1xf32>
    %138 = vector.broadcast %137 : vector<8x1xf32> to vector<8x256xf32>
    %139 = arith.mulf %134, %138 : vector<8x256xf32>
    %140 = vector.broadcast %119 : vector<1x256xf32> to vector<8x256xf32>
    %141 = arith.mulf %139, %140 : vector<8x256xf32>
    %142 = vector.broadcast %121 : vector<1x256xf32> to vector<8x256xf32>
    %143 = arith.addf %141, %142 : vector<8x256xf32>
    %c0_56 = arith.constant 0 : index
    %c0_57 = arith.constant 0 : index
    %c0_58 = arith.constant 0 : index
    %144 = vector.load %arg12[%c0_56, %c0_57, %c0_58] : memref<3x256x512xbf16, #tpu.memory_space<vmem>>, vector<1x256x512xbf16>
    %145 = vector.shape_cast %144 : vector<1x256x512xbf16> to vector<256x512xbf16>
    %146 = arith.truncf %143 : vector<8x256xf32> to vector<8x256xbf16>
    %cst_59 = arith.constant dense<0.000000e+00> : vector<8x512xf32>
    %147 = tpu.matmul %146, %145, %cst_59 {dimension_numbers = #tpu.dot_dimension_numbers<[1], [0], [0], [1], [0, 0, 1, 1], [], []>} : vector<8x256xbf16>, vector<256x512xbf16>, vector<8x512xf32> -> vector<8x512xf32>
    %c0_60 = arith.constant 0 : index
    %c0_61 = arith.constant 0 : index
    %c0_62 = arith.constant 0 : index
    %148 = vector.load %arg13[%c0_60, %c0_61, %c0_62] : memref<3x1x512xf32, #tpu.memory_space<vmem>>, vector<1x1x512xf32>
    %149 = vector.shape_cast %148 : vector<1x1x512xf32> to vector<1x512xf32>
    %150 = vector.broadcast %149 : vector<1x512xf32> to vector<8x512xf32>
    %151 = arith.addf %147, %150 : vector<8x512xf32>
    %cst_63 = arith.constant 0.000000e+00 : f32
    %152 = vector.broadcast %cst_63 : f32 to vector<8x512xf32>
    %153 = arith.maximumf %151, %152 : vector<8x512xf32>
    %c0_64 = arith.constant 0 : index
    %c0_65 = arith.constant 0 : index
    %c0_66 = arith.constant 0 : index
    %154 = vector.load %arg14[%c0_64, %c0_65, %c0_66] : memref<3x512x256xbf16, #tpu.memory_space<vmem>>, vector<1x512x256xbf16>
    %155 = vector.shape_cast %154 : vector<1x512x256xbf16> to vector<512x256xbf16>
    %156 = arith.truncf %153 : vector<8x512xf32> to vector<8x512xbf16>
    %cst_67 = arith.constant dense<0.000000e+00> : vector<8x256xf32>
    %157 = tpu.matmul %156, %155, %cst_67 {dimension_numbers = #tpu.dot_dimension_numbers<[1], [0], [0], [1], [0, 0, 1, 1], [], []>} : vector<8x512xbf16>, vector<512x256xbf16>, vector<8x256xf32> -> vector<8x256xf32>
    %c0_68 = arith.constant 0 : index
    %c0_69 = arith.constant 0 : index
    %c0_70 = arith.constant 0 : index
    %158 = vector.load %arg15[%c0_68, %c0_69, %c0_70] : memref<3x1x256xf32, #tpu.memory_space<vmem>>, vector<1x1x256xf32>
    %159 = vector.shape_cast %158 : vector<1x1x256xf32> to vector<1x256xf32>
    %160 = vector.broadcast %159 : vector<1x256xf32> to vector<8x256xf32>
    %161 = arith.addf %157, %160 : vector<8x256xf32>
    %162 = arith.addf %143, %161 : vector<8x256xf32>
    %c0_71 = arith.constant 0 : index
    %c0_72 = arith.constant 0 : index
    %c0_73 = arith.constant 0 : index
    %163 = vector.load %arg16[%c0_71, %c0_72, %c0_73] : memref<3x1x256xf32, #tpu.memory_space<vmem>>, vector<1x1x256xf32>
    %164 = vector.shape_cast %163 : vector<1x1x256xf32> to vector<1x256xf32>
    %c0_74 = arith.constant 0 : index
    %c0_75 = arith.constant 0 : index
    %c0_76 = arith.constant 0 : index
    %165 = vector.load %arg17[%c0_74, %c0_75, %c0_76] : memref<3x1x256xf32, #tpu.memory_space<vmem>>, vector<1x1x256xf32>
    %166 = vector.shape_cast %165 : vector<1x1x256xf32> to vector<1x256xf32>
    %cst_77 = arith.constant dense<0.000000e+00> : vector<8xf32>
    %167 = vector.multi_reduction <add>, %162, %cst_77 [1] : vector<8x256xf32> to vector<8xf32>
    %168 = vector.shape_cast %167 : vector<8xf32> to vector<8x1xf32>
    %cst_78 = arith.constant 2.560000e+02 : f32
    %169 = vector.broadcast %cst_78 : f32 to vector<8x1xf32>
    %170 = arith.divf %168, %169 : vector<8x1xf32>
    %171 = vector.broadcast %170 : vector<8x1xf32> to vector<8x256xf32>
    %172 = arith.subf %162, %171 : vector<8x256xf32>
    %173 = arith.mulf %172, %172 : vector<8x256xf32>
    %cst_79 = arith.constant dense<0.000000e+00> : vector<8xf32>
    %174 = vector.multi_reduction <add>, %173, %cst_79 [1] : vector<8x256xf32> to vector<8xf32>
    %175 = vector.shape_cast %174 : vector<8xf32> to vector<8x1xf32>
    %cst_80 = arith.constant 2.560000e+02 : f32
    %176 = vector.broadcast %cst_80 : f32 to vector<8x1xf32>
    %177 = arith.divf %175, %176 : vector<8x1xf32>
    %178 = vector.broadcast %170 : vector<8x1xf32> to vector<8x256xf32>
    %179 = arith.subf %162, %178 : vector<8x256xf32>
    %cst_81 = arith.constant 9.99999974E-6 : f32
    %180 = vector.broadcast %cst_81 : f32 to vector<8x1xf32>
    %181 = arith.addf %177, %180 : vector<8x1xf32>
    %182 = math.rsqrt %181 : vector<8x1xf32>
    %183 = vector.broadcast %182 : vector<8x1xf32> to vector<8x256xf32>
    %184 = arith.mulf %179, %183 : vector<8x256xf32>
    %185 = vector.broadcast %164 : vector<1x256xf32> to vector<8x256xf32>
    %186 = arith.mulf %184, %185 : vector<8x256xf32>
    %187 = vector.broadcast %166 : vector<1x256xf32> to vector<8x256xf32>
    %188 = arith.addf %186, %187 : vector<8x256xf32>
    %c1 = arith.constant 1 : index
    %c0_82 = arith.constant 0 : index
    %c0_83 = arith.constant 0 : index
    %189 = vector.load %arg6[%c1, %c0_82, %c0_83] : memref<3x256x768xbf16, #tpu.memory_space<vmem>>, vector<1x256x768xbf16>
    %190 = vector.shape_cast %189 : vector<1x256x768xbf16> to vector<256x768xbf16>
    %191 = arith.truncf %188 : vector<8x256xf32> to vector<8x256xbf16>
    %cst_84 = arith.constant dense<0.000000e+00> : vector<8x768xf32>
    %192 = tpu.matmul %191, %190, %cst_84 {dimension_numbers = #tpu.dot_dimension_numbers<[1], [0], [0], [1], [0, 0, 1, 1], [], []>} : vector<8x256xbf16>, vector<256x768xbf16>, vector<8x768xf32> -> vector<8x768xf32>
    %c1_85 = arith.constant 1 : index
    %c0_86 = arith.constant 0 : index
    %c0_87 = arith.constant 0 : index
    %193 = vector.load %arg7[%c1_85, %c0_86, %c0_87] : memref<3x1x768xf32, #tpu.memory_space<vmem>>, vector<1x1x768xf32>
    %194 = vector.shape_cast %193 : vector<1x1x768xf32> to vector<1x768xf32>
    %195 = vector.broadcast %194 : vector<1x768xf32> to vector<8x768xf32>
    %196 = arith.addf %192, %195 : vector<8x768xf32>
    %197 = vector.extract_strided_slice %196 {offsets = [0, 0], sizes = [8, 64], strides = [1, 1]} : vector<8x768xf32> to vector<8x64xf32>
    %198 = vector.extract_strided_slice %196 {offsets = [0, 256], sizes = [8, 64], strides = [1, 1]} : vector<8x768xf32> to vector<8x64xf32>
    %199 = vector.extract_strided_slice %196 {offsets = [0, 512], sizes = [8, 64], strides = [1, 1]} : vector<8x768xf32> to vector<8x64xf32>
    %200 = arith.truncf %197 : vector<8x64xf32> to vector<8x64xbf16>
    %201 = arith.truncf %198 : vector<8x64xf32> to vector<8x64xbf16>
    %cst_88 = arith.constant dense<0.000000e+00> : vector<8x8xf32>
    %202 = tpu.matmul %200, %201, %cst_88 {dimension_numbers = #tpu.dot_dimension_numbers<[1], [1], [0], [0], [0, 0, 1, 0], [], []>} : vector<8x64xbf16>, vector<8x64xbf16>, vector<8x8xf32> -> vector<8x8xf32>
    %cst_89 = arith.constant 1.250000e-01 : f32
    %203 = vector.broadcast %cst_89 : f32 to vector<8x8xf32>
    %204 = arith.mulf %202, %203 : vector<8x8xf32>
    %205 = arith.addf %204, %11 : vector<8x8xf32>
    %cst_90 = arith.constant dense<0xFF800000> : vector<8xf32>
    %206 = vector.multi_reduction <maximumf>, %205, %cst_90 [1] : vector<8x8xf32> to vector<8xf32>
    %207 = vector.shape_cast %206 : vector<8xf32> to vector<8x1xf32>
    %208 = vector.broadcast %207 : vector<8x1xf32> to vector<8x8xf32>
    %209 = arith.subf %205, %208 : vector<8x8xf32>
    %210 = math.exp %209 : vector<8x8xf32>
    %cst_91 = arith.constant dense<0.000000e+00> : vector<8xf32>
    %211 = vector.multi_reduction <add>, %210, %cst_91 [1] : vector<8x8xf32> to vector<8xf32>
    %212 = vector.shape_cast %211 : vector<8xf32> to vector<8x1xf32>
    %213 = tpu.reciprocal %212 {approx = true} : vector<8x1xf32> -> vector<8x1xf32>
    %214 = vector.broadcast %213 : vector<8x1xf32> to vector<8x8xf32>
    %215 = arith.mulf %210, %214 : vector<8x8xf32>
    %216 = arith.truncf %215 : vector<8x8xf32> to vector<8x8xbf16>
    %217 = arith.truncf %199 : vector<8x64xf32> to vector<8x64xbf16>
    %cst_92 = arith.constant dense<0.000000e+00> : vector<8x64xf32>
    %218 = tpu.matmul %216, %217, %cst_92 {dimension_numbers = #tpu.dot_dimension_numbers<[1], [0], [0], [1], [0, 0, 1, 1], [], []>} : vector<8x8xbf16>, vector<8x64xbf16>, vector<8x64xf32> -> vector<8x64xf32>
    %219 = vector.extract_strided_slice %196 {offsets = [0, 64], sizes = [8, 64], strides = [1, 1]} : vector<8x768xf32> to vector<8x64xf32>
    %220 = vector.extract_strided_slice %196 {offsets = [0, 320], sizes = [8, 64], strides = [1, 1]} : vector<8x768xf32> to vector<8x64xf32>
    %221 = vector.extract_strided_slice %196 {offsets = [0, 576], sizes = [8, 64], strides = [1, 1]} : vector<8x768xf32> to vector<8x64xf32>
    %222 = arith.truncf %219 : vector<8x64xf32> to vector<8x64xbf16>
    %223 = arith.truncf %220 : vector<8x64xf32> to vector<8x64xbf16>
    %cst_93 = arith.constant dense<0.000000e+00> : vector<8x8xf32>
    %224 = tpu.matmul %222, %223, %cst_93 {dimension_numbers = #tpu.dot_dimension_numbers<[1], [1], [0], [0], [0, 0, 1, 0], [], []>} : vector<8x64xbf16>, vector<8x64xbf16>, vector<8x8xf32> -> vector<8x8xf32>
    %cst_94 = arith.constant 1.250000e-01 : f32
    %225 = vector.broadcast %cst_94 : f32 to vector<8x8xf32>
    %226 = arith.mulf %224, %225 : vector<8x8xf32>
    %227 = arith.addf %226, %11 : vector<8x8xf32>
    %cst_95 = arith.constant dense<0xFF800000> : vector<8xf32>
    %228 = vector.multi_reduction <maximumf>, %227, %cst_95 [1] : vector<8x8xf32> to vector<8xf32>
    %229 = vector.shape_cast %228 : vector<8xf32> to vector<8x1xf32>
    %230 = vector.broadcast %229 : vector<8x1xf32> to vector<8x8xf32>
    %231 = arith.subf %227, %230 : vector<8x8xf32>
    %232 = math.exp %231 : vector<8x8xf32>
    %cst_96 = arith.constant dense<0.000000e+00> : vector<8xf32>
    %233 = vector.multi_reduction <add>, %232, %cst_96 [1] : vector<8x8xf32> to vector<8xf32>
    %234 = vector.shape_cast %233 : vector<8xf32> to vector<8x1xf32>
    %235 = tpu.reciprocal %234 {approx = true} : vector<8x1xf32> -> vector<8x1xf32>
    %236 = vector.broadcast %235 : vector<8x1xf32> to vector<8x8xf32>
    %237 = arith.mulf %232, %236 : vector<8x8xf32>
    %238 = arith.truncf %237 : vector<8x8xf32> to vector<8x8xbf16>
    %239 = arith.truncf %221 : vector<8x64xf32> to vector<8x64xbf16>
    %cst_97 = arith.constant dense<0.000000e+00> : vector<8x64xf32>
    %240 = tpu.matmul %238, %239, %cst_97 {dimension_numbers = #tpu.dot_dimension_numbers<[1], [0], [0], [1], [0, 0, 1, 1], [], []>} : vector<8x8xbf16>, vector<8x64xbf16>, vector<8x64xf32> -> vector<8x64xf32>
    %241 = vector.extract_strided_slice %196 {offsets = [0, 128], sizes = [8, 64], strides = [1, 1]} : vector<8x768xf32> to vector<8x64xf32>
    %242 = vector.extract_strided_slice %196 {offsets = [0, 384], sizes = [8, 64], strides = [1, 1]} : vector<8x768xf32> to vector<8x64xf32>
    %243 = vector.extract_strided_slice %196 {offsets = [0, 640], sizes = [8, 64], strides = [1, 1]} : vector<8x768xf32> to vector<8x64xf32>
    %244 = arith.truncf %241 : vector<8x64xf32> to vector<8x64xbf16>
    %245 = arith.truncf %242 : vector<8x64xf32> to vector<8x64xbf16>
    %cst_98 = arith.constant dense<0.000000e+00> : vector<8x8xf32>
    %246 = tpu.matmul %244, %245, %cst_98 {dimension_numbers = #tpu.dot_dimension_numbers<[1], [1], [0], [0], [0, 0, 1, 0], [], []>} : vector<8x64xbf16>, vector<8x64xbf16>, vector<8x8xf32> -> vector<8x8xf32>
    %cst_99 = arith.constant 1.250000e-01 : f32
    %247 = vector.broadcast %cst_99 : f32 to vector<8x8xf32>
    %248 = arith.mulf %246, %247 : vector<8x8xf32>
    %249 = arith.addf %248, %11 : vector<8x8xf32>
    %cst_100 = arith.constant dense<0xFF800000> : vector<8xf32>
    %250 = vector.multi_reduction <maximumf>, %249, %cst_100 [1] : vector<8x8xf32> to vector<8xf32>
    %251 = vector.shape_cast %250 : vector<8xf32> to vector<8x1xf32>
    %252 = vector.broadcast %251 : vector<8x1xf32> to vector<8x8xf32>
    %253 = arith.subf %249, %252 : vector<8x8xf32>
    %254 = math.exp %253 : vector<8x8xf32>
    %cst_101 = arith.constant dense<0.000000e+00> : vector<8xf32>
    %255 = vector.multi_reduction <add>, %254, %cst_101 [1] : vector<8x8xf32> to vector<8xf32>
    %256 = vector.shape_cast %255 : vector<8xf32> to vector<8x1xf32>
    %257 = tpu.reciprocal %256 {approx = true} : vector<8x1xf32> -> vector<8x1xf32>
    %258 = vector.broadcast %257 : vector<8x1xf32> to vector<8x8xf32>
    %259 = arith.mulf %254, %258 : vector<8x8xf32>
    %260 = arith.truncf %259 : vector<8x8xf32> to vector<8x8xbf16>
    %261 = arith.truncf %243 : vector<8x64xf32> to vector<8x64xbf16>
    %cst_102 = arith.constant dense<0.000000e+00> : vector<8x64xf32>
    %262 = tpu.matmul %260, %261, %cst_102 {dimension_numbers = #tpu.dot_dimension_numbers<[1], [0], [0], [1], [0, 0, 1, 1], [], []>} : vector<8x8xbf16>, vector<8x64xbf16>, vector<8x64xf32> -> vector<8x64xf32>
    %263 = vector.extract_strided_slice %196 {offsets = [0, 192], sizes = [8, 64], strides = [1, 1]} : vector<8x768xf32> to vector<8x64xf32>
    %264 = vector.extract_strided_slice %196 {offsets = [0, 448], sizes = [8, 64], strides = [1, 1]} : vector<8x768xf32> to vector<8x64xf32>
    %265 = vector.extract_strided_slice %196 {offsets = [0, 704], sizes = [8, 64], strides = [1, 1]} : vector<8x768xf32> to vector<8x64xf32>
    %266 = arith.truncf %263 : vector<8x64xf32> to vector<8x64xbf16>
    %267 = arith.truncf %264 : vector<8x64xf32> to vector<8x64xbf16>
    %cst_103 = arith.constant dense<0.000000e+00> : vector<8x8xf32>
    %268 = tpu.matmul %266, %267, %cst_103 {dimension_numbers = #tpu.dot_dimension_numbers<[1], [1], [0], [0], [0, 0, 1, 0], [], []>} : vector<8x64xbf16>, vector<8x64xbf16>, vector<8x8xf32> -> vector<8x8xf32>
    %cst_104 = arith.constant 1.250000e-01 : f32
    %269 = vector.broadcast %cst_104 : f32 to vector<8x8xf32>
    %270 = arith.mulf %268, %269 : vector<8x8xf32>
    %271 = arith.addf %270, %11 : vector<8x8xf32>
    %cst_105 = arith.constant dense<0xFF800000> : vector<8xf32>
    %272 = vector.multi_reduction <maximumf>, %271, %cst_105 [1] : vector<8x8xf32> to vector<8xf32>
    %273 = vector.shape_cast %272 : vector<8xf32> to vector<8x1xf32>
    %274 = vector.broadcast %273 : vector<8x1xf32> to vector<8x8xf32>
    %275 = arith.subf %271, %274 : vector<8x8xf32>
    %276 = math.exp %275 : vector<8x8xf32>
    %cst_106 = arith.constant dense<0.000000e+00> : vector<8xf32>
    %277 = vector.multi_reduction <add>, %276, %cst_106 [1] : vector<8x8xf32> to vector<8xf32>
    %278 = vector.shape_cast %277 : vector<8xf32> to vector<8x1xf32>
    %279 = tpu.reciprocal %278 {approx = true} : vector<8x1xf32> -> vector<8x1xf32>
    %280 = vector.broadcast %279 : vector<8x1xf32> to vector<8x8xf32>
    %281 = arith.mulf %276, %280 : vector<8x8xf32>
    %282 = arith.truncf %281 : vector<8x8xf32> to vector<8x8xbf16>
    %283 = arith.truncf %265 : vector<8x64xf32> to vector<8x64xbf16>
    %cst_107 = arith.constant dense<0.000000e+00> : vector<8x64xf32>
    %284 = tpu.matmul %282, %283, %cst_107 {dimension_numbers = #tpu.dot_dimension_numbers<[1], [0], [0], [1], [0, 0, 1, 1], [], []>} : vector<8x8xbf16>, vector<8x64xbf16>, vector<8x64xf32> -> vector<8x64xf32>
    %285 = tpu.concatenate %218, %240, %262, %284 in 1 : vector<8x64xf32>, vector<8x64xf32>, vector<8x64xf32>, vector<8x64xf32> -> vector<8x256xf32>
    %c1_108 = arith.constant 1 : index
    %c0_109 = arith.constant 0 : index
    %c0_110 = arith.constant 0 : index
    %286 = vector.load %arg8[%c1_108, %c0_109, %c0_110] : memref<3x256x256xbf16, #tpu.memory_space<vmem>>, vector<1x256x256xbf16>
    %287 = vector.shape_cast %286 : vector<1x256x256xbf16> to vector<256x256xbf16>
    %288 = arith.truncf %285 : vector<8x256xf32> to vector<8x256xbf16>
    %cst_111 = arith.constant dense<0.000000e+00> : vector<8x256xf32>
    %289 = tpu.matmul %288, %287, %cst_111 {dimension_numbers = #tpu.dot_dimension_numbers<[1], [0], [0], [1], [0, 0, 1, 1], [], []>} : vector<8x256xbf16>, vector<256x256xbf16>, vector<8x256xf32> -> vector<8x256xf32>
    %c1_112 = arith.constant 1 : index
    %c0_113 = arith.constant 0 : index
    %c0_114 = arith.constant 0 : index
    %290 = vector.load %arg9[%c1_112, %c0_113, %c0_114] : memref<3x1x256xf32, #tpu.memory_space<vmem>>, vector<1x1x256xf32>
    %291 = vector.shape_cast %290 : vector<1x1x256xf32> to vector<1x256xf32>
    %292 = vector.broadcast %291 : vector<1x256xf32> to vector<8x256xf32>
    %293 = arith.addf %289, %292 : vector<8x256xf32>
    %294 = arith.addf %188, %293 : vector<8x256xf32>
    %c1_115 = arith.constant 1 : index
    %c0_116 = arith.constant 0 : index
    %c0_117 = arith.constant 0 : index
    %295 = vector.load %arg10[%c1_115, %c0_116, %c0_117] : memref<3x1x256xf32, #tpu.memory_space<vmem>>, vector<1x1x256xf32>
    %296 = vector.shape_cast %295 : vector<1x1x256xf32> to vector<1x256xf32>
    %c1_118 = arith.constant 1 : index
    %c0_119 = arith.constant 0 : index
    %c0_120 = arith.constant 0 : index
    %297 = vector.load %arg11[%c1_118, %c0_119, %c0_120] : memref<3x1x256xf32, #tpu.memory_space<vmem>>, vector<1x1x256xf32>
    %298 = vector.shape_cast %297 : vector<1x1x256xf32> to vector<1x256xf32>
    %cst_121 = arith.constant dense<0.000000e+00> : vector<8xf32>
    %299 = vector.multi_reduction <add>, %294, %cst_121 [1] : vector<8x256xf32> to vector<8xf32>
    %300 = vector.shape_cast %299 : vector<8xf32> to vector<8x1xf32>
    %cst_122 = arith.constant 2.560000e+02 : f32
    %301 = vector.broadcast %cst_122 : f32 to vector<8x1xf32>
    %302 = arith.divf %300, %301 : vector<8x1xf32>
    %303 = vector.broadcast %302 : vector<8x1xf32> to vector<8x256xf32>
    %304 = arith.subf %294, %303 : vector<8x256xf32>
    %305 = arith.mulf %304, %304 : vector<8x256xf32>
    %cst_123 = arith.constant dense<0.000000e+00> : vector<8xf32>
    %306 = vector.multi_reduction <add>, %305, %cst_123 [1] : vector<8x256xf32> to vector<8xf32>
    %307 = vector.shape_cast %306 : vector<8xf32> to vector<8x1xf32>
    %cst_124 = arith.constant 2.560000e+02 : f32
    %308 = vector.broadcast %cst_124 : f32 to vector<8x1xf32>
    %309 = arith.divf %307, %308 : vector<8x1xf32>
    %310 = vector.broadcast %302 : vector<8x1xf32> to vector<8x256xf32>
    %311 = arith.subf %294, %310 : vector<8x256xf32>
    %cst_125 = arith.constant 9.99999974E-6 : f32
    %312 = vector.broadcast %cst_125 : f32 to vector<8x1xf32>
    %313 = arith.addf %309, %312 : vector<8x1xf32>
    %314 = math.rsqrt %313 : vector<8x1xf32>
    %315 = vector.broadcast %314 : vector<8x1xf32> to vector<8x256xf32>
    %316 = arith.mulf %311, %315 : vector<8x256xf32>
    %317 = vector.broadcast %296 : vector<1x256xf32> to vector<8x256xf32>
    %318 = arith.mulf %316, %317 : vector<8x256xf32>
    %319 = vector.broadcast %298 : vector<1x256xf32> to vector<8x256xf32>
    %320 = arith.addf %318, %319 : vector<8x256xf32>
    %c1_126 = arith.constant 1 : index
    %c0_127 = arith.constant 0 : index
    %c0_128 = arith.constant 0 : index
    %321 = vector.load %arg12[%c1_126, %c0_127, %c0_128] : memref<3x256x512xbf16, #tpu.memory_space<vmem>>, vector<1x256x512xbf16>
    %322 = vector.shape_cast %321 : vector<1x256x512xbf16> to vector<256x512xbf16>
    %323 = arith.truncf %320 : vector<8x256xf32> to vector<8x256xbf16>
    %cst_129 = arith.constant dense<0.000000e+00> : vector<8x512xf32>
    %324 = tpu.matmul %323, %322, %cst_129 {dimension_numbers = #tpu.dot_dimension_numbers<[1], [0], [0], [1], [0, 0, 1, 1], [], []>} : vector<8x256xbf16>, vector<256x512xbf16>, vector<8x512xf32> -> vector<8x512xf32>
    %c1_130 = arith.constant 1 : index
    %c0_131 = arith.constant 0 : index
    %c0_132 = arith.constant 0 : index
    %325 = vector.load %arg13[%c1_130, %c0_131, %c0_132] : memref<3x1x512xf32, #tpu.memory_space<vmem>>, vector<1x1x512xf32>
    %326 = vector.shape_cast %325 : vector<1x1x512xf32> to vector<1x512xf32>
    %327 = vector.broadcast %326 : vector<1x512xf32> to vector<8x512xf32>
    %328 = arith.addf %324, %327 : vector<8x512xf32>
    %cst_133 = arith.constant 0.000000e+00 : f32
    %329 = vector.broadcast %cst_133 : f32 to vector<8x512xf32>
    %330 = arith.maximumf %328, %329 : vector<8x512xf32>
    %c1_134 = arith.constant 1 : index
    %c0_135 = arith.constant 0 : index
    %c0_136 = arith.constant 0 : index
    %331 = vector.load %arg14[%c1_134, %c0_135, %c0_136] : memref<3x512x256xbf16, #tpu.memory_space<vmem>>, vector<1x512x256xbf16>
    %332 = vector.shape_cast %331 : vector<1x512x256xbf16> to vector<512x256xbf16>
    %333 = arith.truncf %330 : vector<8x512xf32> to vector<8x512xbf16>
    %cst_137 = arith.constant dense<0.000000e+00> : vector<8x256xf32>
    %334 = tpu.matmul %333, %332, %cst_137 {dimension_numbers = #tpu.dot_dimension_numbers<[1], [0], [0], [1], [0, 0, 1, 1], [], []>} : vector<8x512xbf16>, vector<512x256xbf16>, vector<8x256xf32> -> vector<8x256xf32>
    %c1_138 = arith.constant 1 : index
    %c0_139 = arith.constant 0 : index
    %c0_140 = arith.constant 0 : index
    %335 = vector.load %arg15[%c1_138, %c0_139, %c0_140] : memref<3x1x256xf32, #tpu.memory_space<vmem>>, vector<1x1x256xf32>
    %336 = vector.shape_cast %335 : vector<1x1x256xf32> to vector<1x256xf32>
    %337 = vector.broadcast %336 : vector<1x256xf32> to vector<8x256xf32>
    %338 = arith.addf %334, %337 : vector<8x256xf32>
    %339 = arith.addf %320, %338 : vector<8x256xf32>
    %c1_141 = arith.constant 1 : index
    %c0_142 = arith.constant 0 : index
    %c0_143 = arith.constant 0 : index
    %340 = vector.load %arg16[%c1_141, %c0_142, %c0_143] : memref<3x1x256xf32, #tpu.memory_space<vmem>>, vector<1x1x256xf32>
    %341 = vector.shape_cast %340 : vector<1x1x256xf32> to vector<1x256xf32>
    %c1_144 = arith.constant 1 : index
    %c0_145 = arith.constant 0 : index
    %c0_146 = arith.constant 0 : index
    %342 = vector.load %arg17[%c1_144, %c0_145, %c0_146] : memref<3x1x256xf32, #tpu.memory_space<vmem>>, vector<1x1x256xf32>
    %343 = vector.shape_cast %342 : vector<1x1x256xf32> to vector<1x256xf32>
    %cst_147 = arith.constant dense<0.000000e+00> : vector<8xf32>
    %344 = vector.multi_reduction <add>, %339, %cst_147 [1] : vector<8x256xf32> to vector<8xf32>
    %345 = vector.shape_cast %344 : vector<8xf32> to vector<8x1xf32>
    %cst_148 = arith.constant 2.560000e+02 : f32
    %346 = vector.broadcast %cst_148 : f32 to vector<8x1xf32>
    %347 = arith.divf %345, %346 : vector<8x1xf32>
    %348 = vector.broadcast %347 : vector<8x1xf32> to vector<8x256xf32>
    %349 = arith.subf %339, %348 : vector<8x256xf32>
    %350 = arith.mulf %349, %349 : vector<8x256xf32>
    %cst_149 = arith.constant dense<0.000000e+00> : vector<8xf32>
    %351 = vector.multi_reduction <add>, %350, %cst_149 [1] : vector<8x256xf32> to vector<8xf32>
    %352 = vector.shape_cast %351 : vector<8xf32> to vector<8x1xf32>
    %cst_150 = arith.constant 2.560000e+02 : f32
    %353 = vector.broadcast %cst_150 : f32 to vector<8x1xf32>
    %354 = arith.divf %352, %353 : vector<8x1xf32>
    %355 = vector.broadcast %347 : vector<8x1xf32> to vector<8x256xf32>
    %356 = arith.subf %339, %355 : vector<8x256xf32>
    %cst_151 = arith.constant 9.99999974E-6 : f32
    %357 = vector.broadcast %cst_151 : f32 to vector<8x1xf32>
    %358 = arith.addf %354, %357 : vector<8x1xf32>
    %359 = math.rsqrt %358 : vector<8x1xf32>
    %360 = vector.broadcast %359 : vector<8x1xf32> to vector<8x256xf32>
    %361 = arith.mulf %356, %360 : vector<8x256xf32>
    %362 = vector.broadcast %341 : vector<1x256xf32> to vector<8x256xf32>
    %363 = arith.mulf %361, %362 : vector<8x256xf32>
    %364 = vector.broadcast %343 : vector<1x256xf32> to vector<8x256xf32>
    %365 = arith.addf %363, %364 : vector<8x256xf32>
    %c2 = arith.constant 2 : index
    %c0_152 = arith.constant 0 : index
    %c0_153 = arith.constant 0 : index
    %366 = vector.load %arg6[%c2, %c0_152, %c0_153] : memref<3x256x768xbf16, #tpu.memory_space<vmem>>, vector<1x256x768xbf16>
    %367 = vector.shape_cast %366 : vector<1x256x768xbf16> to vector<256x768xbf16>
    %368 = arith.truncf %365 : vector<8x256xf32> to vector<8x256xbf16>
    %cst_154 = arith.constant dense<0.000000e+00> : vector<8x768xf32>
    %369 = tpu.matmul %368, %367, %cst_154 {dimension_numbers = #tpu.dot_dimension_numbers<[1], [0], [0], [1], [0, 0, 1, 1], [], []>} : vector<8x256xbf16>, vector<256x768xbf16>, vector<8x768xf32> -> vector<8x768xf32>
    %c2_155 = arith.constant 2 : index
    %c0_156 = arith.constant 0 : index
    %c0_157 = arith.constant 0 : index
    %370 = vector.load %arg7[%c2_155, %c0_156, %c0_157] : memref<3x1x768xf32, #tpu.memory_space<vmem>>, vector<1x1x768xf32>
    %371 = vector.shape_cast %370 : vector<1x1x768xf32> to vector<1x768xf32>
    %372 = vector.broadcast %371 : vector<1x768xf32> to vector<8x768xf32>
    %373 = arith.addf %369, %372 : vector<8x768xf32>
    %374 = vector.extract_strided_slice %373 {offsets = [0, 0], sizes = [8, 64], strides = [1, 1]} : vector<8x768xf32> to vector<8x64xf32>
    %375 = vector.extract_strided_slice %373 {offsets = [0, 256], sizes = [8, 64], strides = [1, 1]} : vector<8x768xf32> to vector<8x64xf32>
    %376 = vector.extract_strided_slice %373 {offsets = [0, 512], sizes = [8, 64], strides = [1, 1]} : vector<8x768xf32> to vector<8x64xf32>
    %377 = arith.truncf %374 : vector<8x64xf32> to vector<8x64xbf16>
    %378 = arith.truncf %375 : vector<8x64xf32> to vector<8x64xbf16>
    %cst_158 = arith.constant dense<0.000000e+00> : vector<8x8xf32>
    %379 = tpu.matmul %377, %378, %cst_158 {dimension_numbers = #tpu.dot_dimension_numbers<[1], [1], [0], [0], [0, 0, 1, 0], [], []>} : vector<8x64xbf16>, vector<8x64xbf16>, vector<8x8xf32> -> vector<8x8xf32>
    %cst_159 = arith.constant 1.250000e-01 : f32
    %380 = vector.broadcast %cst_159 : f32 to vector<8x8xf32>
    %381 = arith.mulf %379, %380 : vector<8x8xf32>
    %382 = arith.addf %381, %11 : vector<8x8xf32>
    %cst_160 = arith.constant dense<0xFF800000> : vector<8xf32>
    %383 = vector.multi_reduction <maximumf>, %382, %cst_160 [1] : vector<8x8xf32> to vector<8xf32>
    %384 = vector.shape_cast %383 : vector<8xf32> to vector<8x1xf32>
    %385 = vector.broadcast %384 : vector<8x1xf32> to vector<8x8xf32>
    %386 = arith.subf %382, %385 : vector<8x8xf32>
    %387 = math.exp %386 : vector<8x8xf32>
    %cst_161 = arith.constant dense<0.000000e+00> : vector<8xf32>
    %388 = vector.multi_reduction <add>, %387, %cst_161 [1] : vector<8x8xf32> to vector<8xf32>
    %389 = vector.shape_cast %388 : vector<8xf32> to vector<8x1xf32>
    %390 = tpu.reciprocal %389 {approx = true} : vector<8x1xf32> -> vector<8x1xf32>
    %391 = vector.broadcast %390 : vector<8x1xf32> to vector<8x8xf32>
    %392 = arith.mulf %387, %391 : vector<8x8xf32>
    %393 = arith.truncf %392 : vector<8x8xf32> to vector<8x8xbf16>
    %394 = arith.truncf %376 : vector<8x64xf32> to vector<8x64xbf16>
    %cst_162 = arith.constant dense<0.000000e+00> : vector<8x64xf32>
    %395 = tpu.matmul %393, %394, %cst_162 {dimension_numbers = #tpu.dot_dimension_numbers<[1], [0], [0], [1], [0, 0, 1, 1], [], []>} : vector<8x8xbf16>, vector<8x64xbf16>, vector<8x64xf32> -> vector<8x64xf32>
    %396 = vector.extract_strided_slice %373 {offsets = [0, 64], sizes = [8, 64], strides = [1, 1]} : vector<8x768xf32> to vector<8x64xf32>
    %397 = vector.extract_strided_slice %373 {offsets = [0, 320], sizes = [8, 64], strides = [1, 1]} : vector<8x768xf32> to vector<8x64xf32>
    %398 = vector.extract_strided_slice %373 {offsets = [0, 576], sizes = [8, 64], strides = [1, 1]} : vector<8x768xf32> to vector<8x64xf32>
    %399 = arith.truncf %396 : vector<8x64xf32> to vector<8x64xbf16>
    %400 = arith.truncf %397 : vector<8x64xf32> to vector<8x64xbf16>
    %cst_163 = arith.constant dense<0.000000e+00> : vector<8x8xf32>
    %401 = tpu.matmul %399, %400, %cst_163 {dimension_numbers = #tpu.dot_dimension_numbers<[1], [1], [0], [0], [0, 0, 1, 0], [], []>} : vector<8x64xbf16>, vector<8x64xbf16>, vector<8x8xf32> -> vector<8x8xf32>
    %cst_164 = arith.constant 1.250000e-01 : f32
    %402 = vector.broadcast %cst_164 : f32 to vector<8x8xf32>
    %403 = arith.mulf %401, %402 : vector<8x8xf32>
    %404 = arith.addf %403, %11 : vector<8x8xf32>
    %cst_165 = arith.constant dense<0xFF800000> : vector<8xf32>
    %405 = vector.multi_reduction <maximumf>, %404, %cst_165 [1] : vector<8x8xf32> to vector<8xf32>
    %406 = vector.shape_cast %405 : vector<8xf32> to vector<8x1xf32>
    %407 = vector.broadcast %406 : vector<8x1xf32> to vector<8x8xf32>
    %408 = arith.subf %404, %407 : vector<8x8xf32>
    %409 = math.exp %408 : vector<8x8xf32>
    %cst_166 = arith.constant dense<0.000000e+00> : vector<8xf32>
    %410 = vector.multi_reduction <add>, %409, %cst_166 [1] : vector<8x8xf32> to vector<8xf32>
    %411 = vector.shape_cast %410 : vector<8xf32> to vector<8x1xf32>
    %412 = tpu.reciprocal %411 {approx = true} : vector<8x1xf32> -> vector<8x1xf32>
    %413 = vector.broadcast %412 : vector<8x1xf32> to vector<8x8xf32>
    %414 = arith.mulf %409, %413 : vector<8x8xf32>
    %415 = arith.truncf %414 : vector<8x8xf32> to vector<8x8xbf16>
    %416 = arith.truncf %398 : vector<8x64xf32> to vector<8x64xbf16>
    %cst_167 = arith.constant dense<0.000000e+00> : vector<8x64xf32>
    %417 = tpu.matmul %415, %416, %cst_167 {dimension_numbers = #tpu.dot_dimension_numbers<[1], [0], [0], [1], [0, 0, 1, 1], [], []>} : vector<8x8xbf16>, vector<8x64xbf16>, vector<8x64xf32> -> vector<8x64xf32>
    %418 = vector.extract_strided_slice %373 {offsets = [0, 128], sizes = [8, 64], strides = [1, 1]} : vector<8x768xf32> to vector<8x64xf32>
    %419 = vector.extract_strided_slice %373 {offsets = [0, 384], sizes = [8, 64], strides = [1, 1]} : vector<8x768xf32> to vector<8x64xf32>
    %420 = vector.extract_strided_slice %373 {offsets = [0, 640], sizes = [8, 64], strides = [1, 1]} : vector<8x768xf32> to vector<8x64xf32>
    %421 = arith.truncf %418 : vector<8x64xf32> to vector<8x64xbf16>
    %422 = arith.truncf %419 : vector<8x64xf32> to vector<8x64xbf16>
    %cst_168 = arith.constant dense<0.000000e+00> : vector<8x8xf32>
    %423 = tpu.matmul %421, %422, %cst_168 {dimension_numbers = #tpu.dot_dimension_numbers<[1], [1], [0], [0], [0, 0, 1, 0], [], []>} : vector<8x64xbf16>, vector<8x64xbf16>, vector<8x8xf32> -> vector<8x8xf32>
    %cst_169 = arith.constant 1.250000e-01 : f32
    %424 = vector.broadcast %cst_169 : f32 to vector<8x8xf32>
    %425 = arith.mulf %423, %424 : vector<8x8xf32>
    %426 = arith.addf %425, %11 : vector<8x8xf32>
    %cst_170 = arith.constant dense<0xFF800000> : vector<8xf32>
    %427 = vector.multi_reduction <maximumf>, %426, %cst_170 [1] : vector<8x8xf32> to vector<8xf32>
    %428 = vector.shape_cast %427 : vector<8xf32> to vector<8x1xf32>
    %429 = vector.broadcast %428 : vector<8x1xf32> to vector<8x8xf32>
    %430 = arith.subf %426, %429 : vector<8x8xf32>
    %431 = math.exp %430 : vector<8x8xf32>
    %cst_171 = arith.constant dense<0.000000e+00> : vector<8xf32>
    %432 = vector.multi_reduction <add>, %431, %cst_171 [1] : vector<8x8xf32> to vector<8xf32>
    %433 = vector.shape_cast %432 : vector<8xf32> to vector<8x1xf32>
    %434 = tpu.reciprocal %433 {approx = true} : vector<8x1xf32> -> vector<8x1xf32>
    %435 = vector.broadcast %434 : vector<8x1xf32> to vector<8x8xf32>
    %436 = arith.mulf %431, %435 : vector<8x8xf32>
    %437 = arith.truncf %436 : vector<8x8xf32> to vector<8x8xbf16>
    %438 = arith.truncf %420 : vector<8x64xf32> to vector<8x64xbf16>
    %cst_172 = arith.constant dense<0.000000e+00> : vector<8x64xf32>
    %439 = tpu.matmul %437, %438, %cst_172 {dimension_numbers = #tpu.dot_dimension_numbers<[1], [0], [0], [1], [0, 0, 1, 1], [], []>} : vector<8x8xbf16>, vector<8x64xbf16>, vector<8x64xf32> -> vector<8x64xf32>
    %440 = vector.extract_strided_slice %373 {offsets = [0, 192], sizes = [8, 64], strides = [1, 1]} : vector<8x768xf32> to vector<8x64xf32>
    %441 = vector.extract_strided_slice %373 {offsets = [0, 448], sizes = [8, 64], strides = [1, 1]} : vector<8x768xf32> to vector<8x64xf32>
    %442 = vector.extract_strided_slice %373 {offsets = [0, 704], sizes = [8, 64], strides = [1, 1]} : vector<8x768xf32> to vector<8x64xf32>
    %443 = arith.truncf %440 : vector<8x64xf32> to vector<8x64xbf16>
    %444 = arith.truncf %441 : vector<8x64xf32> to vector<8x64xbf16>
    %cst_173 = arith.constant dense<0.000000e+00> : vector<8x8xf32>
    %445 = tpu.matmul %443, %444, %cst_173 {dimension_numbers = #tpu.dot_dimension_numbers<[1], [1], [0], [0], [0, 0, 1, 0], [], []>} : vector<8x64xbf16>, vector<8x64xbf16>, vector<8x8xf32> -> vector<8x8xf32>
    %cst_174 = arith.constant 1.250000e-01 : f32
    %446 = vector.broadcast %cst_174 : f32 to vector<8x8xf32>
    %447 = arith.mulf %445, %446 : vector<8x8xf32>
    %448 = arith.addf %447, %11 : vector<8x8xf32>
    %cst_175 = arith.constant dense<0xFF800000> : vector<8xf32>
    %449 = vector.multi_reduction <maximumf>, %448, %cst_175 [1] : vector<8x8xf32> to vector<8xf32>
    %450 = vector.shape_cast %449 : vector<8xf32> to vector<8x1xf32>
    %451 = vector.broadcast %450 : vector<8x1xf32> to vector<8x8xf32>
    %452 = arith.subf %448, %451 : vector<8x8xf32>
    %453 = math.exp %452 : vector<8x8xf32>
    %cst_176 = arith.constant dense<0.000000e+00> : vector<8xf32>
    %454 = vector.multi_reduction <add>, %453, %cst_176 [1] : vector<8x8xf32> to vector<8xf32>
    %455 = vector.shape_cast %454 : vector<8xf32> to vector<8x1xf32>
    %456 = tpu.reciprocal %455 {approx = true} : vector<8x1xf32> -> vector<8x1xf32>
    %457 = vector.broadcast %456 : vector<8x1xf32> to vector<8x8xf32>
    %458 = arith.mulf %453, %457 : vector<8x8xf32>
    %459 = arith.truncf %458 : vector<8x8xf32> to vector<8x8xbf16>
    %460 = arith.truncf %442 : vector<8x64xf32> to vector<8x64xbf16>
    %cst_177 = arith.constant dense<0.000000e+00> : vector<8x64xf32>
    %461 = tpu.matmul %459, %460, %cst_177 {dimension_numbers = #tpu.dot_dimension_numbers<[1], [0], [0], [1], [0, 0, 1, 1], [], []>} : vector<8x8xbf16>, vector<8x64xbf16>, vector<8x64xf32> -> vector<8x64xf32>
    %462 = tpu.concatenate %395, %417, %439, %461 in 1 : vector<8x64xf32>, vector<8x64xf32>, vector<8x64xf32>, vector<8x64xf32> -> vector<8x256xf32>
    %c2_178 = arith.constant 2 : index
    %c0_179 = arith.constant 0 : index
    %c0_180 = arith.constant 0 : index
    %463 = vector.load %arg8[%c2_178, %c0_179, %c0_180] : memref<3x256x256xbf16, #tpu.memory_space<vmem>>, vector<1x256x256xbf16>
    %464 = vector.shape_cast %463 : vector<1x256x256xbf16> to vector<256x256xbf16>
    %465 = arith.truncf %462 : vector<8x256xf32> to vector<8x256xbf16>
    %cst_181 = arith.constant dense<0.000000e+00> : vector<8x256xf32>
    %466 = tpu.matmul %465, %464, %cst_181 {dimension_numbers = #tpu.dot_dimension_numbers<[1], [0], [0], [1], [0, 0, 1, 1], [], []>} : vector<8x256xbf16>, vector<256x256xbf16>, vector<8x256xf32> -> vector<8x256xf32>
    %c2_182 = arith.constant 2 : index
    %c0_183 = arith.constant 0 : index
    %c0_184 = arith.constant 0 : index
    %467 = vector.load %arg9[%c2_182, %c0_183, %c0_184] : memref<3x1x256xf32, #tpu.memory_space<vmem>>, vector<1x1x256xf32>
    %468 = vector.shape_cast %467 : vector<1x1x256xf32> to vector<1x256xf32>
    %469 = vector.broadcast %468 : vector<1x256xf32> to vector<8x256xf32>
    %470 = arith.addf %466, %469 : vector<8x256xf32>
    %471 = arith.addf %365, %470 : vector<8x256xf32>
    %c2_185 = arith.constant 2 : index
    %c0_186 = arith.constant 0 : index
    %c0_187 = arith.constant 0 : index
    %472 = vector.load %arg10[%c2_185, %c0_186, %c0_187] : memref<3x1x256xf32, #tpu.memory_space<vmem>>, vector<1x1x256xf32>
    %473 = vector.shape_cast %472 : vector<1x1x256xf32> to vector<1x256xf32>
    %c2_188 = arith.constant 2 : index
    %c0_189 = arith.constant 0 : index
    %c0_190 = arith.constant 0 : index
    %474 = vector.load %arg11[%c2_188, %c0_189, %c0_190] : memref<3x1x256xf32, #tpu.memory_space<vmem>>, vector<1x1x256xf32>
    %475 = vector.shape_cast %474 : vector<1x1x256xf32> to vector<1x256xf32>
    %cst_191 = arith.constant dense<0.000000e+00> : vector<8xf32>
    %476 = vector.multi_reduction <add>, %471, %cst_191 [1] : vector<8x256xf32> to vector<8xf32>
    %477 = vector.shape_cast %476 : vector<8xf32> to vector<8x1xf32>
    %cst_192 = arith.constant 2.560000e+02 : f32
    %478 = vector.broadcast %cst_192 : f32 to vector<8x1xf32>
    %479 = arith.divf %477, %478 : vector<8x1xf32>
    %480 = vector.broadcast %479 : vector<8x1xf32> to vector<8x256xf32>
    %481 = arith.subf %471, %480 : vector<8x256xf32>
    %482 = arith.mulf %481, %481 : vector<8x256xf32>
    %cst_193 = arith.constant dense<0.000000e+00> : vector<8xf32>
    %483 = vector.multi_reduction <add>, %482, %cst_193 [1] : vector<8x256xf32> to vector<8xf32>
    %484 = vector.shape_cast %483 : vector<8xf32> to vector<8x1xf32>
    %cst_194 = arith.constant 2.560000e+02 : f32
    %485 = vector.broadcast %cst_194 : f32 to vector<8x1xf32>
    %486 = arith.divf %484, %485 : vector<8x1xf32>
    %487 = vector.broadcast %479 : vector<8x1xf32> to vector<8x256xf32>
    %488 = arith.subf %471, %487 : vector<8x256xf32>
    %cst_195 = arith.constant 9.99999974E-6 : f32
    %489 = vector.broadcast %cst_195 : f32 to vector<8x1xf32>
    %490 = arith.addf %486, %489 : vector<8x1xf32>
    %491 = math.rsqrt %490 : vector<8x1xf32>
    %492 = vector.broadcast %491 : vector<8x1xf32> to vector<8x256xf32>
    %493 = arith.mulf %488, %492 : vector<8x256xf32>
    %494 = vector.broadcast %473 : vector<1x256xf32> to vector<8x256xf32>
    %495 = arith.mulf %493, %494 : vector<8x256xf32>
    %496 = vector.broadcast %475 : vector<1x256xf32> to vector<8x256xf32>
    %497 = arith.addf %495, %496 : vector<8x256xf32>
    %c2_196 = arith.constant 2 : index
    %c0_197 = arith.constant 0 : index
    %c0_198 = arith.constant 0 : index
    %498 = vector.load %arg12[%c2_196, %c0_197, %c0_198] : memref<3x256x512xbf16, #tpu.memory_space<vmem>>, vector<1x256x512xbf16>
    %499 = vector.shape_cast %498 : vector<1x256x512xbf16> to vector<256x512xbf16>
    %500 = arith.truncf %497 : vector<8x256xf32> to vector<8x256xbf16>
    %cst_199 = arith.constant dense<0.000000e+00> : vector<8x512xf32>
    %501 = tpu.matmul %500, %499, %cst_199 {dimension_numbers = #tpu.dot_dimension_numbers<[1], [0], [0], [1], [0, 0, 1, 1], [], []>} : vector<8x256xbf16>, vector<256x512xbf16>, vector<8x512xf32> -> vector<8x512xf32>
    %c2_200 = arith.constant 2 : index
    %c0_201 = arith.constant 0 : index
    %c0_202 = arith.constant 0 : index
    %502 = vector.load %arg13[%c2_200, %c0_201, %c0_202] : memref<3x1x512xf32, #tpu.memory_space<vmem>>, vector<1x1x512xf32>
    %503 = vector.shape_cast %502 : vector<1x1x512xf32> to vector<1x512xf32>
    %504 = vector.broadcast %503 : vector<1x512xf32> to vector<8x512xf32>
    %505 = arith.addf %501, %504 : vector<8x512xf32>
    %cst_203 = arith.constant 0.000000e+00 : f32
    %506 = vector.broadcast %cst_203 : f32 to vector<8x512xf32>
    %507 = arith.maximumf %505, %506 : vector<8x512xf32>
    %c2_204 = arith.constant 2 : index
    %c0_205 = arith.constant 0 : index
    %c0_206 = arith.constant 0 : index
    %508 = vector.load %arg14[%c2_204, %c0_205, %c0_206] : memref<3x512x256xbf16, #tpu.memory_space<vmem>>, vector<1x512x256xbf16>
    %509 = vector.shape_cast %508 : vector<1x512x256xbf16> to vector<512x256xbf16>
    %510 = arith.truncf %507 : vector<8x512xf32> to vector<8x512xbf16>
    %cst_207 = arith.constant dense<0.000000e+00> : vector<8x256xf32>
    %511 = tpu.matmul %510, %509, %cst_207 {dimension_numbers = #tpu.dot_dimension_numbers<[1], [0], [0], [1], [0, 0, 1, 1], [], []>} : vector<8x512xbf16>, vector<512x256xbf16>, vector<8x256xf32> -> vector<8x256xf32>
    %c2_208 = arith.constant 2 : index
    %c0_209 = arith.constant 0 : index
    %c0_210 = arith.constant 0 : index
    %512 = vector.load %arg15[%c2_208, %c0_209, %c0_210] : memref<3x1x256xf32, #tpu.memory_space<vmem>>, vector<1x1x256xf32>
    %513 = vector.shape_cast %512 : vector<1x1x256xf32> to vector<1x256xf32>
    %514 = vector.broadcast %513 : vector<1x256xf32> to vector<8x256xf32>
    %515 = arith.addf %511, %514 : vector<8x256xf32>
    %516 = arith.addf %497, %515 : vector<8x256xf32>
    %c2_211 = arith.constant 2 : index
    %c0_212 = arith.constant 0 : index
    %c0_213 = arith.constant 0 : index
    %517 = vector.load %arg16[%c2_211, %c0_212, %c0_213] : memref<3x1x256xf32, #tpu.memory_space<vmem>>, vector<1x1x256xf32>
    %518 = vector.shape_cast %517 : vector<1x1x256xf32> to vector<1x256xf32>
    %c2_214 = arith.constant 2 : index
    %c0_215 = arith.constant 0 : index
    %c0_216 = arith.constant 0 : index
    %519 = vector.load %arg17[%c2_214, %c0_215, %c0_216] : memref<3x1x256xf32, #tpu.memory_space<vmem>>, vector<1x1x256xf32>
    %520 = vector.shape_cast %519 : vector<1x1x256xf32> to vector<1x256xf32>
    %cst_217 = arith.constant dense<0.000000e+00> : vector<8xf32>
    %521 = vector.multi_reduction <add>, %516, %cst_217 [1] : vector<8x256xf32> to vector<8xf32>
    %522 = vector.shape_cast %521 : vector<8xf32> to vector<8x1xf32>
    %cst_218 = arith.constant 2.560000e+02 : f32
    %523 = vector.broadcast %cst_218 : f32 to vector<8x1xf32>
    %524 = arith.divf %522, %523 : vector<8x1xf32>
    %525 = vector.broadcast %524 : vector<8x1xf32> to vector<8x256xf32>
    %526 = arith.subf %516, %525 : vector<8x256xf32>
    %527 = arith.mulf %526, %526 : vector<8x256xf32>
    %cst_219 = arith.constant dense<0.000000e+00> : vector<8xf32>
    %528 = vector.multi_reduction <add>, %527, %cst_219 [1] : vector<8x256xf32> to vector<8xf32>
    %529 = vector.shape_cast %528 : vector<8xf32> to vector<8x1xf32>
    %cst_220 = arith.constant 2.560000e+02 : f32
    %530 = vector.broadcast %cst_220 : f32 to vector<8x1xf32>
    %531 = arith.divf %529, %530 : vector<8x1xf32>
    %532 = vector.broadcast %524 : vector<8x1xf32> to vector<8x256xf32>
    %533 = arith.subf %516, %532 : vector<8x256xf32>
    %cst_221 = arith.constant 9.99999974E-6 : f32
    %534 = vector.broadcast %cst_221 : f32 to vector<8x1xf32>
    %535 = arith.addf %531, %534 : vector<8x1xf32>
    %536 = math.rsqrt %535 : vector<8x1xf32>
    %537 = vector.broadcast %536 : vector<8x1xf32> to vector<8x256xf32>
    %538 = arith.mulf %533, %537 : vector<8x256xf32>
    %539 = vector.broadcast %518 : vector<1x256xf32> to vector<8x256xf32>
    %540 = arith.mulf %538, %539 : vector<8x256xf32>
    %541 = vector.broadcast %520 : vector<1x256xf32> to vector<8x256xf32>
    %542 = arith.addf %540, %541 : vector<8x256xf32>
    %c0_222 = arith.constant 0 : index
    %c0_223 = arith.constant 0 : index
    %543 = vector.load %arg18[%c0_222, %c0_223] : memref<256x768xbf16, #tpu.memory_space<vmem>>, vector<256x768xbf16>
    %544 = arith.truncf %542 : vector<8x256xf32> to vector<8x256xbf16>
    %cst_224 = arith.constant dense<0.000000e+00> : vector<8x768xf32>
    %545 = tpu.matmul %544, %543, %cst_224 {dimension_numbers = #tpu.dot_dimension_numbers<[1], [0], [0], [1], [0, 0, 1, 1], [], []>} : vector<8x256xbf16>, vector<256x768xbf16>, vector<8x768xf32> -> vector<8x768xf32>
    %c0_225 = arith.constant 0 : index
    %c0_226 = arith.constant 0 : index
    %546 = vector.load %arg19[%c0_225, %c0_226] : memref<1x768xf32, #tpu.memory_space<vmem>>, vector<1x768xf32>
    %547 = vector.broadcast %546 : vector<1x768xf32> to vector<8x768xf32>
    %548 = arith.addf %545, %547 : vector<8x768xf32>
    %c0_227 = arith.constant 0 : index
    %c0_228 = arith.constant 0 : index
    %549 = vector.load %arg20[%c0_227, %c0_228] : memref<1x768xf32, #tpu.memory_space<vmem>>, vector<1x768xf32>
    %550 = vector.broadcast %549 : vector<1x768xf32> to vector<8x768xf32>
    %551 = arith.mulf %548, %550 : vector<8x768xf32>
    %cst_229 = arith.constant dense<0.000000e+00> : vector<8xf32>
    %552 = vector.multi_reduction <add>, %551, %cst_229 [1] : vector<8x768xf32> to vector<8xf32>
    %553 = vector.shape_cast %552 : vector<8xf32> to vector<8x1xf32>
    %c0_230 = arith.constant 0 : index
    %c0_231 = arith.constant 0 : index
    %554 = vector.load %arg21[%c0_230, %c0_231] : memref<1x1xf32, #tpu.memory_space<vmem>>, vector<1x1xf32>
    %555 = vector.broadcast %554 : vector<1x1xf32> to vector<8x1xf32>
    %556 = arith.addf %553, %555 : vector<8x1xf32>
    %cst_232 = arith.constant 0.0360843912 : f32
    %557 = vector.broadcast %cst_232 : f32 to vector<8x1xf32>
    %558 = arith.mulf %556, %557 : vector<8x1xf32>
    %cst_233 = arith.constant dense<0xFF800000> : vector<1xf32>
    %559 = vector.multi_reduction <maximumf>, %558, %cst_233 [0] : vector<8x1xf32> to vector<1xf32>
    %560 = vector.shape_cast %559 : vector<1xf32> to vector<1x1xf32>
    %561 = vector.broadcast %560 : vector<1x1xf32> to vector<8x1xf32>
    %562 = arith.subf %558, %561 : vector<8x1xf32>
    %563 = math.exp %562 : vector<8x1xf32>
    %cst_234 = arith.constant dense<0.000000e+00> : vector<1xf32>
    %564 = vector.multi_reduction <add>, %563, %cst_234 [0] : vector<8x1xf32> to vector<1xf32>
    %565 = vector.shape_cast %564 : vector<1xf32> to vector<1x1xf32>
    %566 = tpu.reciprocal %565 {approx = true} : vector<1x1xf32> -> vector<1x1xf32>
    %567 = vector.broadcast %566 : vector<1x1xf32> to vector<8x1xf32>
    %568 = arith.mulf %563, %567 : vector<8x1xf32>
    %569 = vector.broadcast %568 : vector<8x1xf32> to vector<8x768xf32>
    %570 = arith.mulf %548, %569 : vector<8x768xf32>
    %cst_235 = arith.constant dense<0.000000e+00> : vector<768xf32>
    %571 = vector.multi_reduction <add>, %570, %cst_235 [0] : vector<8x768xf32> to vector<768xf32>
    %572 = vector.shape_cast %571 : vector<768xf32> to vector<1x768xf32>
    %c0_236 = arith.constant 0 : index
    %c0_237 = arith.constant 0 : index
    %c0_238 = arith.constant 0 : index
    %573 = vector.load %arg22[%c0_236, %c0_237, %c0_238] : memref<1x1x768xf32, #tpu.memory_space<vmem>>, vector<1x1x768xf32>
    %574 = vector.shape_cast %573 : vector<1x1x768xf32> to vector<1x768xf32>
    %575 = vector.shape_cast %572 : vector<1x768xf32> to vector<1x1x768xf32>
    tpu.vector_store %arg22[%c0_236, %c0_237, %c0_238], %575 {strides = array<i32>} : memref<1x1x768xf32, #tpu.memory_space<vmem>>, vector<1x1x768xf32>,
    return
  }
  func.func @transform_0(%arg0: i32) -> (i32, i32, i32) {
    %c0_i32 = arith.constant 0 : i32
    %c0_i32_0 = arith.constant 0 : i32
    %c0_i32_1 = arith.constant 0 : i32
    return %arg0, %c0_i32, %c0_i32_0 : i32, i32, i32
  }
  func.func @transform_1(%arg0: i32) -> (i32, i32) {
    %c0_i32 = arith.constant 0 : i32
    %c0_i32_0 = arith.constant 0 : i32
    %c0_i32_1 = arith.constant 0 : i32
    return %c0_i32, %c0_i32_0 : i32, i32
  }
  func.func @transform_2(%arg0: i32) -> (i32, i32) {
    %c0_i32 = arith.constant 0 : i32
    %c0_i32_0 = arith.constant 0 : i32
    %c0_i32_1 = arith.constant 0 : i32
    return %c0_i32, %c0_i32_0 : i32, i32
  }
  func.func @transform_3(%arg0: i32) -> (i32, i32) {
    %c0_i32 = arith.constant 0 : i32
    %c0_i32_0 = arith.constant 0 : i32
    %c0_i32_1 = arith.constant 0 : i32
    return %c0_i32, %c0_i32_0 : i32, i32
  }
  func.func @transform_4(%arg0: i32) -> (i32, i32) {
    %c0_i32 = arith.constant 0 : i32
    %c0_i32_0 = arith.constant 0 : i32
    %c0_i32_1 = arith.constant 0 : i32
    return %c0_i32, %c0_i32_0 : i32, i32
  }
  func.func @transform_5(%arg0: i32) -> (i32, i32, i32) {
    %c0_i32 = arith.constant 0 : i32
    %c0_i32_0 = arith.constant 0 : i32
    %c0_i32_1 = arith.constant 0 : i32
    %c0_i32_2 = arith.constant 0 : i32
    return %c0_i32, %c0_i32_0, %c0_i32_1 : i32, i32, i32
  }
  func.func @transform_6(%arg0: i32) -> (i32, i32, i32) {
    %c0_i32 = arith.constant 0 : i32
    %c0_i32_0 = arith.constant 0 : i32
    %c0_i32_1 = arith.constant 0 : i32
    %c0_i32_2 = arith.constant 0 : i32
    return %c0_i32, %c0_i32_0, %c0_i32_1 : i32, i32, i32
  }
  func.func @transform_7(%arg0: i32) -> (i32, i32, i32) {
    %c0_i32 = arith.constant 0 : i32
    %c0_i32_0 = arith.constant 0 : i32
    %c0_i32_1 = arith.constant 0 : i32
    %c0_i32_2 = arith.constant 0 : i32
    return %c0_i32, %c0_i32_0, %c0_i32_1 : i32, i32, i32
  }
  func.func @transform_8(%arg0: i32) -> (i32, i32, i32) {
    %c0_i32 = arith.constant 0 : i32
    %c0_i32_0 = arith.constant 0 : i32
    %c0_i32_1 = arith.constant 0 : i32
    %c0_i32_2 = arith.constant 0 : i32
    return %c0_i32, %c0_i32_0, %c0_i32_1 : i32, i32, i32
  }
  func.func @transform_9(%arg0: i32) -> (i32, i32, i32) {
    %c0_i32 = arith.constant 0 : i32
    %c0_i32_0 = arith.constant 0 : i32
    %c0_i32_1 = arith.constant 0 : i32
    %c0_i32_2 = arith.constant 0 : i32
    return %c0_i32, %c0_i32_0, %c0_i32_1 : i32, i32, i32
  }
  func.func @transform_10(%arg0: i32) -> (i32, i32, i32) {
    %c0_i32 = arith.constant 0 : i32
    %c0_i32_0 = arith.constant 0 : i32
    %c0_i32_1 = arith.constant 0 : i32
    %c0_i32_2 = arith.constant 0 : i32
    return %c0_i32, %c0_i32_0, %c0_i32_1 : i32, i32, i32
  }
  func.func @transform_11(%arg0: i32) -> (i32, i32, i32) {
    %c0_i32 = arith.constant 0 : i32
    %c0_i32_0 = arith.constant 0 : i32
    %c0_i32_1 = arith.constant 0 : i32
    %c0_i32_2 = arith.constant 0 : i32
    return %c0_i32, %c0_i32_0, %c0_i32_1 : i32, i32, i32
  }
  func.func @transform_12(%arg0: i32) -> (i32, i32, i32) {
    %c0_i32 = arith.constant 0 : i32
    %c0_i32_0 = arith.constant 0 : i32
    %c0_i32_1 = arith.constant 0 : i32
    %c0_i32_2 = arith.constant 0 : i32
    return %c0_i32, %c0_i32_0, %c0_i32_1 : i32, i32, i32
  }
  func.func @transform_13(%arg0: i32) -> (i32, i32, i32) {
    %c0_i32 = arith.constant 0 : i32
    %c0_i32_0 = arith.constant 0 : i32
    %c0_i32_1 = arith.constant 0 : i32
    %c0_i32_2 = arith.constant 0 : i32
    return %c0_i32, %c0_i32_0, %c0_i32_1 : i32, i32, i32
  }
  func.func @transform_14(%arg0: i32) -> (i32, i32, i32) {
    %c0_i32 = arith.constant 0 : i32
    %c0_i32_0 = arith.constant 0 : i32
    %c0_i32_1 = arith.constant 0 : i32
    %c0_i32_2 = arith.constant 0 : i32
    return %c0_i32, %c0_i32_0, %c0_i32_1 : i32, i32, i32
  }
  func.func @transform_15(%arg0: i32) -> (i32, i32, i32) {
    %c0_i32 = arith.constant 0 : i32
    %c0_i32_0 = arith.constant 0 : i32
    %c0_i32_1 = arith.constant 0 : i32
    %c0_i32_2 = arith.constant 0 : i32
    return %c0_i32, %c0_i32_0, %c0_i32_1 : i32, i32, i32
  }
  func.func @transform_16(%arg0: i32) -> (i32, i32, i32) {
    %c0_i32 = arith.constant 0 : i32
    %c0_i32_0 = arith.constant 0 : i32
    %c0_i32_1 = arith.constant 0 : i32
    %c0_i32_2 = arith.constant 0 : i32
    return %c0_i32, %c0_i32_0, %c0_i32_1 : i32, i32, i32
  }
  func.func @transform_17(%arg0: i32) -> (i32, i32) {
    %c0_i32 = arith.constant 0 : i32
    %c0_i32_0 = arith.constant 0 : i32
    %c0_i32_1 = arith.constant 0 : i32
    return %c0_i32, %c0_i32_0 : i32, i32
  }
  func.func @transform_18(%arg0: i32) -> (i32, i32) {
    %c0_i32 = arith.constant 0 : i32
    %c0_i32_0 = arith.constant 0 : i32
    %c0_i32_1 = arith.constant 0 : i32
    return %c0_i32, %c0_i32_0 : i32, i32
  }
  func.func @transform_19(%arg0: i32) -> (i32, i32) {
    %c0_i32 = arith.constant 0 : i32
    %c0_i32_0 = arith.constant 0 : i32
    %c0_i32_1 = arith.constant 0 : i32
    return %c0_i32, %c0_i32_0 : i32, i32
  }
  func.func @transform_20(%arg0: i32) -> (i32, i32) {
    %c0_i32 = arith.constant 0 : i32
    %c0_i32_0 = arith.constant 0 : i32
    %c0_i32_1 = arith.constant 0 : i32
    return %c0_i32, %c0_i32_0 : i32, i32
  }
  func.func @transform_21(%arg0: i32) -> (i32, i32, i32) {
    %c0_i32 = arith.constant 0 : i32
    %c0_i32_0 = arith.constant 0 : i32
    %c0_i32_1 = arith.constant 0 : i32
    return %arg0, %c0_i32, %c0_i32_0 : i32, i32, i32
  }
}

</mosaic_0001>

<llo_original>
// kernel: sentence_decoder_forward.1
$region0: #{sentence_decoder_forward.1}
  #allocation0 [shape = 'u32[]', space=smem, size = 0x4, offset = 0x4, fixed_abs, tag = 'smem constant byte address 0x4 - core index']
  #allocation1 [shape = 'u32[144,128]{1,0:T(1,128)}', space=vmem, size = 0x12000, scoped, tag = 'internal scratch']
  #allocation2 [shape = 'f32[1,1]{1,0:T(1,128)S(1)}', space=vmem, size = 0x200, scoped, tag = 'scoped memory for sentence_decoder_forward.1']
  %s0 = inlined_call_operand.vmem [shape: bf16[2,8,64], index: 0, kind: input, shape index: {}]
  %s1 = inlined_call_operand.vmem [shape: f32[8,256], index: 1, kind: input, shape index: {}]
  %s2 = inlined_call_operand.vmem [shape: f32[8,8], index: 2, kind: input, shape index: {}]
  %s3 = inlined_call_operand.hbm [shape: bf16[64,256], index: 3, kind: input, shape index: {}]
  %s4 = inlined_call_operand.hbm [shape: f32[1,256], index: 4, kind: input, shape index: {}]
  %s5 = inlined_call_operand.hbm [shape: bf16[3,256,768], index: 5, kind: input, shape index: {}]
  %s6 = inlined_call_operand.hbm [shape: f32[3,1,768], index: 6, kind: input, shape index: {}]
  %s7 = inlined_call_operand.hbm [shape: bf16[3,256,256], index: 7, kind: input, shape index: {}]
  %s8 = inlined_call_operand.hbm [shape: f32[3,1,256], index: 8, kind: input, shape index: {}]
  %s9 = inlined_call_operand.hbm [shape: f32[3,1,256], index: 9, kind: input, shape index: {}]
  %s10 = inlined_call_operand.hbm [shape: f32[3,1,256], index: 10, kind: input, shape index: {}]
  %s11 = inlined_call_operand.hbm [shape: bf16[3,256,512], index: 11, kind: input, shape index: {}]
  %s12 = inlined_call_operand.hbm [shape: f32[3,1,512], index: 12, kind: input, shape index: {}]
  %s13 = inlined_call_operand.hbm [shape: bf16[3,512,256], index: 13, kind: input, shape index: {}]
  %s14 = inlined_call_operand.hbm [shape: f32[3,1,256], index: 14, kind: input, shape index: {}]
  %s15 = inlined_call_operand.hbm [shape: f32[3,1,256], index: 15, kind: input, shape index: {}]
  %s16 = inlined_call_operand.hbm [shape: f32[3,1,256], index: 16, kind: input, shape index: {}]
  %s17 = inlined_call_operand.hbm [shape: bf16[256,768], index: 17, kind: input, shape index: {}]
  %s18 = inlined_call_operand.hbm [shape: f32[1,768], index: 18, kind: input, shape index: {}]
  %s19 = inlined_call_operand.hbm [shape: f32[1,768], index: 19, kind: input, shape index: {}]
  %s20 = inlined_call_operand.<no memory space> [shape: f32[1,1], index: 20, kind: input, shape index: {}]
  %s21 = inlined_call_operand.vmem [shape: f32[2,1,768], index: 21, kind: output, shape index: {}]
  %s22 = sld [smem:[#allocation0]]
  $region185: #{sentence_decoder_forward.1} parent=0
    _
  %s24 = ssub.s32 1, %s22
  %s25 = scalar_select 0, %s24, %s22
  %v26 = vstv %s20
  %27 = vst [vmem:[#allocation2] sm:$0x1] %v26
  $region1: #{sentence_decoder_forward.1} parent=0
    #allocation3 [shape = 'u8[32768]{0}', space=vmem, size = 0x8000, scoped, tag = 'input window, operand 3, single buffered']
    #allocation4 [shape = 's32[2]{0}', space=sflag, size = 0x8, scoped, tag = 'scoped memory for sentence_decoder_forward.1']
    #allocation5 [shape = 'u8[1024]{0}', space=vmem, size = 0x400, scoped, tag = 'input window, operand 4, single buffered']
    #allocation6 [shape = 's32[1]{0}', space=sflag, size = 0x4, scoped, tag = 'scoped memory for sentence_decoder_forward.1']
    #allocation7 [shape = 'u8[1179648]{0}', space=vmem, size = 0x120000, scoped, tag = 'input window, operand 5, single buffered']
    #allocation8 [shape = 'u8[9216]{0}', space=vmem, size = 0x2400, scoped, tag = 'input window, operand 6, single buffered']
    #allocation9 [shape = 's32[1]{0}', space=sflag, size = 0x4, scoped, tag = 'scoped memory for sentence_decoder_forward.1']
    #allocation10 [shape = 'u8[393216]{0}', space=vmem, size = 0x60000, scoped, tag = 'input window, operand 7, single buffered']
    #allocation11 [shape = 'u8[3072]{0}', space=vmem, size = 0xc00, scoped, tag = 'input window, operand 8, single buffered']
    #allocation12 [shape = 's32[1]{0}', space=sflag, size = 0x4, scoped, tag = 'scoped memory for sentence_decoder_forward.1']
    #allocation13 [shape = 'u8[3072]{0}', space=vmem, size = 0xc00, scoped, tag = 'input window, operand 9, single buffered']
    #allocation14 [shape = 'u8[3072]{0}', space=vmem, size = 0xc00, scoped, tag = 'input window, operand 10, single buffered']
    #allocation15 [shape = 's32[1]{0}', space=sflag, size = 0x4, scoped, tag = 'scoped memory for sentence_decoder_forward.1']
    #allocation16 [shape = 'u8[786432]{0}', space=vmem, size = 0xc0000, scoped, tag = 'input window, operand 11, single buffered']
    #allocation17 [shape = 'u8[6144]{0}', space=vmem, size = 0x1800, scoped, tag = 'input window, operand 12, single buffered']
    #allocation18 [shape = 's32[1]{0}', space=sflag, size = 0x4, scoped, tag = 'scoped memory for sentence_decoder_forward.1']
    #allocation19 [shape = 'u8[786432]{0}', space=vmem, size = 0xc0000, scoped, tag = 'input window, operand 13, single buffered']
    #allocation20 [shape = 'u8[3072]{0}', space=vmem, size = 0xc00, scoped, tag = 'input window, operand 14, single buffered']
    #allocation21 [shape = 's32[1]{0}', space=sflag, size = 0x4, scoped, tag = 'scoped memory for sentence_decoder_forward.1']
    #allocation22 [shape = 'u8[3072]{0}', space=vmem, size = 0xc00, scoped, tag = 'input window, operand 15, single buffered']
    #allocation23 [shape = 'u8[3072]{0}', space=vmem, size = 0xc00, scoped, tag = 'input window, operand 16, single buffered']
    #allocation24 [shape = 's32[1]{0}', space=sflag, size = 0x4, scoped, tag = 'scoped memory for sentence_decoder_forward.1']
    #allocation25 [shape = 'u8[393216]{0}', space=vmem, size = 0x60000, scoped, tag = 'input window, operand 17, single buffered']
    #allocation26 [shape = 'u8[3072]{0}', space=vmem, size = 0xc00, scoped, tag = 'input window, operand 18, single buffered']
    #allocation27 [shape = 's32[1]{0}', space=sflag, size = 0x4, scoped, tag = 'scoped memory for sentence_decoder_forward.1']
    #allocation28 [shape = 'u8[3072]{0}', space=vmem, size = 0xc00, scoped, tag = 'input window, operand 19, single buffered']
    %28 = vsyncpa [#allocation4], 0
    %29 = vsyncpa [#allocation6], 0
    %30 = vsyncpa [#allocation9], 0
    %31 = vsyncpa [#allocation12], 0
    %32 = vsyncpa [#allocation15], 0
    %33 = vsyncpa [#allocation18], 0
    %34 = vsyncpa [#allocation21], 0
    %35 = vsyncpa [#allocation24], 0
    %36 = vsyncpa [#allocation27], 0
    loop: start=0, step=1, limit=4
    $region2: #{sentence_decoder_forward.1} parent=1 // loop_pre_header
      _
    $region3: #{sentence_decoder_forward.1} parent=1 // loop_header
      %s38 = sphi 0, %s42
      %p39 = scmp.ge.s32.totalorder %s38, 4
      %s48 = sphi 0, %s50
      %s51 = sphi 0, %s48
      %s52 = sphi 0, %s51
      %s68 = sphi 0, %s52
      %s72 = sphi 0, %s72
      %s74 = sphi 0, %s72
      %s75 = sphi 0, %s74
      %s89 = sphi 0, %s75
      %s93 = sphi 0, %s93
      %s95 = sphi 0, %s93
      %s96 = sphi 0, %s95
      %s110 = sphi 0, %s96
      %s114 = sphi 0, %s114
      %s116 = sphi 0, %s114
      %s117 = sphi 0, %s116
      %s131 = sphi 0, %s117
      %s135 = sphi 0, %s135
      %s137 = sphi 0, %s135
      %s138 = sphi 0, %s137
      %s152 = sphi 0, %s138
      %s156 = sphi 0, %s156
      %s158 = sphi 0, %s156
      %s159 = sphi 0, %s158
      %s173 = sphi 0, %s159
      %s177 = sphi 0, %s177
      %s179 = sphi 0, %s177
      %s180 = sphi 0, %s179
      %s194 = sphi 0, %s180
      %s198 = sphi 0, %s198
      %s200 = sphi 0, %s198
      %s201 = sphi 0, %s200
      %s215 = sphi 0, %s201
      %s219 = sphi 0, %s219
      %s221 = sphi 0, %s219
      %s222 = sphi 0, %s221
      %s236 = sphi 0, %s222
      %s240 = sphi 0, %s240
      %s242 = sphi 0, %s240
      %s243 = sphi 0, %s242
      %s257 = sphi 0, %s243
      %s261 = sphi 0, %s261
      %s263 = sphi 0, %s261
      %s264 = sphi 0, %s263
      %s278 = sphi 0, %s264
      %s282 = sphi 0, %s282
      %s284 = sphi 0, %s282
      %s285 = sphi 0, %s284
      %s299 = sphi 0, %s285
      %s303 = sphi 0, %s303
      %s305 = sphi 0, %s303
      %s306 = sphi 0, %s305
      %s320 = sphi 0, %s306
      %s324 = sphi 0, %s324
      %s326 = sphi 0, %s324
      %s327 = sphi 0, %s326
      %s341 = sphi 0, %s327
      %s345 = sphi 0, %s345
      %s347 = sphi 0, %s345
      %s348 = sphi 0, %s347
      %s362 = sphi 0, %s348
      %s366 = sphi 0, %s366
      %s368 = sphi 0, %s366
      %s369 = sphi 0, %s368
      %s383 = sphi 0, %s369
      %s387 = sphi 0, %s387
      %s389 = sphi 0, %s387
      %s390 = sphi 0, %s389
      %s404 = sphi 0, %s390
      %s408 = sphi 0, %s408
      %s410 = sphi 0, %s408
      %s411 = sphi 0, %s410
      %s425 = sphi 0, %s411
      %s429 = sphi 0, %s429
      %s431 = sphi 0, %s429
      %s432 = sphi 0, %s431
      %s446 = sphi 0, %s432
      %s450 = sphi 0, %s450
      %s452 = sphi 0, %s450
      %s453 = sphi 0, %s452
      %s467 = sphi 0, %s453
      %s471 = sphi 0, %s471
      %s473 = sphi 0, %s471
      %s474 = sphi 0, %s473
      %s488 = sphi 0, %s474
      %s494 = sphi 0, %s496
      %s497 = sphi 0, %s494
      %s498 = sphi 0, %s497
      %s514 = sphi 0, %s498
    $region4: #{sentence_decoder_forward.1} parent=1 // loop_header_branch
      %41 = sbr.rel (%p39) target = $region8
    $region5: #{sentence_decoder_forward.1} parent=1 // loop_body
      %s43 = ssub.s32 %s38, 1
      %s44 = ssub.s32 %s38, 2
      %s45 = sadd.s32 %s38, 1
      %s46 = ssub.s32 %s38, %s45
      %p47 = scmp.eq.s32.totalorder %s46, 0
      %s49 = sadd.s32 %s48, 1
      %s50 = scalar_select %p47, %s48, %s49
      %p53 = pneg %p47
      %p54 = scmp.eq.s32.totalorder %s38, 1
      %p55 = por %p53, %p54
      %p56 = scmp.ne.s32.totalorder %s48, %s51
      %p57 = scmp.eq.s32.totalorder %s38, 0
      %p58 = por %p56, %p57
      %p59 = scmp.ne.s32.totalorder %s48, %s51
      %p60 = scmp.eq.s32.totalorder %s43, 1
      %p61 = por %p59, %p60
      %p62 = scmp.ne.s32.totalorder %s51, %s52
      %p63 = scmp.eq.s32.totalorder %s43, 0
      %p64 = por %p62, %p63
      %p65 = scmp.ne.s32.totalorder %s51, %s52
      %p66 = scmp.eq.s32.totalorder %s44, 1
      %p67 = por %p65, %p66
      %p69 = scmp.ne.s32.totalorder %s52, %s68
      %p70 = scmp.eq.s32.totalorder %s44, 0
      %p71 = por %p69, %p70
      %s73 = sadd.s32 %s72, 1
      %p76 = scmp.eq.s32.totalorder %s38, 1
      %p77 = scmp.ne.s32.totalorder %s72, %s74
      %p78 = scmp.eq.s32.totalorder %s38, 0
      %p79 = por %p77, %p78
      %p80 = scmp.ne.s32.totalorder %s72, %s74
      %p81 = scmp.eq.s32.totalorder %s43, 1
      %p82 = por %p80, %p81
      %p83 = scmp.ne.s32.totalorder %s74, %s75
      %p84 = scmp.eq.s32.totalorder %s43, 0
      %p85 = por %p83, %p84
      %p86 = scmp.ne.s32.totalorder %s74, %s75
      %p87 = scmp.eq.s32.totalorder %s44, 1
      %p88 = por %p86, %p87
      %p90 = scmp.ne.s32.totalorder %s75, %s89
      %p91 = scmp.eq.s32.totalorder %s44, 0
      %p92 = por %p90, %p91
      %s94 = sadd.s32 %s93, 1
      %p97 = scmp.eq.s32.totalorder %s38, 1
      %p98 = scmp.ne.s32.totalorder %s93, %s95
      %p99 = scmp.eq.s32.totalorder %s38, 0
      %p100 = por %p98, %p99
      %p101 = scmp.ne.s32.totalorder %s93, %s95
      %p102 = scmp.eq.s32.totalorder %s43, 1
      %p103 = por %p101, %p102
      %p104 = scmp.ne.s32.totalorder %s95, %s96
      %p105 = scmp.eq.s32.totalorder %s43, 0
      %p106 = por %p104, %p105
      %p107 = scmp.ne.s32.totalorder %s95, %s96
      %p108 = scmp.eq.s32.totalorder %s44, 1
      %p109 = por %p107, %p108
      %p111 = scmp.ne.s32.totalorder %s96, %s110
      %p112 = scmp.eq.s32.totalorder %s44, 0
      %p113 = por %p111, %p112
      %s115 = sadd.s32 %s114, 1
      %p118 = scmp.eq.s32.totalorder %s38, 1
      %p119 = scmp.ne.s32.totalorder %s114, %s116
      %p120 = scmp.eq.s32.totalorder %s38, 0
      %p121 = por %p119, %p120
      %p122 = scmp.ne.s32.totalorder %s114, %s116
      %p123 = scmp.eq.s32.totalorder %s43, 1
      %p124 = por %p122, %p123
      %p125 = scmp.ne.s32.totalorder %s116, %s117
      %p126 = scmp.eq.s32.totalorder %s43, 0
      %p127 = por %p125, %p126
      %p128 = scmp.ne.s32.totalorder %s116, %s117
      %p129 = scmp.eq.s32.totalorder %s44, 1
      %p130 = por %p128, %p129
      %p132 = scmp.ne.s32.totalorder %s117, %s131
      %p133 = scmp.eq.s32.totalorder %s44, 0
      %p134 = por %p132, %p133
      %s136 = sadd.s32 %s135, 1
      %p139 = scmp.eq.s32.totalorder %s38, 1
      %p140 = scmp.ne.s32.totalorder %s135, %s137
      %p141 = scmp.eq.s32.totalorder %s38, 0
      %p142 = por %p140, %p141
      %p143 = scmp.ne.s32.totalorder %s135, %s137
      %p144 = scmp.eq.s32.totalorder %s43, 1
      %p145 = por %p143, %p144
      %p146 = scmp.ne.s32.totalorder %s137, %s138
      %p147 = scmp.eq.s32.totalorder %s43, 0
      %p148 = por %p146, %p147
      %p149 = scmp.ne.s32.totalorder %s137, %s138
      %p150 = scmp.eq.s32.totalorder %s44, 1
      %p151 = por %p149, %p150
      %p153 = scmp.ne.s32.totalorder %s138, %s152
      %p154 = scmp.eq.s32.totalorder %s44, 0
      %p155 = por %p153, %p154
      %s157 = sadd.s32 %s156, 1
      %p160 = scmp.eq.s32.totalorder %s38, 1
      %p161 = scmp.ne.s32.totalorder %s156, %s158
      %p162 = scmp.eq.s32.totalorder %s38, 0
      %p163 = por %p161, %p162
      %p164 = scmp.ne.s32.totalorder %s156, %s158
      %p165 = scmp.eq.s32.totalorder %s43, 1
      %p166 = por %p164, %p165
      %p167 = scmp.ne.s32.totalorder %s158, %s159
      %p168 = scmp.eq.s32.totalorder %s43, 0
      %p169 = por %p167, %p168
      %p170 = scmp.ne.s32.totalorder %s158, %s159
      %p171 = scmp.eq.s32.totalorder %s44, 1
      %p172 = por %p170, %p171
      %p174 = scmp.ne.s32.totalorder %s159, %s173
      %p175 = scmp.eq.s32.totalorder %s44, 0
      %p176 = por %p174, %p175
      %s178 = sadd.s32 %s177, 1
      %p181 = scmp.eq.s32.totalorder %s38, 1
      %p182 = scmp.ne.s32.totalorder %s177, %s179
      %p183 = scmp.eq.s32.totalorder %s38, 0
      %p184 = por %p182, %p183
      %p185 = scmp.ne.s32.totalorder %s177, %s179
      %p186 = scmp.eq.s32.totalorder %s43, 1
      %p187 = por %p185, %p186
      %p188 = scmp.ne.s32.totalorder %s179, %s180
      %p189 = scmp.eq.s32.totalorder %s43, 0
      %p190 = por %p188, %p189
      %p191 = scmp.ne.s32.totalorder %s179, %s180
      %p192 = scmp.eq.s32.totalorder %s44, 1
      %p193 = por %p191, %p192
      %p195 = scmp.ne.s32.totalorder %s180, %s194
      %p196 = scmp.eq.s32.totalorder %s44, 0
      %p197 = por %p195, %p196
      %s199 = sadd.s32 %s198, 1
      %p202 = scmp.eq.s32.totalorder %s38, 1
      %p203 = scmp.ne.s32.totalorder %s198, %s200
      %p204 = scmp.eq.s32.totalorder %s38, 0
      %p205 = por %p203, %p204
      %p206 = scmp.ne.s32.totalorder %s198, %s200
      %p207 = scmp.eq.s32.totalorder %s43, 1
      %p208 = por %p206, %p207
      %p209 = scmp.ne.s32.totalorder %s200, %s201
      %p210 = scmp.eq.s32.totalorder %s43, 0
      %p211 = por %p209, %p210
      %p212 = scmp.ne.s32.totalorder %s200, %s201
      %p213 = scmp.eq.s32.totalorder %s44, 1
      %p214 = por %p212, %p213
      %p216 = scmp.ne.s32.totalorder %s201, %s215
      %p217 = scmp.eq.s32.totalorder %s44, 0
      %p218 = por %p216, %p217
      %s220 = sadd.s32 %s219, 1
      %p223 = scmp.eq.s32.totalorder %s38, 1
      %p224 = scmp.ne.s32.totalorder %s219, %s221
      %p225 = scmp.eq.s32.totalorder %s38, 0
      %p226 = por %p224, %p225
      %p227 = scmp.ne.s32.totalorder %s219, %s221
      %p228 = scmp.eq.s32.totalorder %s43, 1
      %p229 = por %p227, %p228
      %p230 = scmp.ne.s32.totalorder %s221, %s222
      %p231 = scmp.eq.s32.totalorder %s43, 0
      %p232 = por %p230, %p231
      %p233 = scmp.ne.s32.totalorder %s221, %s222
      %p234 = scmp.eq.s32.totalorder %s44, 1
      %p235 = por %p233, %p234
      %p237 = scmp.ne.s32.totalorder %s222, %s236
      %p238 = scmp.eq.s32.totalorder %s44, 0
      %p239 = por %p237, %p238
      %s241 = sadd.s32 %s240, 1
      %p244 = scmp.eq.s32.totalorder %s38, 1
      %p245 = scmp.ne.s32.totalorder %s240, %s242
      %p246 = scmp.eq.s32.totalorder %s38, 0
      %p247 = por %p245, %p246
      %p248 = scmp.ne.s32.totalorder %s240, %s242
      %p249 = scmp.eq.s32.totalorder %s43, 1
      %p250 = por %p248, %p249
      %p251 = scmp.ne.s32.totalorder %s242, %s243
      %p252 = scmp.eq.s32.totalorder %s43, 0
      %p253 = por %p251, %p252
      %p254 = scmp.ne.s32.totalorder %s242, %s243
      %p255 = scmp.eq.s32.totalorder %s44, 1
      %p256 = por %p254, %p255
      %p258 = scmp.ne.s32.totalorder %s243, %s257
      %p259 = scmp.eq.s32.totalorder %s44, 0
      %p260 = por %p258, %p259
      %s262 = sadd.s32 %s261, 1
      %p265 = scmp.eq.s32.totalorder %s38, 1
      %p266 = scmp.ne.s32.totalorder %s261, %s263
      %p267 = scmp.eq.s32.totalorder %s38, 0
      %p268 = por %p266, %p267
      %p269 = scmp.ne.s32.totalorder %s261, %s263
      %p270 = scmp.eq.s32.totalorder %s43, 1
      %p271 = por %p269, %p270
      %p272 = scmp.ne.s32.totalorder %s263, %s264
      %p273 = scmp.eq.s32.totalorder %s43, 0
      %p274 = por %p272, %p273
      %p275 = scmp.ne.s32.totalorder %s263, %s264
      %p276 = scmp.eq.s32.totalorder %s44, 1
      %p277 = por %p275, %p276
      %p279 = scmp.ne.s32.totalorder %s264, %s278
      %p280 = scmp.eq.s32.totalorder %s44, 0
      %p281 = por %p279, %p280
      %s283 = sadd.s32 %s282, 1
      %p286 = scmp.eq.s32.totalorder %s38, 1
      %p287 = scmp.ne.s32.totalorder %s282, %s284
      %p288 = scmp.eq.s32.totalorder %s38, 0
      %p289 = por %p287, %p288
      %p290 = scmp.ne.s32.totalorder %s282, %s284
      %p291 = scmp.eq.s32.totalorder %s43, 1
      %p292 = por %p290, %p291
      %p293 = scmp.ne.s32.totalorder %s284, %s285
      %p294 = scmp.eq.s32.totalorder %s43, 0
      %p295 = por %p293, %p294
      %p296 = scmp.ne.s32.totalorder %s284, %s285
      %p297 = scmp.eq.s32.totalorder %s44, 1
      %p298 = por %p296, %p297
      %p300 = scmp.ne.s32.totalorder %s285, %s299
      %p301 = scmp.eq.s32.totalorder %s44, 0
      %p302 = por %p300, %p301
      %s304 = sadd.s32 %s303, 1
      %p307 = scmp.eq.s32.totalorder %s38, 1
      %p308 = scmp.ne.s32.totalorder %s303, %s305
      %p309 = scmp.eq.s32.totalorder %s38, 0
      %p310 = por %p308, %p309
      %p311 = scmp.ne.s32.totalorder %s303, %s305
      %p312 = scmp.eq.s32.totalorder %s43, 1
      %p313 = por %p311, %p312
      %p314 = scmp.ne.s32.totalorder %s305, %s306
      %p315 = scmp.eq.s32.totalorder %s43, 0
      %p316 = por %p314, %p315
      %p317 = scmp.ne.s32.totalorder %s305, %s306
      %p318 = scmp.eq.s32.totalorder %s44, 1
      %p319 = por %p317, %p318
      %p321 = scmp.ne.s32.totalorder %s306, %s320
      %p322 = scmp.eq.s32.totalorder %s44, 0
      %p323 = por %p321, %p322
      %s325 = sadd.s32 %s324, 1
      %p328 = scmp.eq.s32.totalorder %s38, 1
      %p329 = scmp.ne.s32.totalorder %s324, %s326
      %p330 = scmp.eq.s32.totalorder %s38, 0
      %p331 = por %p329, %p330
      %p332 = scmp.ne.s32.totalorder %s324, %s326
      %p333 = scmp.eq.s32.totalorder %s43, 1
      %p334 = por %p332, %p333
      %p335 = scmp.ne.s32.totalorder %s326, %s327
      %p336 = scmp.eq.s32.totalorder %s43, 0
      %p337 = por %p335, %p336
      %p338 = scmp.ne.s32.totalorder %s326, %s327
      %p339 = scmp.eq.s32.totalorder %s44, 1
      %p340 = por %p338, %p339
      %p342 = scmp.ne.s32.totalorder %s327, %s341
      %p343 = scmp.eq.s32.totalorder %s44, 0
      %p344 = por %p342, %p343
      %s346 = sadd.s32 %s345, 1
      %p349 = scmp.eq.s32.totalorder %s38, 1
      %p350 = scmp.ne.s32.totalorder %s345, %s347
      %p351 = scmp.eq.s32.totalorder %s38, 0
      %p352 = por %p350, %p351
      %p353 = scmp.ne.s32.totalorder %s345, %s347
      %p354 = scmp.eq.s32.totalorder %s43, 1
      %p355 = por %p353, %p354
      %p356 = scmp.ne.s32.totalorder %s347, %s348
      %p357 = scmp.eq.s32.totalorder %s43, 0
      %p358 = por %p356, %p357
      %p359 = scmp.ne.s32.totalorder %s347, %s348
      %p360 = scmp.eq.s32.totalorder %s44, 1
      %p361 = por %p359, %p360
      %p363 = scmp.ne.s32.totalorder %s348, %s362
      %p364 = scmp.eq.s32.totalorder %s44, 0
      %p365 = por %p363, %p364
      %s367 = sadd.s32 %s366, 1
      %p370 = scmp.eq.s32.totalorder %s38, 1
      %p371 = scmp.ne.s32.totalorder %s366, %s368
      %p372 = scmp.eq.s32.totalorder %s38, 0
      %p373 = por %p371, %p372
      %p374 = scmp.ne.s32.totalorder %s366, %s368
      %p375 = scmp.eq.s32.totalorder %s43, 1
      %p376 = por %p374, %p375
      %p377 = scmp.ne.s32.totalorder %s368, %s369
      %p378 = scmp.eq.s32.totalorder %s43, 0
      %p379 = por %p377, %p378
      %p380 = scmp.ne.s32.totalorder %s368, %s369
      %p381 = scmp.eq.s32.totalorder %s44, 1
      %p382 = por %p380, %p381
      %p384 = scmp.ne.s32.totalorder %s369, %s383
      %p385 = scmp.eq.s32.totalorder %s44, 0
      %p386 = por %p384, %p385
      %s388 = sadd.s32 %s387, 1
      %p391 = scmp.eq.s32.totalorder %s38, 1
      %p392 = scmp.ne.s32.totalorder %s387, %s389
      %p393 = scmp.eq.s32.totalorder %s38, 0
      %p394 = por %p392, %p393
      %p395 = scmp.ne.s32.totalorder %s387, %s389
      %p396 = scmp.eq.s32.totalorder %s43, 1
      %p397 = por %p395, %p396
      %p398 = scmp.ne.s32.totalorder %s389, %s390
      %p399 = scmp.eq.s32.totalorder %s43, 0
      %p400 = por %p398, %p399
      %p401 = scmp.ne.s32.totalorder %s389, %s390
      %p402 = scmp.eq.s32.totalorder %s44, 1
      %p403 = por %p401, %p402
      %p405 = scmp.ne.s32.totalorder %s390, %s404
      %p406 = scmp.eq.s32.totalorder %s44, 0
      %p407 = por %p405, %p406
      %s409 = sadd.s32 %s408, 1
      %p412 = scmp.eq.s32.totalorder %s38, 1
      %p413 = scmp.ne.s32.totalorder %s408, %s410
      %p414 = scmp.eq.s32.totalorder %s38, 0
      %p415 = por %p413, %p414
      %p416 = scmp.ne.s32.totalorder %s408, %s410
      %p417 = scmp.eq.s32.totalorder %s43, 1
      %p418 = por %p416, %p417
      %p419 = scmp.ne.s32.totalorder %s410, %s411
      %p420 = scmp.eq.s32.totalorder %s43, 0
      %p421 = por %p419, %p420
      %p422 = scmp.ne.s32.totalorder %s410, %s411
      %p423 = scmp.eq.s32.totalorder %s44, 1
      %p424 = por %p422, %p423
      %p426 = scmp.ne.s32.totalorder %s411, %s425
      %p427 = scmp.eq.s32.totalorder %s44, 0
      %p428 = por %p426, %p427
      %s430 = sadd.s32 %s429, 1
      %p433 = scmp.eq.s32.totalorder %s38, 1
      %p434 = scmp.ne.s32.totalorder %s429, %s431
      %p435 = scmp.eq.s32.totalorder %s38, 0
      %p436 = por %p434, %p435
      %p437 = scmp.ne.s32.totalorder %s429, %s431
      %p438 = scmp.eq.s32.totalorder %s43, 1
      %p439 = por %p437, %p438
      %p440 = scmp.ne.s32.totalorder %s431, %s432
      %p441 = scmp.eq.s32.totalorder %s43, 0
      %p442 = por %p440, %p441
      %p443 = scmp.ne.s32.totalorder %s431, %s432
      %p444 = scmp.eq.s32.totalorder %s44, 1
      %p445 = por %p443, %p444
      %p447 = scmp.ne.s32.totalorder %s432, %s446
      %p448 = scmp.eq.s32.totalorder %s44, 0
      %p449 = por %p447, %p448
      %s451 = sadd.s32 %s450, 1
      %p454 = scmp.eq.s32.totalorder %s38, 1
      %p455 = scmp.ne.s32.totalorder %s450, %s452
      %p456 = scmp.eq.s32.totalorder %s38, 0
      %p457 = por %p455, %p456
      %p458 = scmp.ne.s32.totalorder %s450, %s452
      %p459 = scmp.eq.s32.totalorder %s43, 1
      %p460 = por %p458, %p459
      %p461 = scmp.ne.s32.totalorder %s452, %s453
      %p462 = scmp.eq.s32.totalorder %s43, 0
      %p463 = por %p461, %p462
      %p464 = scmp.ne.s32.totalorder %s452, %s453
      %p465 = scmp.eq.s32.totalorder %s44, 1
      %p466 = por %p464, %p465
      %p468 = scmp.ne.s32.totalorder %s453, %s467
      %p469 = scmp.eq.s32.totalorder %s44, 0
      %p470 = por %p468, %p469
      %s472 = sadd.s32 %s471, 1
      %p475 = scmp.eq.s32.totalorder %s38, 1
      %p476 = scmp.ne.s32.totalorder %s471, %s473
      %p477 = scmp.eq.s32.totalorder %s38, 0
      %p478 = por %p476, %p477
      %p479 = scmp.ne.s32.totalorder %s471, %s473
      %p480 = scmp.eq.s32.totalorder %s43, 1
      %p481 = por %p479, %p480
      %p482 = scmp.ne.s32.totalorder %s473, %s474
      %p483 = scmp.eq.s32.totalorder %s43, 0
      %p484 = por %p482, %p483
      %p485 = scmp.ne.s32.totalorder %s473, %s474
      %p486 = scmp.eq.s32.totalorder %s44, 1
      %p487 = por %p485, %p486
      %p489 = scmp.ne.s32.totalorder %s474, %s488
      %p490 = scmp.eq.s32.totalorder %s44, 0
      %p491 = por %p489, %p490
      %s492 = ssub.s32 %s38, %s45
      %p493 = scmp.eq.s32.totalorder %s492, 0
      %s495 = sadd.s32 %s494, 1
      %s496 = scalar_select %p493, %s494, %s495
      %p499 = pneg %p493
      %p500 = scmp.eq.s32.totalorder %s38, 1
      %p501 = por %p499, %p500
      %p502 = scmp.ne.s32.totalorder %s494, %s497
      %p503 = scmp.eq.s32.totalorder %s38, 0
      %p504 = por %p502, %p503
      %p505 = scmp.ne.s32.totalorder %s494, %s497
      %p506 = scmp.eq.s32.totalorder %s43, 1
      %p507 = por %p505, %p506
      %p508 = scmp.ne.s32.totalorder %s497, %s498
      %p509 = scmp.eq.s32.totalorder %s43, 0
      %p510 = por %p508, %p509
      %p511 = scmp.ne.s32.totalorder %s497, %s498
      %p512 = scmp.eq.s32.totalorder %s44, 1
      %p513 = por %p511, %p512
      %p515 = scmp.ne.s32.totalorder %s498, %s514
      %p516 = scmp.eq.s32.totalorder %s44, 0
      %p517 = por %p515, %p516
      %p518 = scmp.le.s32.totalorder 1, %s38
      %p519 = scmp.lt.s32.totalorder %s38, 3
      %p520 = pnand %p518, %p519
      %p521 = pneg %p520
      // Predicated region
      $region9: #{sentence_decoder_forward.1} parent=5 // pred_check
        _
      $region10: #{sentence_decoder_forward.1} parent=5 // pred_check_branch
        %523 = sbr.rel (%p520) target = $region12
      $region11: #{sentence_decoder_forward.1} parent=5 // pred_region
        %s524 = ssub.s32 %s38, 1
        // Predicated region
        $region13: #{sentence_decoder_forward.1} parent=11 // pred_check
          %p525 = pneg %p85
        $region14: #{sentence_decoder_forward.1} parent=11 // pred_check_branch
          %527 = sbr.rel (%p525) target = $region16
        $region15: #{sentence_decoder_forward.1} parent=11 // pred_region
          _
        $region16: #{sentence_decoder_forward.1} parent=11 // pred_fallthru
          _
        // Predicated region
        $region17: #{sentence_decoder_forward.1} parent=11 // pred_check
          %p528 = pneg %p106
        $region18: #{sentence_decoder_forward.1} parent=11 // pred_check_branch
          %530 = sbr.rel (%p528) target = $region20
        $region19: #{sentence_decoder_forward.1} parent=11 // pred_region
          _
        $region20: #{sentence_decoder_forward.1} parent=11 // pred_fallthru
          _
        // Predicated region
        $region21: #{sentence_decoder_forward.1} parent=11 // pred_check
          %p531 = pneg %p127
        $region22: #{sentence_decoder_forward.1} parent=11 // pred_check_branch
          %533 = sbr.rel (%p531) target = $region24
        $region23: #{sentence_decoder_forward.1} parent=11 // pred_region
          %s535 = ssub.s32 1024, 1024
          %536 = vsyncadd [#allocation4], %s535
          %s537 = sshll.u32 [#allocation3], 4
          %s538 = int_to_ptr.vmem [resolvable:$true] %s537
          %543 = dma.hbm_to_vmem [thread:$0]  %s3, 1024, %s538, [#allocation4], 128, 128, 8
        $region24: #{sentence_decoder_forward.1} parent=11 // pred_fallthru
          _
        // Predicated region
        $region25: #{sentence_decoder_forward.1} parent=11 // pred_check
          %p544 = pneg %p148
        $region26: #{sentence_decoder_forward.1} parent=11 // pred_check_branch
          %546 = sbr.rel (%p544) target = $region28
        $region27: #{sentence_decoder_forward.1} parent=11 // pred_region
          %s548 = ssub.s32 32, 32
          %549 = vsyncadd [#allocation6], %s548
          %s551 = sshll.u32 [#allocation5], 4
          %s552 = int_to_ptr.vmem [resolvable:$true] %s551
          %554 = dma.hbm_to_vmem [thread:$0]  %s4, 32, %s552, [#allocation6]
        $region28: #{sentence_decoder_forward.1} parent=11 // pred_fallthru
          _
        // Predicated region
        $region29: #{sentence_decoder_forward.1} parent=11 // pred_check
          %p555 = pneg %p169
        $region30: #{sentence_decoder_forward.1} parent=11 // pred_check_branch
          %557 = sbr.rel (%p555) target = $region32
        $region31: #{sentence_decoder_forward.1} parent=11 // pred_region
          %s559 = ssub.s32 36864, 36864
          %560 = vsyncadd [#allocation6], %s559
          %s561 = sshll.u32 [#allocation7], 4
          %s562 = int_to_ptr.vmem [resolvable:$true] %s561
          %567 = dma.hbm_to_vmem [thread:$0]  %s5, 36864, %s562, [#allocation6], 384, 384, 24
        $region32: #{sentence_decoder_forward.1} parent=11 // pred_fallthru
          _
        // Predicated region
        $region33: #{sentence_decoder_forward.1} parent=11 // pred_check
          %p568 = pneg %p190
        $region34: #{sentence_decoder_forward.1} parent=11 // pred_check_branch
          %570 = sbr.rel (%p568) target = $region36
        $region35: #{sentence_decoder_forward.1} parent=11 // pred_region
          %s572 = ssub.s32 288, 288
          %573 = vsyncadd [#allocation9], %s572
          %s574 = sshll.u32 [#allocation8], 4
          %s575 = int_to_ptr.vmem [resolvable:$true] %s574
          %580 = dma.hbm_to_vmem [thread:$0]  %s6, 288, %s575, [#allocation9], 96, 96, 6
        $region36: #{sentence_decoder_forward.1} parent=11 // pred_fallthru
          _
        // Predicated region
        $region37: #{sentence_decoder_forward.1} parent=11 // pred_check
          %p581 = pneg %p211
        $region38: #{sentence_decoder_forward.1} parent=11 // pred_check_branch
          %583 = sbr.rel (%p581) target = $region40
        $region39: #{sentence_decoder_forward.1} parent=11 // pred_region
          %s585 = ssub.s32 12288, 12288
          %586 = vsyncadd [#allocation9], %s585
          %s587 = sshll.u32 [#allocation10], 4
          %s588 = int_to_ptr.vmem [resolvable:$true] %s587
          %593 = dma.hbm_to_vmem [thread:$0]  %s7, 12288, %s588, [#allocation9], 128, 128, 8
        $region40: #{sentence_decoder_forward.1} parent=11 // pred_fallthru
          _
        // Predicated region
        $region41: #{sentence_decoder_forward.1} parent=11 // pred_check
          %p594 = pneg %p232
        $region42: #{sentence_decoder_forward.1} parent=11 // pred_check_branch
          %596 = sbr.rel (%p594) target = $region44
        $region43: #{sentence_decoder_forward.1} parent=11 // pred_region
          %s598 = ssub.s32 96, 96
          %599 = vsyncadd [#allocation12], %s598
          %s600 = sshll.u32 [#allocation11], 4
          %s601 = int_to_ptr.vmem [resolvable:$true] %s600
          %606 = dma.hbm_to_vmem [thread:$0]  %s8, 96, %s601, [#allocation12], 32, 32, 2
        $region44: #{sentence_decoder_forward.1} parent=11 // pred_fallthru
          _
        // Predicated region
        $region45: #{sentence_decoder_forward.1} parent=11 // pred_check
          %p607 = pneg %p253
        $region46: #{sentence_decoder_forward.1} parent=11 // pred_check_branch
          %609 = sbr.rel (%p607) target = $region48
        $region47: #{sentence_decoder_forward.1} parent=11 // pred_region
          %s611 = ssub.s32 96, 96
          %612 = vsyncadd [#allocation12], %s611
          %s613 = sshll.u32 [#allocation13], 4
          %s614 = int_to_ptr.vmem [resolvable:$true] %s613
          %619 = dma.hbm_to_vmem [thread:$0]  %s9, 96, %s614, [#allocation12], 32, 32, 2
        $region48: #{sentence_decoder_forward.1} parent=11 // pred_fallthru
          _
        // Predicated region
        $region49: #{sentence_decoder_forward.1} parent=11 // pred_check
          %p620 = pneg %p274
        $region50: #{sentence_decoder_forward.1} parent=11 // pred_check_branch
          %622 = sbr.rel (%p620) target = $region52
        $region51: #{sentence_decoder_forward.1} parent=11 // pred_region
          %s624 = ssub.s32 96, 96
          %625 = vsyncadd [#allocation15], %s624
          %s626 = sshll.u32 [#allocation14], 4
          %s627 = int_to_ptr.vmem [resolvable:$true] %s626
          %632 = dma.hbm_to_vmem [thread:$0]  %s10, 96, %s627, [#allocation15], 32, 32, 2
        $region52: #{sentence_decoder_forward.1} parent=11 // pred_fallthru
          _
        // Predicated region
        $region53: #{sentence_decoder_forward.1} parent=11 // pred_check
          %p633 = pneg %p295
        $region54: #{sentence_decoder_forward.1} parent=11 // pred_check_branch
          %635 = sbr.rel (%p633) target = $region56
        $region55: #{sentence_decoder_forward.1} parent=11 // pred_region
          %s637 = ssub.s32 24576, 24576
          %638 = vsyncadd [#allocation15], %s637
          %s639 = sshll.u32 [#allocation16], 4
          %s640 = int_to_ptr.vmem [resolvable:$true] %s639
          %645 = dma.hbm_to_vmem [thread:$0]  %s11, 24576, %s640, [#allocation15], 256, 256, 16
        $region56: #{sentence_decoder_forward.1} parent=11 // pred_fallthru
          _
        // Predicated region
        $region57: #{sentence_decoder_forward.1} parent=11 // pred_check
          %p646 = pneg %p316
        $region58: #{sentence_decoder_forward.1} parent=11 // pred_check_branch
          %648 = sbr.rel (%p646) target = $region60
        $region59: #{sentence_decoder_forward.1} parent=11 // pred_region
          %s650 = ssub.s32 192, 192
          %651 = vsyncadd [#allocation18], %s650
          %s652 = sshll.u32 [#allocation17], 4
          %s653 = int_to_ptr.vmem [resolvable:$true] %s652
          %658 = dma.hbm_to_vmem [thread:$0]  %s12, 192, %s653, [#allocation18], 64, 64, 4
        $region60: #{sentence_decoder_forward.1} parent=11 // pred_fallthru
          _
        // Predicated region
        $region61: #{sentence_decoder_forward.1} parent=11 // pred_check
          %p659 = pneg %p337
        $region62: #{sentence_decoder_forward.1} parent=11 // pred_check_branch
          %661 = sbr.rel (%p659) target = $region64
        $region63: #{sentence_decoder_forward.1} parent=11 // pred_region
          %s663 = ssub.s32 24576, 24576
          %664 = vsyncadd [#allocation18], %s663
          %s665 = sshll.u32 [#allocation19], 4
          %s666 = int_to_ptr.vmem [resolvable:$true] %s665
          %671 = dma.hbm_to_vmem [thread:$0]  %s13, 24576, %s666, [#allocation18], 128, 128, 8
        $region64: #{sentence_decoder_forward.1} parent=11 // pred_fallthru
          _
        // Predicated region
        $region65: #{sentence_decoder_forward.1} parent=11 // pred_check
          %p672 = pneg %p358
        $region66: #{sentence_decoder_forward.1} parent=11 // pred_check_branch
          %674 = sbr.rel (%p672) target = $region68
        $region67: #{sentence_decoder_forward.1} parent=11 // pred_region
          %s676 = ssub.s32 96, 96
          %677 = vsyncadd [#allocation21], %s676
          %s678 = sshll.u32 [#allocation20], 4
          %s679 = int_to_ptr.vmem [resolvable:$true] %s678
          %684 = dma.hbm_to_vmem [thread:$0]  %s14, 96, %s679, [#allocation21], 32, 32, 2
        $region68: #{sentence_decoder_forward.1} parent=11 // pred_fallthru
          _
        // Predicated region
        $region69: #{sentence_decoder_forward.1} parent=11 // pred_check
          %p685 = pneg %p379
        $region70: #{sentence_decoder_forward.1} parent=11 // pred_check_branch
          %687 = sbr.rel (%p685) target = $region72
        $region71: #{sentence_decoder_forward.1} parent=11 // pred_region
          %s689 = ssub.s32 96, 96
          %690 = vsyncadd [#allocation21], %s689
          %s691 = sshll.u32 [#allocation22], 4
          %s692 = int_to_ptr.vmem [resolvable:$true] %s691
          %697 = dma.hbm_to_vmem [thread:$0]  %s15, 96, %s692, [#allocation21], 32, 32, 2
        $region72: #{sentence_decoder_forward.1} parent=11 // pred_fallthru
          _
        // Predicated region
        $region73: #{sentence_decoder_forward.1} parent=11 // pred_check
          %p698 = pneg %p400
        $region74: #{sentence_decoder_forward.1} parent=11 // pred_check_branch
          %700 = sbr.rel (%p698) target = $region76
        $region75: #{sentence_decoder_forward.1} parent=11 // pred_region
          %s702 = ssub.s32 96, 96
          %703 = vsyncadd [#allocation24], %s702
          %s704 = sshll.u32 [#allocation23], 4
          %s705 = int_to_ptr.vmem [resolvable:$true] %s704
          %710 = dma.hbm_to_vmem [thread:$0]  %s16, 96, %s705, [#allocation24], 32, 32, 2
        $region76: #{sentence_decoder_forward.1} parent=11 // pred_fallthru
          _
        // Predicated region
        $region77: #{sentence_decoder_forward.1} parent=11 // pred_check
          %p711 = pneg %p421
        $region78: #{sentence_decoder_forward.1} parent=11 // pred_check_branch
          %713 = sbr.rel (%p711) target = $region80
        $region79: #{sentence_decoder_forward.1} parent=11 // pred_region
          %s715 = ssub.s32 12288, 12288
          %716 = vsyncadd [#allocation24], %s715
          %s717 = sshll.u32 [#allocation25], 4
          %s718 = int_to_ptr.vmem [resolvable:$true] %s717
          %723 = dma.hbm_to_vmem [thread:$0]  %s17, 12288, %s718, [#allocation24], 384, 384, 24
        $region80: #{sentence_decoder_forward.1} parent=11 // pred_fallthru
          _
        // Predicated region
        $region81: #{sentence_decoder_forward.1} parent=11 // pred_check
          %p724 = pneg %p442
        $region82: #{sentence_decoder_forward.1} parent=11 // pred_check_branch
          %726 = sbr.rel (%p724) target = $region84
        $region83: #{sentence_decoder_forward.1} parent=11 // pred_region
          %s728 = ssub.s32 96, 96
          %729 = vsyncadd [#allocation27], %s728
          %s731 = sshll.u32 [#allocation26], 4
          %s732 = int_to_ptr.vmem [resolvable:$true] %s731
          %734 = dma.hbm_to_vmem [thread:$0]  %s18, 96, %s732, [#allocation27]
        $region84: #{sentence_decoder_forward.1} parent=11 // pred_fallthru
          _
        // Predicated region
        $region85: #{sentence_decoder_forward.1} parent=11 // pred_check
          %p735 = pneg %p463
        $region86: #{sentence_decoder_forward.1} parent=11 // pred_check_branch
          %737 = sbr.rel (%p735) target = $region88
        $region87: #{sentence_decoder_forward.1} parent=11 // pred_region
          %s739 = ssub.s32 96, 96
          %740 = vsyncadd [#allocation27], %s739
          %s742 = sshll.u32 [#allocation28], 4
          %s743 = int_to_ptr.vmem [resolvable:$true] %s742
          %745 = dma.hbm_to_vmem [thread:$0]  %s19, 96, %s743, [#allocation27]
        $region88: #{sentence_decoder_forward.1} parent=11 // pred_fallthru
          _
        // Predicated region
        $region89: #{sentence_decoder_forward.1} parent=11 // pred_check
          %p746 = pneg %p484
        $region90: #{sentence_decoder_forward.1} parent=11 // pred_check_branch
          %748 = sbr.rel (%p746) target = $region92
        $region91: #{sentence_decoder_forward.1} parent=11 // pred_region
          _
        $region92: #{sentence_decoder_forward.1} parent=11 // pred_fallthru
          _
      $region12: #{sentence_decoder_forward.1} parent=5 // pred_fallthru
        _
      %p749 = scmp.lt.s32.totalorder %s38, 2
      // Predicated region
      $region93: #{sentence_decoder_forward.1} parent=5 // pred_check
        %p750 = pneg %p749
      $region94: #{sentence_decoder_forward.1} parent=5 // pred_check_branch
        %752 = sbr.rel (%p750) target = $region96
      $region95: #{sentence_decoder_forward.1} parent=5 // pred_region
        // Predicated region
        $region97: #{sentence_decoder_forward.1} parent=95 // pred_check
          %p753 = pneg %p58
        $region98: #{sentence_decoder_forward.1} parent=95 // pred_check_branch
          %755 = sbr.rel (%p753) target = $region100
        $region99: #{sentence_decoder_forward.1} parent=95 // pred_region
          %p756 = scmp.lt.s32.totalorder %s38, 1
          %s757 = scalar_select %p756, %s38, 1
          %s758 = smul.addr %s757, 4
          %s759 = scalar_lea.vmem %s0, %s758
        $region100: #{sentence_decoder_forward.1} parent=95 // pred_fallthru
          _
      $region96: #{sentence_decoder_forward.1} parent=5 // pred_fallthru
        _
      %p760 = scmp.le.s32.totalorder 1, %s38
      %p761 = scmp.lt.s32.totalorder %s38, 3
      %p762 = pnand %p760, %p761
      %p763 = pneg %p762
      // Predicated region
      $region101: #{sentence_decoder_forward.1} parent=5 // pred_check
        _
      $region102: #{sentence_decoder_forward.1} parent=5 // pred_check_branch
        %765 = sbr.rel (%p762) target = $region104
      $region103: #{sentence_decoder_forward.1} parent=5 // pred_region
        %s766 = ssub.s32 %s38, 1
        // Predicated region
        $region105: #{sentence_decoder_forward.1} parent=103 // pred_check
          %p767 = pneg %p127
        $region106: #{sentence_decoder_forward.1} parent=103 // pred_check_branch
          %769 = sbr.rel (%p767) target = $region108
        $region107: #{sentence_decoder_forward.1} parent=103 // pred_region
          %770 = dma.done [#allocation4], 1024
        $region108: #{sentence_decoder_forward.1} parent=103 // pred_fallthru
          _
        // Predicated region
        $region109: #{sentence_decoder_forward.1} parent=103 // pred_check
          %p771 = pneg %p148
        $region110: #{sentence_decoder_forward.1} parent=103 // pred_check_branch
          %773 = sbr.rel (%p771) target = $region112
        $region111: #{sentence_decoder_forward.1} parent=103 // pred_region
          %774 = dma.done [#allocation6], 32
        $region112: #{sentence_decoder_forward.1} parent=103 // pred_fallthru
          _
        // Predicated region
        $region113: #{sentence_decoder_forward.1} parent=103 // pred_check
          %p775 = pneg %p169
        $region114: #{sentence_decoder_forward.1} parent=103 // pred_check_branch
          %777 = sbr.rel (%p775) target = $region116
        $region115: #{sentence_decoder_forward.1} parent=103 // pred_region
          %778 = dma.done [#allocation6], 36864
        $region116: #{sentence_decoder_forward.1} parent=103 // pred_fallthru
          _
        // Predicated region
        $region117: #{sentence_decoder_forward.1} parent=103 // pred_check
          %p779 = pneg %p190
        $region118: #{sentence_decoder_forward.1} parent=103 // pred_check_branch
          %781 = sbr.rel (%p779) target = $region120
        $region119: #{sentence_decoder_forward.1} parent=103 // pred_region
          %782 = dma.done [#allocation9], 288
        $region120: #{sentence_decoder_forward.1} parent=103 // pred_fallthru
          _
        // Predicated region
        $region121: #{sentence_decoder_forward.1} parent=103 // pred_check
          %p783 = pneg %p211
        $region122: #{sentence_decoder_forward.1} parent=103 // pred_check_branch
          %785 = sbr.rel (%p783) target = $region124
        $region123: #{sentence_decoder_forward.1} parent=103 // pred_region
          %786 = dma.done [#allocation9], 12288
        $region124: #{sentence_decoder_forward.1} parent=103 // pred_fallthru
          _
        // Predicated region
        $region125: #{sentence_decoder_forward.1} parent=103 // pred_check
          %p787 = pneg %p232
        $region126: #{sentence_decoder_forward.1} parent=103 // pred_check_branch
          %789 = sbr.rel (%p787) target = $region128
        $region127: #{sentence_decoder_forward.1} parent=103 // pred_region
          %790 = dma.done [#allocation12], 96
        $region128: #{sentence_decoder_forward.1} parent=103 // pred_fallthru
          _
        // Predicated region
        $region129: #{sentence_decoder_forward.1} parent=103 // pred_check
          %p791 = pneg %p253
        $region130: #{sentence_decoder_forward.1} parent=103 // pred_check_branch
          %793 = sbr.rel (%p791) target = $region132
        $region131: #{sentence_decoder_forward.1} parent=103 // pred_region
          %794 = dma.done [#allocation12], 96
        $region132: #{sentence_decoder_forward.1} parent=103 // pred_fallthru
          _
        // Predicated region
        $region133: #{sentence_decoder_forward.1} parent=103 // pred_check
          %p795 = pneg %p274
        $region134: #{sentence_decoder_forward.1} parent=103 // pred_check_branch
          %797 = sbr.rel (%p795) target = $region136
        $region135: #{sentence_decoder_forward.1} parent=103 // pred_region
          %798 = dma.done [#allocation15], 96
        $region136: #{sentence_decoder_forward.1} parent=103 // pred_fallthru
          _
        // Predicated region
        $region137: #{sentence_decoder_forward.1} parent=103 // pred_check
          %p799 = pneg %p295
        $region138: #{sentence_decoder_forward.1} parent=103 // pred_check_branch
          %801 = sbr.rel (%p799) target = $region140
        $region139: #{sentence_decoder_forward.1} parent=103 // pred_region
          %802 = dma.done [#allocation15], 24576
        $region140: #{sentence_decoder_forward.1} parent=103 // pred_fallthru
          _
        // Predicated region
        $region141: #{sentence_decoder_forward.1} parent=103 // pred_check
          %p803 = pneg %p316
        $region142: #{sentence_decoder_forward.1} parent=103 // pred_check_branch
          %805 = sbr.rel (%p803) target = $region144
        $region143: #{sentence_decoder_forward.1} parent=103 // pred_region
          %806 = dma.done [#allocation18], 192
        $region144: #{sentence_decoder_forward.1} parent=103 // pred_fallthru
          _
        // Predicated region
        $region145: #{sentence_decoder_forward.1} parent=103 // pred_check
          %p807 = pneg %p337
        $region146: #{sentence_decoder_forward.1} parent=103 // pred_check_branch
          %809 = sbr.rel (%p807) target = $region148
        $region147: #{sentence_decoder_forward.1} parent=103 // pred_region
          %810 = dma.done [#allocation18], 24576
        $region148: #{sentence_decoder_forward.1} parent=103 // pred_fallthru
          _
        // Predicated region
        $region149: #{sentence_decoder_forward.1} parent=103 // pred_check
          %p811 = pneg %p358
        $region150: #{sentence_decoder_forward.1} parent=103 // pred_check_branch
          %813 = sbr.rel (%p811) target = $region152
        $region151: #{sentence_decoder_forward.1} parent=103 // pred_region
          %814 = dma.done [#allocation21], 96
        $region152: #{sentence_decoder_forward.1} parent=103 // pred_fallthru
          _
        // Predicated region
        $region153: #{sentence_decoder_forward.1} parent=103 // pred_check
          %p815 = pneg %p379
        $region154: #{sentence_decoder_forward.1} parent=103 // pred_check_branch
          %817 = sbr.rel (%p815) target = $region156
        $region155: #{sentence_decoder_forward.1} parent=103 // pred_region
          %818 = dma.done [#allocation21], 96
        $region156: #{sentence_decoder_forward.1} parent=103 // pred_fallthru
          _
        // Predicated region
        $region157: #{sentence_decoder_forward.1} parent=103 // pred_check
          %p819 = pneg %p400
        $region158: #{sentence_decoder_forward.1} parent=103 // pred_check_branch
          %821 = sbr.rel (%p819) target = $region160
        $region159: #{sentence_decoder_forward.1} parent=103 // pred_region
          %822 = dma.done [#allocation24], 96
        $region160: #{sentence_decoder_forward.1} parent=103 // pred_fallthru
          _
        // Predicated region
        $region161: #{sentence_decoder_forward.1} parent=103 // pred_check
          %p823 = pneg %p421
        $region162: #{sentence_decoder_forward.1} parent=103 // pred_check_branch
          %825 = sbr.rel (%p823) target = $region164
        $region163: #{sentence_decoder_forward.1} parent=103 // pred_region
          %826 = dma.done [#allocation24], 12288
        $region164: #{sentence_decoder_forward.1} parent=103 // pred_fallthru
          _
        // Predicated region
        $region165: #{sentence_decoder_forward.1} parent=103 // pred_check
          %p827 = pneg %p442
        $region166: #{sentence_decoder_forward.1} parent=103 // pred_check_branch
          %829 = sbr.rel (%p827) target = $region168
        $region167: #{sentence_decoder_forward.1} parent=103 // pred_region
          %830 = dma.done [#allocation27], 96
        $region168: #{sentence_decoder_forward.1} parent=103 // pred_fallthru
          _
        // Predicated region
        $region169: #{sentence_decoder_forward.1} parent=103 // pred_check
          %p831 = pneg %p463
        $region170: #{sentence_decoder_forward.1} parent=103 // pred_check_branch
          %833 = sbr.rel (%p831) target = $region172
        $region171: #{sentence_decoder_forward.1} parent=103 // pred_region
          %834 = dma.done [#allocation27], 96
        $region172: #{sentence_decoder_forward.1} parent=103 // pred_fallthru
          _
        %p835 = scmp.lt.s32.totalorder %s43, 1
        %s836 = scalar_select %p835, %s43, 1
        %s837 = smul.addr %s836, 4
        %s838 = scalar_lea.vmem %s0, %s837
        %p839 = pneg %p64
        %p840 = pneg %p61
        %p841 = pneg %p85
        %p842 = pneg %p82
        %p843 = pneg %p106
        %p844 = pneg %p103
        %p845 = pneg %p127
        %p846 = pneg %p124
        %p847 = pneg %p148
        %p848 = pneg %p145
        %p849 = pneg %p169
        %p850 = pneg %p166
        %p851 = pneg %p190
        %p852 = pneg %p187
        %p853 = pneg %p211
        %p854 = pneg %p208
        %p855 = pneg %p232
        %p856 = pneg %p229
        %p857 = pneg %p253
        %p858 = pneg %p250
        %p859 = pneg %p274
        %p860 = pneg %p271
        %p861 = pneg %p295
        %p862 = pneg %p292
        %p863 = pneg %p316
        %p864 = pneg %p313
        %p865 = pneg %p337
        %p866 = pneg %p334
        %p867 = pneg %p358
        %p868 = pneg %p355
        %p869 = pneg %p379
        %p870 = pneg %p376
        %p871 = pneg %p400
        %p872 = pneg %p397
        %p873 = pneg %p421
        %p874 = pneg %p418
        %p875 = pneg %p442
        %p876 = pneg %p439
        %p877 = pneg %p463
        %p878 = pneg %p460
        %p879 = pneg %p484
        %p880 = pneg %p481
        %p881 = pneg %p510
        %p882 = pneg %p507
        %p883 = scmp.lt.s32.totalorder %s43, 1
        %s884 = scalar_select %p883, %s43, 1
        %s885 = smul.addr %s884, 6
        %s886 = scalar_lea.vmem %s21, %s885
        %p887 = scmp.lt.s32.totalorder %s43, 1
        %s888 = scalar_select %p887, %s43, 1
        %s889 = smul.addr %s888, 4
        %s890 = scalar_lea.vmem %s0, %s889
        %p891 = scmp.lt.s32.totalorder %s43, 1
        %s892 = scalar_select %p891, %s43, 1
        %s893 = smul.addr %s892, 6
        %s894 = scalar_lea.vmem %s21, %s893
        %v896 = vld [vmem:[%s890] sm:$0xf]
        %v897 = vld [vmem:[#allocation3] sm:$0xff]
        %v898 = vld [vmem:[#allocation3 + $0x8] sm:$0xff]
        %v899 = vld [vmem:[#allocation3 + $0x10] sm:$0xff]
        %v900 = vld [vmem:[#allocation3 + $0x18] sm:$0xff]
        %v901 = vld [vmem:[#allocation3 + $0x20] sm:$0xff]
        %v902 = vld [vmem:[#allocation3 + $0x28] sm:$0xff]
        %v903 = vld [vmem:[#allocation3 + $0x30] sm:$0xff]
        %v904 = vld [vmem:[#allocation3 + $0x38] sm:$0xff]
        %v905 = vld [vmem:[#allocation5] sm:$0x3]
        %v907 = vlaneseq
        %v908 = vshrl.u32 %v907, 7
        %v909 = vsub.s32 0, %v908
        %v910 = vrot.slane %v905, %v909
        %v911 = vlaneseq
        %v912 = vshrl.u32 %v911, 7
        %v913 = vsub.s32 1, %v912
        %v914 = vrot.slane %v905, %v913
        %v925 = vunpack.c.l.b16 %v897
        %v926 = vunpack.c.h.b16 %v897
        %v927 = vunpack.c.l.b16 %v898
        %v928 = vunpack.c.h.b16 %v898
        %v929 = vunpack.c.l.b16 %v899
        %v930 = vunpack.c.h.b16 %v899
        %v931 = vunpack.c.l.b16 %v900
        %v932 = vunpack.c.h.b16 %v900
        %v933 = vunpack.c.l.b16 %v901
        %v934 = vunpack.c.h.b16 %v901
        %v935 = vunpack.c.l.b16 %v902
        %v936 = vunpack.c.h.b16 %v902
        %v937 = vunpack.c.l.b16 %v903
        %v938 = vunpack.c.h.b16 %v903
        %v939 = vunpack.c.l.b16 %v904
        %v940 = vunpack.c.h.b16 %v904
        %v941 = vpack.c.b16 %v927, %v925
        %v942 = vpack.c.b16 %v928, %v926
        %v943 = vpack.c.b16 %v931, %v929
        %v944 = vpack.c.b16 %v932, %v930
        %v945 = vpack.c.b16 %v935, %v933
        %v946 = vpack.c.b16 %v936, %v934
        %v947 = vpack.c.b16 %v939, %v937
        %v948 = vpack.c.b16 %v940, %v938
        %vm957 = vcmask 523264
        %v959 = vsel %vm957, %v896, 0
        %961 = vmatprep.subr.bf16.mxu0 %v942
        %962 = vmatpush1.bf16.msra.mxu0 %v941
        %963 = vmatprep.subr.bf16.mxu0 %v944
        %964 = vmatpush1.bf16.msra.mxu0 %v943
        %965 = vmatprep.subr.bf16.mxu0 %v946
        %966 = vmatpush1.bf16.msra.mxu0 %v945
        %967 = vmatprep.subr.bf16.mxu0 %v948
        %968 = vmatpush1.bf16.msra.mxu0 %v947
        %969 = vmatprep.subr.bf16.mxu0 0
        %970 = vmatpush1.bf16.msra.mxu0 0
        %971 = vmatprep.subr.bf16.mxu0 0
        %972 = vmatpush1.bf16.msra.mxu0 0
        %973 = vmatprep.subr.bf16.mxu0 0
        %974 = vmatpush1.bf16.msra.mxu0 0
        %975 = vmatprep.subr.bf16.mxu0 0
        %976 = vmatpush1.bf16.msra.mxu0 0
        %977 = vmatprep.subr.bf16.mxu0 0
        %978 = vmatpush1.bf16.msra.mxu0 0
        %979 = vmatprep.subr.bf16.mxu0 0
        %980 = vmatpush1.bf16.msra.mxu0 0
        %981 = vmatprep.subr.bf16.mxu0 0
        %982 = vmatpush1.bf16.msra.mxu0 0
        %983 = vmatprep.subr.bf16.mxu0 0
        %984 = vmatpush1.bf16.msra.mxu0 0
        %985 = vmatprep.subr.bf16.mxu0 0
        %986 = vmatpush1.bf16.msra.mxu0 0
        %987 = vmatprep.subr.bf16.mxu0 0
        %988 = vmatpush1.bf16.msra.mxu0 0
        %989 = vmatprep.subr.bf16.mxu0 0
        %990 = vmatpush1.bf16.msra.mxu0 0
        %991 = vmatprep.subr.bf16.mxu0 0
        %992 = vmatpush1.bf16.msra.mxu0 0
        %993 = vmatprep.mubr.bf16.mxu0 0
        %994 = vmatmul.mubr.bf16.gmra.mrb[0].mxu0 %v959
        %v995 = vpop.f32.mrb[0].mxu0
        %v996 = vadd.f32 %v910, %v995
        %v997 = vpop.f32.mrb[0].mxu0
        %v998 = vadd.f32 %v914, %v997
        %v999 = vpop.f32.mrb[0].mxu0
        %v1000 = vpop.f32.mrb[0].mxu0
        %1001 = vdwg.mxu0
        %v1002 = vmax.f32 %v996, 0.0
        %v1003 = vmax.f32 %v998, 0.0
        %v1004 = vld [vmem:[%s1] sm:$0xff]
        %v1005 = vld [vmem:[%s1 + $0x8] sm:$0xff]
        %v1006 = vadd.f32 %v1002, %v1004
        %v1007 = vadd.f32 %v1003, %v1005
        %v1008 = vld [vmem:[%s2] sm:$0xff]
        %v1009 = vld [vmem:[#allocation7] sm:$0xff]
        %v1010 = vld [vmem:[#allocation7 + $0x8] sm:$0xff]
        %v1011 = vld [vmem:[#allocation7 + $0x10] sm:$0xff]
        %v1012 = vld [vmem:[#allocation7 + $0x18] sm:$0xff]
        %v1013 = vld [vmem:[#allocation7 + $0x20] sm:$0xff]
        %v1014 = vld [vmem:[#allocation7 + $0x28] sm:$0xff]
        %v1015 = vld [vmem:[#allocation7 + $0x30] sm:$0xff]
        %v1016 = vld [vmem:[#allocation7 + $0x38] sm:$0xff]
        %v1017 = vld [vmem:[#allocation7 + $0x40] sm:$0xff]
        %v1018 = vld [vmem:[#allocation7 + $0x48] sm:$0xff]
        %v1019 = vld [vmem:[#allocation7 + $0x50] sm:$0xff]
        %v1020 = vld [vmem:[#allocation7 + $0x58] sm:$0xff]
        %v1021 = vld [vmem:[#allocation7 + $0x60] sm:$0xff]
        %v1022 = vld [vmem:[#allocation7 + $0x68] sm:$0xff]
        %v1023 = vld [vmem:[#allocation7 + $0x70] sm:$0xff]
        %v1024 = vld [vmem:[#allocation7 + $0x78] sm:$0xff]
        %v1025 = vld [vmem:[#allocation7 + $0x80] sm:$0xff]
        %v1026 = vld [vmem:[#allocation7 + $0x88] sm:$0xff]
        %v1027 = vld [vmem:[#allocation7 + $0x90] sm:$0xff]
        %v1028 = vld [vmem:[#allocation7 + $0x98] sm:$0xff]
        %v1029 = vld [vmem:[#allocation7 + $0xa0] sm:$0xff]
        %v1030 = vld [vmem:[#allocation7 + $0xa8] sm:$0xff]
        %v1031 = vld [vmem:[#allocation7 + $0xb0] sm:$0xff]
        %v1032 = vld [vmem:[#allocation7 + $0xb8] sm:$0xff]
        %v1033 = vld [vmem:[#allocation7 + $0xc0] sm:$0xff]
        %v1034 = vld [vmem:[#allocation7 + $0xc8] sm:$0xff]
        %v1035 = vld [vmem:[#allocation7 + $0xd0] sm:$0xff]
        %v1036 = vld [vmem:[#allocation7 + $0xd8] sm:$0xff]
        %v1037 = vld [vmem:[#allocation7 + $0xe0] sm:$0xff]
        %v1038 = vld [vmem:[#allocation7 + $0xe8] sm:$0xff]
        %v1039 = vld [vmem:[#allocation7 + $0xf0] sm:$0xff]
        %v1040 = vld [vmem:[#allocation7 + $0xf8] sm:$0xff]
        %v1041 = vld [vmem:[#allocation7 + $0x100] sm:$0xff]
        %v1042 = vld [vmem:[#allocation7 + $0x108] sm:$0xff]
        %v1043 = vld [vmem:[#allocation7 + $0x110] sm:$0xff]
        %v1044 = vld [vmem:[#allocation7 + $0x118] sm:$0xff]
        %v1045 = vld [vmem:[#allocation7 + $0x120] sm:$0xff]
        %v1046 = vld [vmem:[#allocation7 + $0x128] sm:$0xff]
        %v1047 = vld [vmem:[#allocation7 + $0x130] sm:$0xff]
        %v1048 = vld [vmem:[#allocation7 + $0x138] sm:$0xff]
        %v1049 = vld [vmem:[#allocation7 + $0x140] sm:$0xff]
        %v1050 = vld [vmem:[#allocation7 + $0x148] sm:$0xff]
        %v1051 = vld [vmem:[#allocation7 + $0x150] sm:$0xff]
        %v1052 = vld [vmem:[#allocation7 + $0x158] sm:$0xff]
        %v1053 = vld [vmem:[#allocation7 + $0x160] sm:$0xff]
        %v1054 = vld [vmem:[#allocation7 + $0x168] sm:$0xff]
        %v1055 = vld [vmem:[#allocation7 + $0x170] sm:$0xff]
        %v1056 = vld [vmem:[#allocation7 + $0x178] sm:$0xff]
        %v1057 = vld [vmem:[#allocation7 + $0x180] sm:$0xff]
        %v1058 = vld [vmem:[#allocation7 + $0x188] sm:$0xff]
        %v1059 = vld [vmem:[#allocation7 + $0x190] sm:$0xff]
        %v1060 = vld [vmem:[#allocation7 + $0x198] sm:$0xff]
        %v1061 = vld [vmem:[#allocation7 + $0x1a0] sm:$0xff]
        %v1062 = vld [vmem:[#allocation7 + $0x1a8] sm:$0xff]
        %v1063 = vld [vmem:[#allocation7 + $0x1b0] sm:$0xff]
        %v1064 = vld [vmem:[#allocation7 + $0x1b8] sm:$0xff]
        %v1065 = vld [vmem:[#allocation7 + $0x1c0] sm:$0xff]
        %v1066 = vld [vmem:[#allocation7 + $0x1c8] sm:$0xff]
        %v1067 = vld [vmem:[#allocation7 + $0x1d0] sm:$0xff]
        %v1068 = vld [vmem:[#allocation7 + $0x1d8] sm:$0xff]
        %v1069 = vld [vmem:[#allocation7 + $0x1e0] sm:$0xff]
        %v1070 = vld [vmem:[#allocation7 + $0x1e8] sm:$0xff]
        %v1071 = vld [vmem:[#allocation7 + $0x1f0] sm:$0xff]
        %v1072 = vld [vmem:[#allocation7 + $0x1f8] sm:$0xff]
        %v1073 = vld [vmem:[#allocation7 + $0x200] sm:$0xff]
        %v1074 = vld [vmem:[#allocation7 + $0x208] sm:$0xff]
        %v1075 = vld [vmem:[#allocation7 + $0x210] sm:$0xff]
        %v1076 = vld [vmem:[#allocation7 + $0x218] sm:$0xff]
        %v1077 = vld [vmem:[#allocation7 + $0x220] sm:$0xff]
        %v1078 = vld [vmem:[#allocation7 + $0x228] sm:$0xff]
        %v1079 = vld [vmem:[#allocation7 + $0x230] sm:$0xff]
        %v1080 = vld [vmem:[#allocation7 + $0x238] sm:$0xff]
        %v1081 = vld [vmem:[#allocation7 + $0x240] sm:$0xff]
        %v1082 = vld [vmem:[#allocation7 + $0x248] sm:$0xff]
        %v1083 = vld [vmem:[#allocation7 + $0x250] sm:$0xff]
        %v1084 = vld [vmem:[#allocation7 + $0x258] sm:$0xff]
        %v1085 = vld [vmem:[#allocation7 + $0x260] sm:$0xff]
        %v1086 = vld [vmem:[#allocation7 + $0x268] sm:$0xff]
        %v1087 = vld [vmem:[#allocation7 + $0x270] sm:$0xff]
        %v1088 = vld [vmem:[#allocation7 + $0x278] sm:$0xff]
        %v1089 = vld [vmem:[#allocation7 + $0x280] sm:$0xff]
        %v1090 = vld [vmem:[#allocation7 + $0x288] sm:$0xff]
        %v1091 = vld [vmem:[#allocation7 + $0x290] sm:$0xff]
        %v1092 = vld [vmem:[#allocation7 + $0x298] sm:$0xff]
        %v1093 = vld [vmem:[#allocation7 + $0x2a0] sm:$0xff]
        %v1094 = vld [vmem:[#allocation7 + $0x2a8] sm:$0xff]
        %v1095 = vld [vmem:[#allocation7 + $0x2b0] sm:$0xff]
        %v1096 = vld [vmem:[#allocation7 + $0x2b8] sm:$0xff]
        %v1097 = vld [vmem:[#allocation7 + $0x2c0] sm:$0xff]
        %v1098 = vld [vmem:[#allocation7 + $0x2c8] sm:$0xff]
        %v1099 = vld [vmem:[#allocation7 + $0x2d0] sm:$0xff]
        %v1100 = vld [vmem:[#allocation7 + $0x2d8] sm:$0xff]
        %v1101 = vld [vmem:[#allocation7 + $0x2e0] sm:$0xff]
        %v1102 = vld [vmem:[#allocation7 + $0x2e8] sm:$0xff]
        %v1103 = vld [vmem:[#allocation7 + $0x2f0] sm:$0xff]
        %v1104 = vld [vmem:[#allocation7 + $0x2f8] sm:$0xff]
        %v1105 = vpack.c.bf16 %v1006, %v1006
        %v1106 = vpack.c.bf16 %v1007, %v1007
        %v1107 = vld [vmem:[#allocation8] sm:$0x3f]
        %v1109 = vlaneseq
        %v1110 = vshrl.u32 %v1109, 7
        %v1111 = vsub.s32 0, %v1110
        %v1112 = vrot.slane %v1107, %v1111
        %v1113 = vlaneseq
        %v1114 = vshrl.u32 %v1113, 7
        %v1115 = vsub.s32 1, %v1114
        %v1116 = vrot.slane %v1107, %v1115
        %v1117 = vlaneseq
        %v1118 = vshrl.u32 %v1117, 7
        %v1119 = vsub.s32 2, %v1118
        %v1120 = vrot.slane %v1107, %v1119
        %v1121 = vlaneseq
        %v1122 = vshrl.u32 %v1121, 7
        %v1123 = vsub.s32 3, %v1122
        %v1124 = vrot.slane %v1107, %v1123
        %v1125 = vlaneseq
        %v1126 = vshrl.u32 %v1125, 7
        %v1127 = vsub.s32 4, %v1126
        %v1128 = vrot.slane %v1107, %v1127
        %v1129 = vlaneseq
        %v1130 = vshrl.u32 %v1129, 7
        %v1131 = vsub.s32 5, %v1130
        %v1132 = vrot.slane %v1107, %v1131
        %v1235 = vunpack.c.l.b16 %v1009
        %v1236 = vunpack.c.h.b16 %v1009
        %v1237 = vunpack.c.l.b16 %v1010
        %v1238 = vunpack.c.h.b16 %v1010
        %v1239 = vunpack.c.l.b16 %v1011
        %v1240 = vunpack.c.h.b16 %v1011
        %v1241 = vunpack.c.l.b16 %v1012
        %v1242 = vunpack.c.h.b16 %v1012
        %v1243 = vunpack.c.l.b16 %v1013
        %v1244 = vunpack.c.h.b16 %v1013
        %v1245 = vunpack.c.l.b16 %v1014
        %v1246 = vunpack.c.h.b16 %v1014
        %v1247 = vunpack.c.l.b16 %v1015
        %v1248 = vunpack.c.h.b16 %v1015
        %v1249 = vunpack.c.l.b16 %v1016
        %v1250 = vunpack.c.h.b16 %v1016
        %v1251 = vunpack.c.l.b16 %v1017
        %v1252 = vunpack.c.h.b16 %v1017
        %v1253 = vunpack.c.l.b16 %v1018
        %v1254 = vunpack.c.h.b16 %v1018
        %v1255 = vunpack.c.l.b16 %v1019
        %v1256 = vunpack.c.h.b16 %v1019
        %v1257 = vunpack.c.l.b16 %v1020
        %v1258 = vunpack.c.h.b16 %v1020
        %v1259 = vunpack.c.l.b16 %v1021
        %v1260 = vunpack.c.h.b16 %v1021
        %v1261 = vunpack.c.l.b16 %v1022
        %v1262 = vunpack.c.h.b16 %v1022
        %v1263 = vunpack.c.l.b16 %v1023
        %v1264 = vunpack.c.h.b16 %v1023
        %v1265 = vunpack.c.l.b16 %v1024
        %v1266 = vunpack.c.h.b16 %v1024
        %v1267 = vunpack.c.l.b16 %v1025
        %v1268 = vunpack.c.h.b16 %v1025
        %v1269 = vunpack.c.l.b16 %v1026
        %v1270 = vunpack.c.h.b16 %v1026
        %v1271 = vunpack.c.l.b16 %v1027
        %v1272 = vunpack.c.h.b16 %v1027
        %v1273 = vunpack.c.l.b16 %v1028
        %v1274 = vunpack.c.h.b16 %v1028
        %v1275 = vunpack.c.l.b16 %v1029
        %v1276 = vunpack.c.h.b16 %v1029
        %v1277 = vunpack.c.l.b16 %v1030
        %v1278 = vunpack.c.h.b16 %v1030
        %v1279 = vunpack.c.l.b16 %v1031
        %v1280 = vunpack.c.h.b16 %v1031
        %v1281 = vunpack.c.l.b16 %v1032
        %v1282 = vunpack.c.h.b16 %v1032
        %v1283 = vunpack.c.l.b16 %v1033
        %v1284 = vunpack.c.h.b16 %v1033
        %v1285 = vunpack.c.l.b16 %v1034
        %v1286 = vunpack.c.h.b16 %v1034
        %v1287 = vunpack.c.l.b16 %v1035
        %v1288 = vunpack.c.h.b16 %v1035
        %v1289 = vunpack.c.l.b16 %v1036
        %v1290 = vunpack.c.h.b16 %v1036
        %v1291 = vunpack.c.l.b16 %v1037
        %v1292 = vunpack.c.h.b16 %v1037
        %v1293 = vunpack.c.l.b16 %v1038
        %v1294 = vunpack.c.h.b16 %v1038
        %v1295 = vunpack.c.l.b16 %v1039
        %v1296 = vunpack.c.h.b16 %v1039
        %v1297 = vunpack.c.l.b16 %v1040
        %v1298 = vunpack.c.h.b16 %v1040
        %v1299 = vunpack.c.l.b16 %v1041
        %v1300 = vunpack.c.h.b16 %v1041
        %v1301 = vunpack.c.l.b16 %v1042
        %v1302 = vunpack.c.h.b16 %v1042
        %v1303 = vunpack.c.l.b16 %v1043
        %v1304 = vunpack.c.h.b16 %v1043
        %v1305 = vunpack.c.l.b16 %v1044
        %v1306 = vunpack.c.h.b16 %v1044
        %v1307 = vunpack.c.l.b16 %v1045
        %v1308 = vunpack.c.h.b16 %v1045
        %v1309 = vunpack.c.l.b16 %v1046
        %v1310 = vunpack.c.h.b16 %v1046
        %v1311 = vunpack.c.l.b16 %v1047
        %v1312 = vunpack.c.h.b16 %v1047
        %v1313 = vunpack.c.l.b16 %v1048
        %v1314 = vunpack.c.h.b16 %v1048
        %v1315 = vunpack.c.l.b16 %v1049
        %v1316 = vunpack.c.h.b16 %v1049
        %v1317 = vunpack.c.l.b16 %v1050
        %v1318 = vunpack.c.h.b16 %v1050
        %v1319 = vunpack.c.l.b16 %v1051
        %v1320 = vunpack.c.h.b16 %v1051
        %v1321 = vunpack.c.l.b16 %v1052
        %v1322 = vunpack.c.h.b16 %v1052
        %v1323 = vunpack.c.l.b16 %v1053
        %v1324 = vunpack.c.h.b16 %v1053
        %v1325 = vunpack.c.l.b16 %v1054
        %v1326 = vunpack.c.h.b16 %v1054
        %v1327 = vunpack.c.l.b16 %v1055
        %v1328 = vunpack.c.h.b16 %v1055
        %v1329 = vunpack.c.l.b16 %v1056
        %v1330 = vunpack.c.h.b16 %v1056
        %v1331 = vunpack.c.l.b16 %v1057
        %v1332 = vunpack.c.h.b16 %v1057
        %v1333 = vunpack.c.l.b16 %v1058
        %v1334 = vunpack.c.h.b16 %v1058
        %v1335 = vunpack.c.l.b16 %v1059
        %v1336 = vunpack.c.h.b16 %v1059
        %v1337 = vunpack.c.l.b16 %v1060
        %v1338 = vunpack.c.h.b16 %v1060
        %v1339 = vunpack.c.l.b16 %v1061
        %v1340 = vunpack.c.h.b16 %v1061
        %v1341 = vunpack.c.l.b16 %v1062
        %v1342 = vunpack.c.h.b16 %v1062
        %v1343 = vunpack.c.l.b16 %v1063
        %v1344 = vunpack.c.h.b16 %v1063
        %v1345 = vunpack.c.l.b16 %v1064
        %v1346 = vunpack.c.h.b16 %v1064
        %v1347 = vunpack.c.l.b16 %v1065
        %v1348 = vunpack.c.h.b16 %v1065
        %v1349 = vunpack.c.l.b16 %v1066
        %v1350 = vunpack.c.h.b16 %v1066
        %v1351 = vunpack.c.l.b16 %v1067
        %v1352 = vunpack.c.h.b16 %v1067
        %v1353 = vunpack.c.l.b16 %v1068
        %v1354 = vunpack.c.h.b16 %v1068
        %v1355 = vunpack.c.l.b16 %v1069
        %v1356 = vunpack.c.h.b16 %v1069
        %v1357 = vunpack.c.l.b16 %v1070
        %v1358 = vunpack.c.h.b16 %v1070
        %v1359 = vunpack.c.l.b16 %v1071
        %v1360 = vunpack.c.h.b16 %v1071
        %v1361 = vunpack.c.l.b16 %v1072
        %v1362 = vunpack.c.h.b16 %v1072
        %v1363 = vunpack.c.l.b16 %v1073
        %v1364 = vunpack.c.h.b16 %v1073
        %v1365 = vunpack.c.l.b16 %v1074
        %v1366 = vunpack.c.h.b16 %v1074
        %v1367 = vunpack.c.l.b16 %v1075
        %v1368 = vunpack.c.h.b16 %v1075
        %v1369 = vunpack.c.l.b16 %v1076
        %v1370 = vunpack.c.h.b16 %v1076
        %v1371 = vunpack.c.l.b16 %v1077
        %v1372 = vunpack.c.h.b16 %v1077
        %v1373 = vunpack.c.l.b16 %v1078
        %v1374 = vunpack.c.h.b16 %v1078
        %v1375 = vunpack.c.l.b16 %v1079
        %v1376 = vunpack.c.h.b16 %v1079
        %v1377 = vunpack.c.l.b16 %v1080
        %v1378 = vunpack.c.h.b16 %v1080
        %v1379 = vunpack.c.l.b16 %v1081
        %v1380 = vunpack.c.h.b16 %v1081
        %v1381 = vunpack.c.l.b16 %v1082
        %v1382 = vunpack.c.h.b16 %v1082
        %v1383 = vunpack.c.l.b16 %v1083
        %v1384 = vunpack.c.h.b16 %v1083
        %v1385 = vunpack.c.l.b16 %v1084
        %v1386 = vunpack.c.h.b16 %v1084
        %v1387 = vunpack.c.l.b16 %v1085
        %v1388 = vunpack.c.h.b16 %v1085
        %v1389 = vunpack.c.l.b16 %v1086
        %v1390 = vunpack.c.h.b16 %v1086
        %v1391 = vunpack.c.l.b16 %v1087
        %v1392 = vunpack.c.h.b16 %v1087
        %v1393 = vunpack.c.l.b16 %v1088
        %v1394 = vunpack.c.h.b16 %v1088
        %v1395 = vunpack.c.l.b16 %v1089
        %v1396 = vunpack.c.h.b16 %v1089
        %v1397 = vunpack.c.l.b16 %v1090
        %v1398 = vunpack.c.h.b16 %v1090
        %v1399 = vunpack.c.l.b16 %v1091
        %v1400 = vunpack.c.h.b16 %v1091
        %v1401 = vunpack.c.l.b16 %v1092
        %v1402 = vunpack.c.h.b16 %v1092
        %v1403 = vunpack.c.l.b16 %v1093
        %v1404 = vunpack.c.h.b16 %v1093
        %v1405 = vunpack.c.l.b16 %v1094
        %v1406 = vunpack.c.h.b16 %v1094
        %v1407 = vunpack.c.l.b16 %v1095
        %v1408 = vunpack.c.h.b16 %v1095
        %v1409 = vunpack.c.l.b16 %v1096
        %v1410 = vunpack.c.h.b16 %v1096
        %v1411 = vunpack.c.l.b16 %v1097
        %v1412 = vunpack.c.h.b16 %v1097
        %v1413 = vunpack.c.l.b16 %v1098
        %v1414 = vunpack.c.h.b16 %v1098
        %v1415 = vunpack.c.l.b16 %v1099
        %v1416 = vunpack.c.h.b16 %v1099
        %v1417 = vunpack.c.l.b16 %v1100
        %v1418 = vunpack.c.h.b16 %v1100
        %v1419 = vunpack.c.l.b16 %v1101
        %v1420 = vunpack.c.h.b16 %v1101
        %v1421 = vunpack.c.l.b16 %v1102
        %v1422 = vunpack.c.h.b16 %v1102
        %v1423 = vunpack.c.l.b16 %v1103
        %v1424 = vunpack.c.h.b16 %v1103
        %v1425 = vunpack.c.l.b16 %v1104
        %v1426 = vunpack.c.h.b16 %v1104
        %v1427 = vpack.c.b16 %v1241, %v1235
        %v1428 = vpack.c.b16 %v1242, %v1236
        %v1429 = vpack.c.b16 %v1243, %v1237
        %v1430 = vpack.c.b16 %v1244, %v1238
        %v1431 = vpack.c.b16 %v1245, %v1239
        %v1432 = vpack.c.b16 %v1246, %v1240
        %v1433 = vpack.c.b16 %v1253, %v1247
        %v1434 = vpack.c.b16 %v1254, %v1248
        %v1435 = vpack.c.b16 %v1255, %v1249
        %v1436 = vpack.c.b16 %v1256, %v1250
        %v1437 = vpack.c.b16 %v1257, %v1251
        %v1438 = vpack.c.b16 %v1258, %v1252
        %v1439 = vpack.c.b16 %v1265, %v1259
        %v1440 = vpack.c.b16 %v1266, %v1260
        %v1441 = vpack.c.b16 %v1267, %v1261
        %v1442 = vpack.c.b16 %v1268, %v1262
        %v1443 = vpack.c.b16 %v1269, %v1263
        %v1444 = vpack.c.b16 %v1270, %v1264
        %v1445 = vpack.c.b16 %v1277, %v1271
        %v1446 = vpack.c.b16 %v1278, %v1272
        %v1447 = vpack.c.b16 %v1279, %v1273
        %v1448 = vpack.c.b16 %v1280, %v1274
        %v1449 = vpack.c.b16 %v1281, %v1275
        %v1450 = vpack.c.b16 %v1282, %v1276
        %v1451 = vpack.c.b16 %v1289, %v1283
        %v1452 = vpack.c.b16 %v1290, %v1284
        %v1453 = vpack.c.b16 %v1291, %v1285
        %v1454 = vpack.c.b16 %v1292, %v1286
        %v1455 = vpack.c.b16 %v1293, %v1287
        %v1456 = vpack.c.b16 %v1294, %v1288
        %v1457 = vpack.c.b16 %v1301, %v1295
        %v1458 = vpack.c.b16 %v1302, %v1296
        %v1459 = vpack.c.b16 %v1303, %v1297
        %v1460 = vpack.c.b16 %v1304, %v1298
        %v1461 = vpack.c.b16 %v1305, %v1299
        %v1462 = vpack.c.b16 %v1306, %v1300
        %v1463 = vpack.c.b16 %v1313, %v1307
        %v1464 = vpack.c.b16 %v1314, %v1308
        %v1465 = vpack.c.b16 %v1315, %v1309
        %v1466 = vpack.c.b16 %v1316, %v1310
        %v1467 = vpack.c.b16 %v1317, %v1311
        %v1468 = vpack.c.b16 %v1318, %v1312
        %v1469 = vpack.c.b16 %v1325, %v1319
        %v1470 = vpack.c.b16 %v1326, %v1320
        %v1471 = vpack.c.b16 %v1327, %v1321
        %v1472 = vpack.c.b16 %v1328, %v1322
        %v1473 = vpack.c.b16 %v1329, %v1323
        %v1474 = vpack.c.b16 %v1330, %v1324
        %v1475 = vpack.c.b16 %v1337, %v1331
        %v1476 = vpack.c.b16 %v1338, %v1332
        %v1477 = vpack.c.b16 %v1339, %v1333
        %v1478 = vpack.c.b16 %v1340, %v1334
        %v1479 = vpack.c.b16 %v1341, %v1335
        %v1480 = vpack.c.b16 %v1342, %v1336
        %v1481 = vpack.c.b16 %v1349, %v1343
        %v1482 = vpack.c.b16 %v1350, %v1344
        %v1483 = vpack.c.b16 %v1351, %v1345
        %v1484 = vpack.c.b16 %v1352, %v1346
        %v1485 = vpack.c.b16 %v1353, %v1347
        %v1486 = vpack.c.b16 %v1354, %v1348
        %v1487 = vpack.c.b16 %v1361, %v1355
        %v1488 = vpack.c.b16 %v1362, %v1356
        %v1489 = vpack.c.b16 %v1363, %v1357
        %v1490 = vpack.c.b16 %v1364, %v1358
        %v1491 = vpack.c.b16 %v1365, %v1359
        %v1492 = vpack.c.b16 %v1366, %v1360
        %v1493 = vpack.c.b16 %v1373, %v1367
        %v1494 = vpack.c.b16 %v1374, %v1368
        %v1495 = vpack.c.b16 %v1375, %v1369
        %v1496 = vpack.c.b16 %v1376, %v1370
        %v1497 = vpack.c.b16 %v1377, %v1371
        %v1498 = vpack.c.b16 %v1378, %v1372
        %v1499 = vpack.c.b16 %v1385, %v1379
        %v1500 = vpack.c.b16 %v1386, %v1380
        %v1501 = vpack.c.b16 %v1387, %v1381
        %v1502 = vpack.c.b16 %v1388, %v1382
        %v1503 = vpack.c.b16 %v1389, %v1383
        %v1504 = vpack.c.b16 %v1390, %v1384
        %v1505 = vpack.c.b16 %v1397, %v1391
        %v1506 = vpack.c.b16 %v1398, %v1392
        %v1507 = vpack.c.b16 %v1399, %v1393
        %v1508 = vpack.c.b16 %v1400, %v1394
        %v1509 = vpack.c.b16 %v1401, %v1395
        %v1510 = vpack.c.b16 %v1402, %v1396
        %v1511 = vpack.c.b16 %v1409, %v1403
        %v1512 = vpack.c.b16 %v1410, %v1404
        %v1513 = vpack.c.b16 %v1411, %v1405
        %v1514 = vpack.c.b16 %v1412, %v1406
        %v1515 = vpack.c.b16 %v1413, %v1407
        %v1516 = vpack.c.b16 %v1414, %v1408
        %v1517 = vpack.c.b16 %v1421, %v1415
        %v1518 = vpack.c.b16 %v1422, %v1416
        %v1519 = vpack.c.b16 %v1423, %v1417
        %v1520 = vpack.c.b16 %v1424, %v1418
        %v1521 = vpack.c.b16 %v1425, %v1419
        %v1522 = vpack.c.b16 %v1426, %v1420
        %1619 = vmatprep.subr.bf16.mxu0 %v1428
        %1620 = vmatpush1.bf16.msra.mxu0 %v1427
        %1621 = vmatprep.subr.bf16.mxu0 %v1434
        %1622 = vmatpush1.bf16.msra.mxu0 %v1433
        %1623 = vmatprep.subr.bf16.mxu0 %v1440
        %1624 = vmatpush1.bf16.msra.mxu0 %v1439
        %1625 = vmatprep.subr.bf16.mxu0 %v1446
        %1626 = vmatpush1.bf16.msra.mxu0 %v1445
        %1627 = vmatprep.subr.bf16.mxu0 %v1452
        %1628 = vmatpush1.bf16.msra.mxu0 %v1451
        %1629 = vmatprep.subr.bf16.mxu0 %v1458
        %1630 = vmatpush1.bf16.msra.mxu0 %v1457
        %1631 = vmatprep.subr.bf16.mxu0 %v1464
        %1632 = vmatpush1.bf16.msra.mxu0 %v1463
        %1633 = vmatprep.subr.bf16.mxu0 %v1470
        %1634 = vmatpush1.bf16.msra.mxu0 %v1469
        %1635 = vmatprep.subr.bf16.mxu0 %v1476
        %1636 = vmatpush1.bf16.msra.mxu0 %v1475
        %1637 = vmatprep.subr.bf16.mxu0 %v1482
        %1638 = vmatpush1.bf16.msra.mxu0 %v1481
        %1639 = vmatprep.subr.bf16.mxu0 %v1488
        %1640 = vmatpush1.bf16.msra.mxu0 %v1487
        %1641 = vmatprep.subr.bf16.mxu0 %v1494
        %1642 = vmatpush1.bf16.msra.mxu0 %v1493
        %1643 = vmatprep.subr.bf16.mxu0 %v1500
        %1644 = vmatpush1.bf16.msra.mxu0 %v1499
        %1645 = vmatprep.subr.bf16.mxu0 %v1506
        %1646 = vmatpush1.bf16.msra.mxu0 %v1505
        %1647 = vmatprep.subr.bf16.mxu0 %v1512
        %1648 = vmatpush1.bf16.msra.mxu0 %v1511
        %1649 = vmatprep.subr.bf16.mxu0 %v1518
        %1650 = vmatpush1.bf16.msra.mxu0 %v1517
        %1651 = vmatprep.mubr.bf16.mxu0 %v1106
        %1652 = vmatmul.mubr.bf16.gmra.mrb[0].mxu0 %v1105
        %v1653 = vpop.f32.mrb[0].mxu0
        %v1654 = vadd.f32 %v1112, %v1653
        %v1655 = vpop.f32.mrb[0].mxu0
        %v1656 = vadd.f32 %v1116, %v1655
        %v1657 = vpop.f32.mrb[0].mxu0
        %v1658 = vpop.f32.mrb[0].mxu0
        %1659 = vdwg.mxu0
        %1660 = vmatprep.subr.bf16.mxu0 %v1430
        %1661 = vmatpush1.bf16.msra.mxu0 %v1429
        %1662 = vmatprep.subr.bf16.mxu0 %v1436
        %1663 = vmatpush1.bf16.msra.mxu0 %v1435
        %1664 = vmatprep.subr.bf16.mxu0 %v1442
        %1665 = vmatpush1.bf16.msra.mxu0 %v1441
        %1666 = vmatprep.subr.bf16.mxu0 %v1448
        %1667 = vmatpush1.bf16.msra.mxu0 %v1447
        %1668 = vmatprep.subr.bf16.mxu0 %v1454
        %1669 = vmatpush1.bf16.msra.mxu0 %v1453
        %1670 = vmatprep.subr.bf16.mxu0 %v1460
        %1671 = vmatpush1.bf16.msra.mxu0 %v1459
        %1672 = vmatprep.subr.bf16.mxu0 %v1466
        %1673 = vmatpush1.bf16.msra.mxu0 %v1465
        %1674 = vmatprep.subr.bf16.mxu0 %v1472
        %1675 = vmatpush1.bf16.msra.mxu0 %v1471
        %1676 = vmatprep.subr.bf16.mxu0 %v1478
        %1677 = vmatpush1.bf16.msra.mxu0 %v1477
        %1678 = vmatprep.subr.bf16.mxu0 %v1484
        %1679 = vmatpush1.bf16.msra.mxu0 %v1483
        %1680 = vmatprep.subr.bf16.mxu0 %v1490
        %1681 = vmatpush1.bf16.msra.mxu0 %v1489
        %1682 = vmatprep.subr.bf16.mxu0 %v1496
        %1683 = vmatpush1.bf16.msra.mxu0 %v1495
        %1684 = vmatprep.subr.bf16.mxu0 %v1502
        %1685 = vmatpush1.bf16.msra.mxu0 %v1501
        %1686 = vmatprep.subr.bf16.mxu0 %v1508
        %1687 = vmatpush1.bf16.msra.mxu0 %v1507
        %1688 = vmatprep.subr.bf16.mxu0 %v1514
        %1689 = vmatpush1.bf16.msra.mxu0 %v1513
        %1690 = vmatprep.subr.bf16.mxu0 %v1520
        %1691 = vmatpush1.bf16.msra.mxu0 %v1519
        %1692 = vmatprep.mubr.bf16.mxu0 %v1106
        %1693 = vmatmul.mubr.bf16.gmra.mrb[0].mxu0 %v1105
        %v1694 = vpop.f32.mrb[0].mxu0
        %v1695 = vadd.f32 %v1120, %v1694
        %v1696 = vpop.f32.mrb[0].mxu0
        %v1697 = vadd.f32 %v1124, %v1696
        %v1698 = vpop.f32.mrb[0].mxu0
        %v1699 = vpop.f32.mrb[0].mxu0
        %1700 = vdwg.mxu0
        %1701 = vmatprep.subr.bf16.mxu0 %v1432
        %1702 = vmatpush1.bf16.msra.mxu0 %v1431
        %1703 = vmatprep.subr.bf16.mxu0 %v1438
        %1704 = vmatpush1.bf16.msra.mxu0 %v1437
        %1705 = vmatprep.subr.bf16.mxu0 %v1444
        %1706 = vmatpush1.bf16.msra.mxu0 %v1443
        %1707 = vmatprep.subr.bf16.mxu0 %v1450
        %1708 = vmatpush1.bf16.msra.mxu0 %v1449
        %1709 = vmatprep.subr.bf16.mxu0 %v1456
        %1710 = vmatpush1.bf16.msra.mxu0 %v1455
        %1711 = vmatprep.subr.bf16.mxu0 %v1462
        %1712 = vmatpush1.bf16.msra.mxu0 %v1461
        %1713 = vmatprep.subr.bf16.mxu0 %v1468
        %1714 = vmatpush1.bf16.msra.mxu0 %v1467
        %1715 = vmatprep.subr.bf16.mxu0 %v1474
        %1716 = vmatpush1.bf16.msra.mxu0 %v1473
        %1717 = vmatprep.subr.bf16.mxu0 %v1480
        %1718 = vmatpush1.bf16.msra.mxu0 %v1479
        %1719 = vmatprep.subr.bf16.mxu0 %v1486
        %1720 = vmatpush1.bf16.msra.mxu0 %v1485
        %1721 = vmatprep.subr.bf16.mxu0 %v1492
        %1722 = vmatpush1.bf16.msra.mxu0 %v1491
        %1723 = vmatprep.subr.bf16.mxu0 %v1498
        %1724 = vmatpush1.bf16.msra.mxu0 %v1497
        %1725 = vmatprep.subr.bf16.mxu0 %v1504
        %1726 = vmatpush1.bf16.msra.mxu0 %v1503
        %1727 = vmatprep.subr.bf16.mxu0 %v1510
        %1728 = vmatpush1.bf16.msra.mxu0 %v1509
        %1729 = vmatprep.subr.bf16.mxu0 %v1516
        %1730 = vmatpush1.bf16.msra.mxu0 %v1515
        %1731 = vmatprep.subr.bf16.mxu0 %v1522
        %1732 = vmatpush1.bf16.msra.mxu0 %v1521
        %1733 = vmatprep.mubr.bf16.mxu0 %v1106
        %1734 = vmatmul.mubr.bf16.gmra.mrb[0].mxu0 %v1105
        %v1735 = vpop.f32.mrb[0].mxu0
        %v1736 = vadd.f32 %v1128, %v1735
        %v1737 = vpop.f32.mrb[0].mxu0
        %v1738 = vadd.f32 %v1132, %v1737
        %v1739 = vpop.f32.mrb[0].mxu0
        %v1740 = vpop.f32.mrb[0].mxu0
        %1741 = vdwg.mxu0
        %v1742 = vpack.c.bf16 %v1654, %v1654
        %v1743 = vpack.c.bf16 %v1695, %v1695
        %v1745 = vsel %vm957, %v1742, 0
        %v1748 = vsel %vm957, %v1743, 0
        %1750 = vmatprep.subr.bf16.mxu0 0
        %1751 = vmatpush1.bf16.xpose.msra.mxu0 %v1748
        %1752 = vmatprep.subr.bf16.mxu0 0
        %1753 = vmatpush1.bf16.xpose.msra.mxu0 0
        %1754 = vmatprep.subr.bf16.mxu0 0
        %1755 = vmatpush1.bf16.xpose.msra.mxu0 0
        %1756 = vmatprep.subr.bf16.mxu0 0
        %1757 = vmatpush1.bf16.xpose.msra.mxu0 0
        %1758 = vmatprep.subr.bf16.mxu0 0
        %1759 = vmatpush1.bf16.xpose.msra.mxu0 0
        %1760 = vmatprep.subr.bf16.mxu0 0
        %1761 = vmatpush1.bf16.xpose.msra.mxu0 0
        %1762 = vmatprep.subr.bf16.mxu0 0
        %1763 = vmatpush1.bf16.xpose.msra.mxu0 0
        %1764 = vmatprep.subr.bf16.mxu0 0
        %1765 = vmatpush1.bf16.xpose.msra.mxu0 0
        %1766 = vmatprep.subr.bf16.mxu0 0
        %1767 = vmatpush1.bf16.xpose.msra.mxu0 0
        %1768 = vmatprep.subr.bf16.mxu0 0
        %1769 = vmatpush1.bf16.xpose.msra.mxu0 0
        %1770 = vmatprep.subr.bf16.mxu0 0
        %1771 = vmatpush1.bf16.xpose.msra.mxu0 0
        %1772 = vmatprep.subr.bf16.mxu0 0
        %1773 = vmatpush1.bf16.xpose.msra.mxu0 0
        %1774 = vmatprep.subr.bf16.mxu0 0
        %1775 = vmatpush1.bf16.xpose.msra.mxu0 0
        %1776 = vmatprep.subr.bf16.mxu0 0
        %1777 = vmatpush1.bf16.xpose.msra.mxu0 0
        %1778 = vmatprep.subr.bf16.mxu0 0
        %1779 = vmatpush1.bf16.xpose.msra.mxu0 0
        %1780 = vmatprep.subr.bf16.mxu0 0
        %1781 = vmatpush1.bf16.xpose.msra.mxu0 0
        %1782 = vmatprep.mubr.bf16.mxu0 0
        %1783 = vmatmul.mubr.bf16.gmra.mrb[0].mxu0 %v1745
        %v1784 = vpop.f32.mrb[0].mxu0
        %v1785 = vadd.f32 0.0, %v1784
        %v1786 = vpop.f32.mrb[0].mxu0
        %v1787 = vpop.f32.mrb[0].mxu0
        %v1788 = vpop.f32.mrb[0].mxu0
        %1789 = vdwg.mxu0
        %v1790 = vmul.f32 %v1785, 0.125
        %v1791 = vadd.f32 %v1790, %v1008
        %vm1792 = vcmask 64512
        %v1793 = vsel %vm1792, %v1791, -inf
        %1794 = vmax.xlane.f32.xlu0 %v1793
        %v1795 = vpop.xlane.xlu0 %1794
        %v1796 = vsub.f32 %v1791, %v1795
        %v1797 = vmul.f32 %v1796, 1.442695
        %v1798 = vpow.pop %v1797
        %v1799 = vsel %vm1792, %v1798, 0.0
        %1800 = vadd.xlane.f32.xlu0 %v1799
        %v1801 = vpop.xlane.xlu0 %1800
        %v1802 = vrcp.pop %v1801
        %v1803 = vmul.f32 %v1798, %v1802
        %v1804 = vpack.c.bf16 %v1803, %v1803
        %v1805 = vpack.c.bf16 %v1736, %v1736
        %v1807 = vsel %vm1792, %v1804, 0
        %vm1809 = vcmask 1043456
        %v1811 = vsel %vm1809, %v1805, 0
        %1813 = vmatprep.subr.bf16.mxu0 0
        %1814 = vmatpush1.bf16.msra.mxu0 %v1811
        %1815 = vmatprep.subr.bf16.mxu0 0
        %1816 = vmatpush1.bf16.msra.mxu0 0
        %1817 = vmatprep.subr.bf16.mxu0 0
        %1818 = vmatpush1.bf16.msra.mxu0 0
        %1819 = vmatprep.subr.bf16.mxu0 0
        %1820 = vmatpush1.bf16.msra.mxu0 0
        %1821 = vmatprep.subr.bf16.mxu0 0
        %1822 = vmatpush1.bf16.msra.mxu0 0
        %1823 = vmatprep.subr.bf16.mxu0 0
        %1824 = vmatpush1.bf16.msra.mxu0 0
        %1825 = vmatprep.subr.bf16.mxu0 0
        %1826 = vmatpush1.bf16.msra.mxu0 0
        %1827 = vmatprep.subr.bf16.mxu0 0
        %1828 = vmatpush1.bf16.msra.mxu0 0
        %1829 = vmatprep.subr.bf16.mxu0 0
        %1830 = vmatpush1.bf16.msra.mxu0 0
        %1831 = vmatprep.subr.bf16.mxu0 0
        %1832 = vmatpush1.bf16.msra.mxu0 0
        %1833 = vmatprep.subr.bf16.mxu0 0
        %1834 = vmatpush1.bf16.msra.mxu0 0
        %1835 = vmatprep.subr.bf16.mxu0 0
        %1836 = vmatpush1.bf16.msra.mxu0 0
        %1837 = vmatprep.subr.bf16.mxu0 0
        %1838 = vmatpush1.bf16.msra.mxu0 0
        %1839 = vmatprep.subr.bf16.mxu0 0
        %1840 = vmatpush1.bf16.msra.mxu0 0
        %1841 = vmatprep.subr.bf16.mxu0 0
        %1842 = vmatpush1.bf16.msra.mxu0 0
        %1843 = vmatprep.subr.bf16.mxu0 0
        %1844 = vmatpush1.bf16.msra.mxu0 0
        %1845 = vmatprep.mubr.bf16.mxu0 0
        %1846 = vmatmul.mubr.bf16.gmra.mrb[0].mxu0 %v1807
        %v1847 = vpop.f32.mrb[0].mxu0
        %v1848 = vadd.f32 0.0, %v1847
        %v1849 = vpop.f32.mrb[0].mxu0
        %v1850 = vpop.f32.mrb[0].mxu0
        %v1851 = vpop.f32.mrb[0].mxu0
        %1852 = vdwg.mxu0
        %1854 = vrot.lane.b32.xlu0 %v1742, 64
        %v1855 = vpop.permute.xlu0 %1854
        %1857 = vrot.lane.b32.xlu0 %v1743, 64
        %v1858 = vpop.permute.xlu0 %1857
        %v1860 = vsel %vm957, %v1855, 0
        %v1863 = vsel %vm957, %v1858, 0
        %1865 = vmatprep.subr.bf16.mxu0 0
        %1866 = vmatpush1.bf16.xpose.msra.mxu0 %v1863
        %1867 = vmatprep.subr.bf16.mxu0 0
        %1868 = vmatpush1.bf16.xpose.msra.mxu0 0
        %1869 = vmatprep.subr.bf16.mxu0 0
        %1870 = vmatpush1.bf16.xpose.msra.mxu0 0
        %1871 = vmatprep.subr.bf16.mxu0 0
        %1872 = vmatpush1.bf16.xpose.msra.mxu0 0
        %1873 = vmatprep.subr.bf16.mxu0 0
        %1874 = vmatpush1.bf16.xpose.msra.mxu0 0
        %1875 = vmatprep.subr.bf16.mxu0 0
        %1876 = vmatpush1.bf16.xpose.msra.mxu0 0
        %1877 = vmatprep.subr.bf16.mxu0 0
        %1878 = vmatpush1.bf16.xpose.msra.mxu0 0
        %1879 = vmatprep.subr.bf16.mxu0 0
        %1880 = vmatpush1.bf16.xpose.msra.mxu0 0
        %1881 = vmatprep.subr.bf16.mxu0 0
        %1882 = vmatpush1.bf16.xpose.msra.mxu0 0
        %1883 = vmatprep.subr.bf16.mxu0 0
        %1884 = vmatpush1.bf16.xpose.msra.mxu0 0
        %1885 = vmatprep.subr.bf16.mxu0 0
        %1886 = vmatpush1.bf16.xpose.msra.mxu0 0
        %1887 = vmatprep.subr.bf16.mxu0 0
        %1888 = vmatpush1.bf16.xpose.msra.mxu0 0
        %1889 = vmatprep.subr.bf16.mxu0 0
        %1890 = vmatpush1.bf16.xpose.msra.mxu0 0
        %1891 = vmatprep.subr.bf16.mxu0 0
        %1892 = vmatpush1.bf16.xpose.msra.mxu0 0
        %1893 = vmatprep.subr.bf16.mxu0 0
        %1894 = vmatpush1.bf16.xpose.msra.mxu0 0
        %1895 = vmatprep.subr.bf16.mxu0 0
        %1896 = vmatpush1.bf16.xpose.msra.mxu0 0
        %1897 = vmatprep.mubr.bf16.mxu0 0
        %1898 = vmatmul.mubr.bf16.gmra.mrb[0].mxu0 %v1860
        %v1899 = vpop.f32.mrb[0].mxu0
        %v1900 = vadd.f32 0.0, %v1899
        %v1901 = vpop.f32.mrb[0].mxu0
        %v1902 = vpop.f32.mrb[0].mxu0
        %v1903 = vpop.f32.mrb[0].mxu0
        %1904 = vdwg.mxu0
        %v1905 = vmul.f32 %v1900, 0.125
        %v1906 = vadd.f32 %v1905, %v1008
        %v1907 = vsel %vm1792, %v1906, -inf
        %1908 = vmax.xlane.f32.xlu0 %v1907
        %v1909 = vpop.xlane.xlu0 %1908
        %v1910 = vsub.f32 %v1906, %v1909
        %v1911 = vmul.f32 %v1910, 1.442695
        %v1912 = vpow.pop %v1911
        %v1913 = vsel %vm1792, %v1912, 0.0
        %1914 = vadd.xlane.f32.xlu0 %v1913
        %v1915 = vpop.xlane.xlu0 %1914
        %v1916 = vrcp.pop %v1915
        %v1917 = vmul.f32 %v1912, %v1916
        %v1918 = vpack.c.bf16 %v1917, %v1917
        %1920 = vrot.lane.b32.xlu0 %v1805, 64
        %v1921 = vpop.permute.xlu0 %1920
        %v1923 = vsel %vm1792, %v1918, 0
        %v1926 = vsel %vm1809, %v1921, 0
        %1928 = vmatprep.subr.bf16.mxu0 0
        %1929 = vmatpush1.bf16.msra.mxu0 %v1926
        %1930 = vmatprep.subr.bf16.mxu0 0
        %1931 = vmatpush1.bf16.msra.mxu0 0
        %1932 = vmatprep.subr.bf16.mxu0 0
        %1933 = vmatpush1.bf16.msra.mxu0 0
        %1934 = vmatprep.subr.bf16.mxu0 0
        %1935 = vmatpush1.bf16.msra.mxu0 0
        %1936 = vmatprep.subr.bf16.mxu0 0
        %1937 = vmatpush1.bf16.msra.mxu0 0
        %1938 = vmatprep.subr.bf16.mxu0 0
        %1939 = vmatpush1.bf16.msra.mxu0 0
        %1940 = vmatprep.subr.bf16.mxu0 0
        %1941 = vmatpush1.bf16.msra.mxu0 0
        %1942 = vmatprep.subr.bf16.mxu0 0
        %1943 = vmatpush1.bf16.msra.mxu0 0
        %1944 = vmatprep.subr.bf16.mxu0 0
        %1945 = vmatpush1.bf16.msra.mxu0 0
        %1946 = vmatprep.subr.bf16.mxu0 0
        %1947 = vmatpush1.bf16.msra.mxu0 0
        %1948 = vmatprep.subr.bf16.mxu0 0
        %1949 = vmatpush1.bf16.msra.mxu0 0
        %1950 = vmatprep.subr.bf16.mxu0 0
        %1951 = vmatpush1.bf16.msra.mxu0 0
        %1952 = vmatprep.subr.bf16.mxu0 0
        %1953 = vmatpush1.bf16.msra.mxu0 0
        %1954 = vmatprep.subr.bf16.mxu0 0
        %1955 = vmatpush1.bf16.msra.mxu0 0
        %1956 = vmatprep.subr.bf16.mxu0 0
        %1957 = vmatpush1.bf16.msra.mxu0 0
        %1958 = vmatprep.subr.bf16.mxu0 0
        %1959 = vmatpush1.bf16.msra.mxu0 0
        %1960 = vmatprep.mubr.bf16.mxu0 0
        %1961 = vmatmul.mubr.bf16.gmra.mrb[0].mxu0 %v1923
        %v1962 = vpop.f32.mrb[0].mxu0
        %v1963 = vadd.f32 0.0, %v1962
        %v1964 = vpop.f32.mrb[0].mxu0
        %v1965 = vpop.f32.mrb[0].mxu0
        %v1966 = vpop.f32.mrb[0].mxu0
        %1967 = vdwg.mxu0
        %v1968 = vpack.c.bf16 %v1656, %v1656
        %v1969 = vpack.c.bf16 %v1697, %v1697
        %v1971 = vsel %vm957, %v1968, 0
        %v1974 = vsel %vm957, %v1969, 0
        %1976 = vmatprep.subr.bf16.mxu0 0
        %1977 = vmatpush1.bf16.xpose.msra.mxu0 %v1974
        %1978 = vmatprep.subr.bf16.mxu0 0
        %1979 = vmatpush1.bf16.xpose.msra.mxu0 0
        %1980 = vmatprep.subr.bf16.mxu0 0
        %1981 = vmatpush1.bf16.xpose.msra.mxu0 0
        %1982 = vmatprep.subr.bf16.mxu0 0
        %1983 = vmatpush1.bf16.xpose.msra.mxu0 0
        %1984 = vmatprep.subr.bf16.mxu0 0
        %1985 = vmatpush1.bf16.xpose.msra.mxu0 0
        %1986 = vmatprep.subr.bf16.mxu0 0
        %1987 = vmatpush1.bf16.xpose.msra.mxu0 0
        %1988 = vmatprep.subr.bf16.mxu0 0
        %1989 = vmatpush1.bf16.xpose.msra.mxu0 0
        %1990 = vmatprep.subr.bf16.mxu0 0
        %1991 = vmatpush1.bf16.xpose.msra.mxu0 0
        %1992 = vmatprep.subr.bf16.mxu0 0
        %1993 = vmatpush1.bf16.xpose.msra.mxu0 0
        %1994 = vmatprep.subr.bf16.mxu0 0
        %1995 = vmatpush1.bf16.xpose.msra.mxu0 0
        %1996 = vmatprep.subr.bf16.mxu0 0
        %1997 = vmatpush1.bf16.xpose.msra.mxu0 0
        %1998 = vmatprep.subr.bf16.mxu0 0
        %1999 = vmatpush1.bf16.xpose.msra.mxu0 0
        %2000 = vmatprep.subr.bf16.mxu0 0
        %2001 = vmatpush1.bf16.xpose.msra.mxu0 0
        %2002 = vmatprep.subr.bf16.mxu0 0
        %2003 = vmatpush1.bf16.xpose.msra.mxu0 0
        %2004 = vmatprep.subr.bf16.mxu0 0
        %2005 = vmatpush1.bf16.xpose.msra.mxu0 0
        %2006 = vmatprep.subr.bf16.mxu0 0
        %2007 = vmatpush1.bf16.xpose.msra.mxu0 0
        %2008 = vmatprep.mubr.bf16.mxu0 0
        %2009 = vmatmul.mubr.bf16.gmra.mrb[0].mxu0 %v1971
        %v2010 = vpop.f32.mrb[0].mxu0
        %v2011 = vadd.f32 0.0, %v2010
        %v2012 = vpop.f32.mrb[0].mxu0
        %v2013 = vpop.f32.mrb[0].mxu0
        %v2014 = vpop.f32.mrb[0].mxu0
        %2015 = vdwg.mxu0
        %v2016 = vmul.f32 %v2011, 0.125
        %v2017 = vadd.f32 %v2016, %v1008
        %v2018 = vsel %vm1792, %v2017, -inf
        %2019 = vmax.xlane.f32.xlu0 %v2018
        %v2020 = vpop.xlane.xlu0 %2019
        %v2021 = vsub.f32 %v2017, %v2020
        %v2022 = vmul.f32 %v2021, 1.442695
        %v2023 = vpow.pop %v2022
        %v2024 = vsel %vm1792, %v2023, 0.0
        %2025 = vadd.xlane.f32.xlu0 %v2024
        %v2026 = vpop.xlane.xlu0 %2025
        %v2027 = vrcp.pop %v2026
        %v2028 = vmul.f32 %v2023, %v2027
        %v2029 = vpack.c.bf16 %v2028, %v2028
        %v2030 = vpack.c.bf16 %v1738, %v1738
        %v2032 = vsel %vm1792, %v2029, 0
        %v2035 = vsel %vm1809, %v2030, 0
        %2037 = vmatprep.subr.bf16.mxu0 0
        %2038 = vmatpush1.bf16.msra.mxu0 %v2035
        %2039 = vmatprep.subr.bf16.mxu0 0
        %2040 = vmatpush1.bf16.msra.mxu0 0
        %2041 = vmatprep.subr.bf16.mxu0 0
        %2042 = vmatpush1.bf16.msra.mxu0 0
        %2043 = vmatprep.subr.bf16.mxu0 0
        %2044 = vmatpush1.bf16.msra.mxu0 0
        %2045 = vmatprep.subr.bf16.mxu0 0
        %2046 = vmatpush1.bf16.msra.mxu0 0
        %2047 = vmatprep.subr.bf16.mxu0 0
        %2048 = vmatpush1.bf16.msra.mxu0 0
        %2049 = vmatprep.subr.bf16.mxu0 0
        %2050 = vmatpush1.bf16.msra.mxu0 0
        %2051 = vmatprep.subr.bf16.mxu0 0
        %2052 = vmatpush1.bf16.msra.mxu0 0
        %2053 = vmatprep.subr.bf16.mxu0 0
        %2054 = vmatpush1.bf16.msra.mxu0 0
        %2055 = vmatprep.subr.bf16.mxu0 0
        %2056 = vmatpush1.bf16.msra.mxu0 0
        %2057 = vmatprep.subr.bf16.mxu0 0
        %2058 = vmatpush1.bf16.msra.mxu0 0
        %2059 = vmatprep.subr.bf16.mxu0 0
        %2060 = vmatpush1.bf16.msra.mxu0 0
        %2061 = vmatprep.subr.bf16.mxu0 0
        %2062 = vmatpush1.bf16.msra.mxu0 0
        %2063 = vmatprep.subr.bf16.mxu0 0
        %2064 = vmatpush1.bf16.msra.mxu0 0
        %2065 = vmatprep.subr.bf16.mxu0 0
        %2066 = vmatpush1.bf16.msra.mxu0 0
        %2067 = vmatprep.subr.bf16.mxu0 0
        %2068 = vmatpush1.bf16.msra.mxu0 0
        %2069 = vmatprep.mubr.bf16.mxu0 0
        %2070 = vmatmul.mubr.bf16.gmra.mrb[0].mxu0 %v2032
        %v2071 = vpop.f32.mrb[0].mxu0
        %v2072 = vadd.f32 0.0, %v2071
        %v2073 = vpop.f32.mrb[0].mxu0
        %v2074 = vpop.f32.mrb[0].mxu0
        %v2075 = vpop.f32.mrb[0].mxu0
        %2076 = vdwg.mxu0
        %2078 = vrot.lane.b32.xlu0 %v1968, 64
        %v2079 = vpop.permute.xlu0 %2078
        %2081 = vrot.lane.b32.xlu0 %v1969, 64
        %v2082 = vpop.permute.xlu0 %2081
        %v2084 = vsel %vm957, %v2079, 0
        %v2087 = vsel %vm957, %v2082, 0
        %2089 = vmatprep.subr.bf16.mxu0 0
        %2090 = vmatpush1.bf16.xpose.msra.mxu0 %v2087
        %2091 = vmatprep.subr.bf16.mxu0 0
        %2092 = vmatpush1.bf16.xpose.msra.mxu0 0
        %2093 = vmatprep.subr.bf16.mxu0 0
        %2094 = vmatpush1.bf16.xpose.msra.mxu0 0
        %2095 = vmatprep.subr.bf16.mxu0 0
        %2096 = vmatpush1.bf16.xpose.msra.mxu0 0
        %2097 = vmatprep.subr.bf16.mxu0 0
        %2098 = vmatpush1.bf16.xpose.msra.mxu0 0
        %2099 = vmatprep.subr.bf16.mxu0 0
        %2100 = vmatpush1.bf16.xpose.msra.mxu0 0
        %2101 = vmatprep.subr.bf16.mxu0 0
        %2102 = vmatpush1.bf16.xpose.msra.mxu0 0
        %2103 = vmatprep.subr.bf16.mxu0 0
        %2104 = vmatpush1.bf16.xpose.msra.mxu0 0
        %2105 = vmatprep.subr.bf16.mxu0 0
        %2106 = vmatpush1.bf16.xpose.msra.mxu0 0
        %2107 = vmatprep.subr.bf16.mxu0 0
        %2108 = vmatpush1.bf16.xpose.msra.mxu0 0
        %2109 = vmatprep.subr.bf16.mxu0 0
        %2110 = vmatpush1.bf16.xpose.msra.mxu0 0
        %2111 = vmatprep.subr.bf16.mxu0 0
        %2112 = vmatpush1.bf16.xpose.msra.mxu0 0
        %2113 = vmatprep.subr.bf16.mxu0 0
        %2114 = vmatpush1.bf16.xpose.msra.mxu0 0
        %2115 = vmatprep.subr.bf16.mxu0 0
        %2116 = vmatpush1.bf16.xpose.msra.mxu0 0
        %2117 = vmatprep.subr.bf16.mxu0 0
        %2118 = vmatpush1.bf16.xpose.msra.mxu0 0
        %2119 = vmatprep.subr.bf16.mxu0 0
        %2120 = vmatpush1.bf16.xpose.msra.mxu0 0
        %2121 = vmatprep.mubr.bf16.mxu0 0
        %2122 = vmatmul.mubr.bf16.gmra.mrb[0].mxu0 %v2084
        %v2123 = vpop.f32.mrb[0].mxu0
        %v2124 = vadd.f32 0.0, %v2123
        %v2125 = vpop.f32.mrb[0].mxu0
        %v2126 = vpop.f32.mrb[0].mxu0
        %v2127 = vpop.f32.mrb[0].mxu0
        %2128 = vdwg.mxu0
        %v2129 = vmul.f32 %v2124, 0.125
        %v2130 = vadd.f32 %v2129, %v1008
        %v2131 = vsel %vm1792, %v2130, -inf
        %2132 = vmax.xlane.f32.xlu0 %v2131
        %v2133 = vpop.xlane.xlu0 %2132
        %v2134 = vsub.f32 %v2130, %v2133
        %v2135 = vmul.f32 %v2134, 1.442695
        %v2136 = vpow.pop %v2135
        %v2137 = vsel %vm1792, %v2136, 0.0
        %2138 = vadd.xlane.f32.xlu0 %v2137
        %v2139 = vpop.xlane.xlu0 %2138
        %v2140 = vrcp.pop %v2139
        %v2141 = vmul.f32 %v2136, %v2140
        %v2142 = vpack.c.bf16 %v2141, %v2141
        %2144 = vrot.lane.b32.xlu0 %v2030, 64
        %v2145 = vpop.permute.xlu0 %2144
        %v2147 = vsel %vm1792, %v2142, 0
        %v2150 = vsel %vm1809, %v2145, 0
        %2152 = vmatprep.subr.bf16.mxu0 0
        %2153 = vmatpush1.bf16.msra.mxu0 %v2150
        %2154 = vmatprep.subr.bf16.mxu0 0
        %2155 = vmatpush1.bf16.msra.mxu0 0
        %2156 = vmatprep.subr.bf16.mxu0 0
        %2157 = vmatpush1.bf16.msra.mxu0 0
        %2158 = vmatprep.subr.bf16.mxu0 0
        %2159 = vmatpush1.bf16.msra.mxu0 0
        %2160 = vmatprep.subr.bf16.mxu0 0
        %2161 = vmatpush1.bf16.msra.mxu0 0
        %2162 = vmatprep.subr.bf16.mxu0 0
        %2163 = vmatpush1.bf16.msra.mxu0 0
        %2164 = vmatprep.subr.bf16.mxu0 0
        %2165 = vmatpush1.bf16.msra.mxu0 0
        %2166 = vmatprep.subr.bf16.mxu0 0
        %2167 = vmatpush1.bf16.msra.mxu0 0
        %2168 = vmatprep.subr.bf16.mxu0 0
        %2169 = vmatpush1.bf16.msra.mxu0 0
        %2170 = vmatprep.subr.bf16.mxu0 0
        %2171 = vmatpush1.bf16.msra.mxu0 0
        %2172 = vmatprep.subr.bf16.mxu0 0
        %2173 = vmatpush1.bf16.msra.mxu0 0
        %2174 = vmatprep.subr.bf16.mxu0 0
        %2175 = vmatpush1.bf16.msra.mxu0 0
        %2176 = vmatprep.subr.bf16.mxu0 0
        %2177 = vmatpush1.bf16.msra.mxu0 0
        %2178 = vmatprep.subr.bf16.mxu0 0
        %2179 = vmatpush1.bf16.msra.mxu0 0
        %2180 = vmatprep.subr.bf16.mxu0 0
        %2181 = vmatpush1.bf16.msra.mxu0 0
        %2182 = vmatprep.subr.bf16.mxu0 0
        %2183 = vmatpush1.bf16.msra.mxu0 0
        %2184 = vmatprep.mubr.bf16.mxu0 0
        %2185 = vmatmul.mubr.bf16.gmra.mrb[0].mxu0 %v2147
        %v2186 = vpop.f32.mrb[0].mxu0
        %v2187 = vadd.f32 0.0, %v2186
        %v2188 = vpop.f32.mrb[0].mxu0
        %v2189 = vpop.f32.mrb[0].mxu0
        %v2190 = vpop.f32.mrb[0].mxu0
        %2191 = vdwg.mxu0
        %2193 = vrot.lane.b32.xlu0 %v1963, 64
        %v2194 = vpop.permute.xlu0 %2193
        %2197 = vrot.lane.b32.xlu0 %v2187, 64
        %v2198 = vpop.permute.xlu0 %2197
        %v2200 = vsel %vm957, %v1848, %v2194
        %v2201 = vsel %vm957, %v2072, %v2198
        %v2202 = vld [vmem:[#allocation10] sm:$0xff]
        %v2203 = vld [vmem:[#allocation10 + $0x8] sm:$0xff]
        %v2204 = vld [vmem:[#allocation10 + $0x10] sm:$0xff]
        %v2205 = vld [vmem:[#allocation10 + $0x18] sm:$0xff]
        %v2206 = vld [vmem:[#allocation10 + $0x20] sm:$0xff]
        %v2207 = vld [vmem:[#allocation10 + $0x28] sm:$0xff]
        %v2208 = vld [vmem:[#allocation10 + $0x30] sm:$0xff]
        %v2209 = vld [vmem:[#allocation10 + $0x38] sm:$0xff]
        %v2210 = vld [vmem:[#allocation10 + $0x40] sm:$0xff]
        %v2211 = vld [vmem:[#allocation10 + $0x48] sm:$0xff]
        %v2212 = vld [vmem:[#allocation10 + $0x50] sm:$0xff]
        %v2213 = vld [vmem:[#allocation10 + $0x58] sm:$0xff]
        %v2214 = vld [vmem:[#allocation10 + $0x60] sm:$0xff]
        %v2215 = vld [vmem:[#allocation10 + $0x68] sm:$0xff]
        %v2216 = vld [vmem:[#allocation10 + $0x70] sm:$0xff]
        %v2217 = vld [vmem:[#allocation10 + $0x78] sm:$0xff]
        %v2218 = vld [vmem:[#allocation10 + $0x80] sm:$0xff]
        %v2219 = vld [vmem:[#allocation10 + $0x88] sm:$0xff]
        %v2220 = vld [vmem:[#allocation10 + $0x90] sm:$0xff]
        %v2221 = vld [vmem:[#allocation10 + $0x98] sm:$0xff]
        %v2222 = vld [vmem:[#allocation10 + $0xa0] sm:$0xff]
        %v2223 = vld [vmem:[#allocation10 + $0xa8] sm:$0xff]
        %v2224 = vld [vmem:[#allocation10 + $0xb0] sm:$0xff]
        %v2225 = vld [vmem:[#allocation10 + $0xb8] sm:$0xff]
        %v2226 = vld [vmem:[#allocation10 + $0xc0] sm:$0xff]
        %v2227 = vld [vmem:[#allocation10 + $0xc8] sm:$0xff]
        %v2228 = vld [vmem:[#allocation10 + $0xd0] sm:$0xff]
        %v2229 = vld [vmem:[#allocation10 + $0xd8] sm:$0xff]
        %v2230 = vld [vmem:[#allocation10 + $0xe0] sm:$0xff]
        %v2231 = vld [vmem:[#allocation10 + $0xe8] sm:$0xff]
        %v2232 = vld [vmem:[#allocation10 + $0xf0] sm:$0xff]
        %v2233 = vld [vmem:[#allocation10 + $0xf8] sm:$0xff]
        %v2234 = vpack.c.bf16 %v2200, %v2200
        %v2235 = vpack.c.bf16 %v2201, %v2201
        %v2236 = vld [vmem:[#allocation11] sm:$0x3]
        %v2238 = vlaneseq
        %v2239 = vshrl.u32 %v2238, 7
        %v2240 = vsub.s32 0, %v2239
        %v2241 = vrot.slane %v2236, %v2240
        %v2242 = vlaneseq
        %v2243 = vshrl.u32 %v2242, 7
        %v2244 = vsub.s32 1, %v2243
        %v2245 = vrot.slane %v2236, %v2244
        %v2280 = vunpack.c.l.b16 %v2202
        %v2281 = vunpack.c.h.b16 %v2202
        %v2282 = vunpack.c.l.b16 %v2203
        %v2283 = vunpack.c.h.b16 %v2203
        %v2284 = vunpack.c.l.b16 %v2204
        %v2285 = vunpack.c.h.b16 %v2204
        %v2286 = vunpack.c.l.b16 %v2205
        %v2287 = vunpack.c.h.b16 %v2205
        %v2288 = vunpack.c.l.b16 %v2206
        %v2289 = vunpack.c.h.b16 %v2206
        %v2290 = vunpack.c.l.b16 %v2207
        %v2291 = vunpack.c.h.b16 %v2207
        %v2292 = vunpack.c.l.b16 %v2208
        %v2293 = vunpack.c.h.b16 %v2208
        %v2294 = vunpack.c.l.b16 %v2209
        %v2295 = vunpack.c.h.b16 %v2209
        %v2296 = vunpack.c.l.b16 %v2210
        %v2297 = vunpack.c.h.b16 %v2210
        %v2298 = vunpack.c.l.b16 %v2211
        %v2299 = vunpack.c.h.b16 %v2211
        %v2300 = vunpack.c.l.b16 %v2212
        %v2301 = vunpack.c.h.b16 %v2212
        %v2302 = vunpack.c.l.b16 %v2213
        %v2303 = vunpack.c.h.b16 %v2213
        %v2304 = vunpack.c.l.b16 %v2214
        %v2305 = vunpack.c.h.b16 %v2214
        %v2306 = vunpack.c.l.b16 %v2215
        %v2307 = vunpack.c.h.b16 %v2215
        %v2308 = vunpack.c.l.b16 %v2216
        %v2309 = vunpack.c.h.b16 %v2216
        %v2310 = vunpack.c.l.b16 %v2217
        %v2311 = vunpack.c.h.b16 %v2217
        %v2312 = vunpack.c.l.b16 %v2218
        %v2313 = vunpack.c.h.b16 %v2218
        %v2314 = vunpack.c.l.b16 %v2219
        %v2315 = vunpack.c.h.b16 %v2219
        %v2316 = vunpack.c.l.b16 %v2220
        %v2317 = vunpack.c.h.b16 %v2220
        %v2318 = vunpack.c.l.b16 %v2221
        %v2319 = vunpack.c.h.b16 %v2221
        %v2320 = vunpack.c.l.b16 %v2222
        %v2321 = vunpack.c.h.b16 %v2222
        %v2322 = vunpack.c.l.b16 %v2223
        %v2323 = vunpack.c.h.b16 %v2223
        %v2324 = vunpack.c.l.b16 %v2224
        %v2325 = vunpack.c.h.b16 %v2224
        %v2326 = vunpack.c.l.b16 %v2225
        %v2327 = vunpack.c.h.b16 %v2225
        %v2328 = vunpack.c.l.b16 %v2226
        %v2329 = vunpack.c.h.b16 %v2226
        %v2330 = vunpack.c.l.b16 %v2227
        %v2331 = vunpack.c.h.b16 %v2227
        %v2332 = vunpack.c.l.b16 %v2228
        %v2333 = vunpack.c.h.b16 %v2228
        %v2334 = vunpack.c.l.b16 %v2229
        %v2335 = vunpack.c.h.b16 %v2229
        %v2336 = vunpack.c.l.b16 %v2230
        %v2337 = vunpack.c.h.b16 %v2230
        %v2338 = vunpack.c.l.b16 %v2231
        %v2339 = vunpack.c.h.b16 %v2231
        %v2340 = vunpack.c.l.b16 %v2232
        %v2341 = vunpack.c.h.b16 %v2232
        %v2342 = vunpack.c.l.b16 %v2233
        %v2343 = vunpack.c.h.b16 %v2233
        %v2344 = vpack.c.b16 %v2282, %v2280
        %v2345 = vpack.c.b16 %v2283, %v2281
        %v2346 = vpack.c.b16 %v2286, %v2284
        %v2347 = vpack.c.b16 %v2287, %v2285
        %v2348 = vpack.c.b16 %v2290, %v2288
        %v2349 = vpack.c.b16 %v2291, %v2289
        %v2350 = vpack.c.b16 %v2294, %v2292
        %v2351 = vpack.c.b16 %v2295, %v2293
        %v2352 = vpack.c.b16 %v2298, %v2296
        %v2353 = vpack.c.b16 %v2299, %v2297
        %v2354 = vpack.c.b16 %v2302, %v2300
        %v2355 = vpack.c.b16 %v2303, %v2301
        %v2356 = vpack.c.b16 %v2306, %v2304
        %v2357 = vpack.c.b16 %v2307, %v2305
        %v2358 = vpack.c.b16 %v2310, %v2308
        %v2359 = vpack.c.b16 %v2311, %v2309
        %v2360 = vpack.c.b16 %v2314, %v2312
        %v2361 = vpack.c.b16 %v2315, %v2313
        %v2362 = vpack.c.b16 %v2318, %v2316
        %v2363 = vpack.c.b16 %v2319, %v2317
        %v2364 = vpack.c.b16 %v2322, %v2320
        %v2365 = vpack.c.b16 %v2323, %v2321
        %v2366 = vpack.c.b16 %v2326, %v2324
        %v2367 = vpack.c.b16 %v2327, %v2325
        %v2368 = vpack.c.b16 %v2330, %v2328
        %v2369 = vpack.c.b16 %v2331, %v2329
        %v2370 = vpack.c.b16 %v2334, %v2332
        %v2371 = vpack.c.b16 %v2335, %v2333
        %v2372 = vpack.c.b16 %v2338, %v2336
        %v2373 = vpack.c.b16 %v2339, %v2337
        %v2374 = vpack.c.b16 %v2342, %v2340
        %v2375 = vpack.c.b16 %v2343, %v2341
        %2408 = vmatprep.subr.bf16.mxu0 %v2345
        %2409 = vmatpush1.bf16.msra.mxu0 %v2344
        %2410 = vmatprep.subr.bf16.mxu0 %v2347
        %2411 = vmatpush1.bf16.msra.mxu0 %v2346
        %2412 = vmatprep.subr.bf16.mxu0 %v2349
        %2413 = vmatpush1.bf16.msra.mxu0 %v2348
        %2414 = vmatprep.subr.bf16.mxu0 %v2351
        %2415 = vmatpush1.bf16.msra.mxu0 %v2350
        %2416 = vmatprep.subr.bf16.mxu0 %v2353
        %2417 = vmatpush1.bf16.msra.mxu0 %v2352
        %2418 = vmatprep.subr.bf16.mxu0 %v2355
        %2419 = vmatpush1.bf16.msra.mxu0 %v2354
        %2420 = vmatprep.subr.bf16.mxu0 %v2357
        %2421 = vmatpush1.bf16.msra.mxu0 %v2356
        %2422 = vmatprep.subr.bf16.mxu0 %v2359
        %2423 = vmatpush1.bf16.msra.mxu0 %v2358
        %2424 = vmatprep.subr.bf16.mxu0 %v2361
        %2425 = vmatpush1.bf16.msra.mxu0 %v2360
        %2426 = vmatprep.subr.bf16.mxu0 %v2363
        %2427 = vmatpush1.bf16.msra.mxu0 %v2362
        %2428 = vmatprep.subr.bf16.mxu0 %v2365
        %2429 = vmatpush1.bf16.msra.mxu0 %v2364
        %2430 = vmatprep.subr.bf16.mxu0 %v2367
        %2431 = vmatpush1.bf16.msra.mxu0 %v2366
        %2432 = vmatprep.subr.bf16.mxu0 %v2369
        %2433 = vmatpush1.bf16.msra.mxu0 %v2368
        %2434 = vmatprep.subr.bf16.mxu0 %v2371
        %2435 = vmatpush1.bf16.msra.mxu0 %v2370
        %2436 = vmatprep.subr.bf16.mxu0 %v2373
        %2437 = vmatpush1.bf16.msra.mxu0 %v2372
        %2438 = vmatprep.subr.bf16.mxu0 %v2375
        %2439 = vmatpush1.bf16.msra.mxu0 %v2374
        %2440 = vmatprep.mubr.bf16.mxu0 %v2235
        %2441 = vmatmul.mubr.bf16.gmra.mrb[0].mxu0 %v2234
        %v2442 = vpop.f32.mrb[0].mxu0
        %v2443 = vadd.f32 %v2241, %v2442
        %v2444 = vpop.f32.mrb[0].mxu0
        %v2445 = vadd.f32 %v2245, %v2444
        %v2446 = vpop.f32.mrb[0].mxu0
        %v2447 = vpop.f32.mrb[0].mxu0
        %2448 = vdwg.mxu0
        %v2449 = vadd.f32 %v1006, %v2443
        %v2450 = vadd.f32 %v1007, %v2445
        %v2451 = vld [vmem:[#allocation13] sm:$0x3]
        %v2452 = vld [vmem:[#allocation14] sm:$0x3]
        %v2453 = vadd.f32 %v2449, %v2450
        %2454 = vadd.xlane.f32.xlu0 %v2453
        %v2455 = vpop.xlane.xlu0 %2454
        %v2456 = vrcp.pop 256.0
        %v2457 = vmul.f32 %v2455, %v2456
        %v2458 = vsub.f32 %v2449, %v2457
        %v2459 = vsub.f32 %v2450, %v2457
        %v2460 = vmul.f32 %v2458, %v2458
        %v2461 = vmul.f32 %v2459, %v2459
        %v2462 = vadd.f32 %v2460, %v2461
        %2463 = vadd.xlane.f32.xlu0 %v2462
        %v2464 = vpop.xlane.xlu0 %2463
        %v2465 = vmul.f32 %v2464, %v2456
        %v2466 = vadd.f32 %v2465, 1e-05
        %v2467 = vrsqrt.pop %v2466
        %v2468 = vmul.f32 %v2458, %v2467
        %v2469 = vmul.f32 %v2459, %v2467
        %v2471 = vlaneseq
        %v2472 = vshrl.u32 %v2471, 7
        %v2473 = vsub.s32 0, %v2472
        %v2474 = vrot.slane %v2451, %v2473
        %v2475 = vlaneseq
        %v2476 = vshrl.u32 %v2475, 7
        %v2477 = vsub.s32 1, %v2476
        %v2478 = vrot.slane %v2451, %v2477
        %v2481 = vmul.f32 %v2468, %v2474
        %v2482 = vmul.f32 %v2469, %v2478
        %v2484 = vlaneseq
        %v2485 = vshrl.u32 %v2484, 7
        %v2486 = vsub.s32 0, %v2485
        %v2487 = vrot.slane %v2452, %v2486
        %v2488 = vlaneseq
        %v2489 = vshrl.u32 %v2488, 7
        %v2490 = vsub.s32 1, %v2489
        %v2491 = vrot.slane %v2452, %v2490
        %v2494 = vadd.f32 %v2481, %v2487
        %v2495 = vadd.f32 %v2482, %v2491
        %v2496 = vld [vmem:[#allocation16] sm:$0xff]
        %v2497 = vld [vmem:[#allocation16 + $0x8] sm:$0xff]
        %v2498 = vld [vmem:[#allocation16 + $0x10] sm:$0xff]
        %v2499 = vld [vmem:[#allocation16 + $0x18] sm:$0xff]
        %v2500 = vld [vmem:[#allocation16 + $0x20] sm:$0xff]
        %v2501 = vld [vmem:[#allocation16 + $0x28] sm:$0xff]
        %v2502 = vld [vmem:[#allocation16 + $0x30] sm:$0xff]
        %v2503 = vld [vmem:[#allocation16 + $0x38] sm:$0xff]
        %v2504 = vld [vmem:[#allocation16 + $0x40] sm:$0xff]
        %v2505 = vld [vmem:[#allocation16 + $0x48] sm:$0xff]
        %v2506 = vld [vmem:[#allocation16 + $0x50] sm:$0xff]
        %v2507 = vld [vmem:[#allocation16 + $0x58] sm:$0xff]
        %v2508 = vld [vmem:[#allocation16 + $0x60] sm:$0xff]
        %v2509 = vld [vmem:[#allocation16 + $0x68] sm:$0xff]
        %v2510 = vld [vmem:[#allocation16 + $0x70] sm:$0xff]
        %v2511 = vld [vmem:[#allocation16 + $0x78] sm:$0xff]
        %v2512 = vld [vmem:[#allocation16 + $0x80] sm:$0xff]
        %v2513 = vld [vmem:[#allocation16 + $0x88] sm:$0xff]
        %v2514 = vld [vmem:[#allocation16 + $0x90] sm:$0xff]
        %v2515 = vld [vmem:[#allocation16 + $0x98] sm:$0xff]
        %v2516 = vld [vmem:[#allocation16 + $0xa0] sm:$0xff]
        %v2517 = vld [vmem:[#allocation16 + $0xa8] sm:$0xff]
        %v2518 = vld [vmem:[#allocation16 + $0xb0] sm:$0xff]
        %v2519 = vld [vmem:[#allocation16 + $0xb8] sm:$0xff]
        %v2520 = vld [vmem:[#allocation16 + $0xc0] sm:$0xff]
        %v2521 = vld [vmem:[#allocation16 + $0xc8] sm:$0xff]
        %v2522 = vld [vmem:[#allocation16 + $0xd0] sm:$0xff]
        %v2523 = vld [vmem:[#allocation16 + $0xd8] sm:$0xff]
        %v2524 = vld [vmem:[#allocation16 + $0xe0] sm:$0xff]
        %v2525 = vld [vmem:[#allocation16 + $0xe8] sm:$0xff]
        %v2526 = vld [vmem:[#allocation16 + $0xf0] sm:$0xff]
        %v2527 = vld [vmem:[#allocation16 + $0xf8] sm:$0xff]
        %v2528 = vld [vmem:[#allocation16 + $0x100] sm:$0xff]
        %v2529 = vld [vmem:[#allocation16 + $0x108] sm:$0xff]
        %v2530 = vld [vmem:[#allocation16 + $0x110] sm:$0xff]
        %v2531 = vld [vmem:[#allocation16 + $0x118] sm:$0xff]
        %v2532 = vld [vmem:[#allocation16 + $0x120] sm:$0xff]
        %v2533 = vld [vmem:[#allocation16 + $0x128] sm:$0xff]
        %v2534 = vld [vmem:[#allocation16 + $0x130] sm:$0xff]
        %v2535 = vld [vmem:[#allocation16 + $0x138] sm:$0xff]
        %v2536 = vld [vmem:[#allocation16 + $0x140] sm:$0xff]
        %v2537 = vld [vmem:[#allocation16 + $0x148] sm:$0xff]
        %v2538 = vld [vmem:[#allocation16 + $0x150] sm:$0xff]
        %v2539 = vld [vmem:[#allocation16 + $0x158] sm:$0xff]
        %v2540 = vld [vmem:[#allocation16 + $0x160] sm:$0xff]
        %v2541 = vld [vmem:[#allocation16 + $0x168] sm:$0xff]
        %v2542 = vld [vmem:[#allocation16 + $0x170] sm:$0xff]
        %v2543 = vld [vmem:[#allocation16 + $0x178] sm:$0xff]
        %v2544 = vld [vmem:[#allocation16 + $0x180] sm:$0xff]
        %v2545 = vld [vmem:[#allocation16 + $0x188] sm:$0xff]
        %v2546 = vld [vmem:[#allocation16 + $0x190] sm:$0xff]
        %v2547 = vld [vmem:[#allocation16 + $0x198] sm:$0xff]
        %v2548 = vld [vmem:[#allocation16 + $0x1a0] sm:$0xff]
        %v2549 = vld [vmem:[#allocation16 + $0x1a8] sm:$0xff]
        %v2550 = vld [vmem:[#allocation16 + $0x1b0] sm:$0xff]
        %v2551 = vld [vmem:[#allocation16 + $0x1b8] sm:$0xff]
        %v2552 = vld [vmem:[#allocation16 + $0x1c0] sm:$0xff]
        %v2553 = vld [vmem:[#allocation16 + $0x1c8] sm:$0xff]
        %v2554 = vld [vmem:[#allocation16 + $0x1d0] sm:$0xff]
        %v2555 = vld [vmem:[#allocation16 + $0x1d8] sm:$0xff]
        %v2556 = vld [vmem:[#allocation16 + $0x1e0] sm:$0xff]
        %v2557 = vld [vmem:[#allocation16 + $0x1e8] sm:$0xff]
        %v2558 = vld [vmem:[#allocation16 + $0x1f0] sm:$0xff]
        %v2559 = vld [vmem:[#allocation16 + $0x1f8] sm:$0xff]
        %v2560 = vpack.c.bf16 %v2494, %v2494
        %v2561 = vpack.c.bf16 %v2495, %v2495
        %v2562 = vld [vmem:[#allocation17] sm:$0xf]
        %v2564 = vlaneseq
        %v2565 = vshrl.u32 %v2564, 7
        %v2566 = vsub.s32 0, %v2565
        %v2567 = vrot.slane %v2562, %v2566
        %v2568 = vlaneseq
        %v2569 = vshrl.u32 %v2568, 7
        %v2570 = vsub.s32 1, %v2569
        %v2571 = vrot.slane %v2562, %v2570
        %v2572 = vlaneseq
        %v2573 = vshrl.u32 %v2572, 7
        %v2574 = vsub.s32 2, %v2573
        %v2575 = vrot.slane %v2562, %v2574
        %v2576 = vlaneseq
        %v2577 = vshrl.u32 %v2576, 7
        %v2578 = vsub.s32 3, %v2577
        %v2579 = vrot.slane %v2562, %v2578
        %v2648 = vunpack.c.l.b16 %v2496
        %v2649 = vunpack.c.h.b16 %v2496
        %v2650 = vunpack.c.l.b16 %v2497
        %v2651 = vunpack.c.h.b16 %v2497
        %v2652 = vunpack.c.l.b16 %v2498
        %v2653 = vunpack.c.h.b16 %v2498
        %v2654 = vunpack.c.l.b16 %v2499
        %v2655 = vunpack.c.h.b16 %v2499
        %v2656 = vunpack.c.l.b16 %v2500
        %v2657 = vunpack.c.h.b16 %v2500
        %v2658 = vunpack.c.l.b16 %v2501
        %v2659 = vunpack.c.h.b16 %v2501
        %v2660 = vunpack.c.l.b16 %v2502
        %v2661 = vunpack.c.h.b16 %v2502
        %v2662 = vunpack.c.l.b16 %v2503
        %v2663 = vunpack.c.h.b16 %v2503
        %v2664 = vunpack.c.l.b16 %v2504
        %v2665 = vunpack.c.h.b16 %v2504
        %v2666 = vunpack.c.l.b16 %v2505
        %v2667 = vunpack.c.h.b16 %v2505
        %v2668 = vunpack.c.l.b16 %v2506
        %v2669 = vunpack.c.h.b16 %v2506
        %v2670 = vunpack.c.l.b16 %v2507
        %v2671 = vunpack.c.h.b16 %v2507
        %v2672 = vunpack.c.l.b16 %v2508
        %v2673 = vunpack.c.h.b16 %v2508
        %v2674 = vunpack.c.l.b16 %v2509
        %v2675 = vunpack.c.h.b16 %v2509
        %v2676 = vunpack.c.l.b16 %v2510
        %v2677 = vunpack.c.h.b16 %v2510
        %v2678 = vunpack.c.l.b16 %v2511
        %v2679 = vunpack.c.h.b16 %v2511
        %v2680 = vunpack.c.l.b16 %v2512
        %v2681 = vunpack.c.h.b16 %v2512
        %v2682 = vunpack.c.l.b16 %v2513
        %v2683 = vunpack.c.h.b16 %v2513
        %v2684 = vunpack.c.l.b16 %v2514
        %v2685 = vunpack.c.h.b16 %v2514
        %v2686 = vunpack.c.l.b16 %v2515
        %v2687 = vunpack.c.h.b16 %v2515
        %v2688 = vunpack.c.l.b16 %v2516
        %v2689 = vunpack.c.h.b16 %v2516
        %v2690 = vunpack.c.l.b16 %v2517
        %v2691 = vunpack.c.h.b16 %v2517
        %v2692 = vunpack.c.l.b16 %v2518
        %v2693 = vunpack.c.h.b16 %v2518
        %v2694 = vunpack.c.l.b16 %v2519
        %v2695 = vunpack.c.h.b16 %v2519
        %v2696 = vunpack.c.l.b16 %v2520
        %v2697 = vunpack.c.h.b16 %v2520
        %v2698 = vunpack.c.l.b16 %v2521
        %v2699 = vunpack.c.h.b16 %v2521
        %v2700 = vunpack.c.l.b16 %v2522
        %v2701 = vunpack.c.h.b16 %v2522
        %v2702 = vunpack.c.l.b16 %v2523
        %v2703 = vunpack.c.h.b16 %v2523
        %v2704 = vunpack.c.l.b16 %v2524
        %v2705 = vunpack.c.h.b16 %v2524
        %v2706 = vunpack.c.l.b16 %v2525
        %v2707 = vunpack.c.h.b16 %v2525
        %v2708 = vunpack.c.l.b16 %v2526
        %v2709 = vunpack.c.h.b16 %v2526
        %v2710 = vunpack.c.l.b16 %v2527
        %v2711 = vunpack.c.h.b16 %v2527
        %v2712 = vunpack.c.l.b16 %v2528
        %v2713 = vunpack.c.h.b16 %v2528
        %v2714 = vunpack.c.l.b16 %v2529
        %v2715 = vunpack.c.h.b16 %v2529
        %v2716 = vunpack.c.l.b16 %v2530
        %v2717 = vunpack.c.h.b16 %v2530
        %v2718 = vunpack.c.l.b16 %v2531
        %v2719 = vunpack.c.h.b16 %v2531
        %v2720 = vunpack.c.l.b16 %v2532
        %v2721 = vunpack.c.h.b16 %v2532
        %v2722 = vunpack.c.l.b16 %v2533
        %v2723 = vunpack.c.h.b16 %v2533
        %v2724 = vunpack.c.l.b16 %v2534
        %v2725 = vunpack.c.h.b16 %v2534
        %v2726 = vunpack.c.l.b16 %v2535
        %v2727 = vunpack.c.h.b16 %v2535
        %v2728 = vunpack.c.l.b16 %v2536
        %v2729 = vunpack.c.h.b16 %v2536
        %v2730 = vunpack.c.l.b16 %v2537
        %v2731 = vunpack.c.h.b16 %v2537
        %v2732 = vunpack.c.l.b16 %v2538
        %v2733 = vunpack.c.h.b16 %v2538
        %v2734 = vunpack.c.l.b16 %v2539
        %v2735 = vunpack.c.h.b16 %v2539
        %v2736 = vunpack.c.l.b16 %v2540
        %v2737 = vunpack.c.h.b16 %v2540
        %v2738 = vunpack.c.l.b16 %v2541
        %v2739 = vunpack.c.h.b16 %v2541
        %v2740 = vunpack.c.l.b16 %v2542
        %v2741 = vunpack.c.h.b16 %v2542
        %v2742 = vunpack.c.l.b16 %v2543
        %v2743 = vunpack.c.h.b16 %v2543
        %v2744 = vunpack.c.l.b16 %v2544
        %v2745 = vunpack.c.h.b16 %v2544
        %v2746 = vunpack.c.l.b16 %v2545
        %v2747 = vunpack.c.h.b16 %v2545
        %v2748 = vunpack.c.l.b16 %v2546
        %v2749 = vunpack.c.h.b16 %v2546
        %v2750 = vunpack.c.l.b16 %v2547
        %v2751 = vunpack.c.h.b16 %v2547
        %v2752 = vunpack.c.l.b16 %v2548
        %v2753 = vunpack.c.h.b16 %v2548
        %v2754 = vunpack.c.l.b16 %v2549
        %v2755 = vunpack.c.h.b16 %v2549
        %v2756 = vunpack.c.l.b16 %v2550
        %v2757 = vunpack.c.h.b16 %v2550
        %v2758 = vunpack.c.l.b16 %v2551
        %v2759 = vunpack.c.h.b16 %v2551
        %v2760 = vunpack.c.l.b16 %v2552
        %v2761 = vunpack.c.h.b16 %v2552
        %v2762 = vunpack.c.l.b16 %v2553
        %v2763 = vunpack.c.h.b16 %v2553
        %v2764 = vunpack.c.l.b16 %v2554
        %v2765 = vunpack.c.h.b16 %v2554
        %v2766 = vunpack.c.l.b16 %v2555
        %v2767 = vunpack.c.h.b16 %v2555
        %v2768 = vunpack.c.l.b16 %v2556
        %v2769 = vunpack.c.h.b16 %v2556
        %v2770 = vunpack.c.l.b16 %v2557
        %v2771 = vunpack.c.h.b16 %v2557
        %v2772 = vunpack.c.l.b16 %v2558
        %v2773 = vunpack.c.h.b16 %v2558
        %v2774 = vunpack.c.l.b16 %v2559
        %v2775 = vunpack.c.h.b16 %v2559
        %v2776 = vpack.c.b16 %v2652, %v2648
        %v2777 = vpack.c.b16 %v2653, %v2649
        %v2778 = vpack.c.b16 %v2654, %v2650
        %v2779 = vpack.c.b16 %v2655, %v2651
        %v2780 = vpack.c.b16 %v2660, %v2656
        %v2781 = vpack.c.b16 %v2661, %v2657
        %v2782 = vpack.c.b16 %v2662, %v2658
        %v2783 = vpack.c.b16 %v2663, %v2659
        %v2784 = vpack.c.b16 %v2668, %v2664
        %v2785 = vpack.c.b16 %v2669, %v2665
        %v2786 = vpack.c.b16 %v2670, %v2666
        %v2787 = vpack.c.b16 %v2671, %v2667
        %v2788 = vpack.c.b16 %v2676, %v2672
        %v2789 = vpack.c.b16 %v2677, %v2673
        %v2790 = vpack.c.b16 %v2678, %v2674
        %v2791 = vpack.c.b16 %v2679, %v2675
        %v2792 = vpack.c.b16 %v2684, %v2680
        %v2793 = vpack.c.b16 %v2685, %v2681
        %v2794 = vpack.c.b16 %v2686, %v2682
        %v2795 = vpack.c.b16 %v2687, %v2683
        %v2796 = vpack.c.b16 %v2692, %v2688
        %v2797 = vpack.c.b16 %v2693, %v2689
        %v2798 = vpack.c.b16 %v2694, %v2690
        %v2799 = vpack.c.b16 %v2695, %v2691
        %v2800 = vpack.c.b16 %v2700, %v2696
        %v2801 = vpack.c.b16 %v2701, %v2697
        %v2802 = vpack.c.b16 %v2702, %v2698
        %v2803 = vpack.c.b16 %v2703, %v2699
        %v2804 = vpack.c.b16 %v2708, %v2704
        %v2805 = vpack.c.b16 %v2709, %v2705
        %v2806 = vpack.c.b16 %v2710, %v2706
        %v2807 = vpack.c.b16 %v2711, %v2707
        %v2808 = vpack.c.b16 %v2716, %v2712
        %v2809 = vpack.c.b16 %v2717, %v2713
        %v2810 = vpack.c.b16 %v2718, %v2714
        %v2811 = vpack.c.b16 %v2719, %v2715
        %v2812 = vpack.c.b16 %v2724, %v2720
        %v2813 = vpack.c.b16 %v2725, %v2721
        %v2814 = vpack.c.b16 %v2726, %v2722
        %v2815 = vpack.c.b16 %v2727, %v2723
        %v2816 = vpack.c.b16 %v2732, %v2728
        %v2817 = vpack.c.b16 %v2733, %v2729
        %v2818 = vpack.c.b16 %v2734, %v2730
        %v2819 = vpack.c.b16 %v2735, %v2731
        %v2820 = vpack.c.b16 %v2740, %v2736
        %v2821 = vpack.c.b16 %v2741, %v2737
        %v2822 = vpack.c.b16 %v2742, %v2738
        %v2823 = vpack.c.b16 %v2743, %v2739
        %v2824 = vpack.c.b16 %v2748, %v2744
        %v2825 = vpack.c.b16 %v2749, %v2745
        %v2826 = vpack.c.b16 %v2750, %v2746
        %v2827 = vpack.c.b16 %v2751, %v2747
        %v2828 = vpack.c.b16 %v2756, %v2752
        %v2829 = vpack.c.b16 %v2757, %v2753
        %v2830 = vpack.c.b16 %v2758, %v2754
        %v2831 = vpack.c.b16 %v2759, %v2755
        %v2832 = vpack.c.b16 %v2764, %v2760
        %v2833 = vpack.c.b16 %v2765, %v2761
        %v2834 = vpack.c.b16 %v2766, %v2762
        %v2835 = vpack.c.b16 %v2767, %v2763
        %v2836 = vpack.c.b16 %v2772, %v2768
        %v2837 = vpack.c.b16 %v2773, %v2769
        %v2838 = vpack.c.b16 %v2774, %v2770
        %v2839 = vpack.c.b16 %v2775, %v2771
        %2904 = vmatprep.subr.bf16.mxu0 %v2777
        %2905 = vmatpush1.bf16.msra.mxu0 %v2776
        %2906 = vmatprep.subr.bf16.mxu0 %v2781
        %2907 = vmatpush1.bf16.msra.mxu0 %v2780
        %2908 = vmatprep.subr.bf16.mxu0 %v2785
        %2909 = vmatpush1.bf16.msra.mxu0 %v2784
        %2910 = vmatprep.subr.bf16.mxu0 %v2789
        %2911 = vmatpush1.bf16.msra.mxu0 %v2788
        %2912 = vmatprep.subr.bf16.mxu0 %v2793
        %2913 = vmatpush1.bf16.msra.mxu0 %v2792
        %2914 = vmatprep.subr.bf16.mxu0 %v2797
        %2915 = vmatpush1.bf16.msra.mxu0 %v2796
        %2916 = vmatprep.subr.bf16.mxu0 %v2801
        %2917 = vmatpush1.bf16.msra.mxu0 %v2800
        %2918 = vmatprep.subr.bf16.mxu0 %v2805
        %2919 = vmatpush1.bf16.msra.mxu0 %v2804
        %2920 = vmatprep.subr.bf16.mxu0 %v2809
        %2921 = vmatpush1.bf16.msra.mxu0 %v2808
        %2922 = vmatprep.subr.bf16.mxu0 %v2813
        %2923 = vmatpush1.bf16.msra.mxu0 %v2812
        %2924 = vmatprep.subr.bf16.mxu0 %v2817
        %2925 = vmatpush1.bf16.msra.mxu0 %v2816
        %2926 = vmatprep.subr.bf16.mxu0 %v2821
        %2927 = vmatpush1.bf16.msra.mxu0 %v2820
        %2928 = vmatprep.subr.bf16.mxu0 %v2825
        %2929 = vmatpush1.bf16.msra.mxu0 %v2824
        %2930 = vmatprep.subr.bf16.mxu0 %v2829
        %2931 = vmatpush1.bf16.msra.mxu0 %v2828
        %2932 = vmatprep.subr.bf16.mxu0 %v2833
        %2933 = vmatpush1.bf16.msra.mxu0 %v2832
        %2934 = vmatprep.subr.bf16.mxu0 %v2837
        %2935 = vmatpush1.bf16.msra.mxu0 %v2836
        %2936 = vmatprep.mubr.bf16.mxu0 %v2561
        %2937 = vmatmul.mubr.bf16.gmra.mrb[0].mxu0 %v2560
        %v2938 = vpop.f32.mrb[0].mxu0
        %v2939 = vadd.f32 %v2567, %v2938
        %v2940 = vpop.f32.mrb[0].mxu0
        %v2941 = vadd.f32 %v2571, %v2940
        %v2942 = vpop.f32.mrb[0].mxu0
        %v2943 = vpop.f32.mrb[0].mxu0
        %2944 = vdwg.mxu0
        %2945 = vmatprep.subr.bf16.mxu0 %v2779
        %2946 = vmatpush1.bf16.msra.mxu0 %v2778
        %2947 = vmatprep.subr.bf16.mxu0 %v2783
        %2948 = vmatpush1.bf16.msra.mxu0 %v2782
        %2949 = vmatprep.subr.bf16.mxu0 %v2787
        %2950 = vmatpush1.bf16.msra.mxu0 %v2786
        %2951 = vmatprep.subr.bf16.mxu0 %v2791
        %2952 = vmatpush1.bf16.msra.mxu0 %v2790
        %2953 = vmatprep.subr.bf16.mxu0 %v2795
        %2954 = vmatpush1.bf16.msra.mxu0 %v2794
        %2955 = vmatprep.subr.bf16.mxu0 %v2799
        %2956 = vmatpush1.bf16.msra.mxu0 %v2798
        %2957 = vmatprep.subr.bf16.mxu0 %v2803
        %2958 = vmatpush1.bf16.msra.mxu0 %v2802
        %2959 = vmatprep.subr.bf16.mxu0 %v2807
        %2960 = vmatpush1.bf16.msra.mxu0 %v2806
        %2961 = vmatprep.subr.bf16.mxu0 %v2811
        %2962 = vmatpush1.bf16.msra.mxu0 %v2810
        %2963 = vmatprep.subr.bf16.mxu0 %v2815
        %2964 = vmatpush1.bf16.msra.mxu0 %v2814
        %2965 = vmatprep.subr.bf16.mxu0 %v2819
        %2966 = vmatpush1.bf16.msra.mxu0 %v2818
        %2967 = vmatprep.subr.bf16.mxu0 %v2823
        %2968 = vmatpush1.bf16.msra.mxu0 %v2822
        %2969 = vmatprep.subr.bf16.mxu0 %v2827
        %2970 = vmatpush1.bf16.msra.mxu0 %v2826
        %2971 = vmatprep.subr.bf16.mxu0 %v2831
        %2972 = vmatpush1.bf16.msra.mxu0 %v2830
        %2973 = vmatprep.subr.bf16.mxu0 %v2835
        %2974 = vmatpush1.bf16.msra.mxu0 %v2834
        %2975 = vmatprep.subr.bf16.mxu0 %v2839
        %2976 = vmatpush1.bf16.msra.mxu0 %v2838
        %2977 = vmatprep.mubr.bf16.mxu0 %v2561
        %2978 = vmatmul.mubr.bf16.gmra.mrb[0].mxu0 %v2560
        %v2979 = vpop.f32.mrb[0].mxu0
        %v2980 = vadd.f32 %v2575, %v2979
        %v2981 = vpop.f32.mrb[0].mxu0
        %v2982 = vadd.f32 %v2579, %v2981
        %v2983 = vpop.f32.mrb[0].mxu0
        %v2984 = vpop.f32.mrb[0].mxu0
        %2985 = vdwg.mxu0
        %v2986 = vmax.f32 %v2939, 0.0
        %v2987 = vmax.f32 %v2941, 0.0
        %v2988 = vmax.f32 %v2980, 0.0
        %v2989 = vmax.f32 %v2982, 0.0
        %v2990 = vld [vmem:[#allocation19] sm:$0xff]
        %v2991 = vld [vmem:[#allocation19 + $0x8] sm:$0xff]
        %v2992 = vld [vmem:[#allocation19 + $0x10] sm:$0xff]
        %v2993 = vld [vmem:[#allocation19 + $0x18] sm:$0xff]
        %v2994 = vld [vmem:[#allocation19 + $0x20] sm:$0xff]
        %v2995 = vld [vmem:[#allocation19 + $0x28] sm:$0xff]
        %v2996 = vld [vmem:[#allocation19 + $0x30] sm:$0xff]
        %v2997 = vld [vmem:[#allocation19 + $0x38] sm:$0xff]
        %v2998 = vld [vmem:[#allocation19 + $0x40] sm:$0xff]
        %v2999 = vld [vmem:[#allocation19 + $0x48] sm:$0xff]
        %v3000 = vld [vmem:[#allocation19 + $0x50] sm:$0xff]
        %v3001 = vld [vmem:[#allocation19 + $0x58] sm:$0xff]
        %v3002 = vld [vmem:[#allocation19 + $0x60] sm:$0xff]
        %v3003 = vld [vmem:[#allocation19 + $0x68] sm:$0xff]
        %v3004 = vld [vmem:[#allocation19 + $0x70] sm:$0xff]
        %v3005 = vld [vmem:[#allocation19 + $0x78] sm:$0xff]
        %v3006 = vld [vmem:[#allocation19 + $0x80] sm:$0xff]
        %v3007 = vld [vmem:[#allocation19 + $0x88] sm:$0xff]
        %v3008 = vld [vmem:[#allocation19 + $0x90] sm:$0xff]
        %v3009 = vld [vmem:[#allocation19 + $0x98] sm:$0xff]
        %v3010 = vld [vmem:[#allocation19 + $0xa0] sm:$0xff]
        %v3011 = vld [vmem:[#allocation19 + $0xa8] sm:$0xff]
        %v3012 = vld [vmem:[#allocation19 + $0xb0] sm:$0xff]
        %v3013 = vld [vmem:[#allocation19 + $0xb8] sm:$0xff]
        %v3014 = vld [vmem:[#allocation19 + $0xc0] sm:$0xff]
        %v3015 = vld [vmem:[#allocation19 + $0xc8] sm:$0xff]
        %v3016 = vld [vmem:[#allocation19 + $0xd0] sm:$0xff]
        %v3017 = vld [vmem:[#allocation19 + $0xd8] sm:$0xff]
        %v3018 = vld [vmem:[#allocation19 + $0xe0] sm:$0xff]
        %v3019 = vld [vmem:[#allocation19 + $0xe8] sm:$0xff]
        %v3020 = vld [vmem:[#allocation19 + $0xf0] sm:$0xff]
        %v3021 = vld [vmem:[#allocation19 + $0xf8] sm:$0xff]
        %v3022 = vld [vmem:[#allocation19 + $0x100] sm:$0xff]
        %v3023 = vld [vmem:[#allocation19 + $0x108] sm:$0xff]
        %v3024 = vld [vmem:[#allocation19 + $0x110] sm:$0xff]
        %v3025 = vld [vmem:[#allocation19 + $0x118] sm:$0xff]
        %v3026 = vld [vmem:[#allocation19 + $0x120] sm:$0xff]
        %v3027 = vld [vmem:[#allocation19 + $0x128] sm:$0xff]
        %v3028 = vld [vmem:[#allocation19 + $0x130] sm:$0xff]
        %v3029 = vld [vmem:[#allocation19 + $0x138] sm:$0xff]
        %v3030 = vld [vmem:[#allocation19 + $0x140] sm:$0xff]
        %v3031 = vld [vmem:[#allocation19 + $0x148] sm:$0xff]
        %v3032 = vld [vmem:[#allocation19 + $0x150] sm:$0xff]
        %v3033 = vld [vmem:[#allocation19 + $0x158] sm:$0xff]
        %v3034 = vld [vmem:[#allocation19 + $0x160] sm:$0xff]
        %v3035 = vld [vmem:[#allocation19 + $0x168] sm:$0xff]
        %v3036 = vld [vmem:[#allocation19 + $0x170] sm:$0xff]
        %v3037 = vld [vmem:[#allocation19 + $0x178] sm:$0xff]
        %v3038 = vld [vmem:[#allocation19 + $0x180] sm:$0xff]
        %v3039 = vld [vmem:[#allocation19 + $0x188] sm:$0xff]
        %v3040 = vld [vmem:[#allocation19 + $0x190] sm:$0xff]
        %v3041 = vld [vmem:[#allocation19 + $0x198] sm:$0xff]
        %v3042 = vld [vmem:[#allocation19 + $0x1a0] sm:$0xff]
        %v3043 = vld [vmem:[#allocation19 + $0x1a8] sm:$0xff]
        %v3044 = vld [vmem:[#allocation19 + $0x1b0] sm:$0xff]
        %v3045 = vld [vmem:[#allocation19 + $0x1b8] sm:$0xff]
        %v3046 = vld [vmem:[#allocation19 + $0x1c0] sm:$0xff]
        %v3047 = vld [vmem:[#allocation19 + $0x1c8] sm:$0xff]
        %v3048 = vld [vmem:[#allocation19 + $0x1d0] sm:$0xff]
        %v3049 = vld [vmem:[#allocation19 + $0x1d8] sm:$0xff]
        %v3050 = vld [vmem:[#allocation19 + $0x1e0] sm:$0xff]
        %v3051 = vld [vmem:[#allocation19 + $0x1e8] sm:$0xff]
        %v3052 = vld [vmem:[#allocation19 + $0x1f0] sm:$0xff]
        %v3053 = vld [vmem:[#allocation19 + $0x1f8] sm:$0xff]
        %v3054 = vpack.c.bf16 %v2986, %v2986
        %v3055 = vpack.c.bf16 %v2987, %v2987
        %v3056 = vpack.c.bf16 %v2988, %v2988
        %v3057 = vpack.c.bf16 %v2989, %v2989
        %v3058 = vld [vmem:[#allocation20] sm:$0x3]
        %v3060 = vlaneseq
        %v3061 = vshrl.u32 %v3060, 7
        %v3062 = vsub.s32 0, %v3061
        %v3063 = vrot.slane %v3058, %v3062
        %v3064 = vlaneseq
        %v3065 = vshrl.u32 %v3064, 7
        %v3066 = vsub.s32 1, %v3065
        %v3067 = vrot.slane %v3058, %v3066
        %v3134 = vunpack.c.l.b16 %v2990
        %v3135 = vunpack.c.h.b16 %v2990
        %v3136 = vunpack.c.l.b16 %v2991
        %v3137 = vunpack.c.h.b16 %v2991
        %v3138 = vunpack.c.l.b16 %v2992
        %v3139 = vunpack.c.h.b16 %v2992
        %v3140 = vunpack.c.l.b16 %v2993
        %v3141 = vunpack.c.h.b16 %v2993
        %v3142 = vunpack.c.l.b16 %v2994
        %v3143 = vunpack.c.h.b16 %v2994
        %v3144 = vunpack.c.l.b16 %v2995
        %v3145 = vunpack.c.h.b16 %v2995
        %v3146 = vunpack.c.l.b16 %v2996
        %v3147 = vunpack.c.h.b16 %v2996
        %v3148 = vunpack.c.l.b16 %v2997
        %v3149 = vunpack.c.h.b16 %v2997
        %v3150 = vunpack.c.l.b16 %v2998
        %v3151 = vunpack.c.h.b16 %v2998
        %v3152 = vunpack.c.l.b16 %v2999
        %v3153 = vunpack.c.h.b16 %v2999
        %v3154 = vunpack.c.l.b16 %v3000
        %v3155 = vunpack.c.h.b16 %v3000
        %v3156 = vunpack.c.l.b16 %v3001
        %v3157 = vunpack.c.h.b16 %v3001
        %v3158 = vunpack.c.l.b16 %v3002
        %v3159 = vunpack.c.h.b16 %v3002
        %v3160 = vunpack.c.l.b16 %v3003
        %v3161 = vunpack.c.h.b16 %v3003
        %v3162 = vunpack.c.l.b16 %v3004
        %v3163 = vunpack.c.h.b16 %v3004
        %v3164 = vunpack.c.l.b16 %v3005
        %v3165 = vunpack.c.h.b16 %v3005
        %v3166 = vunpack.c.l.b16 %v3006
        %v3167 = vunpack.c.h.b16 %v3006
        %v3168 = vunpack.c.l.b16 %v3007
        %v3169 = vunpack.c.h.b16 %v3007
        %v3170 = vunpack.c.l.b16 %v3008
        %v3171 = vunpack.c.h.b16 %v3008
        %v3172 = vunpack.c.l.b16 %v3009
        %v3173 = vunpack.c.h.b16 %v3009
        %v3174 = vunpack.c.l.b16 %v3010
        %v3175 = vunpack.c.h.b16 %v3010
        %v3176 = vunpack.c.l.b16 %v3011
        %v3177 = vunpack.c.h.b16 %v3011
        %v3178 = vunpack.c.l.b16 %v3012
        %v3179 = vunpack.c.h.b16 %v3012
        %v3180 = vunpack.c.l.b16 %v3013
        %v3181 = vunpack.c.h.b16 %v3013
        %v3182 = vunpack.c.l.b16 %v3014
        %v3183 = vunpack.c.h.b16 %v3014
        %v3184 = vunpack.c.l.b16 %v3015
        %v3185 = vunpack.c.h.b16 %v3015
        %v3186 = vunpack.c.l.b16 %v3016
        %v3187 = vunpack.c.h.b16 %v3016
        %v3188 = vunpack.c.l.b16 %v3017
        %v3189 = vunpack.c.h.b16 %v3017
        %v3190 = vunpack.c.l.b16 %v3018
        %v3191 = vunpack.c.h.b16 %v3018
        %v3192 = vunpack.c.l.b16 %v3019
        %v3193 = vunpack.c.h.b16 %v3019
        %v3194 = vunpack.c.l.b16 %v3020
        %v3195 = vunpack.c.h.b16 %v3020
        %v3196 = vunpack.c.l.b16 %v3021
        %v3197 = vunpack.c.h.b16 %v3021
        %v3198 = vunpack.c.l.b16 %v3022
        %v3199 = vunpack.c.h.b16 %v3022
        %v3200 = vunpack.c.l.b16 %v3023
        %v3201 = vunpack.c.h.b16 %v3023
        %v3202 = vunpack.c.l.b16 %v3024
        %v3203 = vunpack.c.h.b16 %v3024
        %v3204 = vunpack.c.l.b16 %v3025
        %v3205 = vunpack.c.h.b16 %v3025
        %v3206 = vunpack.c.l.b16 %v3026
        %v3207 = vunpack.c.h.b16 %v3026
        %v3208 = vunpack.c.l.b16 %v3027
        %v3209 = vunpack.c.h.b16 %v3027
        %v3210 = vunpack.c.l.b16 %v3028
        %v3211 = vunpack.c.h.b16 %v3028
        %v3212 = vunpack.c.l.b16 %v3029
        %v3213 = vunpack.c.h.b16 %v3029
        %v3214 = vunpack.c.l.b16 %v3030
        %v3215 = vunpack.c.h.b16 %v3030
        %v3216 = vunpack.c.l.b16 %v3031
        %v3217 = vunpack.c.h.b16 %v3031
        %v3218 = vunpack.c.l.b16 %v3032
        %v3219 = vunpack.c.h.b16 %v3032
        %v3220 = vunpack.c.l.b16 %v3033
        %v3221 = vunpack.c.h.b16 %v3033
        %v3222 = vunpack.c.l.b16 %v3034
        %v3223 = vunpack.c.h.b16 %v3034
        %v3224 = vunpack.c.l.b16 %v3035
        %v3225 = vunpack.c.h.b16 %v3035
        %v3226 = vunpack.c.l.b16 %v3036
        %v3227 = vunpack.c.h.b16 %v3036
        %v3228 = vunpack.c.l.b16 %v3037
        %v3229 = vunpack.c.h.b16 %v3037
        %v3230 = vunpack.c.l.b16 %v3038
        %v3231 = vunpack.c.h.b16 %v3038
        %v3232 = vunpack.c.l.b16 %v3039
        %v3233 = vunpack.c.h.b16 %v3039
        %v3234 = vunpack.c.l.b16 %v3040
        %v3235 = vunpack.c.h.b16 %v3040
        %v3236 = vunpack.c.l.b16 %v3041
        %v3237 = vunpack.c.h.b16 %v3041
        %v3238 = vunpack.c.l.b16 %v3042
        %v3239 = vunpack.c.h.b16 %v3042
        %v3240 = vunpack.c.l.b16 %v3043
        %v3241 = vunpack.c.h.b16 %v3043
        %v3242 = vunpack.c.l.b16 %v3044
        %v3243 = vunpack.c.h.b16 %v3044
        %v3244 = vunpack.c.l.b16 %v3045
        %v3245 = vunpack.c.h.b16 %v3045
        %v3246 = vunpack.c.l.b16 %v3046
        %v3247 = vunpack.c.h.b16 %v3046
        %v3248 = vunpack.c.l.b16 %v3047
        %v3249 = vunpack.c.h.b16 %v3047
        %v3250 = vunpack.c.l.b16 %v3048
        %v3251 = vunpack.c.h.b16 %v3048
        %v3252 = vunpack.c.l.b16 %v3049
        %v3253 = vunpack.c.h.b16 %v3049
        %v3254 = vunpack.c.l.b16 %v3050
        %v3255 = vunpack.c.h.b16 %v3050
        %v3256 = vunpack.c.l.b16 %v3051
        %v3257 = vunpack.c.h.b16 %v3051
        %v3258 = vunpack.c.l.b16 %v3052
        %v3259 = vunpack.c.h.b16 %v3052
        %v3260 = vunpack.c.l.b16 %v3053
        %v3261 = vunpack.c.h.b16 %v3053
        %v3262 = vpack.c.b16 %v3136, %v3134
        %v3263 = vpack.c.b16 %v3137, %v3135
        %v3264 = vpack.c.b16 %v3140, %v3138
        %v3265 = vpack.c.b16 %v3141, %v3139
        %v3266 = vpack.c.b16 %v3144, %v3142
        %v3267 = vpack.c.b16 %v3145, %v3143
        %v3268 = vpack.c.b16 %v3148, %v3146
        %v3269 = vpack.c.b16 %v3149, %v3147
        %v3270 = vpack.c.b16 %v3152, %v3150
        %v3271 = vpack.c.b16 %v3153, %v3151
        %v3272 = vpack.c.b16 %v3156, %v3154
        %v3273 = vpack.c.b16 %v3157, %v3155
        %v3274 = vpack.c.b16 %v3160, %v3158
        %v3275 = vpack.c.b16 %v3161, %v3159
        %v3276 = vpack.c.b16 %v3164, %v3162
        %v3277 = vpack.c.b16 %v3165, %v3163
        %v3278 = vpack.c.b16 %v3168, %v3166
        %v3279 = vpack.c.b16 %v3169, %v3167
        %v3280 = vpack.c.b16 %v3172, %v3170
        %v3281 = vpack.c.b16 %v3173, %v3171
        %v3282 = vpack.c.b16 %v3176, %v3174
        %v3283 = vpack.c.b16 %v3177, %v3175
        %v3284 = vpack.c.b16 %v3180, %v3178
        %v3285 = vpack.c.b16 %v3181, %v3179
        %v3286 = vpack.c.b16 %v3184, %v3182
        %v3287 = vpack.c.b16 %v3185, %v3183
        %v3288 = vpack.c.b16 %v3188, %v3186
        %v3289 = vpack.c.b16 %v3189, %v3187
        %v3290 = vpack.c.b16 %v3192, %v3190
        %v3291 = vpack.c.b16 %v3193, %v3191
        %v3292 = vpack.c.b16 %v3196, %v3194
        %v3293 = vpack.c.b16 %v3197, %v3195
        %v3294 = vpack.c.b16 %v3200, %v3198
        %v3295 = vpack.c.b16 %v3201, %v3199
        %v3296 = vpack.c.b16 %v3204, %v3202
        %v3297 = vpack.c.b16 %v3205, %v3203
        %v3298 = vpack.c.b16 %v3208, %v3206
        %v3299 = vpack.c.b16 %v3209, %v3207
        %v3300 = vpack.c.b16 %v3212, %v3210
        %v3301 = vpack.c.b16 %v3213, %v3211
        %v3302 = vpack.c.b16 %v3216, %v3214
        %v3303 = vpack.c.b16 %v3217, %v3215
        %v3304 = vpack.c.b16 %v3220, %v3218
        %v3305 = vpack.c.b16 %v3221, %v3219
        %v3306 = vpack.c.b16 %v3224, %v3222
        %v3307 = vpack.c.b16 %v3225, %v3223
        %v3308 = vpack.c.b16 %v3228, %v3226
        %v3309 = vpack.c.b16 %v3229, %v3227
        %v3310 = vpack.c.b16 %v3232, %v3230
        %v3311 = vpack.c.b16 %v3233, %v3231
        %v3312 = vpack.c.b16 %v3236, %v3234
        %v3313 = vpack.c.b16 %v3237, %v3235
        %v3314 = vpack.c.b16 %v3240, %v3238
        %v3315 = vpack.c.b16 %v3241, %v3239
        %v3316 = vpack.c.b16 %v3244, %v3242
        %v3317 = vpack.c.b16 %v3245, %v3243
        %v3318 = vpack.c.b16 %v3248, %v3246
        %v3319 = vpack.c.b16 %v3249, %v3247
        %v3320 = vpack.c.b16 %v3252, %v3250
        %v3321 = vpack.c.b16 %v3253, %v3251
        %v3322 = vpack.c.b16 %v3256, %v3254
        %v3323 = vpack.c.b16 %v3257, %v3255
        %v3324 = vpack.c.b16 %v3260, %v3258
        %v3325 = vpack.c.b16 %v3261, %v3259
        %3390 = vmatprep.subr.bf16.mxu0 %v3263
        %3391 = vmatpush1.bf16.msra.mxu0 %v3262
        %3392 = vmatprep.subr.bf16.mxu0 %v3265
        %3393 = vmatpush1.bf16.msra.mxu0 %v3264
        %3394 = vmatprep.subr.bf16.mxu0 %v3267
        %3395 = vmatpush1.bf16.msra.mxu0 %v3266
        %3396 = vmatprep.subr.bf16.mxu0 %v3269
        %3397 = vmatpush1.bf16.msra.mxu0 %v3268
        %3398 = vmatprep.subr.bf16.mxu0 %v3271
        %3399 = vmatpush1.bf16.msra.mxu0 %v3270
        %3400 = vmatprep.subr.bf16.mxu0 %v3273
        %3401 = vmatpush1.bf16.msra.mxu0 %v3272
        %3402 = vmatprep.subr.bf16.mxu0 %v3275
        %3403 = vmatpush1.bf16.msra.mxu0 %v3274
        %3404 = vmatprep.subr.bf16.mxu0 %v3277
        %3405 = vmatpush1.bf16.msra.mxu0 %v3276
        %3406 = vmatprep.subr.bf16.mxu0 %v3279
        %3407 = vmatpush1.bf16.msra.mxu0 %v3278
        %3408 = vmatprep.subr.bf16.mxu0 %v3281
        %3409 = vmatpush1.bf16.msra.mxu0 %v3280
        %3410 = vmatprep.subr.bf16.mxu0 %v3283
        %3411 = vmatpush1.bf16.msra.mxu0 %v3282
        %3412 = vmatprep.subr.bf16.mxu0 %v3285
        %3413 = vmatpush1.bf16.msra.mxu0 %v3284
        %3414 = vmatprep.subr.bf16.mxu0 %v3287
        %3415 = vmatpush1.bf16.msra.mxu0 %v3286
        %3416 = vmatprep.subr.bf16.mxu0 %v3289
        %3417 = vmatpush1.bf16.msra.mxu0 %v3288
        %3418 = vmatprep.subr.bf16.mxu0 %v3291
        %3419 = vmatpush1.bf16.msra.mxu0 %v3290
        %3420 = vmatprep.subr.bf16.mxu0 %v3293
        %3421 = vmatpush1.bf16.msra.mxu0 %v3292
        %3422 = vmatprep.mubr.bf16.mxu0 %v3055
        %3423 = vmatmul.mubr.bf16.gmra.mrb[0].mxu0 %v3054
        %v3424 = vpop.f32.mrb[0].mxu0
        %v3425 = vadd.f32 %v3063, %v3424
        %v3426 = vpop.f32.mrb[0].mxu0
        %v3427 = vadd.f32 %v3067, %v3426
        %v3428 = vpop.f32.mrb[0].mxu0
        %v3429 = vpop.f32.mrb[0].mxu0
        %3430 = vdwg.mxu0
        %3431 = vmatprep.subr.bf16.mxu0 %v3295
        %3432 = vmatpush1.bf16.msra.mxu0 %v3294
        %3433 = vmatprep.subr.bf16.mxu0 %v3297
        %3434 = vmatpush1.bf16.msra.mxu0 %v3296
        %3435 = vmatprep.subr.bf16.mxu0 %v3299
        %3436 = vmatpush1.bf16.msra.mxu0 %v3298
        %3437 = vmatprep.subr.bf16.mxu0 %v3301
        %3438 = vmatpush1.bf16.msra.mxu0 %v3300
        %3439 = vmatprep.subr.bf16.mxu0 %v3303
        %3440 = vmatpush1.bf16.msra.mxu0 %v3302
        %3441 = vmatprep.subr.bf16.mxu0 %v3305
        %3442 = vmatpush1.bf16.msra.mxu0 %v3304
        %3443 = vmatprep.subr.bf16.mxu0 %v3307
        %3444 = vmatpush1.bf16.msra.mxu0 %v3306
        %3445 = vmatprep.subr.bf16.mxu0 %v3309
        %3446 = vmatpush1.bf16.msra.mxu0 %v3308
        %3447 = vmatprep.subr.bf16.mxu0 %v3311
        %3448 = vmatpush1.bf16.msra.mxu0 %v3310
        %3449 = vmatprep.subr.bf16.mxu0 %v3313
        %3450 = vmatpush1.bf16.msra.mxu0 %v3312
        %3451 = vmatprep.subr.bf16.mxu0 %v3315
        %3452 = vmatpush1.bf16.msra.mxu0 %v3314
        %3453 = vmatprep.subr.bf16.mxu0 %v3317
        %3454 = vmatpush1.bf16.msra.mxu0 %v3316
        %3455 = vmatprep.subr.bf16.mxu0 %v3319
        %3456 = vmatpush1.bf16.msra.mxu0 %v3318
        %3457 = vmatprep.subr.bf16.mxu0 %v3321
        %3458 = vmatpush1.bf16.msra.mxu0 %v3320
        %3459 = vmatprep.subr.bf16.mxu0 %v3323
        %3460 = vmatpush1.bf16.msra.mxu0 %v3322
        %3461 = vmatprep.subr.bf16.mxu0 %v3325
        %3462 = vmatpush1.bf16.msra.mxu0 %v3324
        %3463 = vmatprep.mubr.bf16.mxu0 %v3057
        %3464 = vmatmul.mubr.bf16.gmra.mrb[0].mxu0 %v3056
        %v3465 = vpop.f32.mrb[0].mxu0
        %v3466 = vadd.f32 %v3425, %v3465
        %v3467 = vpop.f32.mrb[0].mxu0
        %v3468 = vadd.f32 %v3427, %v3467
        %v3469 = vpop.f32.mrb[0].mxu0
        %v3470 = vpop.f32.mrb[0].mxu0
        %3471 = vdwg.mxu0
        %v3472 = vadd.f32 %v2494, %v3466
        %v3473 = vadd.f32 %v2495, %v3468
        %v3474 = vld [vmem:[#allocation22] sm:$0x3]
        %v3475 = vld [vmem:[#allocation23] sm:$0x3]
        %v3476 = vadd.f32 %v3472, %v3473
        %3477 = vadd.xlane.f32.xlu0 %v3476
        %v3478 = vpop.xlane.xlu0 %3477
        %v3479 = vmul.f32 %v3478, %v2456
        %v3480 = vsub.f32 %v3472, %v3479
        %v3481 = vsub.f32 %v3473, %v3479
        %v3482 = vmul.f32 %v3480, %v3480
        %v3483 = vmul.f32 %v3481, %v3481
        %v3484 = vadd.f32 %v3482, %v3483
        %3485 = vadd.xlane.f32.xlu0 %v3484
        %v3486 = vpop.xlane.xlu0 %3485
        %v3487 = vmul.f32 %v3486, %v2456
        %v3488 = vadd.f32 %v3487, 1e-05
        %v3489 = vrsqrt.pop %v3488
        %v3490 = vmul.f32 %v3480, %v3489
        %v3491 = vmul.f32 %v3481, %v3489
        %v3493 = vlaneseq
        %v3494 = vshrl.u32 %v3493, 7
        %v3495 = vsub.s32 0, %v3494
        %v3496 = vrot.slane %v3474, %v3495
        %v3497 = vlaneseq
        %v3498 = vshrl.u32 %v3497, 7
        %v3499 = vsub.s32 1, %v3498
        %v3500 = vrot.slane %v3474, %v3499
        %v3503 = vmul.f32 %v3490, %v3496
        %v3504 = vmul.f32 %v3491, %v3500
        %v3506 = vlaneseq
        %v3507 = vshrl.u32 %v3506, 7
        %v3508 = vsub.s32 0, %v3507
        %v3509 = vrot.slane %v3475, %v3508
        %v3510 = vlaneseq
        %v3511 = vshrl.u32 %v3510, 7
        %v3512 = vsub.s32 1, %v3511
        %v3513 = vrot.slane %v3475, %v3512
        %v3516 = vadd.f32 %v3503, %v3509
        %v3517 = vadd.f32 %v3504, %v3513
        %s3518 = scalar_lea.vmem [#allocation7], 768
        %v3519 = vld [vmem:[%s3518] sm:$0xff]
        %v3520 = vld [vmem:[%s3518 + $0x8] sm:$0xff]
        %v3521 = vld [vmem:[%s3518 + $0x10] sm:$0xff]
        %v3522 = vld [vmem:[%s3518 + $0x18] sm:$0xff]
        %v3523 = vld [vmem:[%s3518 + $0x20] sm:$0xff]
        %v3524 = vld [vmem:[%s3518 + $0x28] sm:$0xff]
        %v3525 = vld [vmem:[%s3518 + $0x30] sm:$0xff]
        %v3526 = vld [vmem:[%s3518 + $0x38] sm:$0xff]
        %v3527 = vld [vmem:[%s3518 + $0x40] sm:$0xff]
        %v3528 = vld [vmem:[%s3518 + $0x48] sm:$0xff]
        %v3529 = vld [vmem:[%s3518 + $0x50] sm:$0xff]
        %v3530 = vld [vmem:[%s3518 + $0x58] sm:$0xff]
        %v3531 = vld [vmem:[%s3518 + $0x60] sm:$0xff]
        %v3532 = vld [vmem:[%s3518 + $0x68] sm:$0xff]
        %v3533 = vld [vmem:[%s3518 + $0x70] sm:$0xff]
        %v3534 = vld [vmem:[%s3518 + $0x78] sm:$0xff]
        %v3535 = vld [vmem:[%s3518 + $0x80] sm:$0xff]
        %v3536 = vld [vmem:[%s3518 + $0x88] sm:$0xff]
        %v3537 = vld [vmem:[%s3518 + $0x90] sm:$0xff]
        %v3538 = vld [vmem:[%s3518 + $0x98] sm:$0xff]
        %v3539 = vld [vmem:[%s3518 + $0xa0] sm:$0xff]
        %v3540 = vld [vmem:[%s3518 + $0xa8] sm:$0xff]
        %v3541 = vld [vmem:[%s3518 + $0xb0] sm:$0xff]
        %v3542 = vld [vmem:[%s3518 + $0xb8] sm:$0xff]
        %v3543 = vld [vmem:[%s3518 + $0xc0] sm:$0xff]
        %v3544 = vld [vmem:[%s3518 + $0xc8] sm:$0xff]
        %v3545 = vld [vmem:[%s3518 + $0xd0] sm:$0xff]
        %v3546 = vld [vmem:[%s3518 + $0xd8] sm:$0xff]
        %v3547 = vld [vmem:[%s3518 + $0xe0] sm:$0xff]
        %v3548 = vld [vmem:[%s3518 + $0xe8] sm:$0xff]
        %v3549 = vld [vmem:[%s3518 + $0xf0] sm:$0xff]
        %v3550 = vld [vmem:[%s3518 + $0xf8] sm:$0xff]
        %v3551 = vld [vmem:[%s3518 + $0x100] sm:$0xff]
        %v3552 = vld [vmem:[%s3518 + $0x108] sm:$0xff]
        %v3553 = vld [vmem:[%s3518 + $0x110] sm:$0xff]
        %v3554 = vld [vmem:[%s3518 + $0x118] sm:$0xff]
        %v3555 = vld [vmem:[%s3518 + $0x120] sm:$0xff]
        %v3556 = vld [vmem:[%s3518 + $0x128] sm:$0xff]
        %v3557 = vld [vmem:[%s3518 + $0x130] sm:$0xff]
        %v3558 = vld [vmem:[%s3518 + $0x138] sm:$0xff]
        %v3559 = vld [vmem:[%s3518 + $0x140] sm:$0xff]
        %v3560 = vld [vmem:[%s3518 + $0x148] sm:$0xff]
        %v3561 = vld [vmem:[%s3518 + $0x150] sm:$0xff]
        %v3562 = vld [vmem:[%s3518 + $0x158] sm:$0xff]
        %v3563 = vld [vmem:[%s3518 + $0x160] sm:$0xff]
        %v3564 = vld [vmem:[%s3518 + $0x168] sm:$0xff]
        %v3565 = vld [vmem:[%s3518 + $0x170] sm:$0xff]
        %v3566 = vld [vmem:[%s3518 + $0x178] sm:$0xff]
        %v3567 = vld [vmem:[%s3518 + $0x180] sm:$0xff]
        %v3568 = vld [vmem:[%s3518 + $0x188] sm:$0xff]
        %v3569 = vld [vmem:[%s3518 + $0x190] sm:$0xff]
        %v3570 = vld [vmem:[%s3518 + $0x198] sm:$0xff]
        %v3571 = vld [vmem:[%s3518 + $0x1a0] sm:$0xff]
        %v3572 = vld [vmem:[%s3518 + $0x1a8] sm:$0xff]
        %v3573 = vld [vmem:[%s3518 + $0x1b0] sm:$0xff]
        %v3574 = vld [vmem:[%s3518 + $0x1b8] sm:$0xff]
        %v3575 = vld [vmem:[%s3518 + $0x1c0] sm:$0xff]
        %v3576 = vld [vmem:[%s3518 + $0x1c8] sm:$0xff]
        %v3577 = vld [vmem:[%s3518 + $0x1d0] sm:$0xff]
        %v3578 = vld [vmem:[%s3518 + $0x1d8] sm:$0xff]
        %v3579 = vld [vmem:[%s3518 + $0x1e0] sm:$0xff]
        %v3580 = vld [vmem:[%s3518 + $0x1e8] sm:$0xff]
        %v3581 = vld [vmem:[%s3518 + $0x1f0] sm:$0xff]
        %v3582 = vld [vmem:[%s3518 + $0x1f8] sm:$0xff]
        %v3583 = vld [vmem:[%s3518 + $0x200] sm:$0xff]
        %v3584 = vld [vmem:[%s3518 + $0x208] sm:$0xff]
        %v3585 = vld [vmem:[%s3518 + $0x210] sm:$0xff]
        %v3586 = vld [vmem:[%s3518 + $0x218] sm:$0xff]
        %v3587 = vld [vmem:[%s3518 + $0x220] sm:$0xff]
        %v3588 = vld [vmem:[%s3518 + $0x228] sm:$0xff]
        %v3589 = vld [vmem:[%s3518 + $0x230] sm:$0xff]
        %v3590 = vld [vmem:[%s3518 + $0x238] sm:$0xff]
        %v3591 = vld [vmem:[%s3518 + $0x240] sm:$0xff]
        %v3592 = vld [vmem:[%s3518 + $0x248] sm:$0xff]
        %v3593 = vld [vmem:[%s3518 + $0x250] sm:$0xff]
        %v3594 = vld [vmem:[%s3518 + $0x258] sm:$0xff]
        %v3595 = vld [vmem:[%s3518 + $0x260] sm:$0xff]
        %v3596 = vld [vmem:[%s3518 + $0x268] sm:$0xff]
        %v3597 = vld [vmem:[%s3518 + $0x270] sm:$0xff]
        %v3598 = vld [vmem:[%s3518 + $0x278] sm:$0xff]
        %v3599 = vld [vmem:[%s3518 + $0x280] sm:$0xff]
        %v3600 = vld [vmem:[%s3518 + $0x288] sm:$0xff]
        %v3601 = vld [vmem:[%s3518 + $0x290] sm:$0xff]
        %v3602 = vld [vmem:[%s3518 + $0x298] sm:$0xff]
        %v3603 = vld [vmem:[%s3518 + $0x2a0] sm:$0xff]
        %v3604 = vld [vmem:[%s3518 + $0x2a8] sm:$0xff]
        %v3605 = vld [vmem:[%s3518 + $0x2b0] sm:$0xff]
        %v3606 = vld [vmem:[%s3518 + $0x2b8] sm:$0xff]
        %v3607 = vld [vmem:[%s3518 + $0x2c0] sm:$0xff]
        %v3608 = vld [vmem:[%s3518 + $0x2c8] sm:$0xff]
        %v3609 = vld [vmem:[%s3518 + $0x2d0] sm:$0xff]
        %v3610 = vld [vmem:[%s3518 + $0x2d8] sm:$0xff]
        %v3611 = vld [vmem:[%s3518 + $0x2e0] sm:$0xff]
        %v3612 = vld [vmem:[%s3518 + $0x2e8] sm:$0xff]
        %v3613 = vld [vmem:[%s3518 + $0x2f0] sm:$0xff]
        %v3614 = vld [vmem:[%s3518 + $0x2f8] sm:$0xff]
        %v3615 = vpack.c.bf16 %v3516, %v3516
        %v3616 = vpack.c.bf16 %v3517, %v3517
        %s3617 = scalar_lea.vmem [#allocation8], 6
        %v3618 = vld [vmem:[%s3617] sm:$0x3f]
        %v3620 = vlaneseq
        %v3621 = vshrl.u32 %v3620, 7
        %v3622 = vsub.s32 0, %v3621
        %v3623 = vrot.slane %v3618, %v3622
        %v3624 = vlaneseq
        %v3625 = vshrl.u32 %v3624, 7
        %v3626 = vsub.s32 1, %v3625
        %v3627 = vrot.slane %v3618, %v3626
        %v3628 = vlaneseq
        %v3629 = vshrl.u32 %v3628, 7
        %v3630 = vsub.s32 2, %v3629
        %v3631 = vrot.slane %v3618, %v3630
        %v3632 = vlaneseq
        %v3633 = vshrl.u32 %v3632, 7
        %v3634 = vsub.s32 3, %v3633
        %v3635 = vrot.slane %v3618, %v3634
        %v3636 = vlaneseq
        %v3637 = vshrl.u32 %v3636, 7
        %v3638 = vsub.s32 4, %v3637
        %v3639 = vrot.slane %v3618, %v3638
        %v3640 = vlaneseq
        %v3641 = vshrl.u32 %v3640, 7
        %v3642 = vsub.s32 5, %v3641
        %v3643 = vrot.slane %v3618, %v3642
        %v3746 = vunpack.c.l.b16 %v3519
        %v3747 = vunpack.c.h.b16 %v3519
        %v3748 = vunpack.c.l.b16 %v3520
        %v3749 = vunpack.c.h.b16 %v3520
        %v3750 = vunpack.c.l.b16 %v3521
        %v3751 = vunpack.c.h.b16 %v3521
        %v3752 = vunpack.c.l.b16 %v3522
        %v3753 = vunpack.c.h.b16 %v3522
        %v3754 = vunpack.c.l.b16 %v3523
        %v3755 = vunpack.c.h.b16 %v3523
        %v3756 = vunpack.c.l.b16 %v3524
        %v3757 = vunpack.c.h.b16 %v3524
        %v3758 = vunpack.c.l.b16 %v3525
        %v3759 = vunpack.c.h.b16 %v3525
        %v3760 = vunpack.c.l.b16 %v3526
        %v3761 = vunpack.c.h.b16 %v3526
        %v3762 = vunpack.c.l.b16 %v3527
        %v3763 = vunpack.c.h.b16 %v3527
        %v3764 = vunpack.c.l.b16 %v3528
        %v3765 = vunpack.c.h.b16 %v3528
        %v3766 = vunpack.c.l.b16 %v3529
        %v3767 = vunpack.c.h.b16 %v3529
        %v3768 = vunpack.c.l.b16 %v3530
        %v3769 = vunpack.c.h.b16 %v3530
        %v3770 = vunpack.c.l.b16 %v3531
        %v3771 = vunpack.c.h.b16 %v3531
        %v3772 = vunpack.c.l.b16 %v3532
        %v3773 = vunpack.c.h.b16 %v3532
        %v3774 = vunpack.c.l.b16 %v3533
        %v3775 = vunpack.c.h.b16 %v3533
        %v3776 = vunpack.c.l.b16 %v3534
        %v3777 = vunpack.c.h.b16 %v3534
        %v3778 = vunpack.c.l.b16 %v3535
        %v3779 = vunpack.c.h.b16 %v3535
        %v3780 = vunpack.c.l.b16 %v3536
        %v3781 = vunpack.c.h.b16 %v3536
        %v3782 = vunpack.c.l.b16 %v3537
        %v3783 = vunpack.c.h.b16 %v3537
        %v3784 = vunpack.c.l.b16 %v3538
        %v3785 = vunpack.c.h.b16 %v3538
        %v3786 = vunpack.c.l.b16 %v3539
        %v3787 = vunpack.c.h.b16 %v3539
        %v3788 = vunpack.c.l.b16 %v3540
        %v3789 = vunpack.c.h.b16 %v3540
        %v3790 = vunpack.c.l.b16 %v3541
        %v3791 = vunpack.c.h.b16 %v3541
        %v3792 = vunpack.c.l.b16 %v3542
        %v3793 = vunpack.c.h.b16 %v3542
        %v3794 = vunpack.c.l.b16 %v3543
        %v3795 = vunpack.c.h.b16 %v3543
        %v3796 = vunpack.c.l.b16 %v3544
        %v3797 = vunpack.c.h.b16 %v3544
        %v3798 = vunpack.c.l.b16 %v3545
        %v3799 = vunpack.c.h.b16 %v3545
        %v3800 = vunpack.c.l.b16 %v3546
        %v3801 = vunpack.c.h.b16 %v3546
        %v3802 = vunpack.c.l.b16 %v3547
        %v3803 = vunpack.c.h.b16 %v3547
        %v3804 = vunpack.c.l.b16 %v3548
        %v3805 = vunpack.c.h.b16 %v3548
        %v3806 = vunpack.c.l.b16 %v3549
        %v3807 = vunpack.c.h.b16 %v3549
        %v3808 = vunpack.c.l.b16 %v3550
        %v3809 = vunpack.c.h.b16 %v3550
        %v3810 = vunpack.c.l.b16 %v3551
        %v3811 = vunpack.c.h.b16 %v3551
        %v3812 = vunpack.c.l.b16 %v3552
        %v3813 = vunpack.c.h.b16 %v3552
        %v3814 = vunpack.c.l.b16 %v3553
        %v3815 = vunpack.c.h.b16 %v3553
        %v3816 = vunpack.c.l.b16 %v3554
        %v3817 = vunpack.c.h.b16 %v3554
        %v3818 = vunpack.c.l.b16 %v3555
        %v3819 = vunpack.c.h.b16 %v3555
        %v3820 = vunpack.c.l.b16 %v3556
        %v3821 = vunpack.c.h.b16 %v3556
        %v3822 = vunpack.c.l.b16 %v3557
        %v3823 = vunpack.c.h.b16 %v3557
        %v3824 = vunpack.c.l.b16 %v3558
        %v3825 = vunpack.c.h.b16 %v3558
        %v3826 = vunpack.c.l.b16 %v3559
        %v3827 = vunpack.c.h.b16 %v3559
        %v3828 = vunpack.c.l.b16 %v3560
        %v3829 = vunpack.c.h.b16 %v3560
        %v3830 = vunpack.c.l.b16 %v3561
        %v3831 = vunpack.c.h.b16 %v3561
        %v3832 = vunpack.c.l.b16 %v3562
        %v3833 = vunpack.c.h.b16 %v3562
        %v3834 = vunpack.c.l.b16 %v3563
        %v3835 = vunpack.c.h.b16 %v3563
        %v3836 = vunpack.c.l.b16 %v3564
        %v3837 = vunpack.c.h.b16 %v3564
        %v3838 = vunpack.c.l.b16 %v3565
        %v3839 = vunpack.c.h.b16 %v3565
        %v3840 = vunpack.c.l.b16 %v3566
        %v3841 = vunpack.c.h.b16 %v3566
        %v3842 = vunpack.c.l.b16 %v3567
        %v3843 = vunpack.c.h.b16 %v3567
        %v3844 = vunpack.c.l.b16 %v3568
        %v3845 = vunpack.c.h.b16 %v3568
        %v3846 = vunpack.c.l.b16 %v3569
        %v3847 = vunpack.c.h.b16 %v3569
        %v3848 = vunpack.c.l.b16 %v3570
        %v3849 = vunpack.c.h.b16 %v3570
        %v3850 = vunpack.c.l.b16 %v3571
        %v3851 = vunpack.c.h.b16 %v3571
        %v3852 = vunpack.c.l.b16 %v3572
        %v3853 = vunpack.c.h.b16 %v3572
        %v3854 = vunpack.c.l.b16 %v3573
        %v3855 = vunpack.c.h.b16 %v3573
        %v3856 = vunpack.c.l.b16 %v3574
        %v3857 = vunpack.c.h.b16 %v3574
        %v3858 = vunpack.c.l.b16 %v3575
        %v3859 = vunpack.c.h.b16 %v3575
        %v3860 = vunpack.c.l.b16 %v3576
        %v3861 = vunpack.c.h.b16 %v3576
        %v3862 = vunpack.c.l.b16 %v3577
        %v3863 = vunpack.c.h.b16 %v3577
        %v3864 = vunpack.c.l.b16 %v3578
        %v3865 = vunpack.c.h.b16 %v3578
        %v3866 = vunpack.c.l.b16 %v3579
        %v3867 = vunpack.c.h.b16 %v3579
        %v3868 = vunpack.c.l.b16 %v3580
        %v3869 = vunpack.c.h.b16 %v3580
        %v3870 = vunpack.c.l.b16 %v3581
        %v3871 = vunpack.c.h.b16 %v3581
        %v3872 = vunpack.c.l.b16 %v3582
        %v3873 = vunpack.c.h.b16 %v3582
        %v3874 = vunpack.c.l.b16 %v3583
        %v3875 = vunpack.c.h.b16 %v3583
        %v3876 = vunpack.c.l.b16 %v3584
        %v3877 = vunpack.c.h.b16 %v3584
        %v3878 = vunpack.c.l.b16 %v3585
        %v3879 = vunpack.c.h.b16 %v3585
        %v3880 = vunpack.c.l.b16 %v3586
        %v3881 = vunpack.c.h.b16 %v3586
        %v3882 = vunpack.c.l.b16 %v3587
        %v3883 = vunpack.c.h.b16 %v3587
        %v3884 = vunpack.c.l.b16 %v3588
        %v3885 = vunpack.c.h.b16 %v3588
        %v3886 = vunpack.c.l.b16 %v3589
        %v3887 = vunpack.c.h.b16 %v3589
        %v3888 = vunpack.c.l.b16 %v3590
        %v3889 = vunpack.c.h.b16 %v3590
        %v3890 = vunpack.c.l.b16 %v3591
        %v3891 = vunpack.c.h.b16 %v3591
        %v3892 = vunpack.c.l.b16 %v3592
        %v3893 = vunpack.c.h.b16 %v3592
        %v3894 = vunpack.c.l.b16 %v3593
        %v3895 = vunpack.c.h.b16 %v3593
        %v3896 = vunpack.c.l.b16 %v3594
        %v3897 = vunpack.c.h.b16 %v3594
        %v3898 = vunpack.c.l.b16 %v3595
        %v3899 = vunpack.c.h.b16 %v3595
        %v3900 = vunpack.c.l.b16 %v3596
        %v3901 = vunpack.c.h.b16 %v3596
        %v3902 = vunpack.c.l.b16 %v3597
        %v3903 = vunpack.c.h.b16 %v3597
        %v3904 = vunpack.c.l.b16 %v3598
        %v3905 = vunpack.c.h.b16 %v3598
        %v3906 = vunpack.c.l.b16 %v3599
        %v3907 = vunpack.c.h.b16 %v3599
        %v3908 = vunpack.c.l.b16 %v3600
        %v3909 = vunpack.c.h.b16 %v3600
        %v3910 = vunpack.c.l.b16 %v3601
        %v3911 = vunpack.c.h.b16 %v3601
        %v3912 = vunpack.c.l.b16 %v3602
        %v3913 = vunpack.c.h.b16 %v3602
        %v3914 = vunpack.c.l.b16 %v3603
        %v3915 = vunpack.c.h.b16 %v3603
        %v3916 = vunpack.c.l.b16 %v3604
        %v3917 = vunpack.c.h.b16 %v3604
        %v3918 = vunpack.c.l.b16 %v3605
        %v3919 = vunpack.c.h.b16 %v3605
        %v3920 = vunpack.c.l.b16 %v3606
        %v3921 = vunpack.c.h.b16 %v3606
        %v3922 = vunpack.c.l.b16 %v3607
        %v3923 = vunpack.c.h.b16 %v3607
        %v3924 = vunpack.c.l.b16 %v3608
        %v3925 = vunpack.c.h.b16 %v3608
        %v3926 = vunpack.c.l.b16 %v3609
        %v3927 = vunpack.c.h.b16 %v3609
        %v3928 = vunpack.c.l.b16 %v3610
        %v3929 = vunpack.c.h.b16 %v3610
        %v3930 = vunpack.c.l.b16 %v3611
        %v3931 = vunpack.c.h.b16 %v3611
        %v3932 = vunpack.c.l.b16 %v3612
        %v3933 = vunpack.c.h.b16 %v3612
        %v3934 = vunpack.c.l.b16 %v3613
        %v3935 = vunpack.c.h.b16 %v3613
        %v3936 = vunpack.c.l.b16 %v3614
        %v3937 = vunpack.c.h.b16 %v3614
        %v3938 = vpack.c.b16 %v3752, %v3746
        %v3939 = vpack.c.b16 %v3753, %v3747
        %v3940 = vpack.c.b16 %v3754, %v3748
        %v3941 = vpack.c.b16 %v3755, %v3749
        %v3942 = vpack.c.b16 %v3756, %v3750
        %v3943 = vpack.c.b16 %v3757, %v3751
        %v3944 = vpack.c.b16 %v3764, %v3758
        %v3945 = vpack.c.b16 %v3765, %v3759
        %v3946 = vpack.c.b16 %v3766, %v3760
        %v3947 = vpack.c.b16 %v3767, %v3761
        %v3948 = vpack.c.b16 %v3768, %v3762
        %v3949 = vpack.c.b16 %v3769, %v3763
        %v3950 = vpack.c.b16 %v3776, %v3770
        %v3951 = vpack.c.b16 %v3777, %v3771
        %v3952 = vpack.c.b16 %v3778, %v3772
        %v3953 = vpack.c.b16 %v3779, %v3773
        %v3954 = vpack.c.b16 %v3780, %v3774
        %v3955 = vpack.c.b16 %v3781, %v3775
        %v3956 = vpack.c.b16 %v3788, %v3782
        %v3957 = vpack.c.b16 %v3789, %v3783
        %v3958 = vpack.c.b16 %v3790, %v3784
        %v3959 = vpack.c.b16 %v3791, %v3785
        %v3960 = vpack.c.b16 %v3792, %v3786
        %v3961 = vpack.c.b16 %v3793, %v3787
        %v3962 = vpack.c.b16 %v3800, %v3794
        %v3963 = vpack.c.b16 %v3801, %v3795
        %v3964 = vpack.c.b16 %v3802, %v3796
        %v3965 = vpack.c.b16 %v3803, %v3797
        %v3966 = vpack.c.b16 %v3804, %v3798
        %v3967 = vpack.c.b16 %v3805, %v3799
        %v3968 = vpack.c.b16 %v3812, %v3806
        %v3969 = vpack.c.b16 %v3813, %v3807
        %v3970 = vpack.c.b16 %v3814, %v3808
        %v3971 = vpack.c.b16 %v3815, %v3809
        %v3972 = vpack.c.b16 %v3816, %v3810
        %v3973 = vpack.c.b16 %v3817, %v3811
        %v3974 = vpack.c.b16 %v3824, %v3818
        %v3975 = vpack.c.b16 %v3825, %v3819
        %v3976 = vpack.c.b16 %v3826, %v3820
        %v3977 = vpack.c.b16 %v3827, %v3821
        %v3978 = vpack.c.b16 %v3828, %v3822
        %v3979 = vpack.c.b16 %v3829, %v3823
        %v3980 = vpack.c.b16 %v3836, %v3830
        %v3981 = vpack.c.b16 %v3837, %v3831
        %v3982 = vpack.c.b16 %v3838, %v3832
        %v3983 = vpack.c.b16 %v3839, %v3833
        %v3984 = vpack.c.b16 %v3840, %v3834
        %v3985 = vpack.c.b16 %v3841, %v3835
        %v3986 = vpack.c.b16 %v3848, %v3842
        %v3987 = vpack.c.b16 %v3849, %v3843
        %v3988 = vpack.c.b16 %v3850, %v3844
        %v3989 = vpack.c.b16 %v3851, %v3845
        %v3990 = vpack.c.b16 %v3852, %v3846
        %v3991 = vpack.c.b16 %v3853, %v3847
        %v3992 = vpack.c.b16 %v3860, %v3854
        %v3993 = vpack.c.b16 %v3861, %v3855
        %v3994 = vpack.c.b16 %v3862, %v3856
        %v3995 = vpack.c.b16 %v3863, %v3857
        %v3996 = vpack.c.b16 %v3864, %v3858
        %v3997 = vpack.c.b16 %v3865, %v3859
        %v3998 = vpack.c.b16 %v3872, %v3866
        %v3999 = vpack.c.b16 %v3873, %v3867
        %v4000 = vpack.c.b16 %v3874, %v3868
        %v4001 = vpack.c.b16 %v3875, %v3869
        %v4002 = vpack.c.b16 %v3876, %v3870
        %v4003 = vpack.c.b16 %v3877, %v3871
        %v4004 = vpack.c.b16 %v3884, %v3878
        %v4005 = vpack.c.b16 %v3885, %v3879
        %v4006 = vpack.c.b16 %v3886, %v3880
        %v4007 = vpack.c.b16 %v3887, %v3881
        %v4008 = vpack.c.b16 %v3888, %v3882
        %v4009 = vpack.c.b16 %v3889, %v3883
        %v4010 = vpack.c.b16 %v3896, %v3890
        %v4011 = vpack.c.b16 %v3897, %v3891
        %v4012 = vpack.c.b16 %v3898, %v3892
        %v4013 = vpack.c.b16 %v3899, %v3893
        %v4014 = vpack.c.b16 %v3900, %v3894
        %v4015 = vpack.c.b16 %v3901, %v3895
        %v4016 = vpack.c.b16 %v3908, %v3902
        %v4017 = vpack.c.b16 %v3909, %v3903
        %v4018 = vpack.c.b16 %v3910, %v3904
        %v4019 = vpack.c.b16 %v3911, %v3905
        %v4020 = vpack.c.b16 %v3912, %v3906
        %v4021 = vpack.c.b16 %v3913, %v3907
        %v4022 = vpack.c.b16 %v3920, %v3914
        %v4023 = vpack.c.b16 %v3921, %v3915
        %v4024 = vpack.c.b16 %v3922, %v3916
        %v4025 = vpack.c.b16 %v3923, %v3917
        %v4026 = vpack.c.b16 %v3924, %v3918
        %v4027 = vpack.c.b16 %v3925, %v3919
        %v4028 = vpack.c.b16 %v3932, %v3926
        %v4029 = vpack.c.b16 %v3933, %v3927
        %v4030 = vpack.c.b16 %v3934, %v3928
        %v4031 = vpack.c.b16 %v3935, %v3929
        %v4032 = vpack.c.b16 %v3936, %v3930
        %v4033 = vpack.c.b16 %v3937, %v3931
        %4130 = vmatprep.subr.bf16.mxu0 %v3939
        %4131 = vmatpush1.bf16.msra.mxu0 %v3938
        %4132 = vmatprep.subr.bf16.mxu0 %v3945
        %4133 = vmatpush1.bf16.msra.mxu0 %v3944
        %4134 = vmatprep.subr.bf16.mxu0 %v3951
        %4135 = vmatpush1.bf16.msra.mxu0 %v3950
        %4136 = vmatprep.subr.bf16.mxu0 %v3957
        %4137 = vmatpush1.bf16.msra.mxu0 %v3956
        %4138 = vmatprep.subr.bf16.mxu0 %v3963
        %4139 = vmatpush1.bf16.msra.mxu0 %v3962
        %4140 = vmatprep.subr.bf16.mxu0 %v3969
        %4141 = vmatpush1.bf16.msra.mxu0 %v3968
        %4142 = vmatprep.subr.bf16.mxu0 %v3975
        %4143 = vmatpush1.bf16.msra.mxu0 %v3974
        %4144 = vmatprep.subr.bf16.mxu0 %v3981
        %4145 = vmatpush1.bf16.msra.mxu0 %v3980
        %4146 = vmatprep.subr.bf16.mxu0 %v3987
        %4147 = vmatpush1.bf16.msra.mxu0 %v3986
        %4148 = vmatprep.subr.bf16.mxu0 %v3993
        %4149 = vmatpush1.bf16.msra.mxu0 %v3992
        %4150 = vmatprep.subr.bf16.mxu0 %v3999
        %4151 = vmatpush1.bf16.msra.mxu0 %v3998
        %4152 = vmatprep.subr.bf16.mxu0 %v4005
        %4153 = vmatpush1.bf16.msra.mxu0 %v4004
        %4154 = vmatprep.subr.bf16.mxu0 %v4011
        %4155 = vmatpush1.bf16.msra.mxu0 %v4010
        %4156 = vmatprep.subr.bf16.mxu0 %v4017
        %4157 = vmatpush1.bf16.msra.mxu0 %v4016
        %4158 = vmatprep.subr.bf16.mxu0 %v4023
        %4159 = vmatpush1.bf16.msra.mxu0 %v4022
        %4160 = vmatprep.subr.bf16.mxu0 %v4029
        %4161 = vmatpush1.bf16.msra.mxu0 %v4028
        %4162 = vmatprep.mubr.bf16.mxu0 %v3616
        %4163 = vmatmul.mubr.bf16.gmra.mrb[0].mxu0 %v3615
        %v4164 = vpop.f32.mrb[0].mxu0
        %v4165 = vadd.f32 %v3623, %v4164
        %v4166 = vpop.f32.mrb[0].mxu0
        %v4167 = vadd.f32 %v3627, %v4166
        %v4168 = vpop.f32.mrb[0].mxu0
        %v4169 = vpop.f32.mrb[0].mxu0
        %4170 = vdwg.mxu0
        %4171 = vmatprep.subr.bf16.mxu0 %v3941
        %4172 = vmatpush1.bf16.msra.mxu0 %v3940
        %4173 = vmatprep.subr.bf16.mxu0 %v3947
        %4174 = vmatpush1.bf16.msra.mxu0 %v3946
        %4175 = vmatprep.subr.bf16.mxu0 %v3953
        %4176 = vmatpush1.bf16.msra.mxu0 %v3952
        %4177 = vmatprep.subr.bf16.mxu0 %v3959
        %4178 = vmatpush1.bf16.msra.mxu0 %v3958
        %4179 = vmatprep.subr.bf16.mxu0 %v3965
        %4180 = vmatpush1.bf16.msra.mxu0 %v3964
        %4181 = vmatprep.subr.bf16.mxu0 %v3971
        %4182 = vmatpush1.bf16.msra.mxu0 %v3970
        %4183 = vmatprep.subr.bf16.mxu0 %v3977
        %4184 = vmatpush1.bf16.msra.mxu0 %v3976
        %4185 = vmatprep.subr.bf16.mxu0 %v3983
        %4186 = vmatpush1.bf16.msra.mxu0 %v3982
        %4187 = vmatprep.subr.bf16.mxu0 %v3989
        %4188 = vmatpush1.bf16.msra.mxu0 %v3988
        %4189 = vmatprep.subr.bf16.mxu0 %v3995
        %4190 = vmatpush1.bf16.msra.mxu0 %v3994
        %4191 = vmatprep.subr.bf16.mxu0 %v4001
        %4192 = vmatpush1.bf16.msra.mxu0 %v4000
        %4193 = vmatprep.subr.bf16.mxu0 %v4007
        %4194 = vmatpush1.bf16.msra.mxu0 %v4006
        %4195 = vmatprep.subr.bf16.mxu0 %v4013
        %4196 = vmatpush1.bf16.msra.mxu0 %v4012
        %4197 = vmatprep.subr.bf16.mxu0 %v4019
        %4198 = vmatpush1.bf16.msra.mxu0 %v4018
        %4199 = vmatprep.subr.bf16.mxu0 %v4025
        %4200 = vmatpush1.bf16.msra.mxu0 %v4024
        %4201 = vmatprep.subr.bf16.mxu0 %v4031
        %4202 = vmatpush1.bf16.msra.mxu0 %v4030
        %4203 = vmatprep.mubr.bf16.mxu0 %v3616
        %4204 = vmatmul.mubr.bf16.gmra.mrb[0].mxu0 %v3615
        %v4205 = vpop.f32.mrb[0].mxu0
        %v4206 = vadd.f32 %v3631, %v4205
        %v4207 = vpop.f32.mrb[0].mxu0
        %v4208 = vadd.f32 %v3635, %v4207
        %v4209 = vpop.f32.mrb[0].mxu0
        %v4210 = vpop.f32.mrb[0].mxu0
        %4211 = vdwg.mxu0
        %4212 = vmatprep.subr.bf16.mxu0 %v3943
        %4213 = vmatpush1.bf16.msra.mxu0 %v3942
        %4214 = vmatprep.subr.bf16.mxu0 %v3949
        %4215 = vmatpush1.bf16.msra.mxu0 %v3948
        %4216 = vmatprep.subr.bf16.mxu0 %v3955
        %4217 = vmatpush1.bf16.msra.mxu0 %v3954
        %4218 = vmatprep.subr.bf16.mxu0 %v3961
        %4219 = vmatpush1.bf16.msra.mxu0 %v3960
        %4220 = vmatprep.subr.bf16.mxu0 %v3967
        %4221 = vmatpush1.bf16.msra.mxu0 %v3966
        %4222 = vmatprep.subr.bf16.mxu0 %v3973
        %4223 = vmatpush1.bf16.msra.mxu0 %v3972
        %4224 = vmatprep.subr.bf16.mxu0 %v3979
        %4225 = vmatpush1.bf16.msra.mxu0 %v3978
        %4226 = vmatprep.subr.bf16.mxu0 %v3985
        %4227 = vmatpush1.bf16.msra.mxu0 %v3984
        %4228 = vmatprep.subr.bf16.mxu0 %v3991
        %4229 = vmatpush1.bf16.msra.mxu0 %v3990
        %4230 = vmatprep.subr.bf16.mxu0 %v3997
        %4231 = vmatpush1.bf16.msra.mxu0 %v3996
        %4232 = vmatprep.subr.bf16.mxu0 %v4003
        %4233 = vmatpush1.bf16.msra.mxu0 %v4002
        %4234 = vmatprep.subr.bf16.mxu0 %v4009
        %4235 = vmatpush1.bf16.msra.mxu0 %v4008
        %4236 = vmatprep.subr.bf16.mxu0 %v4015
        %4237 = vmatpush1.bf16.msra.mxu0 %v4014
        %4238 = vmatprep.subr.bf16.mxu0 %v4021
        %4239 = vmatpush1.bf16.msra.mxu0 %v4020
        %4240 = vmatprep.subr.bf16.mxu0 %v4027
        %4241 = vmatpush1.bf16.msra.mxu0 %v4026
        %4242 = vmatprep.subr.bf16.mxu0 %v4033
        %4243 = vmatpush1.bf16.msra.mxu0 %v4032
        %4244 = vmatprep.mubr.bf16.mxu0 %v3616
        %4245 = vmatmul.mubr.bf16.gmra.mrb[0].mxu0 %v3615
        %v4246 = vpop.f32.mrb[0].mxu0
        %v4247 = vadd.f32 %v3639, %v4246
        %v4248 = vpop.f32.mrb[0].mxu0
        %v4249 = vadd.f32 %v3643, %v4248
        %v4250 = vpop.f32.mrb[0].mxu0
        %v4251 = vpop.f32.mrb[0].mxu0
        %4252 = vdwg.mxu0
        %v4253 = vpack.c.bf16 %v4165, %v4165
        %v4254 = vpack.c.bf16 %v4206, %v4206
        %v4256 = vsel %vm957, %v4253, 0
        %v4259 = vsel %vm957, %v4254, 0
        %4261 = vmatprep.subr.bf16.mxu0 0
        %4262 = vmatpush1.bf16.xpose.msra.mxu0 %v4259
        %4263 = vmatprep.subr.bf16.mxu0 0
        %4264 = vmatpush1.bf16.xpose.msra.mxu0 0
        %4265 = vmatprep.subr.bf16.mxu0 0
        %4266 = vmatpush1.bf16.xpose.msra.mxu0 0
        %4267 = vmatprep.subr.bf16.mxu0 0
        %4268 = vmatpush1.bf16.xpose.msra.mxu0 0
        %4269 = vmatprep.subr.bf16.mxu0 0
        %4270 = vmatpush1.bf16.xpose.msra.mxu0 0
        %4271 = vmatprep.subr.bf16.mxu0 0
        %4272 = vmatpush1.bf16.xpose.msra.mxu0 0
        %4273 = vmatprep.subr.bf16.mxu0 0
        %4274 = vmatpush1.bf16.xpose.msra.mxu0 0
        %4275 = vmatprep.subr.bf16.mxu0 0
        %4276 = vmatpush1.bf16.xpose.msra.mxu0 0
        %4277 = vmatprep.subr.bf16.mxu0 0
        %4278 = vmatpush1.bf16.xpose.msra.mxu0 0
        %4279 = vmatprep.subr.bf16.mxu0 0
        %4280 = vmatpush1.bf16.xpose.msra.mxu0 0
        %4281 = vmatprep.subr.bf16.mxu0 0
        %4282 = vmatpush1.bf16.xpose.msra.mxu0 0
        %4283 = vmatprep.subr.bf16.mxu0 0
        %4284 = vmatpush1.bf16.xpose.msra.mxu0 0
        %4285 = vmatprep.subr.bf16.mxu0 0
        %4286 = vmatpush1.bf16.xpose.msra.mxu0 0
        %4287 = vmatprep.subr.bf16.mxu0 0
        %4288 = vmatpush1.bf16.xpose.msra.mxu0 0
        %4289 = vmatprep.subr.bf16.mxu0 0
        %4290 = vmatpush1.bf16.xpose.msra.mxu0 0
        %4291 = vmatprep.subr.bf16.mxu0 0
        %4292 = vmatpush1.bf16.xpose.msra.mxu0 0
        %4293 = vmatprep.mubr.bf16.mxu0 0
        %4294 = vmatmul.mubr.bf16.gmra.mrb[0].mxu0 %v4256
        %v4295 = vpop.f32.mrb[0].mxu0
        %v4296 = vadd.f32 0.0, %v4295
        %v4297 = vpop.f32.mrb[0].mxu0
        %v4298 = vpop.f32.mrb[0].mxu0
        %v4299 = vpop.f32.mrb[0].mxu0
        %4300 = vdwg.mxu0
        %v4301 = vmul.f32 %v4296, 0.125
        %v4302 = vadd.f32 %v4301, %v1008
        %v4303 = vsel %vm1792, %v4302, -inf
        %4304 = vmax.xlane.f32.xlu0 %v4303
        %v4305 = vpop.xlane.xlu0 %4304
        %v4306 = vsub.f32 %v4302, %v4305
        %v4307 = vmul.f32 %v4306, 1.442695
        %v4308 = vpow.pop %v4307
        %v4309 = vsel %vm1792, %v4308, 0.0
        %4310 = vadd.xlane.f32.xlu0 %v4309
        %v4311 = vpop.xlane.xlu0 %4310
        %v4312 = vrcp.pop %v4311
        %v4313 = vmul.f32 %v4308, %v4312
        %v4314 = vpack.c.bf16 %v4313, %v4313
        %v4315 = vpack.c.bf16 %v4247, %v4247
        %v4317 = vsel %vm1792, %v4314, 0
        %v4320 = vsel %vm1809, %v4315, 0
        %4322 = vmatprep.subr.bf16.mxu0 0
        %4323 = vmatpush1.bf16.msra.mxu0 %v4320
        %4324 = vmatprep.subr.bf16.mxu0 0
        %4325 = vmatpush1.bf16.msra.mxu0 0
        %4326 = vmatprep.subr.bf16.mxu0 0
        %4327 = vmatpush1.bf16.msra.mxu0 0
        %4328 = vmatprep.subr.bf16.mxu0 0
        %4329 = vmatpush1.bf16.msra.mxu0 0
        %4330 = vmatprep.subr.bf16.mxu0 0
        %4331 = vmatpush1.bf16.msra.mxu0 0
        %4332 = vmatprep.subr.bf16.mxu0 0
        %4333 = vmatpush1.bf16.msra.mxu0 0
        %4334 = vmatprep.subr.bf16.mxu0 0
        %4335 = vmatpush1.bf16.msra.mxu0 0
        %4336 = vmatprep.subr.bf16.mxu0 0
        %4337 = vmatpush1.bf16.msra.mxu0 0
        %4338 = vmatprep.subr.bf16.mxu0 0
        %4339 = vmatpush1.bf16.msra.mxu0 0
        %4340 = vmatprep.subr.bf16.mxu0 0
        %4341 = vmatpush1.bf16.msra.mxu0 0
        %4342 = vmatprep.subr.bf16.mxu0 0
        %4343 = vmatpush1.bf16.msra.mxu0 0
        %4344 = vmatprep.subr.bf16.mxu0 0
        %4345 = vmatpush1.bf16.msra.mxu0 0
        %4346 = vmatprep.subr.bf16.mxu0 0
        %4347 = vmatpush1.bf16.msra.mxu0 0
        %4348 = vmatprep.subr.bf16.mxu0 0
        %4349 = vmatpush1.bf16.msra.mxu0 0
        %4350 = vmatprep.subr.bf16.mxu0 0
        %4351 = vmatpush1.bf16.msra.mxu0 0
        %4352 = vmatprep.subr.bf16.mxu0 0
        %4353 = vmatpush1.bf16.msra.mxu0 0
        %4354 = vmatprep.mubr.bf16.mxu0 0
        %4355 = vmatmul.mubr.bf16.gmra.mrb[0].mxu0 %v4317
        %v4356 = vpop.f32.mrb[0].mxu0
        %v4357 = vadd.f32 0.0, %v4356
        %v4358 = vpop.f32.mrb[0].mxu0
        %v4359 = vpop.f32.mrb[0].mxu0
        %v4360 = vpop.f32.mrb[0].mxu0
        %4361 = vdwg.mxu0
        %4363 = vrot.lane.b32.xlu0 %v4253, 64
        %v4364 = vpop.permute.xlu0 %4363
        %4366 = vrot.lane.b32.xlu0 %v4254, 64
        %v4367 = vpop.permute.xlu0 %4366
        %v4369 = vsel %vm957, %v4364, 0
        %v4372 = vsel %vm957, %v4367, 0
        %4374 = vmatprep.subr.bf16.mxu0 0
        %4375 = vmatpush1.bf16.xpose.msra.mxu0 %v4372
        %4376 = vmatprep.subr.bf16.mxu0 0
        %4377 = vmatpush1.bf16.xpose.msra.mxu0 0
        %4378 = vmatprep.subr.bf16.mxu0 0
        %4379 = vmatpush1.bf16.xpose.msra.mxu0 0
        %4380 = vmatprep.subr.bf16.mxu0 0
        %4381 = vmatpush1.bf16.xpose.msra.mxu0 0
        %4382 = vmatprep.subr.bf16.mxu0 0
        %4383 = vmatpush1.bf16.xpose.msra.mxu0 0
        %4384 = vmatprep.subr.bf16.mxu0 0
        %4385 = vmatpush1.bf16.xpose.msra.mxu0 0
        %4386 = vmatprep.subr.bf16.mxu0 0
        %4387 = vmatpush1.bf16.xpose.msra.mxu0 0
        %4388 = vmatprep.subr.bf16.mxu0 0
        %4389 = vmatpush1.bf16.xpose.msra.mxu0 0
        %4390 = vmatprep.subr.bf16.mxu0 0
        %4391 = vmatpush1.bf16.xpose.msra.mxu0 0
        %4392 = vmatprep.subr.bf16.mxu0 0
        %4393 = vmatpush1.bf16.xpose.msra.mxu0 0
        %4394 = vmatprep.subr.bf16.mxu0 0
        %4395 = vmatpush1.bf16.xpose.msra.mxu0 0
        %4396 = vmatprep.subr.bf16.mxu0 0
        %4397 = vmatpush1.bf16.xpose.msra.mxu0 0
        %4398 = vmatprep.subr.bf16.mxu0 0
        %4399 = vmatpush1.bf16.xpose.msra.mxu0 0
        %4400 = vmatprep.subr.bf16.mxu0 0
        %4401 = vmatpush1.bf16.xpose.msra.mxu0 0
        %4402 = vmatprep.subr.bf16.mxu0 0
        %4403 = vmatpush1.bf16.xpose.msra.mxu0 0
        %4404 = vmatprep.subr.bf16.mxu0 0
        %4405 = vmatpush1.bf16.xpose.msra.mxu0 0
        %4406 = vmatprep.mubr.bf16.mxu0 0
        %4407 = vmatmul.mubr.bf16.gmra.mrb[0].mxu0 %v4369
        %v4408 = vpop.f32.mrb[0].mxu0
        %v4409 = vadd.f32 0.0, %v4408
        %v4410 = vpop.f32.mrb[0].mxu0
        %v4411 = vpop.f32.mrb[0].mxu0
        %v4412 = vpop.f32.mrb[0].mxu0
        %4413 = vdwg.mxu0
        %v4414 = vmul.f32 %v4409, 0.125
        %v4415 = vadd.f32 %v4414, %v1008
        %v4416 = vsel %vm1792, %v4415, -inf
        %4417 = vmax.xlane.f32.xlu0 %v4416
        %v4418 = vpop.xlane.xlu0 %4417
        %v4419 = vsub.f32 %v4415, %v4418
        %v4420 = vmul.f32 %v4419, 1.442695
        %v4421 = vpow.pop %v4420
        %v4422 = vsel %vm1792, %v4421, 0.0
        %4423 = vadd.xlane.f32.xlu0 %v4422
        %v4424 = vpop.xlane.xlu0 %4423
        %v4425 = vrcp.pop %v4424
        %v4426 = vmul.f32 %v4421, %v4425
        %v4427 = vpack.c.bf16 %v4426, %v4426
        %4429 = vrot.lane.b32.xlu0 %v4315, 64
        %v4430 = vpop.permute.xlu0 %4429
        %v4432 = vsel %vm1792, %v4427, 0
        %v4435 = vsel %vm1809, %v4430, 0
        %4437 = vmatprep.subr.bf16.mxu0 0
        %4438 = vmatpush1.bf16.msra.mxu0 %v4435
        %4439 = vmatprep.subr.bf16.mxu0 0
        %4440 = vmatpush1.bf16.msra.mxu0 0
        %4441 = vmatprep.subr.bf16.mxu0 0
        %4442 = vmatpush1.bf16.msra.mxu0 0
        %4443 = vmatprep.subr.bf16.mxu0 0
        %4444 = vmatpush1.bf16.msra.mxu0 0
        %4445 = vmatprep.subr.bf16.mxu0 0
        %4446 = vmatpush1.bf16.msra.mxu0 0
        %4447 = vmatprep.subr.bf16.mxu0 0
        %4448 = vmatpush1.bf16.msra.mxu0 0
        %4449 = vmatprep.subr.bf16.mxu0 0
        %4450 = vmatpush1.bf16.msra.mxu0 0
        %4451 = vmatprep.subr.bf16.mxu0 0
        %4452 = vmatpush1.bf16.msra.mxu0 0
        %4453 = vmatprep.subr.bf16.mxu0 0
        %4454 = vmatpush1.bf16.msra.mxu0 0
        %4455 = vmatprep.subr.bf16.mxu0 0
        %4456 = vmatpush1.bf16.msra.mxu0 0
        %4457 = vmatprep.subr.bf16.mxu0 0
        %4458 = vmatpush1.bf16.msra.mxu0 0
        %4459 = vmatprep.subr.bf16.mxu0 0
        %4460 = vmatpush1.bf16.msra.mxu0 0
        %4461 = vmatprep.subr.bf16.mxu0 0
        %4462 = vmatpush1.bf16.msra.mxu0 0
        %4463 = vmatprep.subr.bf16.mxu0 0
        %4464 = vmatpush1.bf16.msra.mxu0 0
        %4465 = vmatprep.subr.bf16.mxu0 0
        %4466 = vmatpush1.bf16.msra.mxu0 0
        %4467 = vmatprep.subr.bf16.mxu0 0
        %4468 = vmatpush1.bf16.msra.mxu0 0
        %4469 = vmatprep.mubr.bf16.mxu0 0
        %4470 = vmatmul.mubr.bf16.gmra.mrb[0].mxu0 %v4432
        %v4471 = vpop.f32.mrb[0].mxu0
        %v4472 = vadd.f32 0.0, %v4471
        %v4473 = vpop.f32.mrb[0].mxu0
        %v4474 = vpop.f32.mrb[0].mxu0
        %v4475 = vpop.f32.mrb[0].mxu0
        %4476 = vdwg.mxu0
        %v4477 = vpack.c.bf16 %v4167, %v4167
        %v4478 = vpack.c.bf16 %v4208, %v4208
        %v4480 = vsel %vm957, %v4477, 0
        %v4483 = vsel %vm957, %v4478, 0
        %4485 = vmatprep.subr.bf16.mxu0 0
        %4486 = vmatpush1.bf16.xpose.msra.mxu0 %v4483
        %4487 = vmatprep.subr.bf16.mxu0 0
        %4488 = vmatpush1.bf16.xpose.msra.mxu0 0
        %4489 = vmatprep.subr.bf16.mxu0 0
        %4490 = vmatpush1.bf16.xpose.msra.mxu0 0
        %4491 = vmatprep.subr.bf16.mxu0 0
        %4492 = vmatpush1.bf16.xpose.msra.mxu0 0
        %4493 = vmatprep.subr.bf16.mxu0 0
        %4494 = vmatpush1.bf16.xpose.msra.mxu0 0
        %4495 = vmatprep.subr.bf16.mxu0 0
        %4496 = vmatpush1.bf16.xpose.msra.mxu0 0
        %4497 = vmatprep.subr.bf16.mxu0 0
        %4498 = vmatpush1.bf16.xpose.msra.mxu0 0
        %4499 = vmatprep.subr.bf16.mxu0 0
        %4500 = vmatpush1.bf16.xpose.msra.mxu0 0
        %4501 = vmatprep.subr.bf16.mxu0 0
        %4502 = vmatpush1.bf16.xpose.msra.mxu0 0
        %4503 = vmatprep.subr.bf16.mxu0 0
        %4504 = vmatpush1.bf16.xpose.msra.mxu0 0
        %4505 = vmatprep.subr.bf16.mxu0 0
        %4506 = vmatpush1.bf16.xpose.msra.mxu0 0
        %4507 = vmatprep.subr.bf16.mxu0 0
        %4508 = vmatpush1.bf16.xpose.msra.mxu0 0
        %4509 = vmatprep.subr.bf16.mxu0 0
        %4510 = vmatpush1.bf16.xpose.msra.mxu0 0
        %4511 = vmatprep.subr.bf16.mxu0 0
        %4512 = vmatpush1.bf16.xpose.msra.mxu0 0
        %4513 = vmatprep.subr.bf16.mxu0 0
        %4514 = vmatpush1.bf16.xpose.msra.mxu0 0
        %4515 = vmatprep.subr.bf16.mxu0 0
        %4516 = vmatpush1.bf16.xpose.msra.mxu0 0
        %4517 = vmatprep.mubr.bf16.mxu0 0
        %4518 = vmatmul.mubr.bf16.gmra.mrb[0].mxu0 %v4480
        %v4519 = vpop.f32.mrb[0].mxu0
        %v4520 = vadd.f32 0.0, %v4519
        %v4521 = vpop.f32.mrb[0].mxu0
        %v4522 = vpop.f32.mrb[0].mxu0
        %v4523 = vpop.f32.mrb[0].mxu0
        %4524 = vdwg.mxu0
        %v4525 = vmul.f32 %v4520, 0.125
        %v4526 = vadd.f32 %v4525, %v1008
        %v4527 = vsel %vm1792, %v4526, -inf
        %4528 = vmax.xlane.f32.xlu0 %v4527
        %v4529 = vpop.xlane.xlu0 %4528
        %v4530 = vsub.f32 %v4526, %v4529
        %v4531 = vmul.f32 %v4530, 1.442695
        %v4532 = vpow.pop %v4531
        %v4533 = vsel %vm1792, %v4532, 0.0
        %4534 = vadd.xlane.f32.xlu0 %v4533
        %v4535 = vpop.xlane.xlu0 %4534
        %v4536 = vrcp.pop %v4535
        %v4537 = vmul.f32 %v4532, %v4536
        %v4538 = vpack.c.bf16 %v4537, %v4537
        %v4539 = vpack.c.bf16 %v4249, %v4249
        %v4541 = vsel %vm1792, %v4538, 0
        %v4544 = vsel %vm1809, %v4539, 0
        %4546 = vmatprep.subr.bf16.mxu0 0
        %4547 = vmatpush1.bf16.msra.mxu0 %v4544
        %4548 = vmatprep.subr.bf16.mxu0 0
        %4549 = vmatpush1.bf16.msra.mxu0 0
        %4550 = vmatprep.subr.bf16.mxu0 0
        %4551 = vmatpush1.bf16.msra.mxu0 0
        %4552 = vmatprep.subr.bf16.mxu0 0
        %4553 = vmatpush1.bf16.msra.mxu0 0
        %4554 = vmatprep.subr.bf16.mxu0 0
        %4555 = vmatpush1.bf16.msra.mxu0 0
        %4556 = vmatprep.subr.bf16.mxu0 0
        %4557 = vmatpush1.bf16.msra.mxu0 0
        %4558 = vmatprep.subr.bf16.mxu0 0
        %4559 = vmatpush1.bf16.msra.mxu0 0
        %4560 = vmatprep.subr.bf16.mxu0 0
        %4561 = vmatpush1.bf16.msra.mxu0 0
        %4562 = vmatprep.subr.bf16.mxu0 0
        %4563 = vmatpush1.bf16.msra.mxu0 0
        %4564 = vmatprep.subr.bf16.mxu0 0
        %4565 = vmatpush1.bf16.msra.mxu0 0
        %4566 = vmatprep.subr.bf16.mxu0 0
        %4567 = vmatpush1.bf16.msra.mxu0 0
        %4568 = vmatprep.subr.bf16.mxu0 0
        %4569 = vmatpush1.bf16.msra.mxu0 0
        %4570 = vmatprep.subr.bf16.mxu0 0
        %4571 = vmatpush1.bf16.msra.mxu0 0
        %4572 = vmatprep.subr.bf16.mxu0 0
        %4573 = vmatpush1.bf16.msra.mxu0 0
        %4574 = vmatprep.subr.bf16.mxu0 0
        %4575 = vmatpush1.bf16.msra.mxu0 0
        %4576 = vmatprep.subr.bf16.mxu0 0
        %4577 = vmatpush1.bf16.msra.mxu0 0
        %4578 = vmatprep.mubr.bf16.mxu0 0
        %4579 = vmatmul.mubr.bf16.gmra.mrb[0].mxu0 %v4541
        %v4580 = vpop.f32.mrb[0].mxu0
        %v4581 = vadd.f32 0.0, %v4580
        %v4582 = vpop.f32.mrb[0].mxu0
        %v4583 = vpop.f32.mrb[0].mxu0
        %v4584 = vpop.f32.mrb[0].mxu0
        %4585 = vdwg.mxu0
        %4587 = vrot.lane.b32.xlu0 %v4477, 64
        %v4588 = vpop.permute.xlu0 %4587
        %4590 = vrot.lane.b32.xlu0 %v4478, 64
        %v4591 = vpop.permute.xlu0 %4590
        %v4593 = vsel %vm957, %v4588, 0
        %v4596 = vsel %vm957, %v4591, 0
        %4598 = vmatprep.subr.bf16.mxu0 0
        %4599 = vmatpush1.bf16.xpose.msra.mxu0 %v4596
        %4600 = vmatprep.subr.bf16.mxu0 0
        %4601 = vmatpush1.bf16.xpose.msra.mxu0 0
        %4602 = vmatprep.subr.bf16.mxu0 0
        %4603 = vmatpush1.bf16.xpose.msra.mxu0 0
        %4604 = vmatprep.subr.bf16.mxu0 0
        %4605 = vmatpush1.bf16.xpose.msra.mxu0 0
        %4606 = vmatprep.subr.bf16.mxu0 0
        %4607 = vmatpush1.bf16.xpose.msra.mxu0 0
        %4608 = vmatprep.subr.bf16.mxu0 0
        %4609 = vmatpush1.bf16.xpose.msra.mxu0 0
        %4610 = vmatprep.subr.bf16.mxu0 0
        %4611 = vmatpush1.bf16.xpose.msra.mxu0 0
        %4612 = vmatprep.subr.bf16.mxu0 0
        %4613 = vmatpush1.bf16.xpose.msra.mxu0 0
        %4614 = vmatprep.subr.bf16.mxu0 0
        %4615 = vmatpush1.bf16.xpose.msra.mxu0 0
        %4616 = vmatprep.subr.bf16.mxu0 0
        %4617 = vmatpush1.bf16.xpose.msra.mxu0 0
        %4618 = vmatprep.subr.bf16.mxu0 0
        %4619 = vmatpush1.bf16.xpose.msra.mxu0 0
        %4620 = vmatprep.subr.bf16.mxu0 0
        %4621 = vmatpush1.bf16.xpose.msra.mxu0 0
        %4622 = vmatprep.subr.bf16.mxu0 0
        %4623 = vmatpush1.bf16.xpose.msra.mxu0 0
        %4624 = vmatprep.subr.bf16.mxu0 0
        %4625 = vmatpush1.bf16.xpose.msra.mxu0 0
        %4626 = vmatprep.subr.bf16.mxu0 0
        %4627 = vmatpush1.bf16.xpose.msra.mxu0 0
        %4628 = vmatprep.subr.bf16.mxu0 0
        %4629 = vmatpush1.bf16.xpose.msra.mxu0 0
        %4630 = vmatprep.mubr.bf16.mxu0 0
        %4631 = vmatmul.mubr.bf16.gmra.mrb[0].mxu0 %v4593
        %v4632 = vpop.f32.mrb[0].mxu0
        %v4633 = vadd.f32 0.0, %v4632
        %v4634 = vpop.f32.mrb[0].mxu0
        %v4635 = vpop.f32.mrb[0].mxu0
        %v4636 = vpop.f32.mrb[0].mxu0
        %4637 = vdwg.mxu0
        %v4638 = vmul.f32 %v4633, 0.125
        %v4639 = vadd.f32 %v4638, %v1008
        %v4640 = vsel %vm1792, %v4639, -inf
        %4641 = vmax.xlane.f32.xlu0 %v4640
        %v4642 = vpop.xlane.xlu0 %4641
        %v4643 = vsub.f32 %v4639, %v4642
        %v4644 = vmul.f32 %v4643, 1.442695
        %v4645 = vpow.pop %v4644
        %v4646 = vsel %vm1792, %v4645, 0.0
        %4647 = vadd.xlane.f32.xlu0 %v4646
        %v4648 = vpop.xlane.xlu0 %4647
        %v4649 = vrcp.pop %v4648
        %v4650 = vmul.f32 %v4645, %v4649
        %v4651 = vpack.c.bf16 %v4650, %v4650
        %4653 = vrot.lane.b32.xlu0 %v4539, 64
        %v4654 = vpop.permute.xlu0 %4653
        %v4656 = vsel %vm1792, %v4651, 0
        %v4659 = vsel %vm1809, %v4654, 0
        %4661 = vmatprep.subr.bf16.mxu0 0
        %4662 = vmatpush1.bf16.msra.mxu0 %v4659
        %4663 = vmatprep.subr.bf16.mxu0 0
        %4664 = vmatpush1.bf16.msra.mxu0 0
        %4665 = vmatprep.subr.bf16.mxu0 0
        %4666 = vmatpush1.bf16.msra.mxu0 0
        %4667 = vmatprep.subr.bf16.mxu0 0
        %4668 = vmatpush1.bf16.msra.mxu0 0
        %4669 = vmatprep.subr.bf16.mxu0 0
        %4670 = vmatpush1.bf16.msra.mxu0 0
        %4671 = vmatprep.subr.bf16.mxu0 0
        %4672 = vmatpush1.bf16.msra.mxu0 0
        %4673 = vmatprep.subr.bf16.mxu0 0
        %4674 = vmatpush1.bf16.msra.mxu0 0
        %4675 = vmatprep.subr.bf16.mxu0 0
        %4676 = vmatpush1.bf16.msra.mxu0 0
        %4677 = vmatprep.subr.bf16.mxu0 0
        %4678 = vmatpush1.bf16.msra.mxu0 0
        %4679 = vmatprep.subr.bf16.mxu0 0
        %4680 = vmatpush1.bf16.msra.mxu0 0
        %4681 = vmatprep.subr.bf16.mxu0 0
        %4682 = vmatpush1.bf16.msra.mxu0 0
        %4683 = vmatprep.subr.bf16.mxu0 0
        %4684 = vmatpush1.bf16.msra.mxu0 0
        %4685 = vmatprep.subr.bf16.mxu0 0
        %4686 = vmatpush1.bf16.msra.mxu0 0
        %4687 = vmatprep.subr.bf16.mxu0 0
        %4688 = vmatpush1.bf16.msra.mxu0 0
        %4689 = vmatprep.subr.bf16.mxu0 0
        %4690 = vmatpush1.bf16.msra.mxu0 0
        %4691 = vmatprep.subr.bf16.mxu0 0
        %4692 = vmatpush1.bf16.msra.mxu0 0
        %4693 = vmatprep.mubr.bf16.mxu0 0
        %4694 = vmatmul.mubr.bf16.gmra.mrb[0].mxu0 %v4656
        %v4695 = vpop.f32.mrb[0].mxu0
        %v4696 = vadd.f32 0.0, %v4695
        %v4697 = vpop.f32.mrb[0].mxu0
        %v4698 = vpop.f32.mrb[0].mxu0
        %v4699 = vpop.f32.mrb[0].mxu0
        %4700 = vdwg.mxu0
        %4702 = vrot.lane.b32.xlu0 %v4472, 64
        %v4703 = vpop.permute.xlu0 %4702
        %4706 = vrot.lane.b32.xlu0 %v4696, 64
        %v4707 = vpop.permute.xlu0 %4706
        %v4709 = vsel %vm957, %v4357, %v4703
        %v4710 = vsel %vm957, %v4581, %v4707
        %s4711 = scalar_lea.vmem [#allocation10], 256
        %v4712 = vld [vmem:[%s4711] sm:$0xff]
        %v4713 = vld [vmem:[%s4711 + $0x8] sm:$0xff]
        %v4714 = vld [vmem:[%s4711 + $0x10] sm:$0xff]
        %v4715 = vld [vmem:[%s4711 + $0x18] sm:$0xff]
        %v4716 = vld [vmem:[%s4711 + $0x20] sm:$0xff]
        %v4717 = vld [vmem:[%s4711 + $0x28] sm:$0xff]
        %v4718 = vld [vmem:[%s4711 + $0x30] sm:$0xff]
        %v4719 = vld [vmem:[%s4711 + $0x38] sm:$0xff]
        %v4720 = vld [vmem:[%s4711 + $0x40] sm:$0xff]
        %v4721 = vld [vmem:[%s4711 + $0x48] sm:$0xff]
        %v4722 = vld [vmem:[%s4711 + $0x50] sm:$0xff]
        %v4723 = vld [vmem:[%s4711 + $0x58] sm:$0xff]
        %v4724 = vld [vmem:[%s4711 + $0x60] sm:$0xff]
        %v4725 = vld [vmem:[%s4711 + $0x68] sm:$0xff]
        %v4726 = vld [vmem:[%s4711 + $0x70] sm:$0xff]
        %v4727 = vld [vmem:[%s4711 + $0x78] sm:$0xff]
        %v4728 = vld [vmem:[%s4711 + $0x80] sm:$0xff]
        %v4729 = vld [vmem:[%s4711 + $0x88] sm:$0xff]
        %v4730 = vld [vmem:[%s4711 + $0x90] sm:$0xff]
        %v4731 = vld [vmem:[%s4711 + $0x98] sm:$0xff]
        %v4732 = vld [vmem:[%s4711 + $0xa0] sm:$0xff]
        %v4733 = vld [vmem:[%s4711 + $0xa8] sm:$0xff]
        %v4734 = vld [vmem:[%s4711 + $0xb0] sm:$0xff]
        %v4735 = vld [vmem:[%s4711 + $0xb8] sm:$0xff]
        %v4736 = vld [vmem:[%s4711 + $0xc0] sm:$0xff]
        %v4737 = vld [vmem:[%s4711 + $0xc8] sm:$0xff]
        %v4738 = vld [vmem:[%s4711 + $0xd0] sm:$0xff]
        %v4739 = vld [vmem:[%s4711 + $0xd8] sm:$0xff]
        %v4740 = vld [vmem:[%s4711 + $0xe0] sm:$0xff]
        %v4741 = vld [vmem:[%s4711 + $0xe8] sm:$0xff]
        %v4742 = vld [vmem:[%s4711 + $0xf0] sm:$0xff]
        %v4743 = vld [vmem:[%s4711 + $0xf8] sm:$0xff]
        %v4744 = vpack.c.bf16 %v4709, %v4709
        %v4745 = vpack.c.bf16 %v4710, %v4710
        %s4746 = scalar_lea.vmem [#allocation11], 2
        %v4747 = vld [vmem:[%s4746] sm:$0x3]
        %v4749 = vlaneseq
        %v4750 = vshrl.u32 %v4749, 7
        %v4751 = vsub.s32 0, %v4750
        %v4752 = vrot.slane %v4747, %v4751
        %v4753 = vlaneseq
        %v4754 = vshrl.u32 %v4753, 7
        %v4755 = vsub.s32 1, %v4754
        %v4756 = vrot.slane %v4747, %v4755
        %v4791 = vunpack.c.l.b16 %v4712
        %v4792 = vunpack.c.h.b16 %v4712
        %v4793 = vunpack.c.l.b16 %v4713
        %v4794 = vunpack.c.h.b16 %v4713
        %v4795 = vunpack.c.l.b16 %v4714
        %v4796 = vunpack.c.h.b16 %v4714
        %v4797 = vunpack.c.l.b16 %v4715
        %v4798 = vunpack.c.h.b16 %v4715
        %v4799 = vunpack.c.l.b16 %v4716
        %v4800 = vunpack.c.h.b16 %v4716
        %v4801 = vunpack.c.l.b16 %v4717
        %v4802 = vunpack.c.h.b16 %v4717
        %v4803 = vunpack.c.l.b16 %v4718
        %v4804 = vunpack.c.h.b16 %v4718
        %v4805 = vunpack.c.l.b16 %v4719
        %v4806 = vunpack.c.h.b16 %v4719
        %v4807 = vunpack.c.l.b16 %v4720
        %v4808 = vunpack.c.h.b16 %v4720
        %v4809 = vunpack.c.l.b16 %v4721
        %v4810 = vunpack.c.h.b16 %v4721
        %v4811 = vunpack.c.l.b16 %v4722
        %v4812 = vunpack.c.h.b16 %v4722
        %v4813 = vunpack.c.l.b16 %v4723
        %v4814 = vunpack.c.h.b16 %v4723
        %v4815 = vunpack.c.l.b16 %v4724
        %v4816 = vunpack.c.h.b16 %v4724
        %v4817 = vunpack.c.l.b16 %v4725
        %v4818 = vunpack.c.h.b16 %v4725
        %v4819 = vunpack.c.l.b16 %v4726
        %v4820 = vunpack.c.h.b16 %v4726
        %v4821 = vunpack.c.l.b16 %v4727
        %v4822 = vunpack.c.h.b16 %v4727
        %v4823 = vunpack.c.l.b16 %v4728
        %v4824 = vunpack.c.h.b16 %v4728
        %v4825 = vunpack.c.l.b16 %v4729
        %v4826 = vunpack.c.h.b16 %v4729
        %v4827 = vunpack.c.l.b16 %v4730
        %v4828 = vunpack.c.h.b16 %v4730
        %v4829 = vunpack.c.l.b16 %v4731
        %v4830 = vunpack.c.h.b16 %v4731
        %v4831 = vunpack.c.l.b16 %v4732
        %v4832 = vunpack.c.h.b16 %v4732
        %v4833 = vunpack.c.l.b16 %v4733
        %v4834 = vunpack.c.h.b16 %v4733
        %v4835 = vunpack.c.l.b16 %v4734
        %v4836 = vunpack.c.h.b16 %v4734
        %v4837 = vunpack.c.l.b16 %v4735
        %v4838 = vunpack.c.h.b16 %v4735
        %v4839 = vunpack.c.l.b16 %v4736
        %v4840 = vunpack.c.h.b16 %v4736
        %v4841 = vunpack.c.l.b16 %v4737
        %v4842 = vunpack.c.h.b16 %v4737
        %v4843 = vunpack.c.l.b16 %v4738
        %v4844 = vunpack.c.h.b16 %v4738
        %v4845 = vunpack.c.l.b16 %v4739
        %v4846 = vunpack.c.h.b16 %v4739
        %v4847 = vunpack.c.l.b16 %v4740
        %v4848 = vunpack.c.h.b16 %v4740
        %v4849 = vunpack.c.l.b16 %v4741
        %v4850 = vunpack.c.h.b16 %v4741
        %v4851 = vunpack.c.l.b16 %v4742
        %v4852 = vunpack.c.h.b16 %v4742
        %v4853 = vunpack.c.l.b16 %v4743
        %v4854 = vunpack.c.h.b16 %v4743
        %v4855 = vpack.c.b16 %v4793, %v4791
        %v4856 = vpack.c.b16 %v4794, %v4792
        %v4857 = vpack.c.b16 %v4797, %v4795
        %v4858 = vpack.c.b16 %v4798, %v4796
        %v4859 = vpack.c.b16 %v4801, %v4799
        %v4860 = vpack.c.b16 %v4802, %v4800
        %v4861 = vpack.c.b16 %v4805, %v4803
        %v4862 = vpack.c.b16 %v4806, %v4804
        %v4863 = vpack.c.b16 %v4809, %v4807
        %v4864 = vpack.c.b16 %v4810, %v4808
        %v4865 = vpack.c.b16 %v4813, %v4811
        %v4866 = vpack.c.b16 %v4814, %v4812
        %v4867 = vpack.c.b16 %v4817, %v4815
        %v4868 = vpack.c.b16 %v4818, %v4816
        %v4869 = vpack.c.b16 %v4821, %v4819
        %v4870 = vpack.c.b16 %v4822, %v4820
        %v4871 = vpack.c.b16 %v4825, %v4823
        %v4872 = vpack.c.b16 %v4826, %v4824
        %v4873 = vpack.c.b16 %v4829, %v4827
        %v4874 = vpack.c.b16 %v4830, %v4828
        %v4875 = vpack.c.b16 %v4833, %v4831
        %v4876 = vpack.c.b16 %v4834, %v4832
        %v4877 = vpack.c.b16 %v4837, %v4835
        %v4878 = vpack.c.b16 %v4838, %v4836
        %v4879 = vpack.c.b16 %v4841, %v4839
        %v4880 = vpack.c.b16 %v4842, %v4840
        %v4881 = vpack.c.b16 %v4845, %v4843
        %v4882 = vpack.c.b16 %v4846, %v4844
        %v4883 = vpack.c.b16 %v4849, %v4847
        %v4884 = vpack.c.b16 %v4850, %v4848
        %v4885 = vpack.c.b16 %v4853, %v4851
        %v4886 = vpack.c.b16 %v4854, %v4852
        %4919 = vmatprep.subr.bf16.mxu0 %v4856
        %4920 = vmatpush1.bf16.msra.mxu0 %v4855
        %4921 = vmatprep.subr.bf16.mxu0 %v4858
        %4922 = vmatpush1.bf16.msra.mxu0 %v4857
        %4923 = vmatprep.subr.bf16.mxu0 %v4860
        %4924 = vmatpush1.bf16.msra.mxu0 %v4859
        %4925 = vmatprep.subr.bf16.mxu0 %v4862
        %4926 = vmatpush1.bf16.msra.mxu0 %v4861
        %4927 = vmatprep.subr.bf16.mxu0 %v4864
        %4928 = vmatpush1.bf16.msra.mxu0 %v4863
        %4929 = vmatprep.subr.bf16.mxu0 %v4866
        %4930 = vmatpush1.bf16.msra.mxu0 %v4865
        %4931 = vmatprep.subr.bf16.mxu0 %v4868
        %4932 = vmatpush1.bf16.msra.mxu0 %v4867
        %4933 = vmatprep.subr.bf16.mxu0 %v4870
        %4934 = vmatpush1.bf16.msra.mxu0 %v4869
        %4935 = vmatprep.subr.bf16.mxu0 %v4872
        %4936 = vmatpush1.bf16.msra.mxu0 %v4871
        %4937 = vmatprep.subr.bf16.mxu0 %v4874
        %4938 = vmatpush1.bf16.msra.mxu0 %v4873
        %4939 = vmatprep.subr.bf16.mxu0 %v4876
        %4940 = vmatpush1.bf16.msra.mxu0 %v4875
        %4941 = vmatprep.subr.bf16.mxu0 %v4878
        %4942 = vmatpush1.bf16.msra.mxu0 %v4877
        %4943 = vmatprep.subr.bf16.mxu0 %v4880
        %4944 = vmatpush1.bf16.msra.mxu0 %v4879
        %4945 = vmatprep.subr.bf16.mxu0 %v4882
        %4946 = vmatpush1.bf16.msra.mxu0 %v4881
        %4947 = vmatprep.subr.bf16.mxu0 %v4884
        %4948 = vmatpush1.bf16.msra.mxu0 %v4883
        %4949 = vmatprep.subr.bf16.mxu0 %v4886
        %4950 = vmatpush1.bf16.msra.mxu0 %v4885
        %4951 = vmatprep.mubr.bf16.mxu0 %v4745
        %4952 = vmatmul.mubr.bf16.gmra.mrb[0].mxu0 %v4744
        %v4953 = vpop.f32.mrb[0].mxu0
        %v4954 = vadd.f32 %v4752, %v4953
        %v4955 = vpop.f32.mrb[0].mxu0
        %v4956 = vadd.f32 %v4756, %v4955
        %v4957 = vpop.f32.mrb[0].mxu0
        %v4958 = vpop.f32.mrb[0].mxu0
        %4959 = vdwg.mxu0
        %v4960 = vadd.f32 %v3516, %v4954
        %v4961 = vadd.f32 %v3517, %v4956
        %s4962 = scalar_lea.vmem [#allocation13], 2
        %v4963 = vld [vmem:[%s4962] sm:$0x3]
        %s4964 = scalar_lea.vmem [#allocation14], 2
        %v4965 = vld [vmem:[%s4964] sm:$0x3]
        %v4966 = vadd.f32 %v4960, %v4961
        %4967 = vadd.xlane.f32.xlu0 %v4966
        %v4968 = vpop.xlane.xlu0 %4967
        %v4969 = vmul.f32 %v4968, %v2456
        %v4970 = vsub.f32 %v4960, %v4969
        %v4971 = vsub.f32 %v4961, %v4969
        %v4972 = vmul.f32 %v4970, %v4970
        %v4973 = vmul.f32 %v4971, %v4971
        %v4974 = vadd.f32 %v4972, %v4973
        %4975 = vadd.xlane.f32.xlu0 %v4974
        %v4976 = vpop.xlane.xlu0 %4975
        %v4977 = vmul.f32 %v4976, %v2456
        %v4978 = vadd.f32 %v4977, 1e-05
        %v4979 = vrsqrt.pop %v4978
        %v4980 = vmul.f32 %v4970, %v4979
        %v4981 = vmul.f32 %v4971, %v4979
        %v4983 = vlaneseq
        %v4984 = vshrl.u32 %v4983, 7
        %v4985 = vsub.s32 0, %v4984
        %v4986 = vrot.slane %v4963, %v4985
        %v4987 = vlaneseq
        %v4988 = vshrl.u32 %v4987, 7
        %v4989 = vsub.s32 1, %v4988
        %v4990 = vrot.slane %v4963, %v4989
        %v4993 = vmul.f32 %v4980, %v4986
        %v4994 = vmul.f32 %v4981, %v4990
        %v4996 = vlaneseq
        %v4997 = vshrl.u32 %v4996, 7
        %v4998 = vsub.s32 0, %v4997
        %v4999 = vrot.slane %v4965, %v4998
        %v5000 = vlaneseq
        %v5001 = vshrl.u32 %v5000, 7
        %v5002 = vsub.s32 1, %v5001
        %v5003 = vrot.slane %v4965, %v5002
        %v5006 = vadd.f32 %v4993, %v4999
        %v5007 = vadd.f32 %v4994, %v5003
        %s5008 = scalar_lea.vmem [#allocation16], 512
        %v5009 = vld [vmem:[%s5008] sm:$0xff]
        %v5010 = vld [vmem:[%s5008 + $0x8] sm:$0xff]
        %v5011 = vld [vmem:[%s5008 + $0x10] sm:$0xff]
        %v5012 = vld [vmem:[%s5008 + $0x18] sm:$0xff]
        %v5013 = vld [vmem:[%s5008 + $0x20] sm:$0xff]
        %v5014 = vld [vmem:[%s5008 + $0x28] sm:$0xff]
        %v5015 = vld [vmem:[%s5008 + $0x30] sm:$0xff]
        %v5016 = vld [vmem:[%s5008 + $0x38] sm:$0xff]
        %v5017 = vld [vmem:[%s5008 + $0x40] sm:$0xff]
        %v5018 = vld [vmem:[%s5008 + $0x48] sm:$0xff]
        %v5019 = vld [vmem:[%s5008 + $0x50] sm:$0xff]
        %v5020 = vld [vmem:[%s5008 + $0x58] sm:$0xff]
        %v5021 = vld [vmem:[%s5008 + $0x60] sm:$0xff]
        %v5022 = vld [vmem:[%s5008 + $0x68] sm:$0xff]
        %v5023 = vld [vmem:[%s5008 + $0x70] sm:$0xff]
        %v5024 = vld [vmem:[%s5008 + $0x78] sm:$0xff]
        %v5025 = vld [vmem:[%s5008 + $0x80] sm:$0xff]
        %v5026 = vld [vmem:[%s5008 + $0x88] sm:$0xff]
        %v5027 = vld [vmem:[%s5008 + $0x90] sm:$0xff]
        %v5028 = vld [vmem:[%s5008 + $0x98] sm:$0xff]
        %v5029 = vld [vmem:[%s5008 + $0xa0] sm:$0xff]
        %v5030 = vld [vmem:[%s5008 + $0xa8] sm:$0xff]
        %v5031 = vld [vmem:[%s5008 + $0xb0] sm:$0xff]
        %v5032 = vld [vmem:[%s5008 + $0xb8] sm:$0xff]
        %v5033 = vld [vmem:[%s5008 + $0xc0] sm:$0xff]
        %v5034 = vld [vmem:[%s5008 + $0xc8] sm:$0xff]
        %v5035 = vld [vmem:[%s5008 + $0xd0] sm:$0xff]
        %v5036 = vld [vmem:[%s5008 + $0xd8] sm:$0xff]
        %v5037 = vld [vmem:[%s5008 + $0xe0] sm:$0xff]
        %v5038 = vld [vmem:[%s5008 + $0xe8] sm:$0xff]
        %v5039 = vld [vmem:[%s5008 + $0xf0] sm:$0xff]
        %v5040 = vld [vmem:[%s5008 + $0xf8] sm:$0xff]
        %v5041 = vld [vmem:[%s5008 + $0x100] sm:$0xff]
        %v5042 = vld [vmem:[%s5008 + $0x108] sm:$0xff]
        %v5043 = vld [vmem:[%s5008 + $0x110] sm:$0xff]
        %v5044 = vld [vmem:[%s5008 + $0x118] sm:$0xff]
        %v5045 = vld [vmem:[%s5008 + $0x120] sm:$0xff]
        %v5046 = vld [vmem:[%s5008 + $0x128] sm:$0xff]
        %v5047 = vld [vmem:[%s5008 + $0x130] sm:$0xff]
        %v5048 = vld [vmem:[%s5008 + $0x138] sm:$0xff]
        %v5049 = vld [vmem:[%s5008 + $0x140] sm:$0xff]
        %v5050 = vld [vmem:[%s5008 + $0x148] sm:$0xff]
        %v5051 = vld [vmem:[%s5008 + $0x150] sm:$0xff]
        %v5052 = vld [vmem:[%s5008 + $0x158] sm:$0xff]
        %v5053 = vld [vmem:[%s5008 + $0x160] sm:$0xff]
        %v5054 = vld [vmem:[%s5008 + $0x168] sm:$0xff]
        %v5055 = vld [vmem:[%s5008 + $0x170] sm:$0xff]
        %v5056 = vld [vmem:[%s5008 + $0x178] sm:$0xff]
        %v5057 = vld [vmem:[%s5008 + $0x180] sm:$0xff]
        %v5058 = vld [vmem:[%s5008 + $0x188] sm:$0xff]
        %v5059 = vld [vmem:[%s5008 + $0x190] sm:$0xff]
        %v5060 = vld [vmem:[%s5008 + $0x198] sm:$0xff]
        %v5061 = vld [vmem:[%s5008 + $0x1a0] sm:$0xff]
        %v5062 = vld [vmem:[%s5008 + $0x1a8] sm:$0xff]
        %v5063 = vld [vmem:[%s5008 + $0x1b0] sm:$0xff]
        %v5064 = vld [vmem:[%s5008 + $0x1b8] sm:$0xff]
        %v5065 = vld [vmem:[%s5008 + $0x1c0] sm:$0xff]
        %v5066 = vld [vmem:[%s5008 + $0x1c8] sm:$0xff]
        %v5067 = vld [vmem:[%s5008 + $0x1d0] sm:$0xff]
        %v5068 = vld [vmem:[%s5008 + $0x1d8] sm:$0xff]
        %v5069 = vld [vmem:[%s5008 + $0x1e0] sm:$0xff]
        %v5070 = vld [vmem:[%s5008 + $0x1e8] sm:$0xff]
        %v5071 = vld [vmem:[%s5008 + $0x1f0] sm:$0xff]
        %v5072 = vld [vmem:[%s5008 + $0x1f8] sm:$0xff]
        %v5073 = vpack.c.bf16 %v5006, %v5006
        %v5074 = vpack.c.bf16 %v5007, %v5007
        %s5075 = scalar_lea.vmem [#allocation17], 4
        %v5076 = vld [vmem:[%s5075] sm:$0xf]
        %v5078 = vlaneseq
        %v5079 = vshrl.u32 %v5078, 7
        %v5080 = vsub.s32 0, %v5079
        %v5081 = vrot.slane %v5076, %v5080
        %v5082 = vlaneseq
        %v5083 = vshrl.u32 %v5082, 7
        %v5084 = vsub.s32 1, %v5083
        %v5085 = vrot.slane %v5076, %v5084
        %v5086 = vlaneseq
        %v5087 = vshrl.u32 %v5086, 7
        %v5088 = vsub.s32 2, %v5087
        %v5089 = vrot.slane %v5076, %v5088
        %v5090 = vlaneseq
        %v5091 = vshrl.u32 %v5090, 7
        %v5092 = vsub.s32 3, %v5091
        %v5093 = vrot.slane %v5076, %v5092
        %v5162 = vunpack.c.l.b16 %v5009
        %v5163 = vunpack.c.h.b16 %v5009
        %v5164 = vunpack.c.l.b16 %v5010
        %v5165 = vunpack.c.h.b16 %v5010
        %v5166 = vunpack.c.l.b16 %v5011
        %v5167 = vunpack.c.h.b16 %v5011
        %v5168 = vunpack.c.l.b16 %v5012
        %v5169 = vunpack.c.h.b16 %v5012
        %v5170 = vunpack.c.l.b16 %v5013
        %v5171 = vunpack.c.h.b16 %v5013
        %v5172 = vunpack.c.l.b16 %v5014
        %v5173 = vunpack.c.h.b16 %v5014
        %v5174 = vunpack.c.l.b16 %v5015
        %v5175 = vunpack.c.h.b16 %v5015
        %v5176 = vunpack.c.l.b16 %v5016
        %v5177 = vunpack.c.h.b16 %v5016
        %v5178 = vunpack.c.l.b16 %v5017
        %v5179 = vunpack.c.h.b16 %v5017
        %v5180 = vunpack.c.l.b16 %v5018
        %v5181 = vunpack.c.h.b16 %v5018
        %v5182 = vunpack.c.l.b16 %v5019
        %v5183 = vunpack.c.h.b16 %v5019
        %v5184 = vunpack.c.l.b16 %v5020
        %v5185 = vunpack.c.h.b16 %v5020
        %v5186 = vunpack.c.l.b16 %v5021
        %v5187 = vunpack.c.h.b16 %v5021
        %v5188 = vunpack.c.l.b16 %v5022
        %v5189 = vunpack.c.h.b16 %v5022
        %v5190 = vunpack.c.l.b16 %v5023
        %v5191 = vunpack.c.h.b16 %v5023
        %v5192 = vunpack.c.l.b16 %v5024
        %v5193 = vunpack.c.h.b16 %v5024
        %v5194 = vunpack.c.l.b16 %v5025
        %v5195 = vunpack.c.h.b16 %v5025
        %v5196 = vunpack.c.l.b16 %v5026
        %v5197 = vunpack.c.h.b16 %v5026
        %v5198 = vunpack.c.l.b16 %v5027
        %v5199 = vunpack.c.h.b16 %v5027
        %v5200 = vunpack.c.l.b16 %v5028
        %v5201 = vunpack.c.h.b16 %v5028
        %v5202 = vunpack.c.l.b16 %v5029
        %v5203 = vunpack.c.h.b16 %v5029
        %v5204 = vunpack.c.l.b16 %v5030
        %v5205 = vunpack.c.h.b16 %v5030
        %v5206 = vunpack.c.l.b16 %v5031
        %v5207 = vunpack.c.h.b16 %v5031
        %v5208 = vunpack.c.l.b16 %v5032
        %v5209 = vunpack.c.h.b16 %v5032
        %v5210 = vunpack.c.l.b16 %v5033
        %v5211 = vunpack.c.h.b16 %v5033
        %v5212 = vunpack.c.l.b16 %v5034
        %v5213 = vunpack.c.h.b16 %v5034
        %v5214 = vunpack.c.l.b16 %v5035
        %v5215 = vunpack.c.h.b16 %v5035
        %v5216 = vunpack.c.l.b16 %v5036
        %v5217 = vunpack.c.h.b16 %v5036
        %v5218 = vunpack.c.l.b16 %v5037
        %v5219 = vunpack.c.h.b16 %v5037
        %v5220 = vunpack.c.l.b16 %v5038
        %v5221 = vunpack.c.h.b16 %v5038
        %v5222 = vunpack.c.l.b16 %v5039
        %v5223 = vunpack.c.h.b16 %v5039
        %v5224 = vunpack.c.l.b16 %v5040
        %v5225 = vunpack.c.h.b16 %v5040
        %v5226 = vunpack.c.l.b16 %v5041
        %v5227 = vunpack.c.h.b16 %v5041
        %v5228 = vunpack.c.l.b16 %v5042
        %v5229 = vunpack.c.h.b16 %v5042
        %v5230 = vunpack.c.l.b16 %v5043
        %v5231 = vunpack.c.h.b16 %v5043
        %v5232 = vunpack.c.l.b16 %v5044
        %v5233 = vunpack.c.h.b16 %v5044
        %v5234 = vunpack.c.l.b16 %v5045
        %v5235 = vunpack.c.h.b16 %v5045
        %v5236 = vunpack.c.l.b16 %v5046
        %v5237 = vunpack.c.h.b16 %v5046
        %v5238 = vunpack.c.l.b16 %v5047
        %v5239 = vunpack.c.h.b16 %v5047
        %v5240 = vunpack.c.l.b16 %v5048
        %v5241 = vunpack.c.h.b16 %v5048
        %v5242 = vunpack.c.l.b16 %v5049
        %v5243 = vunpack.c.h.b16 %v5049
        %v5244 = vunpack.c.l.b16 %v5050
        %v5245 = vunpack.c.h.b16 %v5050
        %v5246 = vunpack.c.l.b16 %v5051
        %v5247 = vunpack.c.h.b16 %v5051
        %v5248 = vunpack.c.l.b16 %v5052
        %v5249 = vunpack.c.h.b16 %v5052
        %v5250 = vunpack.c.l.b16 %v5053
        %v5251 = vunpack.c.h.b16 %v5053
        %v5252 = vunpack.c.l.b16 %v5054
        %v5253 = vunpack.c.h.b16 %v5054
        %v5254 = vunpack.c.l.b16 %v5055
        %v5255 = vunpack.c.h.b16 %v5055
        %v5256 = vunpack.c.l.b16 %v5056
        %v5257 = vunpack.c.h.b16 %v5056
        %v5258 = vunpack.c.l.b16 %v5057
        %v5259 = vunpack.c.h.b16 %v5057
        %v5260 = vunpack.c.l.b16 %v5058
        %v5261 = vunpack.c.h.b16 %v5058
        %v5262 = vunpack.c.l.b16 %v5059
        %v5263 = vunpack.c.h.b16 %v5059
        %v5264 = vunpack.c.l.b16 %v5060
        %v5265 = vunpack.c.h.b16 %v5060
        %v5266 = vunpack.c.l.b16 %v5061
        %v5267 = vunpack.c.h.b16 %v5061
        %v5268 = vunpack.c.l.b16 %v5062
        %v5269 = vunpack.c.h.b16 %v5062
        %v5270 = vunpack.c.l.b16 %v5063
        %v5271 = vunpack.c.h.b16 %v5063
        %v5272 = vunpack.c.l.b16 %v5064
        %v5273 = vunpack.c.h.b16 %v5064
        %v5274 = vunpack.c.l.b16 %v5065
        %v5275 = vunpack.c.h.b16 %v5065
        %v5276 = vunpack.c.l.b16 %v5066
        %v5277 = vunpack.c.h.b16 %v5066
        %v5278 = vunpack.c.l.b16 %v5067
        %v5279 = vunpack.c.h.b16 %v5067
        %v5280 = vunpack.c.l.b16 %v5068
        %v5281 = vunpack.c.h.b16 %v5068
        %v5282 = vunpack.c.l.b16 %v5069
        %v5283 = vunpack.c.h.b16 %v5069
        %v5284 = vunpack.c.l.b16 %v5070
        %v5285 = vunpack.c.h.b16 %v5070
        %v5286 = vunpack.c.l.b16 %v5071
        %v5287 = vunpack.c.h.b16 %v5071
        %v5288 = vunpack.c.l.b16 %v5072
        %v5289 = vunpack.c.h.b16 %v5072
        %v5290 = vpack.c.b16 %v5166, %v5162
        %v5291 = vpack.c.b16 %v5167, %v5163
        %v5292 = vpack.c.b16 %v5168, %v5164
        %v5293 = vpack.c.b16 %v5169, %v5165
        %v5294 = vpack.c.b16 %v5174, %v5170
        %v5295 = vpack.c.b16 %v5175, %v5171
        %v5296 = vpack.c.b16 %v5176, %v5172
        %v5297 = vpack.c.b16 %v5177, %v5173
        %v5298 = vpack.c.b16 %v5182, %v5178
        %v5299 = vpack.c.b16 %v5183, %v5179
        %v5300 = vpack.c.b16 %v5184, %v5180
        %v5301 = vpack.c.b16 %v5185, %v5181
        %v5302 = vpack.c.b16 %v5190, %v5186
        %v5303 = vpack.c.b16 %v5191, %v5187
        %v5304 = vpack.c.b16 %v5192, %v5188
        %v5305 = vpack.c.b16 %v5193, %v5189
        %v5306 = vpack.c.b16 %v5198, %v5194
        %v5307 = vpack.c.b16 %v5199, %v5195
        %v5308 = vpack.c.b16 %v5200, %v5196
        %v5309 = vpack.c.b16 %v5201, %v5197
        %v5310 = vpack.c.b16 %v5206, %v5202
        %v5311 = vpack.c.b16 %v5207, %v5203
        %v5312 = vpack.c.b16 %v5208, %v5204
        %v5313 = vpack.c.b16 %v5209, %v5205
        %v5314 = vpack.c.b16 %v5214, %v5210
        %v5315 = vpack.c.b16 %v5215, %v5211
        %v5316 = vpack.c.b16 %v5216, %v5212
        %v5317 = vpack.c.b16 %v5217, %v5213
        %v5318 = vpack.c.b16 %v5222, %v5218
        %v5319 = vpack.c.b16 %v5223, %v5219
        %v5320 = vpack.c.b16 %v5224, %v5220
        %v5321 = vpack.c.b16 %v5225, %v5221
        %v5322 = vpack.c.b16 %v5230, %v5226
        %v5323 = vpack.c.b16 %v5231, %v5227
        %v5324 = vpack.c.b16 %v5232, %v5228
        %v5325 = vpack.c.b16 %v5233, %v5229
        %v5326 = vpack.c.b16 %v5238, %v5234
        %v5327 = vpack.c.b16 %v5239, %v5235
        %v5328 = vpack.c.b16 %v5240, %v5236
        %v5329 = vpack.c.b16 %v5241, %v5237
        %v5330 = vpack.c.b16 %v5246, %v5242
        %v5331 = vpack.c.b16 %v5247, %v5243
        %v5332 = vpack.c.b16 %v5248, %v5244
        %v5333 = vpack.c.b16 %v5249, %v5245
        %v5334 = vpack.c.b16 %v5254, %v5250
        %v5335 = vpack.c.b16 %v5255, %v5251
        %v5336 = vpack.c.b16 %v5256, %v5252
        %v5337 = vpack.c.b16 %v5257, %v5253
        %v5338 = vpack.c.b16 %v5262, %v5258
        %v5339 = vpack.c.b16 %v5263, %v5259
        %v5340 = vpack.c.b16 %v5264, %v5260
        %v5341 = vpack.c.b16 %v5265, %v5261
        %v5342 = vpack.c.b16 %v5270, %v5266
        %v5343 = vpack.c.b16 %v5271, %v5267
        %v5344 = vpack.c.b16 %v5272, %v5268
        %v5345 = vpack.c.b16 %v5273, %v5269
        %v5346 = vpack.c.b16 %v5278, %v5274
        %v5347 = vpack.c.b16 %v5279, %v5275
        %v5348 = vpack.c.b16 %v5280, %v5276
        %v5349 = vpack.c.b16 %v5281, %v5277
        %v5350 = vpack.c.b16 %v5286, %v5282
        %v5351 = vpack.c.b16 %v5287, %v5283
        %v5352 = vpack.c.b16 %v5288, %v5284
        %v5353 = vpack.c.b16 %v5289, %v5285
        %5418 = vmatprep.subr.bf16.mxu0 %v5291
        %5419 = vmatpush1.bf16.msra.mxu0 %v5290
        %5420 = vmatprep.subr.bf16.mxu0 %v5295
        %5421 = vmatpush1.bf16.msra.mxu0 %v5294
        %5422 = vmatprep.subr.bf16.mxu0 %v5299
        %5423 = vmatpush1.bf16.msra.mxu0 %v5298
        %5424 = vmatprep.subr.bf16.mxu0 %v5303
        %5425 = vmatpush1.bf16.msra.mxu0 %v5302
        %5426 = vmatprep.subr.bf16.mxu0 %v5307
        %5427 = vmatpush1.bf16.msra.mxu0 %v5306
        %5428 = vmatprep.subr.bf16.mxu0 %v5311
        %5429 = vmatpush1.bf16.msra.mxu0 %v5310
        %5430 = vmatprep.subr.bf16.mxu0 %v5315
        %5431 = vmatpush1.bf16.msra.mxu0 %v5314
        %5432 = vmatprep.subr.bf16.mxu0 %v5319
        %5433 = vmatpush1.bf16.msra.mxu0 %v5318
        %5434 = vmatprep.subr.bf16.mxu0 %v5323
        %5435 = vmatpush1.bf16.msra.mxu0 %v5322
        %5436 = vmatprep.subr.bf16.mxu0 %v5327
        %5437 = vmatpush1.bf16.msra.mxu0 %v5326
        %5438 = vmatprep.subr.bf16.mxu0 %v5331
        %5439 = vmatpush1.bf16.msra.mxu0 %v5330
        %5440 = vmatprep.subr.bf16.mxu0 %v5335
        %5441 = vmatpush1.bf16.msra.mxu0 %v5334
        %5442 = vmatprep.subr.bf16.mxu0 %v5339
        %5443 = vmatpush1.bf16.msra.mxu0 %v5338
        %5444 = vmatprep.subr.bf16.mxu0 %v5343
        %5445 = vmatpush1.bf16.msra.mxu0 %v5342
        %5446 = vmatprep.subr.bf16.mxu0 %v5347
        %5447 = vmatpush1.bf16.msra.mxu0 %v5346
        %5448 = vmatprep.subr.bf16.mxu0 %v5351
        %5449 = vmatpush1.bf16.msra.mxu0 %v5350
        %5450 = vmatprep.mubr.bf16.mxu0 %v5074
        %5451 = vmatmul.mubr.bf16.gmra.mrb[0].mxu0 %v5073
        %v5452 = vpop.f32.mrb[0].mxu0
        %v5453 = vadd.f32 %v5081, %v5452
        %v5454 = vpop.f32.mrb[0].mxu0
        %v5455 = vadd.f32 %v5085, %v5454
        %v5456 = vpop.f32.mrb[0].mxu0
        %v5457 = vpop.f32.mrb[0].mxu0
        %5458 = vdwg.mxu0
        %5459 = vmatprep.subr.bf16.mxu0 %v5293
        %5460 = vmatpush1.bf16.msra.mxu0 %v5292
        %5461 = vmatprep.subr.bf16.mxu0 %v5297
        %5462 = vmatpush1.bf16.msra.mxu0 %v5296
        %5463 = vmatprep.subr.bf16.mxu0 %v5301
        %5464 = vmatpush1.bf16.msra.mxu0 %v5300
        %5465 = vmatprep.subr.bf16.mxu0 %v5305
        %5466 = vmatpush1.bf16.msra.mxu0 %v5304
        %5467 = vmatprep.subr.bf16.mxu0 %v5309
        %5468 = vmatpush1.bf16.msra.mxu0 %v5308
        %5469 = vmatprep.subr.bf16.mxu0 %v5313
        %5470 = vmatpush1.bf16.msra.mxu0 %v5312
        %5471 = vmatprep.subr.bf16.mxu0 %v5317
        %5472 = vmatpush1.bf16.msra.mxu0 %v5316
        %5473 = vmatprep.subr.bf16.mxu0 %v5321
        %5474 = vmatpush1.bf16.msra.mxu0 %v5320
        %5475 = vmatprep.subr.bf16.mxu0 %v5325
        %5476 = vmatpush1.bf16.msra.mxu0 %v5324
        %5477 = vmatprep.subr.bf16.mxu0 %v5329
        %5478 = vmatpush1.bf16.msra.mxu0 %v5328
        %5479 = vmatprep.subr.bf16.mxu0 %v5333
        %5480 = vmatpush1.bf16.msra.mxu0 %v5332
        %5481 = vmatprep.subr.bf16.mxu0 %v5337
        %5482 = vmatpush1.bf16.msra.mxu0 %v5336
        %5483 = vmatprep.subr.bf16.mxu0 %v5341
        %5484 = vmatpush1.bf16.msra.mxu0 %v5340
        %5485 = vmatprep.subr.bf16.mxu0 %v5345
        %5486 = vmatpush1.bf16.msra.mxu0 %v5344
        %5487 = vmatprep.subr.bf16.mxu0 %v5349
        %5488 = vmatpush1.bf16.msra.mxu0 %v5348
        %5489 = vmatprep.subr.bf16.mxu0 %v5353
        %5490 = vmatpush1.bf16.msra.mxu0 %v5352
        %5491 = vmatprep.mubr.bf16.mxu0 %v5074
        %5492 = vmatmul.mubr.bf16.gmra.mrb[0].mxu0 %v5073
        %v5493 = vpop.f32.mrb[0].mxu0
        %v5494 = vadd.f32 %v5089, %v5493
        %v5495 = vpop.f32.mrb[0].mxu0
        %v5496 = vadd.f32 %v5093, %v5495
        %v5497 = vpop.f32.mrb[0].mxu0
        %v5498 = vpop.f32.mrb[0].mxu0
        %5499 = vdwg.mxu0
        %v5500 = vmax.f32 %v5453, 0.0
        %v5501 = vmax.f32 %v5455, 0.0
        %v5502 = vmax.f32 %v5494, 0.0
        %v5503 = vmax.f32 %v5496, 0.0
        %s5504 = scalar_lea.vmem [#allocation19], 512
        %v5505 = vld [vmem:[%s5504] sm:$0xff]
        %v5506 = vld [vmem:[%s5504 + $0x8] sm:$0xff]
        %v5507 = vld [vmem:[%s5504 + $0x10] sm:$0xff]
        %v5508 = vld [vmem:[%s5504 + $0x18] sm:$0xff]
        %v5509 = vld [vmem:[%s5504 + $0x20] sm:$0xff]
        %v5510 = vld [vmem:[%s5504 + $0x28] sm:$0xff]
        %v5511 = vld [vmem:[%s5504 + $0x30] sm:$0xff]
        %v5512 = vld [vmem:[%s5504 + $0x38] sm:$0xff]
        %v5513 = vld [vmem:[%s5504 + $0x40] sm:$0xff]
        %v5514 = vld [vmem:[%s5504 + $0x48] sm:$0xff]
        %v5515 = vld [vmem:[%s5504 + $0x50] sm:$0xff]
        %v5516 = vld [vmem:[%s5504 + $0x58] sm:$0xff]
        %v5517 = vld [vmem:[%s5504 + $0x60] sm:$0xff]
        %v5518 = vld [vmem:[%s5504 + $0x68] sm:$0xff]
        %v5519 = vld [vmem:[%s5504 + $0x70] sm:$0xff]
        %v5520 = vld [vmem:[%s5504 + $0x78] sm:$0xff]
        %v5521 = vld [vmem:[%s5504 + $0x80] sm:$0xff]
        %v5522 = vld [vmem:[%s5504 + $0x88] sm:$0xff]
        %v5523 = vld [vmem:[%s5504 + $0x90] sm:$0xff]
        %v5524 = vld [vmem:[%s5504 + $0x98] sm:$0xff]
        %v5525 = vld [vmem:[%s5504 + $0xa0] sm:$0xff]
        %v5526 = vld [vmem:[%s5504 + $0xa8] sm:$0xff]
        %v5527 = vld [vmem:[%s5504 + $0xb0] sm:$0xff]
        %v5528 = vld [vmem:[%s5504 + $0xb8] sm:$0xff]
        %v5529 = vld [vmem:[%s5504 + $0xc0] sm:$0xff]
        %v5530 = vld [vmem:[%s5504 + $0xc8] sm:$0xff]
        %v5531 = vld [vmem:[%s5504 + $0xd0] sm:$0xff]
        %v5532 = vld [vmem:[%s5504 + $0xd8] sm:$0xff]
        %v5533 = vld [vmem:[%s5504 + $0xe0] sm:$0xff]
        %v5534 = vld [vmem:[%s5504 + $0xe8] sm:$0xff]
        %v5535 = vld [vmem:[%s5504 + $0xf0] sm:$0xff]
        %v5536 = vld [vmem:[%s5504 + $0xf8] sm:$0xff]
        %v5537 = vld [vmem:[%s5504 + $0x100] sm:$0xff]
        %v5538 = vld [vmem:[%s5504 + $0x108] sm:$0xff]
        %v5539 = vld [vmem:[%s5504 + $0x110] sm:$0xff]
        %v5540 = vld [vmem:[%s5504 + $0x118] sm:$0xff]
        %v5541 = vld [vmem:[%s5504 + $0x120] sm:$0xff]
        %v5542 = vld [vmem:[%s5504 + $0x128] sm:$0xff]
        %v5543 = vld [vmem:[%s5504 + $0x130] sm:$0xff]
        %v5544 = vld [vmem:[%s5504 + $0x138] sm:$0xff]
        %v5545 = vld [vmem:[%s5504 + $0x140] sm:$0xff]
        %v5546 = vld [vmem:[%s5504 + $0x148] sm:$0xff]
        %v5547 = vld [vmem:[%s5504 + $0x150] sm:$0xff]
        %v5548 = vld [vmem:[%s5504 + $0x158] sm:$0xff]
        %v5549 = vld [vmem:[%s5504 + $0x160] sm:$0xff]
        %v5550 = vld [vmem:[%s5504 + $0x168] sm:$0xff]
        %v5551 = vld [vmem:[%s5504 + $0x170] sm:$0xff]
        %v5552 = vld [vmem:[%s5504 + $0x178] sm:$0xff]
        %v5553 = vld [vmem:[%s5504 + $0x180] sm:$0xff]
        %v5554 = vld [vmem:[%s5504 + $0x188] sm:$0xff]
        %v5555 = vld [vmem:[%s5504 + $0x190] sm:$0xff]
        %v5556 = vld [vmem:[%s5504 + $0x198] sm:$0xff]
        %v5557 = vld [vmem:[%s5504 + $0x1a0] sm:$0xff]
        %v5558 = vld [vmem:[%s5504 + $0x1a8] sm:$0xff]
        %v5559 = vld [vmem:[%s5504 + $0x1b0] sm:$0xff]
        %v5560 = vld [vmem:[%s5504 + $0x1b8] sm:$0xff]
        %v5561 = vld [vmem:[%s5504 + $0x1c0] sm:$0xff]
        %v5562 = vld [vmem:[%s5504 + $0x1c8] sm:$0xff]
        %v5563 = vld [vmem:[%s5504 + $0x1d0] sm:$0xff]
        %v5564 = vld [vmem:[%s5504 + $0x1d8] sm:$0xff]
        %v5565 = vld [vmem:[%s5504 + $0x1e0] sm:$0xff]
        %v5566 = vld [vmem:[%s5504 + $0x1e8] sm:$0xff]
        %v5567 = vld [vmem:[%s5504 + $0x1f0] sm:$0xff]
        %v5568 = vld [vmem:[%s5504 + $0x1f8] sm:$0xff]
        %v5569 = vpack.c.bf16 %v5500, %v5500
        %v5570 = vpack.c.bf16 %v5501, %v5501
        %v5571 = vpack.c.bf16 %v5502, %v5502
        %v5572 = vpack.c.bf16 %v5503, %v5503
        %s5573 = scalar_lea.vmem [#allocation20], 2
        %v5574 = vld [vmem:[%s5573] sm:$0x3]
        %v5576 = vlaneseq
        %v5577 = vshrl.u32 %v5576, 7
        %v5578 = vsub.s32 0, %v5577
        %v5579 = vrot.slane %v5574, %v5578
        %v5580 = vlaneseq
        %v5581 = vshrl.u32 %v5580, 7
        %v5582 = vsub.s32 1, %v5581
        %v5583 = vrot.slane %v5574, %v5582
        %v5650 = vunpack.c.l.b16 %v5505
        %v5651 = vunpack.c.h.b16 %v5505
        %v5652 = vunpack.c.l.b16 %v5506
        %v5653 = vunpack.c.h.b16 %v5506
        %v5654 = vunpack.c.l.b16 %v5507
        %v5655 = vunpack.c.h.b16 %v5507
        %v5656 = vunpack.c.l.b16 %v5508
        %v5657 = vunpack.c.h.b16 %v5508
        %v5658 = vunpack.c.l.b16 %v5509
        %v5659 = vunpack.c.h.b16 %v5509
        %v5660 = vunpack.c.l.b16 %v5510
        %v5661 = vunpack.c.h.b16 %v5510
        %v5662 = vunpack.c.l.b16 %v5511
        %v5663 = vunpack.c.h.b16 %v5511
        %v5664 = vunpack.c.l.b16 %v5512
        %v5665 = vunpack.c.h.b16 %v5512
        %v5666 = vunpack.c.l.b16 %v5513
        %v5667 = vunpack.c.h.b16 %v5513
        %v5668 = vunpack.c.l.b16 %v5514
        %v5669 = vunpack.c.h.b16 %v5514
        %v5670 = vunpack.c.l.b16 %v5515
        %v5671 = vunpack.c.h.b16 %v5515
        %v5672 = vunpack.c.l.b16 %v5516
        %v5673 = vunpack.c.h.b16 %v5516
        %v5674 = vunpack.c.l.b16 %v5517
        %v5675 = vunpack.c.h.b16 %v5517
        %v5676 = vunpack.c.l.b16 %v5518
        %v5677 = vunpack.c.h.b16 %v5518
        %v5678 = vunpack.c.l.b16 %v5519
        %v5679 = vunpack.c.h.b16 %v5519
        %v5680 = vunpack.c.l.b16 %v5520
        %v5681 = vunpack.c.h.b16 %v5520
        %v5682 = vunpack.c.l.b16 %v5521
        %v5683 = vunpack.c.h.b16 %v5521
        %v5684 = vunpack.c.l.b16 %v5522
        %v5685 = vunpack.c.h.b16 %v5522
        %v5686 = vunpack.c.l.b16 %v5523
        %v5687 = vunpack.c.h.b16 %v5523
        %v5688 = vunpack.c.l.b16 %v5524
        %v5689 = vunpack.c.h.b16 %v5524
        %v5690 = vunpack.c.l.b16 %v5525
        %v5691 = vunpack.c.h.b16 %v5525
        %v5692 = vunpack.c.l.b16 %v5526
        %v5693 = vunpack.c.h.b16 %v5526
        %v5694 = vunpack.c.l.b16 %v5527
        %v5695 = vunpack.c.h.b16 %v5527
        %v5696 = vunpack.c.l.b16 %v5528
        %v5697 = vunpack.c.h.b16 %v5528
        %v5698 = vunpack.c.l.b16 %v5529
        %v5699 = vunpack.c.h.b16 %v5529
        %v5700 = vunpack.c.l.b16 %v5530
        %v5701 = vunpack.c.h.b16 %v5530
        %v5702 = vunpack.c.l.b16 %v5531
        %v5703 = vunpack.c.h.b16 %v5531
        %v5704 = vunpack.c.l.b16 %v5532
        %v5705 = vunpack.c.h.b16 %v5532
        %v5706 = vunpack.c.l.b16 %v5533
        %v5707 = vunpack.c.h.b16 %v5533
        %v5708 = vunpack.c.l.b16 %v5534
        %v5709 = vunpack.c.h.b16 %v5534
        %v5710 = vunpack.c.l.b16 %v5535
        %v5711 = vunpack.c.h.b16 %v5535
        %v5712 = vunpack.c.l.b16 %v5536
        %v5713 = vunpack.c.h.b16 %v5536
        %v5714 = vunpack.c.l.b16 %v5537
        %v5715 = vunpack.c.h.b16 %v5537
        %v5716 = vunpack.c.l.b16 %v5538
        %v5717 = vunpack.c.h.b16 %v5538
        %v5718 = vunpack.c.l.b16 %v5539
        %v5719 = vunpack.c.h.b16 %v5539
        %v5720 = vunpack.c.l.b16 %v5540
        %v5721 = vunpack.c.h.b16 %v5540
        %v5722 = vunpack.c.l.b16 %v5541
        %v5723 = vunpack.c.h.b16 %v5541
        %v5724 = vunpack.c.l.b16 %v5542
        %v5725 = vunpack.c.h.b16 %v5542
        %v5726 = vunpack.c.l.b16 %v5543
        %v5727 = vunpack.c.h.b16 %v5543
        %v5728 = vunpack.c.l.b16 %v5544
        %v5729 = vunpack.c.h.b16 %v5544
        %v5730 = vunpack.c.l.b16 %v5545
        %v5731 = vunpack.c.h.b16 %v5545
        %v5732 = vunpack.c.l.b16 %v5546
        %v5733 = vunpack.c.h.b16 %v5546
        %v5734 = vunpack.c.l.b16 %v5547
        %v5735 = vunpack.c.h.b16 %v5547
        %v5736 = vunpack.c.l.b16 %v5548
        %v5737 = vunpack.c.h.b16 %v5548
        %v5738 = vunpack.c.l.b16 %v5549
        %v5739 = vunpack.c.h.b16 %v5549
        %v5740 = vunpack.c.l.b16 %v5550
        %v5741 = vunpack.c.h.b16 %v5550
        %v5742 = vunpack.c.l.b16 %v5551
        %v5743 = vunpack.c.h.b16 %v5551
        %v5744 = vunpack.c.l.b16 %v5552
        %v5745 = vunpack.c.h.b16 %v5552
        %v5746 = vunpack.c.l.b16 %v5553
        %v5747 = vunpack.c.h.b16 %v5553
        %v5748 = vunpack.c.l.b16 %v5554
        %v5749 = vunpack.c.h.b16 %v5554
        %v5750 = vunpack.c.l.b16 %v5555
        %v5751 = vunpack.c.h.b16 %v5555
        %v5752 = vunpack.c.l.b16 %v5556
        %v5753 = vunpack.c.h.b16 %v5556
        %v5754 = vunpack.c.l.b16 %v5557
        %v5755 = vunpack.c.h.b16 %v5557
        %v5756 = vunpack.c.l.b16 %v5558
        %v5757 = vunpack.c.h.b16 %v5558
        %v5758 = vunpack.c.l.b16 %v5559
        %v5759 = vunpack.c.h.b16 %v5559
        %v5760 = vunpack.c.l.b16 %v5560
        %v5761 = vunpack.c.h.b16 %v5560
        %v5762 = vunpack.c.l.b16 %v5561
        %v5763 = vunpack.c.h.b16 %v5561
        %v5764 = vunpack.c.l.b16 %v5562
        %v5765 = vunpack.c.h.b16 %v5562
        %v5766 = vunpack.c.l.b16 %v5563
        %v5767 = vunpack.c.h.b16 %v5563
        %v5768 = vunpack.c.l.b16 %v5564
        %v5769 = vunpack.c.h.b16 %v5564
        %v5770 = vunpack.c.l.b16 %v5565
        %v5771 = vunpack.c.h.b16 %v5565
        %v5772 = vunpack.c.l.b16 %v5566
        %v5773 = vunpack.c.h.b16 %v5566
        %v5774 = vunpack.c.l.b16 %v5567
        %v5775 = vunpack.c.h.b16 %v5567
        %v5776 = vunpack.c.l.b16 %v5568
        %v5777 = vunpack.c.h.b16 %v5568
        %v5778 = vpack.c.b16 %v5652, %v5650
        %v5779 = vpack.c.b16 %v5653, %v5651
        %v5780 = vpack.c.b16 %v5656, %v5654
        %v5781 = vpack.c.b16 %v5657, %v5655
        %v5782 = vpack.c.b16 %v5660, %v5658
        %v5783 = vpack.c.b16 %v5661, %v5659
        %v5784 = vpack.c.b16 %v5664, %v5662
        %v5785 = vpack.c.b16 %v5665, %v5663
        %v5786 = vpack.c.b16 %v5668, %v5666
        %v5787 = vpack.c.b16 %v5669, %v5667
        %v5788 = vpack.c.b16 %v5672, %v5670
        %v5789 = vpack.c.b16 %v5673, %v5671
        %v5790 = vpack.c.b16 %v5676, %v5674
        %v5791 = vpack.c.b16 %v5677, %v5675
        %v5792 = vpack.c.b16 %v5680, %v5678
        %v5793 = vpack.c.b16 %v5681, %v5679
        %v5794 = vpack.c.b16 %v5684, %v5682
        %v5795 = vpack.c.b16 %v5685, %v5683
        %v5796 = vpack.c.b16 %v5688, %v5686
        %v5797 = vpack.c.b16 %v5689, %v5687
        %v5798 = vpack.c.b16 %v5692, %v5690
        %v5799 = vpack.c.b16 %v5693, %v5691
        %v5800 = vpack.c.b16 %v5696, %v5694
        %v5801 = vpack.c.b16 %v5697, %v5695
        %v5802 = vpack.c.b16 %v5700, %v5698
        %v5803 = vpack.c.b16 %v5701, %v5699
        %v5804 = vpack.c.b16 %v5704, %v5702
        %v5805 = vpack.c.b16 %v5705, %v5703
        %v5806 = vpack.c.b16 %v5708, %v5706
        %v5807 = vpack.c.b16 %v5709, %v5707
        %v5808 = vpack.c.b16 %v5712, %v5710
        %v5809 = vpack.c.b16 %v5713, %v5711
        %v5810 = vpack.c.b16 %v5716, %v5714
        %v5811 = vpack.c.b16 %v5717, %v5715
        %v5812 = vpack.c.b16 %v5720, %v5718
        %v5813 = vpack.c.b16 %v5721, %v5719
        %v5814 = vpack.c.b16 %v5724, %v5722
        %v5815 = vpack.c.b16 %v5725, %v5723
        %v5816 = vpack.c.b16 %v5728, %v5726
        %v5817 = vpack.c.b16 %v5729, %v5727
        %v5818 = vpack.c.b16 %v5732, %v5730
        %v5819 = vpack.c.b16 %v5733, %v5731
        %v5820 = vpack.c.b16 %v5736, %v5734
        %v5821 = vpack.c.b16 %v5737, %v5735
        %v5822 = vpack.c.b16 %v5740, %v5738
        %v5823 = vpack.c.b16 %v5741, %v5739
        %v5824 = vpack.c.b16 %v5744, %v5742
        %v5825 = vpack.c.b16 %v5745, %v5743
        %v5826 = vpack.c.b16 %v5748, %v5746
        %v5827 = vpack.c.b16 %v5749, %v5747
        %v5828 = vpack.c.b16 %v5752, %v5750
        %v5829 = vpack.c.b16 %v5753, %v5751
        %v5830 = vpack.c.b16 %v5756, %v5754
        %v5831 = vpack.c.b16 %v5757, %v5755
        %v5832 = vpack.c.b16 %v5760, %v5758
        %v5833 = vpack.c.b16 %v5761, %v5759
        %v5834 = vpack.c.b16 %v5764, %v5762
        %v5835 = vpack.c.b16 %v5765, %v5763
        %v5836 = vpack.c.b16 %v5768, %v5766
        %v5837 = vpack.c.b16 %v5769, %v5767
        %v5838 = vpack.c.b16 %v5772, %v5770
        %v5839 = vpack.c.b16 %v5773, %v5771
        %v5840 = vpack.c.b16 %v5776, %v5774
        %v5841 = vpack.c.b16 %v5777, %v5775
        %5906 = vmatprep.subr.bf16.mxu0 %v5779
        %5907 = vmatpush1.bf16.msra.mxu0 %v5778
        %5908 = vmatprep.subr.bf16.mxu0 %v5781
        %5909 = vmatpush1.bf16.msra.mxu0 %v5780
        %5910 = vmatprep.subr.bf16.mxu0 %v5783
        %5911 = vmatpush1.bf16.msra.mxu0 %v5782
        %5912 = vmatprep.subr.bf16.mxu0 %v5785
        %5913 = vmatpush1.bf16.msra.mxu0 %v5784
        %5914 = vmatprep.subr.bf16.mxu0 %v5787
        %5915 = vmatpush1.bf16.msra.mxu0 %v5786
        %5916 = vmatprep.subr.bf16.mxu0 %v5789
        %5917 = vmatpush1.bf16.msra.mxu0 %v5788
        %5918 = vmatprep.subr.bf16.mxu0 %v5791
        %5919 = vmatpush1.bf16.msra.mxu0 %v5790
        %5920 = vmatprep.subr.bf16.mxu0 %v5793
        %5921 = vmatpush1.bf16.msra.mxu0 %v5792
        %5922 = vmatprep.subr.bf16.mxu0 %v5795
        %5923 = vmatpush1.bf16.msra.mxu0 %v5794
        %5924 = vmatprep.subr.bf16.mxu0 %v5797
        %5925 = vmatpush1.bf16.msra.mxu0 %v5796
        %5926 = vmatprep.subr.bf16.mxu0 %v5799
        %5927 = vmatpush1.bf16.msra.mxu0 %v5798
        %5928 = vmatprep.subr.bf16.mxu0 %v5801
        %5929 = vmatpush1.bf16.msra.mxu0 %v5800
        %5930 = vmatprep.subr.bf16.mxu0 %v5803
        %5931 = vmatpush1.bf16.msra.mxu0 %v5802
        %5932 = vmatprep.subr.bf16.mxu0 %v5805
        %5933 = vmatpush1.bf16.msra.mxu0 %v5804
        %5934 = vmatprep.subr.bf16.mxu0 %v5807
        %5935 = vmatpush1.bf16.msra.mxu0 %v5806
        %5936 = vmatprep.subr.bf16.mxu0 %v5809
        %5937 = vmatpush1.bf16.msra.mxu0 %v5808
        %5938 = vmatprep.mubr.bf16.mxu0 %v5570
        %5939 = vmatmul.mubr.bf16.gmra.mrb[0].mxu0 %v5569
        %v5940 = vpop.f32.mrb[0].mxu0
        %v5941 = vadd.f32 %v5579, %v5940
        %v5942 = vpop.f32.mrb[0].mxu0
        %v5943 = vadd.f32 %v5583, %v5942
        %v5944 = vpop.f32.mrb[0].mxu0
        %v5945 = vpop.f32.mrb[0].mxu0
        %5946 = vdwg.mxu0
        %5947 = vmatprep.subr.bf16.mxu0 %v5811
        %5948 = vmatpush1.bf16.msra.mxu0 %v5810
        %5949 = vmatprep.subr.bf16.mxu0 %v5813
        %5950 = vmatpush1.bf16.msra.mxu0 %v5812
        %5951 = vmatprep.subr.bf16.mxu0 %v5815
        %5952 = vmatpush1.bf16.msra.mxu0 %v5814
        %5953 = vmatprep.subr.bf16.mxu0 %v5817
        %5954 = vmatpush1.bf16.msra.mxu0 %v5816
        %5955 = vmatprep.subr.bf16.mxu0 %v5819
        %5956 = vmatpush1.bf16.msra.mxu0 %v5818
        %5957 = vmatprep.subr.bf16.mxu0 %v5821
        %5958 = vmatpush1.bf16.msra.mxu0 %v5820
        %5959 = vmatprep.subr.bf16.mxu0 %v5823
        %5960 = vmatpush1.bf16.msra.mxu0 %v5822
        %5961 = vmatprep.subr.bf16.mxu0 %v5825
        %5962 = vmatpush1.bf16.msra.mxu0 %v5824
        %5963 = vmatprep.subr.bf16.mxu0 %v5827
        %5964 = vmatpush1.bf16.msra.mxu0 %v5826
        %5965 = vmatprep.subr.bf16.mxu0 %v5829
        %5966 = vmatpush1.bf16.msra.mxu0 %v5828
        %5967 = vmatprep.subr.bf16.mxu0 %v5831
        %5968 = vmatpush1.bf16.msra.mxu0 %v5830
        %5969 = vmatprep.subr.bf16.mxu0 %v5833
        %5970 = vmatpush1.bf16.msra.mxu0 %v5832
        %5971 = vmatprep.subr.bf16.mxu0 %v5835
        %5972 = vmatpush1.bf16.msra.mxu0 %v5834
        %5973 = vmatprep.subr.bf16.mxu0 %v5837
        %5974 = vmatpush1.bf16.msra.mxu0 %v5836
        %5975 = vmatprep.subr.bf16.mxu0 %v5839
        %5976 = vmatpush1.bf16.msra.mxu0 %v5838
        %5977 = vmatprep.subr.bf16.mxu0 %v5841
        %5978 = vmatpush1.bf16.msra.mxu0 %v5840
        %5979 = vmatprep.mubr.bf16.mxu0 %v5572
        %5980 = vmatmul.mubr.bf16.gmra.mrb[0].mxu0 %v5571
        %v5981 = vpop.f32.mrb[0].mxu0
        %v5982 = vadd.f32 %v5941, %v5981
        %v5983 = vpop.f32.mrb[0].mxu0
        %v5984 = vadd.f32 %v5943, %v5983
        %v5985 = vpop.f32.mrb[0].mxu0
        %v5986 = vpop.f32.mrb[0].mxu0
        %5987 = vdwg.mxu0
        %v5988 = vadd.f32 %v5006, %v5982
        %v5989 = vadd.f32 %v5007, %v5984
        %s5990 = scalar_lea.vmem [#allocation22], 2
        %v5991 = vld [vmem:[%s5990] sm:$0x3]
        %s5992 = scalar_lea.vmem [#allocation23], 2
        %v5993 = vld [vmem:[%s5992] sm:$0x3]
        %v5994 = vadd.f32 %v5988, %v5989
        %5995 = vadd.xlane.f32.xlu0 %v5994
        %v5996 = vpop.xlane.xlu0 %5995
        %v5997 = vmul.f32 %v5996, %v2456
        %v5998 = vsub.f32 %v5988, %v5997
        %v5999 = vsub.f32 %v5989, %v5997
        %v6000 = vmul.f32 %v5998, %v5998
        %v6001 = vmul.f32 %v5999, %v5999
        %v6002 = vadd.f32 %v6000, %v6001
        %6003 = vadd.xlane.f32.xlu0 %v6002
        %v6004 = vpop.xlane.xlu0 %6003
        %v6005 = vmul.f32 %v6004, %v2456
        %v6006 = vadd.f32 %v6005, 1e-05
        %v6007 = vrsqrt.pop %v6006
        %v6008 = vmul.f32 %v5998, %v6007
        %v6009 = vmul.f32 %v5999, %v6007
        %v6011 = vlaneseq
        %v6012 = vshrl.u32 %v6011, 7
        %v6013 = vsub.s32 0, %v6012
        %v6014 = vrot.slane %v5991, %v6013
        %v6015 = vlaneseq
        %v6016 = vshrl.u32 %v6015, 7
        %v6017 = vsub.s32 1, %v6016
        %v6018 = vrot.slane %v5991, %v6017
        %v6021 = vmul.f32 %v6008, %v6014
        %v6022 = vmul.f32 %v6009, %v6018
        %v6024 = vlaneseq
        %v6025 = vshrl.u32 %v6024, 7
        %v6026 = vsub.s32 0, %v6025
        %v6027 = vrot.slane %v5993, %v6026
        %v6028 = vlaneseq
        %v6029 = vshrl.u32 %v6028, 7
        %v6030 = vsub.s32 1, %v6029
        %v6031 = vrot.slane %v5993, %v6030
        %v6034 = vadd.f32 %v6021, %v6027
        %v6035 = vadd.f32 %v6022, %v6031
        %s6036 = scalar_lea.vmem [#allocation7], 1536
        %v6037 = vld [vmem:[%s6036] sm:$0xff]
        %v6038 = vld [vmem:[%s6036 + $0x8] sm:$0xff]
        %v6039 = vld [vmem:[%s6036 + $0x10] sm:$0xff]
        %v6040 = vld [vmem:[%s6036 + $0x18] sm:$0xff]
        %v6041 = vld [vmem:[%s6036 + $0x20] sm:$0xff]
        %v6042 = vld [vmem:[%s6036 + $0x28] sm:$0xff]
        %v6043 = vld [vmem:[%s6036 + $0x30] sm:$0xff]
        %v6044 = vld [vmem:[%s6036 + $0x38] sm:$0xff]
        %v6045 = vld [vmem:[%s6036 + $0x40] sm:$0xff]
        %v6046 = vld [vmem:[%s6036 + $0x48] sm:$0xff]
        %v6047 = vld [vmem:[%s6036 + $0x50] sm:$0xff]
        %v6048 = vld [vmem:[%s6036 + $0x58] sm:$0xff]
        %v6049 = vld [vmem:[%s6036 + $0x60] sm:$0xff]
        %v6050 = vld [vmem:[%s6036 + $0x68] sm:$0xff]
        %v6051 = vld [vmem:[%s6036 + $0x70] sm:$0xff]
        %v6052 = vld [vmem:[%s6036 + $0x78] sm:$0xff]
        %v6053 = vld [vmem:[%s6036 + $0x80] sm:$0xff]
        %v6054 = vld [vmem:[%s6036 + $0x88] sm:$0xff]
        %v6055 = vld [vmem:[%s6036 + $0x90] sm:$0xff]
        %v6056 = vld [vmem:[%s6036 + $0x98] sm:$0xff]
        %v6057 = vld [vmem:[%s6036 + $0xa0] sm:$0xff]
        %v6058 = vld [vmem:[%s6036 + $0xa8] sm:$0xff]
        %v6059 = vld [vmem:[%s6036 + $0xb0] sm:$0xff]
        %v6060 = vld [vmem:[%s6036 + $0xb8] sm:$0xff]
        %v6061 = vld [vmem:[%s6036 + $0xc0] sm:$0xff]
        %v6062 = vld [vmem:[%s6036 + $0xc8] sm:$0xff]
        %v6063 = vld [vmem:[%s6036 + $0xd0] sm:$0xff]
        %v6064 = vld [vmem:[%s6036 + $0xd8] sm:$0xff]
        %v6065 = vld [vmem:[%s6036 + $0xe0] sm:$0xff]
        %v6066 = vld [vmem:[%s6036 + $0xe8] sm:$0xff]
        %v6067 = vld [vmem:[%s6036 + $0xf0] sm:$0xff]
        %v6068 = vld [vmem:[%s6036 + $0xf8] sm:$0xff]
        %v6069 = vld [vmem:[%s6036 + $0x100] sm:$0xff]
        %v6070 = vld [vmem:[%s6036 + $0x108] sm:$0xff]
        %v6071 = vld [vmem:[%s6036 + $0x110] sm:$0xff]
        %v6072 = vld [vmem:[%s6036 + $0x118] sm:$0xff]
        %v6073 = vld [vmem:[%s6036 + $0x120] sm:$0xff]
        %v6074 = vld [vmem:[%s6036 + $0x128] sm:$0xff]
        %v6075 = vld [vmem:[%s6036 + $0x130] sm:$0xff]
        %v6076 = vld [vmem:[%s6036 + $0x138] sm:$0xff]
        %v6077 = vld [vmem:[%s6036 + $0x140] sm:$0xff]
        %v6078 = vld [vmem:[%s6036 + $0x148] sm:$0xff]
        %v6079 = vld [vmem:[%s6036 + $0x150] sm:$0xff]
        %v6080 = vld [vmem:[%s6036 + $0x158] sm:$0xff]
        %v6081 = vld [vmem:[%s6036 + $0x160] sm:$0xff]
        %v6082 = vld [vmem:[%s6036 + $0x168] sm:$0xff]
        %v6083 = vld [vmem:[%s6036 + $0x170] sm:$0xff]
        %v6084 = vld [vmem:[%s6036 + $0x178] sm:$0xff]
        %v6085 = vld [vmem:[%s6036 + $0x180] sm:$0xff]
        %v6086 = vld [vmem:[%s6036 + $0x188] sm:$0xff]
        %v6087 = vld [vmem:[%s6036 + $0x190] sm:$0xff]
        %v6088 = vld [vmem:[%s6036 + $0x198] sm:$0xff]
        %v6089 = vld [vmem:[%s6036 + $0x1a0] sm:$0xff]
        %v6090 = vld [vmem:[%s6036 + $0x1a8] sm:$0xff]
        %v6091 = vld [vmem:[%s6036 + $0x1b0] sm:$0xff]
        %v6092 = vld [vmem:[%s6036 + $0x1b8] sm:$0xff]
        %v6093 = vld [vmem:[%s6036 + $0x1c0] sm:$0xff]
        %v6094 = vld [vmem:[%s6036 + $0x1c8] sm:$0xff]
        %v6095 = vld [vmem:[%s6036 + $0x1d0] sm:$0xff]
        %v6096 = vld [vmem:[%s6036 + $0x1d8] sm:$0xff]
        %v6097 = vld [vmem:[%s6036 + $0x1e0] sm:$0xff]
        %v6098 = vld [vmem:[%s6036 + $0x1e8] sm:$0xff]
        %v6099 = vld [vmem:[%s6036 + $0x1f0] sm:$0xff]
        %v6100 = vld [vmem:[%s6036 + $0x1f8] sm:$0xff]
        %v6101 = vld [vmem:[%s6036 + $0x200] sm:$0xff]
        %v6102 = vld [vmem:[%s6036 + $0x208] sm:$0xff]
        %v6103 = vld [vmem:[%s6036 + $0x210] sm:$0xff]
        %v6104 = vld [vmem:[%s6036 + $0x218] sm:$0xff]
        %v6105 = vld [vmem:[%s6036 + $0x220] sm:$0xff]
        %v6106 = vld [vmem:[%s6036 + $0x228] sm:$0xff]
        %v6107 = vld [vmem:[%s6036 + $0x230] sm:$0xff]
        %v6108 = vld [vmem:[%s6036 + $0x238] sm:$0xff]
        %v6109 = vld [vmem:[%s6036 + $0x240] sm:$0xff]
        %v6110 = vld [vmem:[%s6036 + $0x248] sm:$0xff]
        %v6111 = vld [vmem:[%s6036 + $0x250] sm:$0xff]
        %v6112 = vld [vmem:[%s6036 + $0x258] sm:$0xff]
        %v6113 = vld [vmem:[%s6036 + $0x260] sm:$0xff]
        %v6114 = vld [vmem:[%s6036 + $0x268] sm:$0xff]
        %v6115 = vld [vmem:[%s6036 + $0x270] sm:$0xff]
        %v6116 = vld [vmem:[%s6036 + $0x278] sm:$0xff]
        %v6117 = vld [vmem:[%s6036 + $0x280] sm:$0xff]
        %v6118 = vld [vmem:[%s6036 + $0x288] sm:$0xff]
        %v6119 = vld [vmem:[%s6036 + $0x290] sm:$0xff]
        %v6120 = vld [vmem:[%s6036 + $0x298] sm:$0xff]
        %v6121 = vld [vmem:[%s6036 + $0x2a0] sm:$0xff]
        %v6122 = vld [vmem:[%s6036 + $0x2a8] sm:$0xff]
        %v6123 = vld [vmem:[%s6036 + $0x2b0] sm:$0xff]
        %v6124 = vld [vmem:[%s6036 + $0x2b8] sm:$0xff]
        %v6125 = vld [vmem:[%s6036 + $0x2c0] sm:$0xff]
        %v6126 = vld [vmem:[%s6036 + $0x2c8] sm:$0xff]
        %v6127 = vld [vmem:[%s6036 + $0x2d0] sm:$0xff]
        %v6128 = vld [vmem:[%s6036 + $0x2d8] sm:$0xff]
        %v6129 = vld [vmem:[%s6036 + $0x2e0] sm:$0xff]
        %v6130 = vld [vmem:[%s6036 + $0x2e8] sm:$0xff]
        %v6131 = vld [vmem:[%s6036 + $0x2f0] sm:$0xff]
        %v6132 = vld [vmem:[%s6036 + $0x2f8] sm:$0xff]
        %v6133 = vpack.c.bf16 %v6034, %v6034
        %v6134 = vpack.c.bf16 %v6035, %v6035
        %s6135 = scalar_lea.vmem [#allocation8], 12
        %v6136 = vld [vmem:[%s6135] sm:$0x3f]
        %v6138 = vlaneseq
        %v6139 = vshrl.u32 %v6138, 7
        %v6140 = vsub.s32 0, %v6139
        %v6141 = vrot.slane %v6136, %v6140
        %v6142 = vlaneseq
        %v6143 = vshrl.u32 %v6142, 7
        %v6144 = vsub.s32 1, %v6143
        %v6145 = vrot.slane %v6136, %v6144
        %v6146 = vlaneseq
        %v6147 = vshrl.u32 %v6146, 7
        %v6148 = vsub.s32 2, %v6147
        %v6149 = vrot.slane %v6136, %v6148
        %v6150 = vlaneseq
        %v6151 = vshrl.u32 %v6150, 7
        %v6152 = vsub.s32 3, %v6151
        %v6153 = vrot.slane %v6136, %v6152
        %v6154 = vlaneseq
        %v6155 = vshrl.u32 %v6154, 7
        %v6156 = vsub.s32 4, %v6155
        %v6157 = vrot.slane %v6136, %v6156
        %v6158 = vlaneseq
        %v6159 = vshrl.u32 %v6158, 7
        %v6160 = vsub.s32 5, %v6159
        %v6161 = vrot.slane %v6136, %v6160
        %v6264 = vunpack.c.l.b16 %v6037
        %v6265 = vunpack.c.h.b16 %v6037
        %v6266 = vunpack.c.l.b16 %v6038
        %v6267 = vunpack.c.h.b16 %v6038
        %v6268 = vunpack.c.l.b16 %v6039
        %v6269 = vunpack.c.h.b16 %v6039
        %v6270 = vunpack.c.l.b16 %v6040
        %v6271 = vunpack.c.h.b16 %v6040
        %v6272 = vunpack.c.l.b16 %v6041
        %v6273 = vunpack.c.h.b16 %v6041
        %v6274 = vunpack.c.l.b16 %v6042
        %v6275 = vunpack.c.h.b16 %v6042
        %v6276 = vunpack.c.l.b16 %v6043
        %v6277 = vunpack.c.h.b16 %v6043
        %v6278 = vunpack.c.l.b16 %v6044
        %v6279 = vunpack.c.h.b16 %v6044
        %v6280 = vunpack.c.l.b16 %v6045
        %v6281 = vunpack.c.h.b16 %v6045
        %v6282 = vunpack.c.l.b16 %v6046
        %v6283 = vunpack.c.h.b16 %v6046
        %v6284 = vunpack.c.l.b16 %v6047
        %v6285 = vunpack.c.h.b16 %v6047
        %v6286 = vunpack.c.l.b16 %v6048
        %v6287 = vunpack.c.h.b16 %v6048
        %v6288 = vunpack.c.l.b16 %v6049
        %v6289 = vunpack.c.h.b16 %v6049
        %v6290 = vunpack.c.l.b16 %v6050
        %v6291 = vunpack.c.h.b16 %v6050
        %v6292 = vunpack.c.l.b16 %v6051
        %v6293 = vunpack.c.h.b16 %v6051
        %v6294 = vunpack.c.l.b16 %v6052
        %v6295 = vunpack.c.h.b16 %v6052
        %v6296 = vunpack.c.l.b16 %v6053
        %v6297 = vunpack.c.h.b16 %v6053
        %v6298 = vunpack.c.l.b16 %v6054
        %v6299 = vunpack.c.h.b16 %v6054
        %v6300 = vunpack.c.l.b16 %v6055
        %v6301 = vunpack.c.h.b16 %v6055
        %v6302 = vunpack.c.l.b16 %v6056
        %v6303 = vunpack.c.h.b16 %v6056
        %v6304 = vunpack.c.l.b16 %v6057
        %v6305 = vunpack.c.h.b16 %v6057
        %v6306 = vunpack.c.l.b16 %v6058
        %v6307 = vunpack.c.h.b16 %v6058
        %v6308 = vunpack.c.l.b16 %v6059
        %v6309 = vunpack.c.h.b16 %v6059
        %v6310 = vunpack.c.l.b16 %v6060
        %v6311 = vunpack.c.h.b16 %v6060
        %v6312 = vunpack.c.l.b16 %v6061
        %v6313 = vunpack.c.h.b16 %v6061
        %v6314 = vunpack.c.l.b16 %v6062
        %v6315 = vunpack.c.h.b16 %v6062
        %v6316 = vunpack.c.l.b16 %v6063
        %v6317 = vunpack.c.h.b16 %v6063
        %v6318 = vunpack.c.l.b16 %v6064
        %v6319 = vunpack.c.h.b16 %v6064
        %v6320 = vunpack.c.l.b16 %v6065
        %v6321 = vunpack.c.h.b16 %v6065
        %v6322 = vunpack.c.l.b16 %v6066
        %v6323 = vunpack.c.h.b16 %v6066
        %v6324 = vunpack.c.l.b16 %v6067
        %v6325 = vunpack.c.h.b16 %v6067
        %v6326 = vunpack.c.l.b16 %v6068
        %v6327 = vunpack.c.h.b16 %v6068
        %v6328 = vunpack.c.l.b16 %v6069
        %v6329 = vunpack.c.h.b16 %v6069
        %v6330 = vunpack.c.l.b16 %v6070
        %v6331 = vunpack.c.h.b16 %v6070
        %v6332 = vunpack.c.l.b16 %v6071
        %v6333 = vunpack.c.h.b16 %v6071
        %v6334 = vunpack.c.l.b16 %v6072
        %v6335 = vunpack.c.h.b16 %v6072
        %v6336 = vunpack.c.l.b16 %v6073
        %v6337 = vunpack.c.h.b16 %v6073
        %v6338 = vunpack.c.l.b16 %v6074
        %v6339 = vunpack.c.h.b16 %v6074
        %v6340 = vunpack.c.l.b16 %v6075
        %v6341 = vunpack.c.h.b16 %v6075
        %v6342 = vunpack.c.l.b16 %v6076
        %v6343 = vunpack.c.h.b16 %v6076
        %v6344 = vunpack.c.l.b16 %v6077
        %v6345 = vunpack.c.h.b16 %v6077
        %v6346 = vunpack.c.l.b16 %v6078
        %v6347 = vunpack.c.h.b16 %v6078
        %v6348 = vunpack.c.l.b16 %v6079
        %v6349 = vunpack.c.h.b16 %v6079
        %v6350 = vunpack.c.l.b16 %v6080
        %v6351 = vunpack.c.h.b16 %v6080
        %v6352 = vunpack.c.l.b16 %v6081
        %v6353 = vunpack.c.h.b16 %v6081
        %v6354 = vunpack.c.l.b16 %v6082
        %v6355 = vunpack.c.h.b16 %v6082
        %v6356 = vunpack.c.l.b16 %v6083
        %v6357 = vunpack.c.h.b16 %v6083
        %v6358 = vunpack.c.l.b16 %v6084
        %v6359 = vunpack.c.h.b16 %v6084
        %v6360 = vunpack.c.l.b16 %v6085
        %v6361 = vunpack.c.h.b16 %v6085
        %v6362 = vunpack.c.l.b16 %v6086
        %v6363 = vunpack.c.h.b16 %v6086
        %v6364 = vunpack.c.l.b16 %v6087
        %v6365 = vunpack.c.h.b16 %v6087
        %v6366 = vunpack.c.l.b16 %v6088
        %v6367 = vunpack.c.h.b16 %v6088
        %v6368 = vunpack.c.l.b16 %v6089
        %v6369 = vunpack.c.h.b16 %v6089
        %v6370 = vunpack.c.l.b16 %v6090
        %v6371 = vunpack.c.h.b16 %v6090
        %v6372 = vunpack.c.l.b16 %v6091
        %v6373 = vunpack.c.h.b16 %v6091
        %v6374 = vunpack.c.l.b16 %v6092
        %v6375 = vunpack.c.h.b16 %v6092
        %v6376 = vunpack.c.l.b16 %v6093
        %v6377 = vunpack.c.h.b16 %v6093
        %v6378 = vunpack.c.l.b16 %v6094
        %v6379 = vunpack.c.h.b16 %v6094
        %v6380 = vunpack.c.l.b16 %v6095
        %v6381 = vunpack.c.h.b16 %v6095
        %v6382 = vunpack.c.l.b16 %v6096
        %v6383 = vunpack.c.h.b16 %v6096
        %v6384 = vunpack.c.l.b16 %v6097
        %v6385 = vunpack.c.h.b16 %v6097
        %v6386 = vunpack.c.l.b16 %v6098
        %v6387 = vunpack.c.h.b16 %v6098
        %v6388 = vunpack.c.l.b16 %v6099
        %v6389 = vunpack.c.h.b16 %v6099
        %v6390 = vunpack.c.l.b16 %v6100
        %v6391 = vunpack.c.h.b16 %v6100
        %v6392 = vunpack.c.l.b16 %v6101
        %v6393 = vunpack.c.h.b16 %v6101
        %v6394 = vunpack.c.l.b16 %v6102
        %v6395 = vunpack.c.h.b16 %v6102
        %v6396 = vunpack.c.l.b16 %v6103
        %v6397 = vunpack.c.h.b16 %v6103
        %v6398 = vunpack.c.l.b16 %v6104
        %v6399 = vunpack.c.h.b16 %v6104
        %v6400 = vunpack.c.l.b16 %v6105
        %v6401 = vunpack.c.h.b16 %v6105
        %v6402 = vunpack.c.l.b16 %v6106
        %v6403 = vunpack.c.h.b16 %v6106
        %v6404 = vunpack.c.l.b16 %v6107
        %v6405 = vunpack.c.h.b16 %v6107
        %v6406 = vunpack.c.l.b16 %v6108
        %v6407 = vunpack.c.h.b16 %v6108
        %v6408 = vunpack.c.l.b16 %v6109
        %v6409 = vunpack.c.h.b16 %v6109
        %v6410 = vunpack.c.l.b16 %v6110
        %v6411 = vunpack.c.h.b16 %v6110
        %v6412 = vunpack.c.l.b16 %v6111
        %v6413 = vunpack.c.h.b16 %v6111
        %v6414 = vunpack.c.l.b16 %v6112
        %v6415 = vunpack.c.h.b16 %v6112
        %v6416 = vunpack.c.l.b16 %v6113
        %v6417 = vunpack.c.h.b16 %v6113
        %v6418 = vunpack.c.l.b16 %v6114
        %v6419 = vunpack.c.h.b16 %v6114
        %v6420 = vunpack.c.l.b16 %v6115
        %v6421 = vunpack.c.h.b16 %v6115
        %v6422 = vunpack.c.l.b16 %v6116
        %v6423 = vunpack.c.h.b16 %v6116
        %v6424 = vunpack.c.l.b16 %v6117
        %v6425 = vunpack.c.h.b16 %v6117
        %v6426 = vunpack.c.l.b16 %v6118
        %v6427 = vunpack.c.h.b16 %v6118
        %v6428 = vunpack.c.l.b16 %v6119
        %v6429 = vunpack.c.h.b16 %v6119
        %v6430 = vunpack.c.l.b16 %v6120
        %v6431 = vunpack.c.h.b16 %v6120
        %v6432 = vunpack.c.l.b16 %v6121
        %v6433 = vunpack.c.h.b16 %v6121
        %v6434 = vunpack.c.l.b16 %v6122
        %v6435 = vunpack.c.h.b16 %v6122
        %v6436 = vunpack.c.l.b16 %v6123
        %v6437 = vunpack.c.h.b16 %v6123
        %v6438 = vunpack.c.l.b16 %v6124
        %v6439 = vunpack.c.h.b16 %v6124
        %v6440 = vunpack.c.l.b16 %v6125
        %v6441 = vunpack.c.h.b16 %v6125
        %v6442 = vunpack.c.l.b16 %v6126
        %v6443 = vunpack.c.h.b16 %v6126
        %v6444 = vunpack.c.l.b16 %v6127
        %v6445 = vunpack.c.h.b16 %v6127
        %v6446 = vunpack.c.l.b16 %v6128
        %v6447 = vunpack.c.h.b16 %v6128
        %v6448 = vunpack.c.l.b16 %v6129
        %v6449 = vunpack.c.h.b16 %v6129
        %v6450 = vunpack.c.l.b16 %v6130
        %v6451 = vunpack.c.h.b16 %v6130
        %v6452 = vunpack.c.l.b16 %v6131
        %v6453 = vunpack.c.h.b16 %v6131
        %v6454 = vunpack.c.l.b16 %v6132
        %v6455 = vunpack.c.h.b16 %v6132
        %v6456 = vpack.c.b16 %v6270, %v6264
        %v6457 = vpack.c.b16 %v6271, %v6265
        %v6458 = vpack.c.b16 %v6272, %v6266
        %v6459 = vpack.c.b16 %v6273, %v6267
        %v6460 = vpack.c.b16 %v6274, %v6268
        %v6461 = vpack.c.b16 %v6275, %v6269
        %v6462 = vpack.c.b16 %v6282, %v6276
        %v6463 = vpack.c.b16 %v6283, %v6277
        %v6464 = vpack.c.b16 %v6284, %v6278
        %v6465 = vpack.c.b16 %v6285, %v6279
        %v6466 = vpack.c.b16 %v6286, %v6280
        %v6467 = vpack.c.b16 %v6287, %v6281
        %v6468 = vpack.c.b16 %v6294, %v6288
        %v6469 = vpack.c.b16 %v6295, %v6289
        %v6470 = vpack.c.b16 %v6296, %v6290
        %v6471 = vpack.c.b16 %v6297, %v6291
        %v6472 = vpack.c.b16 %v6298, %v6292
        %v6473 = vpack.c.b16 %v6299, %v6293
        %v6474 = vpack.c.b16 %v6306, %v6300
        %v6475 = vpack.c.b16 %v6307, %v6301
        %v6476 = vpack.c.b16 %v6308, %v6302
        %v6477 = vpack.c.b16 %v6309, %v6303
        %v6478 = vpack.c.b16 %v6310, %v6304
        %v6479 = vpack.c.b16 %v6311, %v6305
        %v6480 = vpack.c.b16 %v6318, %v6312
        %v6481 = vpack.c.b16 %v6319, %v6313
        %v6482 = vpack.c.b16 %v6320, %v6314
        %v6483 = vpack.c.b16 %v6321, %v6315
        %v6484 = vpack.c.b16 %v6322, %v6316
        %v6485 = vpack.c.b16 %v6323, %v6317
        %v6486 = vpack.c.b16 %v6330, %v6324
        %v6487 = vpack.c.b16 %v6331, %v6325
        %v6488 = vpack.c.b16 %v6332, %v6326
        %v6489 = vpack.c.b16 %v6333, %v6327
        %v6490 = vpack.c.b16 %v6334, %v6328
        %v6491 = vpack.c.b16 %v6335, %v6329
        %v6492 = vpack.c.b16 %v6342, %v6336
        %v6493 = vpack.c.b16 %v6343, %v6337
        %v6494 = vpack.c.b16 %v6344, %v6338
        %v6495 = vpack.c.b16 %v6345, %v6339
        %v6496 = vpack.c.b16 %v6346, %v6340
        %v6497 = vpack.c.b16 %v6347, %v6341
        %v6498 = vpack.c.b16 %v6354, %v6348
        %v6499 = vpack.c.b16 %v6355, %v6349
        %v6500 = vpack.c.b16 %v6356, %v6350
        %v6501 = vpack.c.b16 %v6357, %v6351
        %v6502 = vpack.c.b16 %v6358, %v6352
        %v6503 = vpack.c.b16 %v6359, %v6353
        %v6504 = vpack.c.b16 %v6366, %v6360
        %v6505 = vpack.c.b16 %v6367, %v6361
        %v6506 = vpack.c.b16 %v6368, %v6362
        %v6507 = vpack.c.b16 %v6369, %v6363
        %v6508 = vpack.c.b16 %v6370, %v6364
        %v6509 = vpack.c.b16 %v6371, %v6365
        %v6510 = vpack.c.b16 %v6378, %v6372
        %v6511 = vpack.c.b16 %v6379, %v6373
        %v6512 = vpack.c.b16 %v6380, %v6374
        %v6513 = vpack.c.b16 %v6381, %v6375
        %v6514 = vpack.c.b16 %v6382, %v6376
        %v6515 = vpack.c.b16 %v6383, %v6377
        %v6516 = vpack.c.b16 %v6390, %v6384
        %v6517 = vpack.c.b16 %v6391, %v6385
        %v6518 = vpack.c.b16 %v6392, %v6386
        %v6519 = vpack.c.b16 %v6393, %v6387
        %v6520 = vpack.c.b16 %v6394, %v6388
        %v6521 = vpack.c.b16 %v6395, %v6389
        %v6522 = vpack.c.b16 %v6402, %v6396
        %v6523 = vpack.c.b16 %v6403, %v6397
        %v6524 = vpack.c.b16 %v6404, %v6398
        %v6525 = vpack.c.b16 %v6405, %v6399
        %v6526 = vpack.c.b16 %v6406, %v6400
        %v6527 = vpack.c.b16 %v6407, %v6401
        %v6528 = vpack.c.b16 %v6414, %v6408
        %v6529 = vpack.c.b16 %v6415, %v6409
        %v6530 = vpack.c.b16 %v6416, %v6410
        %v6531 = vpack.c.b16 %v6417, %v6411
        %v6532 = vpack.c.b16 %v6418, %v6412
        %v6533 = vpack.c.b16 %v6419, %v6413
        %v6534 = vpack.c.b16 %v6426, %v6420
        %v6535 = vpack.c.b16 %v6427, %v6421
        %v6536 = vpack.c.b16 %v6428, %v6422
        %v6537 = vpack.c.b16 %v6429, %v6423
        %v6538 = vpack.c.b16 %v6430, %v6424
        %v6539 = vpack.c.b16 %v6431, %v6425
        %v6540 = vpack.c.b16 %v6438, %v6432
        %v6541 = vpack.c.b16 %v6439, %v6433
        %v6542 = vpack.c.b16 %v6440, %v6434
        %v6543 = vpack.c.b16 %v6441, %v6435
        %v6544 = vpack.c.b16 %v6442, %v6436
        %v6545 = vpack.c.b16 %v6443, %v6437
        %v6546 = vpack.c.b16 %v6450, %v6444
        %v6547 = vpack.c.b16 %v6451, %v6445
        %v6548 = vpack.c.b16 %v6452, %v6446
        %v6549 = vpack.c.b16 %v6453, %v6447
        %v6550 = vpack.c.b16 %v6454, %v6448
        %v6551 = vpack.c.b16 %v6455, %v6449
        %6648 = vmatprep.subr.bf16.mxu0 %v6457
        %6649 = vmatpush1.bf16.msra.mxu0 %v6456
        %6650 = vmatprep.subr.bf16.mxu0 %v6463
        %6651 = vmatpush1.bf16.msra.mxu0 %v6462
        %6652 = vmatprep.subr.bf16.mxu0 %v6469
        %6653 = vmatpush1.bf16.msra.mxu0 %v6468
        %6654 = vmatprep.subr.bf16.mxu0 %v6475
        %6655 = vmatpush1.bf16.msra.mxu0 %v6474
        %6656 = vmatprep.subr.bf16.mxu0 %v6481
        %6657 = vmatpush1.bf16.msra.mxu0 %v6480
        %6658 = vmatprep.subr.bf16.mxu0 %v6487
        %6659 = vmatpush1.bf16.msra.mxu0 %v6486
        %6660 = vmatprep.subr.bf16.mxu0 %v6493
        %6661 = vmatpush1.bf16.msra.mxu0 %v6492
        %6662 = vmatprep.subr.bf16.mxu0 %v6499
        %6663 = vmatpush1.bf16.msra.mxu0 %v6498
        %6664 = vmatprep.subr.bf16.mxu0 %v6505
        %6665 = vmatpush1.bf16.msra.mxu0 %v6504
        %6666 = vmatprep.subr.bf16.mxu0 %v6511
        %6667 = vmatpush1.bf16.msra.mxu0 %v6510
        %6668 = vmatprep.subr.bf16.mxu0 %v6517
        %6669 = vmatpush1.bf16.msra.mxu0 %v6516
        %6670 = vmatprep.subr.bf16.mxu0 %v6523
        %6671 = vmatpush1.bf16.msra.mxu0 %v6522
        %6672 = vmatprep.subr.bf16.mxu0 %v6529
        %6673 = vmatpush1.bf16.msra.mxu0 %v6528
        %6674 = vmatprep.subr.bf16.mxu0 %v6535
        %6675 = vmatpush1.bf16.msra.mxu0 %v6534
        %6676 = vmatprep.subr.bf16.mxu0 %v6541
        %6677 = vmatpush1.bf16.msra.mxu0 %v6540
        %6678 = vmatprep.subr.bf16.mxu0 %v6547
        %6679 = vmatpush1.bf16.msra.mxu0 %v6546
        %6680 = vmatprep.mubr.bf16.mxu0 %v6134
        %6681 = vmatmul.mubr.bf16.gmra.mrb[0].mxu0 %v6133
        %v6682 = vpop.f32.mrb[0].mxu0
        %v6683 = vadd.f32 %v6141, %v6682
        %v6684 = vpop.f32.mrb[0].mxu0
        %v6685 = vadd.f32 %v6145, %v6684
        %v6686 = vpop.f32.mrb[0].mxu0
        %v6687 = vpop.f32.mrb[0].mxu0
        %6688 = vdwg.mxu0
        %6689 = vmatprep.subr.bf16.mxu0 %v6459
        %6690 = vmatpush1.bf16.msra.mxu0 %v6458
        %6691 = vmatprep.subr.bf16.mxu0 %v6465
        %6692 = vmatpush1.bf16.msra.mxu0 %v6464
        %6693 = vmatprep.subr.bf16.mxu0 %v6471
        %6694 = vmatpush1.bf16.msra.mxu0 %v6470
        %6695 = vmatprep.subr.bf16.mxu0 %v6477
        %6696 = vmatpush1.bf16.msra.mxu0 %v6476
        %6697 = vmatprep.subr.bf16.mxu0 %v6483
        %6698 = vmatpush1.bf16.msra.mxu0 %v6482
        %6699 = vmatprep.subr.bf16.mxu0 %v6489
        %6700 = vmatpush1.bf16.msra.mxu0 %v6488
        %6701 = vmatprep.subr.bf16.mxu0 %v6495
        %6702 = vmatpush1.bf16.msra.mxu0 %v6494
        %6703 = vmatprep.subr.bf16.mxu0 %v6501
        %6704 = vmatpush1.bf16.msra.mxu0 %v6500
        %6705 = vmatprep.subr.bf16.mxu0 %v6507
        %6706 = vmatpush1.bf16.msra.mxu0 %v6506
        %6707 = vmatprep.subr.bf16.mxu0 %v6513
        %6708 = vmatpush1.bf16.msra.mxu0 %v6512
        %6709 = vmatprep.subr.bf16.mxu0 %v6519
        %6710 = vmatpush1.bf16.msra.mxu0 %v6518
        %6711 = vmatprep.subr.bf16.mxu0 %v6525
        %6712 = vmatpush1.bf16.msra.mxu0 %v6524
        %6713 = vmatprep.subr.bf16.mxu0 %v6531
        %6714 = vmatpush1.bf16.msra.mxu0 %v6530
        %6715 = vmatprep.subr.bf16.mxu0 %v6537
        %6716 = vmatpush1.bf16.msra.mxu0 %v6536
        %6717 = vmatprep.subr.bf16.mxu0 %v6543
        %6718 = vmatpush1.bf16.msra.mxu0 %v6542
        %6719 = vmatprep.subr.bf16.mxu0 %v6549
        %6720 = vmatpush1.bf16.msra.mxu0 %v6548
        %6721 = vmatprep.mubr.bf16.mxu0 %v6134
        %6722 = vmatmul.mubr.bf16.gmra.mrb[0].mxu0 %v6133
        %v6723 = vpop.f32.mrb[0].mxu0
        %v6724 = vadd.f32 %v6149, %v6723
        %v6725 = vpop.f32.mrb[0].mxu0
        %v6726 = vadd.f32 %v6153, %v6725
        %v6727 = vpop.f32.mrb[0].mxu0
        %v6728 = vpop.f32.mrb[0].mxu0
        %6729 = vdwg.mxu0
        %6730 = vmatprep.subr.bf16.mxu0 %v6461
        %6731 = vmatpush1.bf16.msra.mxu0 %v6460
        %6732 = vmatprep.subr.bf16.mxu0 %v6467
        %6733 = vmatpush1.bf16.msra.mxu0 %v6466
        %6734 = vmatprep.subr.bf16.mxu0 %v6473
        %6735 = vmatpush1.bf16.msra.mxu0 %v6472
        %6736 = vmatprep.subr.bf16.mxu0 %v6479
        %6737 = vmatpush1.bf16.msra.mxu0 %v6478
        %6738 = vmatprep.subr.bf16.mxu0 %v6485
        %6739 = vmatpush1.bf16.msra.mxu0 %v6484
        %6740 = vmatprep.subr.bf16.mxu0 %v6491
        %6741 = vmatpush1.bf16.msra.mxu0 %v6490
        %6742 = vmatprep.subr.bf16.mxu0 %v6497
        %6743 = vmatpush1.bf16.msra.mxu0 %v6496
        %6744 = vmatprep.subr.bf16.mxu0 %v6503
        %6745 = vmatpush1.bf16.msra.mxu0 %v6502
        %6746 = vmatprep.subr.bf16.mxu0 %v6509
        %6747 = vmatpush1.bf16.msra.mxu0 %v6508
        %6748 = vmatprep.subr.bf16.mxu0 %v6515
        %6749 = vmatpush1.bf16.msra.mxu0 %v6514
        %6750 = vmatprep.subr.bf16.mxu0 %v6521
        %6751 = vmatpush1.bf16.msra.mxu0 %v6520
        %6752 = vmatprep.subr.bf16.mxu0 %v6527
        %6753 = vmatpush1.bf16.msra.mxu0 %v6526
        %6754 = vmatprep.subr.bf16.mxu0 %v6533
        %6755 = vmatpush1.bf16.msra.mxu0 %v6532
        %6756 = vmatprep.subr.bf16.mxu0 %v6539
        %6757 = vmatpush1.bf16.msra.mxu0 %v6538
        %6758 = vmatprep.subr.bf16.mxu0 %v6545
        %6759 = vmatpush1.bf16.msra.mxu0 %v6544
        %6760 = vmatprep.subr.bf16.mxu0 %v6551
        %6761 = vmatpush1.bf16.msra.mxu0 %v6550
        %6762 = vmatprep.mubr.bf16.mxu0 %v6134
        %6763 = vmatmul.mubr.bf16.gmra.mrb[0].mxu0 %v6133
        %v6764 = vpop.f32.mrb[0].mxu0
        %v6765 = vadd.f32 %v6157, %v6764
        %v6766 = vpop.f32.mrb[0].mxu0
        %v6767 = vadd.f32 %v6161, %v6766
        %v6768 = vpop.f32.mrb[0].mxu0
        %v6769 = vpop.f32.mrb[0].mxu0
        %6770 = vdwg.mxu0
        %v6771 = vpack.c.bf16 %v6683, %v6683
        %v6772 = vpack.c.bf16 %v6724, %v6724
        %v6774 = vsel %vm957, %v6771, 0
        %v6777 = vsel %vm957, %v6772, 0
        %6779 = vmatprep.subr.bf16.mxu0 0
        %6780 = vmatpush1.bf16.xpose.msra.mxu0 %v6777
        %6781 = vmatprep.subr.bf16.mxu0 0
        %6782 = vmatpush1.bf16.xpose.msra.mxu0 0
        %6783 = vmatprep.subr.bf16.mxu0 0
        %6784 = vmatpush1.bf16.xpose.msra.mxu0 0
        %6785 = vmatprep.subr.bf16.mxu0 0
        %6786 = vmatpush1.bf16.xpose.msra.mxu0 0
        %6787 = vmatprep.subr.bf16.mxu0 0
        %6788 = vmatpush1.bf16.xpose.msra.mxu0 0
        %6789 = vmatprep.subr.bf16.mxu0 0
        %6790 = vmatpush1.bf16.xpose.msra.mxu0 0
        %6791 = vmatprep.subr.bf16.mxu0 0
        %6792 = vmatpush1.bf16.xpose.msra.mxu0 0
        %6793 = vmatprep.subr.bf16.mxu0 0
        %6794 = vmatpush1.bf16.xpose.msra.mxu0 0
        %6795 = vmatprep.subr.bf16.mxu0 0
        %6796 = vmatpush1.bf16.xpose.msra.mxu0 0
        %6797 = vmatprep.subr.bf16.mxu0 0
        %6798 = vmatpush1.bf16.xpose.msra.mxu0 0
        %6799 = vmatprep.subr.bf16.mxu0 0
        %6800 = vmatpush1.bf16.xpose.msra.mxu0 0
        %6801 = vmatprep.subr.bf16.mxu0 0
        %6802 = vmatpush1.bf16.xpose.msra.mxu0 0
        %6803 = vmatprep.subr.bf16.mxu0 0
        %6804 = vmatpush1.bf16.xpose.msra.mxu0 0
        %6805 = vmatprep.subr.bf16.mxu0 0
        %6806 = vmatpush1.bf16.xpose.msra.mxu0 0
        %6807 = vmatprep.subr.bf16.mxu0 0
        %6808 = vmatpush1.bf16.xpose.msra.mxu0 0
        %6809 = vmatprep.subr.bf16.mxu0 0
        %6810 = vmatpush1.bf16.xpose.msra.mxu0 0
        %6811 = vmatprep.mubr.bf16.mxu0 0
        %6812 = vmatmul.mubr.bf16.gmra.mrb[0].mxu0 %v6774
        %v6813 = vpop.f32.mrb[0].mxu0
        %v6814 = vadd.f32 0.0, %v6813
        %v6815 = vpop.f32.mrb[0].mxu0
        %v6816 = vpop.f32.mrb[0].mxu0
        %v6817 = vpop.f32.mrb[0].mxu0
        %6818 = vdwg.mxu0
        %v6819 = vmul.f32 %v6814, 0.125
        %v6820 = vadd.f32 %v6819, %v1008
        %v6821 = vsel %vm1792, %v6820, -inf
        %6822 = vmax.xlane.f32.xlu0 %v6821
        %v6823 = vpop.xlane.xlu0 %6822
        %v6824 = vsub.f32 %v6820, %v6823
        %v6825 = vmul.f32 %v6824, 1.442695
        %v6826 = vpow.pop %v6825
        %v6827 = vsel %vm1792, %v6826, 0.0
        %6828 = vadd.xlane.f32.xlu0 %v6827
        %v6829 = vpop.xlane.xlu0 %6828
        %v6830 = vrcp.pop %v6829
        %v6831 = vmul.f32 %v6826, %v6830
        %v6832 = vpack.c.bf16 %v6831, %v6831
        %v6833 = vpack.c.bf16 %v6765, %v6765
        %v6835 = vsel %vm1792, %v6832, 0
        %v6838 = vsel %vm1809, %v6833, 0
        %6840 = vmatprep.subr.bf16.mxu0 0
        %6841 = vmatpush1.bf16.msra.mxu0 %v6838
        %6842 = vmatprep.subr.bf16.mxu0 0
        %6843 = vmatpush1.bf16.msra.mxu0 0
        %6844 = vmatprep.subr.bf16.mxu0 0
        %6845 = vmatpush1.bf16.msra.mxu0 0
        %6846 = vmatprep.subr.bf16.mxu0 0
        %6847 = vmatpush1.bf16.msra.mxu0 0
        %6848 = vmatprep.subr.bf16.mxu0 0
        %6849 = vmatpush1.bf16.msra.mxu0 0
        %6850 = vmatprep.subr.bf16.mxu0 0
        %6851 = vmatpush1.bf16.msra.mxu0 0
        %6852 = vmatprep.subr.bf16.mxu0 0
        %6853 = vmatpush1.bf16.msra.mxu0 0
        %6854 = vmatprep.subr.bf16.mxu0 0
        %6855 = vmatpush1.bf16.msra.mxu0 0
        %6856 = vmatprep.subr.bf16.mxu0 0
        %6857 = vmatpush1.bf16.msra.mxu0 0
        %6858 = vmatprep.subr.bf16.mxu0 0
        %6859 = vmatpush1.bf16.msra.mxu0 0
        %6860 = vmatprep.subr.bf16.mxu0 0
        %6861 = vmatpush1.bf16.msra.mxu0 0
        %6862 = vmatprep.subr.bf16.mxu0 0
        %6863 = vmatpush1.bf16.msra.mxu0 0
        %6864 = vmatprep.subr.bf16.mxu0 0
        %6865 = vmatpush1.bf16.msra.mxu0 0
        %6866 = vmatprep.subr.bf16.mxu0 0
        %6867 = vmatpush1.bf16.msra.mxu0 0
        %6868 = vmatprep.subr.bf16.mxu0 0
        %6869 = vmatpush1.bf16.msra.mxu0 0
        %6870 = vmatprep.subr.bf16.mxu0 0
        %6871 = vmatpush1.bf16.msra.mxu0 0
        %6872 = vmatprep.mubr.bf16.mxu0 0
        %6873 = vmatmul.mubr.bf16.gmra.mrb[0].mxu0 %v6835
        %v6874 = vpop.f32.mrb[0].mxu0
        %v6875 = vadd.f32 0.0, %v6874
        %v6876 = vpop.f32.mrb[0].mxu0
        %v6877 = vpop.f32.mrb[0].mxu0
        %v6878 = vpop.f32.mrb[0].mxu0
        %6879 = vdwg.mxu0
        %6881 = vrot.lane.b32.xlu0 %v6771, 64
        %v6882 = vpop.permute.xlu0 %6881
        %6884 = vrot.lane.b32.xlu0 %v6772, 64
        %v6885 = vpop.permute.xlu0 %6884
        %v6887 = vsel %vm957, %v6882, 0
        %v6890 = vsel %vm957, %v6885, 0
        %6892 = vmatprep.subr.bf16.mxu0 0
        %6893 = vmatpush1.bf16.xpose.msra.mxu0 %v6890
        %6894 = vmatprep.subr.bf16.mxu0 0
        %6895 = vmatpush1.bf16.xpose.msra.mxu0 0
        %6896 = vmatprep.subr.bf16.mxu0 0
        %6897 = vmatpush1.bf16.xpose.msra.mxu0 0
        %6898 = vmatprep.subr.bf16.mxu0 0
        %6899 = vmatpush1.bf16.xpose.msra.mxu0 0
        %6900 = vmatprep.subr.bf16.mxu0 0
        %6901 = vmatpush1.bf16.xpose.msra.mxu0 0
        %6902 = vmatprep.subr.bf16.mxu0 0
        %6903 = vmatpush1.bf16.xpose.msra.mxu0 0
        %6904 = vmatprep.subr.bf16.mxu0 0
        %6905 = vmatpush1.bf16.xpose.msra.mxu0 0
        %6906 = vmatprep.subr.bf16.mxu0 0
        %6907 = vmatpush1.bf16.xpose.msra.mxu0 0
        %6908 = vmatprep.subr.bf16.mxu0 0
        %6909 = vmatpush1.bf16.xpose.msra.mxu0 0
        %6910 = vmatprep.subr.bf16.mxu0 0
        %6911 = vmatpush1.bf16.xpose.msra.mxu0 0
        %6912 = vmatprep.subr.bf16.mxu0 0
        %6913 = vmatpush1.bf16.xpose.msra.mxu0 0
        %6914 = vmatprep.subr.bf16.mxu0 0
        %6915 = vmatpush1.bf16.xpose.msra.mxu0 0
        %6916 = vmatprep.subr.bf16.mxu0 0
        %6917 = vmatpush1.bf16.xpose.msra.mxu0 0
        %6918 = vmatprep.subr.bf16.mxu0 0
        %6919 = vmatpush1.bf16.xpose.msra.mxu0 0
        %6920 = vmatprep.subr.bf16.mxu0 0
        %6921 = vmatpush1.bf16.xpose.msra.mxu0 0
        %6922 = vmatprep.subr.bf16.mxu0 0
        %6923 = vmatpush1.bf16.xpose.msra.mxu0 0
        %6924 = vmatprep.mubr.bf16.mxu0 0
        %6925 = vmatmul.mubr.bf16.gmra.mrb[0].mxu0 %v6887
        %v6926 = vpop.f32.mrb[0].mxu0
        %v6927 = vadd.f32 0.0, %v6926
        %v6928 = vpop.f32.mrb[0].mxu0
        %v6929 = vpop.f32.mrb[0].mxu0
        %v6930 = vpop.f32.mrb[0].mxu0
        %6931 = vdwg.mxu0
        %v6932 = vmul.f32 %v6927, 0.125
        %v6933 = vadd.f32 %v6932, %v1008
        %v6934 = vsel %vm1792, %v6933, -inf
        %6935 = vmax.xlane.f32.xlu0 %v6934
        %v6936 = vpop.xlane.xlu0 %6935
        %v6937 = vsub.f32 %v6933, %v6936
        %v6938 = vmul.f32 %v6937, 1.442695
        %v6939 = vpow.pop %v6938
        %v6940 = vsel %vm1792, %v6939, 0.0
        %6941 = vadd.xlane.f32.xlu0 %v6940
        %v6942 = vpop.xlane.xlu0 %6941
        %v6943 = vrcp.pop %v6942
        %v6944 = vmul.f32 %v6939, %v6943
        %v6945 = vpack.c.bf16 %v6944, %v6944
        %6947 = vrot.lane.b32.xlu0 %v6833, 64
        %v6948 = vpop.permute.xlu0 %6947
        %v6950 = vsel %vm1792, %v6945, 0
        %v6953 = vsel %vm1809, %v6948, 0
        %6955 = vmatprep.subr.bf16.mxu0 0
        %6956 = vmatpush1.bf16.msra.mxu0 %v6953
        %6957 = vmatprep.subr.bf16.mxu0 0
        %6958 = vmatpush1.bf16.msra.mxu0 0
        %6959 = vmatprep.subr.bf16.mxu0 0
        %6960 = vmatpush1.bf16.msra.mxu0 0
        %6961 = vmatprep.subr.bf16.mxu0 0
        %6962 = vmatpush1.bf16.msra.mxu0 0
        %6963 = vmatprep.subr.bf16.mxu0 0
        %6964 = vmatpush1.bf16.msra.mxu0 0
        %6965 = vmatprep.subr.bf16.mxu0 0
        %6966 = vmatpush1.bf16.msra.mxu0 0
        %6967 = vmatprep.subr.bf16.mxu0 0
        %6968 = vmatpush1.bf16.msra.mxu0 0
        %6969 = vmatprep.subr.bf16.mxu0 0
        %6970 = vmatpush1.bf16.msra.mxu0 0
        %6971 = vmatprep.subr.bf16.mxu0 0
        %6972 = vmatpush1.bf16.msra.mxu0 0
        %6973 = vmatprep.subr.bf16.mxu0 0
        %6974 = vmatpush1.bf16.msra.mxu0 0
        %6975 = vmatprep.subr.bf16.mxu0 0
        %6976 = vmatpush1.bf16.msra.mxu0 0
        %6977 = vmatprep.subr.bf16.mxu0 0
        %6978 = vmatpush1.bf16.msra.mxu0 0
        %6979 = vmatprep.subr.bf16.mxu0 0
        %6980 = vmatpush1.bf16.msra.mxu0 0
        %6981 = vmatprep.subr.bf16.mxu0 0
        %6982 = vmatpush1.bf16.msra.mxu0 0
        %6983 = vmatprep.subr.bf16.mxu0 0
        %6984 = vmatpush1.bf16.msra.mxu0 0
        %6985 = vmatprep.subr.bf16.mxu0 0
        %6986 = vmatpush1.bf16.msra.mxu0 0
        %6987 = vmatprep.mubr.bf16.mxu0 0
        %6988 = vmatmul.mubr.bf16.gmra.mrb[0].mxu0 %v6950
        %v6989 = vpop.f32.mrb[0].mxu0
        %v6990 = vadd.f32 0.0, %v6989
        %v6991 = vpop.f32.mrb[0].mxu0
        %v6992 = vpop.f32.mrb[0].mxu0
        %v6993 = vpop.f32.mrb[0].mxu0
        %6994 = vdwg.mxu0
        %v6995 = vpack.c.bf16 %v6685, %v6685
        %v6996 = vpack.c.bf16 %v6726, %v6726
        %v6998 = vsel %vm957, %v6995, 0
        %v7001 = vsel %vm957, %v6996, 0
        %7003 = vmatprep.subr.bf16.mxu0 0
        %7004 = vmatpush1.bf16.xpose.msra.mxu0 %v7001
        %7005 = vmatprep.subr.bf16.mxu0 0
        %7006 = vmatpush1.bf16.xpose.msra.mxu0 0
        %7007 = vmatprep.subr.bf16.mxu0 0
        %7008 = vmatpush1.bf16.xpose.msra.mxu0 0
        %7009 = vmatprep.subr.bf16.mxu0 0
        %7010 = vmatpush1.bf16.xpose.msra.mxu0 0
        %7011 = vmatprep.subr.bf16.mxu0 0
        %7012 = vmatpush1.bf16.xpose.msra.mxu0 0
        %7013 = vmatprep.subr.bf16.mxu0 0
        %7014 = vmatpush1.bf16.xpose.msra.mxu0 0
        %7015 = vmatprep.subr.bf16.mxu0 0
        %7016 = vmatpush1.bf16.xpose.msra.mxu0 0
        %7017 = vmatprep.subr.bf16.mxu0 0
        %7018 = vmatpush1.bf16.xpose.msra.mxu0 0
        %7019 = vmatprep.subr.bf16.mxu0 0
        %7020 = vmatpush1.bf16.xpose.msra.mxu0 0
        %7021 = vmatprep.subr.bf16.mxu0 0
        %7022 = vmatpush1.bf16.xpose.msra.mxu0 0
        %7023 = vmatprep.subr.bf16.mxu0 0
        %7024 = vmatpush1.bf16.xpose.msra.mxu0 0
        %7025 = vmatprep.subr.bf16.mxu0 0
        %7026 = vmatpush1.bf16.xpose.msra.mxu0 0
        %7027 = vmatprep.subr.bf16.mxu0 0
        %7028 = vmatpush1.bf16.xpose.msra.mxu0 0
        %7029 = vmatprep.subr.bf16.mxu0 0
        %7030 = vmatpush1.bf16.xpose.msra.mxu0 0
        %7031 = vmatprep.subr.bf16.mxu0 0
        %7032 = vmatpush1.bf16.xpose.msra.mxu0 0
        %7033 = vmatprep.subr.bf16.mxu0 0
        %7034 = vmatpush1.bf16.xpose.msra.mxu0 0
        %7035 = vmatprep.mubr.bf16.mxu0 0
        %7036 = vmatmul.mubr.bf16.gmra.mrb[0].mxu0 %v6998
        %v7037 = vpop.f32.mrb[0].mxu0
        %v7038 = vadd.f32 0.0, %v7037
        %v7039 = vpop.f32.mrb[0].mxu0
        %v7040 = vpop.f32.mrb[0].mxu0
        %v7041 = vpop.f32.mrb[0].mxu0
        %7042 = vdwg.mxu0
        %v7043 = vmul.f32 %v7038, 0.125
        %v7044 = vadd.f32 %v7043, %v1008
        %v7045 = vsel %vm1792, %v7044, -inf
        %7046 = vmax.xlane.f32.xlu0 %v7045
        %v7047 = vpop.xlane.xlu0 %7046
        %v7048 = vsub.f32 %v7044, %v7047
        %v7049 = vmul.f32 %v7048, 1.442695
        %v7050 = vpow.pop %v7049
        %v7051 = vsel %vm1792, %v7050, 0.0
        %7052 = vadd.xlane.f32.xlu0 %v7051
        %v7053 = vpop.xlane.xlu0 %7052
        %v7054 = vrcp.pop %v7053
        %v7055 = vmul.f32 %v7050, %v7054
        %v7056 = vpack.c.bf16 %v7055, %v7055
        %v7057 = vpack.c.bf16 %v6767, %v6767
        %v7059 = vsel %vm1792, %v7056, 0
        %v7062 = vsel %vm1809, %v7057, 0
        %7064 = vmatprep.subr.bf16.mxu0 0
        %7065 = vmatpush1.bf16.msra.mxu0 %v7062
        %7066 = vmatprep.subr.bf16.mxu0 0
        %7067 = vmatpush1.bf16.msra.mxu0 0
        %7068 = vmatprep.subr.bf16.mxu0 0
        %7069 = vmatpush1.bf16.msra.mxu0 0
        %7070 = vmatprep.subr.bf16.mxu0 0
        %7071 = vmatpush1.bf16.msra.mxu0 0
        %7072 = vmatprep.subr.bf16.mxu0 0
        %7073 = vmatpush1.bf16.msra.mxu0 0
        %7074 = vmatprep.subr.bf16.mxu0 0
        %7075 = vmatpush1.bf16.msra.mxu0 0
        %7076 = vmatprep.subr.bf16.mxu0 0
        %7077 = vmatpush1.bf16.msra.mxu0 0
        %7078 = vmatprep.subr.bf16.mxu0 0
        %7079 = vmatpush1.bf16.msra.mxu0 0
        %7080 = vmatprep.subr.bf16.mxu0 0
        %7081 = vmatpush1.bf16.msra.mxu0 0
        %7082 = vmatprep.subr.bf16.mxu0 0
        %7083 = vmatpush1.bf16.msra.mxu0 0
        %7084 = vmatprep.subr.bf16.mxu0 0
        %7085 = vmatpush1.bf16.msra.mxu0 0
        %7086 = vmatprep.subr.bf16.mxu0 0
        %7087 = vmatpush1.bf16.msra.mxu0 0
        %7088 = vmatprep.subr.bf16.mxu0 0
        %7089 = vmatpush1.bf16.msra.mxu0 0
        %7090 = vmatprep.subr.bf16.mxu0 0
        %7091 = vmatpush1.bf16.msra.mxu0 0
        %7092 = vmatprep.subr.bf16.mxu0 0
        %7093 = vmatpush1.bf16.msra.mxu0 0
        %7094 = vmatprep.subr.bf16.mxu0 0
        %7095 = vmatpush1.bf16.msra.mxu0 0
        %7096 = vmatprep.mubr.bf16.mxu0 0
        %7097 = vmatmul.mubr.bf16.gmra.mrb[0].mxu0 %v7059
        %v7098 = vpop.f32.mrb[0].mxu0
        %v7099 = vadd.f32 0.0, %v7098
        %v7100 = vpop.f32.mrb[0].mxu0
        %v7101 = vpop.f32.mrb[0].mxu0
        %v7102 = vpop.f32.mrb[0].mxu0
        %7103 = vdwg.mxu0
        %7105 = vrot.lane.b32.xlu0 %v6995, 64
        %v7106 = vpop.permute.xlu0 %7105
        %7108 = vrot.lane.b32.xlu0 %v6996, 64
        %v7109 = vpop.permute.xlu0 %7108
        %v7111 = vsel %vm957, %v7106, 0
        %v7114 = vsel %vm957, %v7109, 0
        %7116 = vmatprep.subr.bf16.mxu0 0
        %7117 = vmatpush1.bf16.xpose.msra.mxu0 %v7114
        %7118 = vmatprep.subr.bf16.mxu0 0
        %7119 = vmatpush1.bf16.xpose.msra.mxu0 0
        %7120 = vmatprep.subr.bf16.mxu0 0
        %7121 = vmatpush1.bf16.xpose.msra.mxu0 0
        %7122 = vmatprep.subr.bf16.mxu0 0
        %7123 = vmatpush1.bf16.xpose.msra.mxu0 0
        %7124 = vmatprep.subr.bf16.mxu0 0
        %7125 = vmatpush1.bf16.xpose.msra.mxu0 0
        %7126 = vmatprep.subr.bf16.mxu0 0
        %7127 = vmatpush1.bf16.xpose.msra.mxu0 0
        %7128 = vmatprep.subr.bf16.mxu0 0
        %7129 = vmatpush1.bf16.xpose.msra.mxu0 0
        %7130 = vmatprep.subr.bf16.mxu0 0
        %7131 = vmatpush1.bf16.xpose.msra.mxu0 0
        %7132 = vmatprep.subr.bf16.mxu0 0
        %7133 = vmatpush1.bf16.xpose.msra.mxu0 0
        %7134 = vmatprep.subr.bf16.mxu0 0
        %7135 = vmatpush1.bf16.xpose.msra.mxu0 0
        %7136 = vmatprep.subr.bf16.mxu0 0
        %7137 = vmatpush1.bf16.xpose.msra.mxu0 0
        %7138 = vmatprep.subr.bf16.mxu0 0
        %7139 = vmatpush1.bf16.xpose.msra.mxu0 0
        %7140 = vmatprep.subr.bf16.mxu0 0
        %7141 = vmatpush1.bf16.xpose.msra.mxu0 0
        %7142 = vmatprep.subr.bf16.mxu0 0
        %7143 = vmatpush1.bf16.xpose.msra.mxu0 0
        %7144 = vmatprep.subr.bf16.mxu0 0
        %7145 = vmatpush1.bf16.xpose.msra.mxu0 0
        %7146 = vmatprep.subr.bf16.mxu0 0
        %7147 = vmatpush1.bf16.xpose.msra.mxu0 0
        %7148 = vmatprep.mubr.bf16.mxu0 0
        %7149 = vmatmul.mubr.bf16.gmra.mrb[0].mxu0 %v7111
        %v7150 = vpop.f32.mrb[0].mxu0
        %v7151 = vadd.f32 0.0, %v7150
        %v7152 = vpop.f32.mrb[0].mxu0
        %v7153 = vpop.f32.mrb[0].mxu0
        %v7154 = vpop.f32.mrb[0].mxu0
        %7155 = vdwg.mxu0
        %v7156 = vmul.f32 %v7151, 0.125
        %v7157 = vadd.f32 %v7156, %v1008
        %v7158 = vsel %vm1792, %v7157, -inf
        %7159 = vmax.xlane.f32.xlu0 %v7158
        %v7160 = vpop.xlane.xlu0 %7159
        %v7161 = vsub.f32 %v7157, %v7160
        %v7162 = vmul.f32 %v7161, 1.442695
        %v7163 = vpow.pop %v7162
        %v7164 = vsel %vm1792, %v7163, 0.0
        %7165 = vadd.xlane.f32.xlu0 %v7164
        %v7166 = vpop.xlane.xlu0 %7165
        %v7167 = vrcp.pop %v7166
        %v7168 = vmul.f32 %v7163, %v7167
        %v7169 = vpack.c.bf16 %v7168, %v7168
        %7171 = vrot.lane.b32.xlu0 %v7057, 64
        %v7172 = vpop.permute.xlu0 %7171
        %v7174 = vsel %vm1792, %v7169, 0
        %v7177 = vsel %vm1809, %v7172, 0
        %7179 = vmatprep.subr.bf16.mxu0 0
        %7180 = vmatpush1.bf16.msra.mxu0 %v7177
        %7181 = vmatprep.subr.bf16.mxu0 0
        %7182 = vmatpush1.bf16.msra.mxu0 0
        %7183 = vmatprep.subr.bf16.mxu0 0
        %7184 = vmatpush1.bf16.msra.mxu0 0
        %7185 = vmatprep.subr.bf16.mxu0 0
        %7186 = vmatpush1.bf16.msra.mxu0 0
        %7187 = vmatprep.subr.bf16.mxu0 0
        %7188 = vmatpush1.bf16.msra.mxu0 0
        %7189 = vmatprep.subr.bf16.mxu0 0
        %7190 = vmatpush1.bf16.msra.mxu0 0
        %7191 = vmatprep.subr.bf16.mxu0 0
        %7192 = vmatpush1.bf16.msra.mxu0 0
        %7193 = vmatprep.subr.bf16.mxu0 0
        %7194 = vmatpush1.bf16.msra.mxu0 0
        %7195 = vmatprep.subr.bf16.mxu0 0
        %7196 = vmatpush1.bf16.msra.mxu0 0
        %7197 = vmatprep.subr.bf16.mxu0 0
        %7198 = vmatpush1.bf16.msra.mxu0 0
        %7199 = vmatprep.subr.bf16.mxu0 0
        %7200 = vmatpush1.bf16.msra.mxu0 0
        %7201 = vmatprep.subr.bf16.mxu0 0
        %7202 = vmatpush1.bf16.msra.mxu0 0
        %7203 = vmatprep.subr.bf16.mxu0 0
        %7204 = vmatpush1.bf16.msra.mxu0 0
        %7205 = vmatprep.subr.bf16.mxu0 0
        %7206 = vmatpush1.bf16.msra.mxu0 0
        %7207 = vmatprep.subr.bf16.mxu0 0
        %7208 = vmatpush1.bf16.msra.mxu0 0
        %7209 = vmatprep.subr.bf16.mxu0 0
        %7210 = vmatpush1.bf16.msra.mxu0 0
        %7211 = vmatprep.mubr.bf16.mxu0 0
        %7212 = vmatmul.mubr.bf16.gmra.mrb[0].mxu0 %v7174
        %v7213 = vpop.f32.mrb[0].mxu0
        %v7214 = vadd.f32 0.0, %v7213
        %v7215 = vpop.f32.mrb[0].mxu0
        %v7216 = vpop.f32.mrb[0].mxu0
        %v7217 = vpop.f32.mrb[0].mxu0
        %7218 = vdwg.mxu0
        %7220 = vrot.lane.b32.xlu0 %v6990, 64
        %v7221 = vpop.permute.xlu0 %7220
        %7224 = vrot.lane.b32.xlu0 %v7214, 64
        %v7225 = vpop.permute.xlu0 %7224
        %v7227 = vsel %vm957, %v6875, %v7221
        %v7228 = vsel %vm957, %v7099, %v7225
        %s7229 = scalar_lea.vmem [#allocation10], 512
        %v7230 = vld [vmem:[%s7229] sm:$0xff]
        %v7231 = vld [vmem:[%s7229 + $0x8] sm:$0xff]
        %v7232 = vld [vmem:[%s7229 + $0x10] sm:$0xff]
        %v7233 = vld [vmem:[%s7229 + $0x18] sm:$0xff]
        %v7234 = vld [vmem:[%s7229 + $0x20] sm:$0xff]
        %v7235 = vld [vmem:[%s7229 + $0x28] sm:$0xff]
        %v7236 = vld [vmem:[%s7229 + $0x30] sm:$0xff]
        %v7237 = vld [vmem:[%s7229 + $0x38] sm:$0xff]
        %v7238 = vld [vmem:[%s7229 + $0x40] sm:$0xff]
        %v7239 = vld [vmem:[%s7229 + $0x48] sm:$0xff]
        %v7240 = vld [vmem:[%s7229 + $0x50] sm:$0xff]
        %v7241 = vld [vmem:[%s7229 + $0x58] sm:$0xff]
        %v7242 = vld [vmem:[%s7229 + $0x60] sm:$0xff]
        %v7243 = vld [vmem:[%s7229 + $0x68] sm:$0xff]
        %v7244 = vld [vmem:[%s7229 + $0x70] sm:$0xff]
        %v7245 = vld [vmem:[%s7229 + $0x78] sm:$0xff]
        %v7246 = vld [vmem:[%s7229 + $0x80] sm:$0xff]
        %v7247 = vld [vmem:[%s7229 + $0x88] sm:$0xff]
        %v7248 = vld [vmem:[%s7229 + $0x90] sm:$0xff]
        %v7249 = vld [vmem:[%s7229 + $0x98] sm:$0xff]
        %v7250 = vld [vmem:[%s7229 + $0xa0] sm:$0xff]
        %v7251 = vld [vmem:[%s7229 + $0xa8] sm:$0xff]
        %v7252 = vld [vmem:[%s7229 + $0xb0] sm:$0xff]
        %v7253 = vld [vmem:[%s7229 + $0xb8] sm:$0xff]
        %v7254 = vld [vmem:[%s7229 + $0xc0] sm:$0xff]
        %v7255 = vld [vmem:[%s7229 + $0xc8] sm:$0xff]
        %v7256 = vld [vmem:[%s7229 + $0xd0] sm:$0xff]
        %v7257 = vld [vmem:[%s7229 + $0xd8] sm:$0xff]
        %v7258 = vld [vmem:[%s7229 + $0xe0] sm:$0xff]
        %v7259 = vld [vmem:[%s7229 + $0xe8] sm:$0xff]
        %v7260 = vld [vmem:[%s7229 + $0xf0] sm:$0xff]
        %v7261 = vld [vmem:[%s7229 + $0xf8] sm:$0xff]
        %v7262 = vpack.c.bf16 %v7227, %v7227
        %v7263 = vpack.c.bf16 %v7228, %v7228
        %s7264 = scalar_lea.vmem [#allocation11], 4
        %v7265 = vld [vmem:[%s7264] sm:$0x3]
        %v7267 = vlaneseq
        %v7268 = vshrl.u32 %v7267, 7
        %v7269 = vsub.s32 0, %v7268
        %v7270 = vrot.slane %v7265, %v7269
        %v7271 = vlaneseq
        %v7272 = vshrl.u32 %v7271, 7
        %v7273 = vsub.s32 1, %v7272
        %v7274 = vrot.slane %v7265, %v7273
        %v7309 = vunpack.c.l.b16 %v7230
        %v7310 = vunpack.c.h.b16 %v7230
        %v7311 = vunpack.c.l.b16 %v7231
        %v7312 = vunpack.c.h.b16 %v7231
        %v7313 = vunpack.c.l.b16 %v7232
        %v7314 = vunpack.c.h.b16 %v7232
        %v7315 = vunpack.c.l.b16 %v7233
        %v7316 = vunpack.c.h.b16 %v7233
        %v7317 = vunpack.c.l.b16 %v7234
        %v7318 = vunpack.c.h.b16 %v7234
        %v7319 = vunpack.c.l.b16 %v7235
        %v7320 = vunpack.c.h.b16 %v7235
        %v7321 = vunpack.c.l.b16 %v7236
        %v7322 = vunpack.c.h.b16 %v7236
        %v7323 = vunpack.c.l.b16 %v7237
        %v7324 = vunpack.c.h.b16 %v7237
        %v7325 = vunpack.c.l.b16 %v7238
        %v7326 = vunpack.c.h.b16 %v7238
        %v7327 = vunpack.c.l.b16 %v7239
        %v7328 = vunpack.c.h.b16 %v7239
        %v7329 = vunpack.c.l.b16 %v7240
        %v7330 = vunpack.c.h.b16 %v7240
        %v7331 = vunpack.c.l.b16 %v7241
        %v7332 = vunpack.c.h.b16 %v7241
        %v7333 = vunpack.c.l.b16 %v7242
        %v7334 = vunpack.c.h.b16 %v7242
        %v7335 = vunpack.c.l.b16 %v7243
        %v7336 = vunpack.c.h.b16 %v7243
        %v7337 = vunpack.c.l.b16 %v7244
        %v7338 = vunpack.c.h.b16 %v7244
        %v7339 = vunpack.c.l.b16 %v7245
        %v7340 = vunpack.c.h.b16 %v7245
        %v7341 = vunpack.c.l.b16 %v7246
        %v7342 = vunpack.c.h.b16 %v7246
        %v7343 = vunpack.c.l.b16 %v7247
        %v7344 = vunpack.c.h.b16 %v7247
        %v7345 = vunpack.c.l.b16 %v7248
        %v7346 = vunpack.c.h.b16 %v7248
        %v7347 = vunpack.c.l.b16 %v7249
        %v7348 = vunpack.c.h.b16 %v7249
        %v7349 = vunpack.c.l.b16 %v7250
        %v7350 = vunpack.c.h.b16 %v7250
        %v7351 = vunpack.c.l.b16 %v7251
        %v7352 = vunpack.c.h.b16 %v7251
        %v7353 = vunpack.c.l.b16 %v7252
        %v7354 = vunpack.c.h.b16 %v7252
        %v7355 = vunpack.c.l.b16 %v7253
        %v7356 = vunpack.c.h.b16 %v7253
        %v7357 = vunpack.c.l.b16 %v7254
        %v7358 = vunpack.c.h.b16 %v7254
        %v7359 = vunpack.c.l.b16 %v7255
        %v7360 = vunpack.c.h.b16 %v7255
        %v7361 = vunpack.c.l.b16 %v7256
        %v7362 = vunpack.c.h.b16 %v7256
        %v7363 = vunpack.c.l.b16 %v7257
        %v7364 = vunpack.c.h.b16 %v7257
        %v7365 = vunpack.c.l.b16 %v7258
        %v7366 = vunpack.c.h.b16 %v7258
        %v7367 = vunpack.c.l.b16 %v7259
        %v7368 = vunpack.c.h.b16 %v7259
        %v7369 = vunpack.c.l.b16 %v7260
        %v7370 = vunpack.c.h.b16 %v7260
        %v7371 = vunpack.c.l.b16 %v7261
        %v7372 = vunpack.c.h.b16 %v7261
        %v7373 = vpack.c.b16 %v7311, %v7309
        %v7374 = vpack.c.b16 %v7312, %v7310
        %v7375 = vpack.c.b16 %v7315, %v7313
        %v7376 = vpack.c.b16 %v7316, %v7314
        %v7377 = vpack.c.b16 %v7319, %v7317
        %v7378 = vpack.c.b16 %v7320, %v7318
        %v7379 = vpack.c.b16 %v7323, %v7321
        %v7380 = vpack.c.b16 %v7324, %v7322
        %v7381 = vpack.c.b16 %v7327, %v7325
        %v7382 = vpack.c.b16 %v7328, %v7326
        %v7383 = vpack.c.b16 %v7331, %v7329
        %v7384 = vpack.c.b16 %v7332, %v7330
        %v7385 = vpack.c.b16 %v7335, %v7333
        %v7386 = vpack.c.b16 %v7336, %v7334
        %v7387 = vpack.c.b16 %v7339, %v7337
        %v7388 = vpack.c.b16 %v7340, %v7338
        %v7389 = vpack.c.b16 %v7343, %v7341
        %v7390 = vpack.c.b16 %v7344, %v7342
        %v7391 = vpack.c.b16 %v7347, %v7345
        %v7392 = vpack.c.b16 %v7348, %v7346
        %v7393 = vpack.c.b16 %v7351, %v7349
        %v7394 = vpack.c.b16 %v7352, %v7350
        %v7395 = vpack.c.b16 %v7355, %v7353
        %v7396 = vpack.c.b16 %v7356, %v7354
        %v7397 = vpack.c.b16 %v7359, %v7357
        %v7398 = vpack.c.b16 %v7360, %v7358
        %v7399 = vpack.c.b16 %v7363, %v7361
        %v7400 = vpack.c.b16 %v7364, %v7362
        %v7401 = vpack.c.b16 %v7367, %v7365
        %v7402 = vpack.c.b16 %v7368, %v7366
        %v7403 = vpack.c.b16 %v7371, %v7369
        %v7404 = vpack.c.b16 %v7372, %v7370
        %7437 = vmatprep.subr.bf16.mxu0 %v7374
        %7438 = vmatpush1.bf16.msra.mxu0 %v7373
        %7439 = vmatprep.subr.bf16.mxu0 %v7376
        %7440 = vmatpush1.bf16.msra.mxu0 %v7375
        %7441 = vmatprep.subr.bf16.mxu0 %v7378
        %7442 = vmatpush1.bf16.msra.mxu0 %v7377
        %7443 = vmatprep.subr.bf16.mxu0 %v7380
        %7444 = vmatpush1.bf16.msra.mxu0 %v7379
        %7445 = vmatprep.subr.bf16.mxu0 %v7382
        %7446 = vmatpush1.bf16.msra.mxu0 %v7381
        %7447 = vmatprep.subr.bf16.mxu0 %v7384
        %7448 = vmatpush1.bf16.msra.mxu0 %v7383
        %7449 = vmatprep.subr.bf16.mxu0 %v7386
        %7450 = vmatpush1.bf16.msra.mxu0 %v7385
        %7451 = vmatprep.subr.bf16.mxu0 %v7388
        %7452 = vmatpush1.bf16.msra.mxu0 %v7387
        %7453 = vmatprep.subr.bf16.mxu0 %v7390
        %7454 = vmatpush1.bf16.msra.mxu0 %v7389
        %7455 = vmatprep.subr.bf16.mxu0 %v7392
        %7456 = vmatpush1.bf16.msra.mxu0 %v7391
        %7457 = vmatprep.subr.bf16.mxu0 %v7394
        %7458 = vmatpush1.bf16.msra.mxu0 %v7393
        %7459 = vmatprep.subr.bf16.mxu0 %v7396
        %7460 = vmatpush1.bf16.msra.mxu0 %v7395
        %7461 = vmatprep.subr.bf16.mxu0 %v7398
        %7462 = vmatpush1.bf16.msra.mxu0 %v7397
        %7463 = vmatprep.subr.bf16.mxu0 %v7400
        %7464 = vmatpush1.bf16.msra.mxu0 %v7399
        %7465 = vmatprep.subr.bf16.mxu0 %v7402
        %7466 = vmatpush1.bf16.msra.mxu0 %v7401
        %7467 = vmatprep.subr.bf16.mxu0 %v7404
        %7468 = vmatpush1.bf16.msra.mxu0 %v7403
        %7469 = vmatprep.mubr.bf16.mxu0 %v7263
        %7470 = vmatmul.mubr.bf16.gmra.mrb[0].mxu0 %v7262
        %v7471 = vpop.f32.mrb[0].mxu0
        %v7472 = vadd.f32 %v7270, %v7471
        %v7473 = vpop.f32.mrb[0].mxu0
        %v7474 = vadd.f32 %v7274, %v7473
        %v7475 = vpop.f32.mrb[0].mxu0
        %v7476 = vpop.f32.mrb[0].mxu0
        %7477 = vdwg.mxu0
        %v7478 = vadd.f32 %v6034, %v7472
        %v7479 = vadd.f32 %v6035, %v7474
        %s7480 = scalar_lea.vmem [#allocation13], 4
        %v7481 = vld [vmem:[%s7480] sm:$0x3]
        %s7482 = scalar_lea.vmem [#allocation14], 4
        %v7483 = vld [vmem:[%s7482] sm:$0x3]
        %v7484 = vadd.f32 %v7478, %v7479
        %7485 = vadd.xlane.f32.xlu0 %v7484
        %v7486 = vpop.xlane.xlu0 %7485
        %v7487 = vmul.f32 %v7486, %v2456
        %v7488 = vsub.f32 %v7478, %v7487
        %v7489 = vsub.f32 %v7479, %v7487
        %v7490 = vmul.f32 %v7488, %v7488
        %v7491 = vmul.f32 %v7489, %v7489
        %v7492 = vadd.f32 %v7490, %v7491
        %7493 = vadd.xlane.f32.xlu0 %v7492
        %v7494 = vpop.xlane.xlu0 %7493
        %v7495 = vmul.f32 %v7494, %v2456
        %v7496 = vadd.f32 %v7495, 1e-05
        %v7497 = vrsqrt.pop %v7496
        %v7498 = vmul.f32 %v7488, %v7497
        %v7499 = vmul.f32 %v7489, %v7497
        %v7501 = vlaneseq
        %v7502 = vshrl.u32 %v7501, 7
        %v7503 = vsub.s32 0, %v7502
        %v7504 = vrot.slane %v7481, %v7503
        %v7505 = vlaneseq
        %v7506 = vshrl.u32 %v7505, 7
        %v7507 = vsub.s32 1, %v7506
        %v7508 = vrot.slane %v7481, %v7507
        %v7511 = vmul.f32 %v7498, %v7504
        %v7512 = vmul.f32 %v7499, %v7508
        %v7514 = vlaneseq
        %v7515 = vshrl.u32 %v7514, 7
        %v7516 = vsub.s32 0, %v7515
        %v7517 = vrot.slane %v7483, %v7516
        %v7518 = vlaneseq
        %v7519 = vshrl.u32 %v7518, 7
        %v7520 = vsub.s32 1, %v7519
        %v7521 = vrot.slane %v7483, %v7520
        %v7524 = vadd.f32 %v7511, %v7517
        %v7525 = vadd.f32 %v7512, %v7521
        %s7526 = scalar_lea.vmem [#allocation16], 1024
        %v7527 = vld [vmem:[%s7526] sm:$0xff]
        %v7528 = vld [vmem:[%s7526 + $0x8] sm:$0xff]
        %v7529 = vld [vmem:[%s7526 + $0x10] sm:$0xff]
        %v7530 = vld [vmem:[%s7526 + $0x18] sm:$0xff]
        %v7531 = vld [vmem:[%s7526 + $0x20] sm:$0xff]
        %v7532 = vld [vmem:[%s7526 + $0x28] sm:$0xff]
        %v7533 = vld [vmem:[%s7526 + $0x30] sm:$0xff]
        %v7534 = vld [vmem:[%s7526 + $0x38] sm:$0xff]
        %v7535 = vld [vmem:[%s7526 + $0x40] sm:$0xff]
        %v7536 = vld [vmem:[%s7526 + $0x48] sm:$0xff]
        %v7537 = vld [vmem:[%s7526 + $0x50] sm:$0xff]
        %v7538 = vld [vmem:[%s7526 + $0x58] sm:$0xff]
        %v7539 = vld [vmem:[%s7526 + $0x60] sm:$0xff]
        %v7540 = vld [vmem:[%s7526 + $0x68] sm:$0xff]
        %v7541 = vld [vmem:[%s7526 + $0x70] sm:$0xff]
        %v7542 = vld [vmem:[%s7526 + $0x78] sm:$0xff]
        %v7543 = vld [vmem:[%s7526 + $0x80] sm:$0xff]
        %v7544 = vld [vmem:[%s7526 + $0x88] sm:$0xff]
        %v7545 = vld [vmem:[%s7526 + $0x90] sm:$0xff]
        %v7546 = vld [vmem:[%s7526 + $0x98] sm:$0xff]
        %v7547 = vld [vmem:[%s7526 + $0xa0] sm:$0xff]
        %v7548 = vld [vmem:[%s7526 + $0xa8] sm:$0xff]
        %v7549 = vld [vmem:[%s7526 + $0xb0] sm:$0xff]
        %v7550 = vld [vmem:[%s7526 + $0xb8] sm:$0xff]
        %v7551 = vld [vmem:[%s7526 + $0xc0] sm:$0xff]
        %v7552 = vld [vmem:[%s7526 + $0xc8] sm:$0xff]
        %v7553 = vld [vmem:[%s7526 + $0xd0] sm:$0xff]
        %v7554 = vld [vmem:[%s7526 + $0xd8] sm:$0xff]
        %v7555 = vld [vmem:[%s7526 + $0xe0] sm:$0xff]
        %v7556 = vld [vmem:[%s7526 + $0xe8] sm:$0xff]
        %v7557 = vld [vmem:[%s7526 + $0xf0] sm:$0xff]
        %v7558 = vld [vmem:[%s7526 + $0xf8] sm:$0xff]
        %v7559 = vld [vmem:[%s7526 + $0x100] sm:$0xff]
        %v7560 = vld [vmem:[%s7526 + $0x108] sm:$0xff]
        %v7561 = vld [vmem:[%s7526 + $0x110] sm:$0xff]
        %v7562 = vld [vmem:[%s7526 + $0x118] sm:$0xff]
        %v7563 = vld [vmem:[%s7526 + $0x120] sm:$0xff]
        %v7564 = vld [vmem:[%s7526 + $0x128] sm:$0xff]
        %v7565 = vld [vmem:[%s7526 + $0x130] sm:$0xff]
        %v7566 = vld [vmem:[%s7526 + $0x138] sm:$0xff]
        %v7567 = vld [vmem:[%s7526 + $0x140] sm:$0xff]
        %v7568 = vld [vmem:[%s7526 + $0x148] sm:$0xff]
        %v7569 = vld [vmem:[%s7526 + $0x150] sm:$0xff]
        %v7570 = vld [vmem:[%s7526 + $0x158] sm:$0xff]
        %v7571 = vld [vmem:[%s7526 + $0x160] sm:$0xff]
        %v7572 = vld [vmem:[%s7526 + $0x168] sm:$0xff]
        %v7573 = vld [vmem:[%s7526 + $0x170] sm:$0xff]
        %v7574 = vld [vmem:[%s7526 + $0x178] sm:$0xff]
        %v7575 = vld [vmem:[%s7526 + $0x180] sm:$0xff]
        %v7576 = vld [vmem:[%s7526 + $0x188] sm:$0xff]
        %v7577 = vld [vmem:[%s7526 + $0x190] sm:$0xff]
        %v7578 = vld [vmem:[%s7526 + $0x198] sm:$0xff]
        %v7579 = vld [vmem:[%s7526 + $0x1a0] sm:$0xff]
        %v7580 = vld [vmem:[%s7526 + $0x1a8] sm:$0xff]
        %v7581 = vld [vmem:[%s7526 + $0x1b0] sm:$0xff]
        %v7582 = vld [vmem:[%s7526 + $0x1b8] sm:$0xff]
        %v7583 = vld [vmem:[%s7526 + $0x1c0] sm:$0xff]
        %v7584 = vld [vmem:[%s7526 + $0x1c8] sm:$0xff]
        %v7585 = vld [vmem:[%s7526 + $0x1d0] sm:$0xff]
        %v7586 = vld [vmem:[%s7526 + $0x1d8] sm:$0xff]
        %v7587 = vld [vmem:[%s7526 + $0x1e0] sm:$0xff]
        %v7588 = vld [vmem:[%s7526 + $0x1e8] sm:$0xff]
        %v7589 = vld [vmem:[%s7526 + $0x1f0] sm:$0xff]
        %v7590 = vld [vmem:[%s7526 + $0x1f8] sm:$0xff]
        %v7591 = vpack.c.bf16 %v7524, %v7524
        %v7592 = vpack.c.bf16 %v7525, %v7525
        %s7593 = scalar_lea.vmem [#allocation17], 8
        %v7594 = vld [vmem:[%s7593] sm:$0xf]
        %v7596 = vlaneseq
        %v7597 = vshrl.u32 %v7596, 7
        %v7598 = vsub.s32 0, %v7597
        %v7599 = vrot.slane %v7594, %v7598
        %v7600 = vlaneseq
        %v7601 = vshrl.u32 %v7600, 7
        %v7602 = vsub.s32 1, %v7601
        %v7603 = vrot.slane %v7594, %v7602
        %v7604 = vlaneseq
        %v7605 = vshrl.u32 %v7604, 7
        %v7606 = vsub.s32 2, %v7605
        %v7607 = vrot.slane %v7594, %v7606
        %v7608 = vlaneseq
        %v7609 = vshrl.u32 %v7608, 7
        %v7610 = vsub.s32 3, %v7609
        %v7611 = vrot.slane %v7594, %v7610
        %v7680 = vunpack.c.l.b16 %v7527
        %v7681 = vunpack.c.h.b16 %v7527
        %v7682 = vunpack.c.l.b16 %v7528
        %v7683 = vunpack.c.h.b16 %v7528
        %v7684 = vunpack.c.l.b16 %v7529
        %v7685 = vunpack.c.h.b16 %v7529
        %v7686 = vunpack.c.l.b16 %v7530
        %v7687 = vunpack.c.h.b16 %v7530
        %v7688 = vunpack.c.l.b16 %v7531
        %v7689 = vunpack.c.h.b16 %v7531
        %v7690 = vunpack.c.l.b16 %v7532
        %v7691 = vunpack.c.h.b16 %v7532
        %v7692 = vunpack.c.l.b16 %v7533
        %v7693 = vunpack.c.h.b16 %v7533
        %v7694 = vunpack.c.l.b16 %v7534
        %v7695 = vunpack.c.h.b16 %v7534
        %v7696 = vunpack.c.l.b16 %v7535
        %v7697 = vunpack.c.h.b16 %v7535
        %v7698 = vunpack.c.l.b16 %v7536
        %v7699 = vunpack.c.h.b16 %v7536
        %v7700 = vunpack.c.l.b16 %v7537
        %v7701 = vunpack.c.h.b16 %v7537
        %v7702 = vunpack.c.l.b16 %v7538
        %v7703 = vunpack.c.h.b16 %v7538
        %v7704 = vunpack.c.l.b16 %v7539
        %v7705 = vunpack.c.h.b16 %v7539
        %v7706 = vunpack.c.l.b16 %v7540
        %v7707 = vunpack.c.h.b16 %v7540
        %v7708 = vunpack.c.l.b16 %v7541
        %v7709 = vunpack.c.h.b16 %v7541
        %v7710 = vunpack.c.l.b16 %v7542
        %v7711 = vunpack.c.h.b16 %v7542
        %v7712 = vunpack.c.l.b16 %v7543
        %v7713 = vunpack.c.h.b16 %v7543
        %v7714 = vunpack.c.l.b16 %v7544
        %v7715 = vunpack.c.h.b16 %v7544
        %v7716 = vunpack.c.l.b16 %v7545
        %v7717 = vunpack.c.h.b16 %v7545
        %v7718 = vunpack.c.l.b16 %v7546
        %v7719 = vunpack.c.h.b16 %v7546
        %v7720 = vunpack.c.l.b16 %v7547
        %v7721 = vunpack.c.h.b16 %v7547
        %v7722 = vunpack.c.l.b16 %v7548
        %v7723 = vunpack.c.h.b16 %v7548
        %v7724 = vunpack.c.l.b16 %v7549
        %v7725 = vunpack.c.h.b16 %v7549
        %v7726 = vunpack.c.l.b16 %v7550
        %v7727 = vunpack.c.h.b16 %v7550
        %v7728 = vunpack.c.l.b16 %v7551
        %v7729 = vunpack.c.h.b16 %v7551
        %v7730 = vunpack.c.l.b16 %v7552
        %v7731 = vunpack.c.h.b16 %v7552
        %v7732 = vunpack.c.l.b16 %v7553
        %v7733 = vunpack.c.h.b16 %v7553
        %v7734 = vunpack.c.l.b16 %v7554
        %v7735 = vunpack.c.h.b16 %v7554
        %v7736 = vunpack.c.l.b16 %v7555
        %v7737 = vunpack.c.h.b16 %v7555
        %v7738 = vunpack.c.l.b16 %v7556
        %v7739 = vunpack.c.h.b16 %v7556
        %v7740 = vunpack.c.l.b16 %v7557
        %v7741 = vunpack.c.h.b16 %v7557
        %v7742 = vunpack.c.l.b16 %v7558
        %v7743 = vunpack.c.h.b16 %v7558
        %v7744 = vunpack.c.l.b16 %v7559
        %v7745 = vunpack.c.h.b16 %v7559
        %v7746 = vunpack.c.l.b16 %v7560
        %v7747 = vunpack.c.h.b16 %v7560
        %v7748 = vunpack.c.l.b16 %v7561
        %v7749 = vunpack.c.h.b16 %v7561
        %v7750 = vunpack.c.l.b16 %v7562
        %v7751 = vunpack.c.h.b16 %v7562
        %v7752 = vunpack.c.l.b16 %v7563
        %v7753 = vunpack.c.h.b16 %v7563
        %v7754 = vunpack.c.l.b16 %v7564
        %v7755 = vunpack.c.h.b16 %v7564
        %v7756 = vunpack.c.l.b16 %v7565
        %v7757 = vunpack.c.h.b16 %v7565
        %v7758 = vunpack.c.l.b16 %v7566
        %v7759 = vunpack.c.h.b16 %v7566
        %v7760 = vunpack.c.l.b16 %v7567
        %v7761 = vunpack.c.h.b16 %v7567
        %v7762 = vunpack.c.l.b16 %v7568
        %v7763 = vunpack.c.h.b16 %v7568
        %v7764 = vunpack.c.l.b16 %v7569
        %v7765 = vunpack.c.h.b16 %v7569
        %v7766 = vunpack.c.l.b16 %v7570
        %v7767 = vunpack.c.h.b16 %v7570
        %v7768 = vunpack.c.l.b16 %v7571
        %v7769 = vunpack.c.h.b16 %v7571
        %v7770 = vunpack.c.l.b16 %v7572
        %v7771 = vunpack.c.h.b16 %v7572
        %v7772 = vunpack.c.l.b16 %v7573
        %v7773 = vunpack.c.h.b16 %v7573
        %v7774 = vunpack.c.l.b16 %v7574
        %v7775 = vunpack.c.h.b16 %v7574
        %v7776 = vunpack.c.l.b16 %v7575
        %v7777 = vunpack.c.h.b16 %v7575
        %v7778 = vunpack.c.l.b16 %v7576
        %v7779 = vunpack.c.h.b16 %v7576
        %v7780 = vunpack.c.l.b16 %v7577
        %v7781 = vunpack.c.h.b16 %v7577
        %v7782 = vunpack.c.l.b16 %v7578
        %v7783 = vunpack.c.h.b16 %v7578
        %v7784 = vunpack.c.l.b16 %v7579
        %v7785 = vunpack.c.h.b16 %v7579
        %v7786 = vunpack.c.l.b16 %v7580
        %v7787 = vunpack.c.h.b16 %v7580
        %v7788 = vunpack.c.l.b16 %v7581
        %v7789 = vunpack.c.h.b16 %v7581
        %v7790 = vunpack.c.l.b16 %v7582
        %v7791 = vunpack.c.h.b16 %v7582
        %v7792 = vunpack.c.l.b16 %v7583
        %v7793 = vunpack.c.h.b16 %v7583
        %v7794 = vunpack.c.l.b16 %v7584
        %v7795 = vunpack.c.h.b16 %v7584
        %v7796 = vunpack.c.l.b16 %v7585
        %v7797 = vunpack.c.h.b16 %v7585
        %v7798 = vunpack.c.l.b16 %v7586
        %v7799 = vunpack.c.h.b16 %v7586
        %v7800 = vunpack.c.l.b16 %v7587
        %v7801 = vunpack.c.h.b16 %v7587
        %v7802 = vunpack.c.l.b16 %v7588
        %v7803 = vunpack.c.h.b16 %v7588
        %v7804 = vunpack.c.l.b16 %v7589
        %v7805 = vunpack.c.h.b16 %v7589
        %v7806 = vunpack.c.l.b16 %v7590
        %v7807 = vunpack.c.h.b16 %v7590
        %v7808 = vpack.c.b16 %v7684, %v7680
        %v7809 = vpack.c.b16 %v7685, %v7681
        %v7810 = vpack.c.b16 %v7686, %v7682
        %v7811 = vpack.c.b16 %v7687, %v7683
        %v7812 = vpack.c.b16 %v7692, %v7688
        %v7813 = vpack.c.b16 %v7693, %v7689
        %v7814 = vpack.c.b16 %v7694, %v7690
        %v7815 = vpack.c.b16 %v7695, %v7691
        %v7816 = vpack.c.b16 %v7700, %v7696
        %v7817 = vpack.c.b16 %v7701, %v7697
        %v7818 = vpack.c.b16 %v7702, %v7698
        %v7819 = vpack.c.b16 %v7703, %v7699
        %v7820 = vpack.c.b16 %v7708, %v7704
        %v7821 = vpack.c.b16 %v7709, %v7705
        %v7822 = vpack.c.b16 %v7710, %v7706
        %v7823 = vpack.c.b16 %v7711, %v7707
        %v7824 = vpack.c.b16 %v7716, %v7712
        %v7825 = vpack.c.b16 %v7717, %v7713
        %v7826 = vpack.c.b16 %v7718, %v7714
        %v7827 = vpack.c.b16 %v7719, %v7715
        %v7828 = vpack.c.b16 %v7724, %v7720
        %v7829 = vpack.c.b16 %v7725, %v7721
        %v7830 = vpack.c.b16 %v7726, %v7722
        %v7831 = vpack.c.b16 %v7727, %v7723
        %v7832 = vpack.c.b16 %v7732, %v7728
        %v7833 = vpack.c.b16 %v7733, %v7729
        %v7834 = vpack.c.b16 %v7734, %v7730
        %v7835 = vpack.c.b16 %v7735, %v7731
        %v7836 = vpack.c.b16 %v7740, %v7736
        %v7837 = vpack.c.b16 %v7741, %v7737
        %v7838 = vpack.c.b16 %v7742, %v7738
        %v7839 = vpack.c.b16 %v7743, %v7739
        %v7840 = vpack.c.b16 %v7748, %v7744
        %v7841 = vpack.c.b16 %v7749, %v7745
        %v7842 = vpack.c.b16 %v7750, %v7746
        %v7843 = vpack.c.b16 %v7751, %v7747
        %v7844 = vpack.c.b16 %v7756, %v7752
        %v7845 = vpack.c.b16 %v7757, %v7753
        %v7846 = vpack.c.b16 %v7758, %v7754
        %v7847 = vpack.c.b16 %v7759, %v7755
        %v7848 = vpack.c.b16 %v7764, %v7760
        %v7849 = vpack.c.b16 %v7765, %v7761
        %v7850 = vpack.c.b16 %v7766, %v7762
        %v7851 = vpack.c.b16 %v7767, %v7763
        %v7852 = vpack.c.b16 %v7772, %v7768
        %v7853 = vpack.c.b16 %v7773, %v7769
        %v7854 = vpack.c.b16 %v7774, %v7770
        %v7855 = vpack.c.b16 %v7775, %v7771
        %v7856 = vpack.c.b16 %v7780, %v7776
        %v7857 = vpack.c.b16 %v7781, %v7777
        %v7858 = vpack.c.b16 %v7782, %v7778
        %v7859 = vpack.c.b16 %v7783, %v7779
        %v7860 = vpack.c.b16 %v7788, %v7784
        %v7861 = vpack.c.b16 %v7789, %v7785
        %v7862 = vpack.c.b16 %v7790, %v7786
        %v7863 = vpack.c.b16 %v7791, %v7787
        %v7864 = vpack.c.b16 %v7796, %v7792
        %v7865 = vpack.c.b16 %v7797, %v7793
        %v7866 = vpack.c.b16 %v7798, %v7794
        %v7867 = vpack.c.b16 %v7799, %v7795
        %v7868 = vpack.c.b16 %v7804, %v7800
        %v7869 = vpack.c.b16 %v7805, %v7801
        %v7870 = vpack.c.b16 %v7806, %v7802
        %v7871 = vpack.c.b16 %v7807, %v7803
        %7936 = vmatprep.subr.bf16.mxu0 %v7809
        %7937 = vmatpush1.bf16.msra.mxu0 %v7808
        %7938 = vmatprep.subr.bf16.mxu0 %v7813
        %7939 = vmatpush1.bf16.msra.mxu0 %v7812
        %7940 = vmatprep.subr.bf16.mxu0 %v7817
        %7941 = vmatpush1.bf16.msra.mxu0 %v7816
        %7942 = vmatprep.subr.bf16.mxu0 %v7821
        %7943 = vmatpush1.bf16.msra.mxu0 %v7820
        %7944 = vmatprep.subr.bf16.mxu0 %v7825
        %7945 = vmatpush1.bf16.msra.mxu0 %v7824
        %7946 = vmatprep.subr.bf16.mxu0 %v7829
        %7947 = vmatpush1.bf16.msra.mxu0 %v7828
        %7948 = vmatprep.subr.bf16.mxu0 %v7833
        %7949 = vmatpush1.bf16.msra.mxu0 %v7832
        %7950 = vmatprep.subr.bf16.mxu0 %v7837
        %7951 = vmatpush1.bf16.msra.mxu0 %v7836
        %7952 = vmatprep.subr.bf16.mxu0 %v7841
        %7953 = vmatpush1.bf16.msra.mxu0 %v7840
        %7954 = vmatprep.subr.bf16.mxu0 %v7845
        %7955 = vmatpush1.bf16.msra.mxu0 %v7844
        %7956 = vmatprep.subr.bf16.mxu0 %v7849
        %7957 = vmatpush1.bf16.msra.mxu0 %v7848
        %7958 = vmatprep.subr.bf16.mxu0 %v7853
        %7959 = vmatpush1.bf16.msra.mxu0 %v7852
        %7960 = vmatprep.subr.bf16.mxu0 %v7857
        %7961 = vmatpush1.bf16.msra.mxu0 %v7856
        %7962 = vmatprep.subr.bf16.mxu0 %v7861
        %7963 = vmatpush1.bf16.msra.mxu0 %v7860
        %7964 = vmatprep.subr.bf16.mxu0 %v7865
        %7965 = vmatpush1.bf16.msra.mxu0 %v7864
        %7966 = vmatprep.subr.bf16.mxu0 %v7869
        %7967 = vmatpush1.bf16.msra.mxu0 %v7868
        %7968 = vmatprep.mubr.bf16.mxu0 %v7592
        %7969 = vmatmul.mubr.bf16.gmra.mrb[0].mxu0 %v7591
        %v7970 = vpop.f32.mrb[0].mxu0
        %v7971 = vadd.f32 %v7599, %v7970
        %v7972 = vpop.f32.mrb[0].mxu0
        %v7973 = vadd.f32 %v7603, %v7972
        %v7974 = vpop.f32.mrb[0].mxu0
        %v7975 = vpop.f32.mrb[0].mxu0
        %7976 = vdwg.mxu0
        %7977 = vmatprep.subr.bf16.mxu0 %v7811
        %7978 = vmatpush1.bf16.msra.mxu0 %v7810
        %7979 = vmatprep.subr.bf16.mxu0 %v7815
        %7980 = vmatpush1.bf16.msra.mxu0 %v7814
        %7981 = vmatprep.subr.bf16.mxu0 %v7819
        %7982 = vmatpush1.bf16.msra.mxu0 %v7818
        %7983 = vmatprep.subr.bf16.mxu0 %v7823
        %7984 = vmatpush1.bf16.msra.mxu0 %v7822
        %7985 = vmatprep.subr.bf16.mxu0 %v7827
        %7986 = vmatpush1.bf16.msra.mxu0 %v7826
        %7987 = vmatprep.subr.bf16.mxu0 %v7831
        %7988 = vmatpush1.bf16.msra.mxu0 %v7830
        %7989 = vmatprep.subr.bf16.mxu0 %v7835
        %7990 = vmatpush1.bf16.msra.mxu0 %v7834
        %7991 = vmatprep.subr.bf16.mxu0 %v7839
        %7992 = vmatpush1.bf16.msra.mxu0 %v7838
        %7993 = vmatprep.subr.bf16.mxu0 %v7843
        %7994 = vmatpush1.bf16.msra.mxu0 %v7842
        %7995 = vmatprep.subr.bf16.mxu0 %v7847
        %7996 = vmatpush1.bf16.msra.mxu0 %v7846
        %7997 = vmatprep.subr.bf16.mxu0 %v7851
        %7998 = vmatpush1.bf16.msra.mxu0 %v7850
        %7999 = vmatprep.subr.bf16.mxu0 %v7855
        %8000 = vmatpush1.bf16.msra.mxu0 %v7854
        %8001 = vmatprep.subr.bf16.mxu0 %v7859
        %8002 = vmatpush1.bf16.msra.mxu0 %v7858
        %8003 = vmatprep.subr.bf16.mxu0 %v7863
        %8004 = vmatpush1.bf16.msra.mxu0 %v7862
        %8005 = vmatprep.subr.bf16.mxu0 %v7867
        %8006 = vmatpush1.bf16.msra.mxu0 %v7866
        %8007 = vmatprep.subr.bf16.mxu0 %v7871
        %8008 = vmatpush1.bf16.msra.mxu0 %v7870
        %8009 = vmatprep.mubr.bf16.mxu0 %v7592
        %8010 = vmatmul.mubr.bf16.gmra.mrb[0].mxu0 %v7591
        %v8011 = vpop.f32.mrb[0].mxu0
        %v8012 = vadd.f32 %v7607, %v8011
        %v8013 = vpop.f32.mrb[0].mxu0
        %v8014 = vadd.f32 %v7611, %v8013
        %v8015 = vpop.f32.mrb[0].mxu0
        %v8016 = vpop.f32.mrb[0].mxu0
        %8017 = vdwg.mxu0
        %v8018 = vmax.f32 %v7971, 0.0
        %v8019 = vmax.f32 %v7973, 0.0
        %v8020 = vmax.f32 %v8012, 0.0
        %v8021 = vmax.f32 %v8014, 0.0
        %s8022 = scalar_lea.vmem [#allocation19], 1024
        %v8023 = vld [vmem:[%s8022] sm:$0xff]
        %v8024 = vld [vmem:[%s8022 + $0x8] sm:$0xff]
        %v8025 = vld [vmem:[%s8022 + $0x10] sm:$0xff]
        %v8026 = vld [vmem:[%s8022 + $0x18] sm:$0xff]
        %v8027 = vld [vmem:[%s8022 + $0x20] sm:$0xff]
        %v8028 = vld [vmem:[%s8022 + $0x28] sm:$0xff]
        %v8029 = vld [vmem:[%s8022 + $0x30] sm:$0xff]
        %v8030 = vld [vmem:[%s8022 + $0x38] sm:$0xff]
        %v8031 = vld [vmem:[%s8022 + $0x40] sm:$0xff]
        %v8032 = vld [vmem:[%s8022 + $0x48] sm:$0xff]
        %v8033 = vld [vmem:[%s8022 + $0x50] sm:$0xff]
        %v8034 = vld [vmem:[%s8022 + $0x58] sm:$0xff]
        %v8035 = vld [vmem:[%s8022 + $0x60] sm:$0xff]
        %v8036 = vld [vmem:[%s8022 + $0x68] sm:$0xff]
        %v8037 = vld [vmem:[%s8022 + $0x70] sm:$0xff]
        %v8038 = vld [vmem:[%s8022 + $0x78] sm:$0xff]
        %v8039 = vld [vmem:[%s8022 + $0x80] sm:$0xff]
        %v8040 = vld [vmem:[%s8022 + $0x88] sm:$0xff]
        %v8041 = vld [vmem:[%s8022 + $0x90] sm:$0xff]
        %v8042 = vld [vmem:[%s8022 + $0x98] sm:$0xff]
        %v8043 = vld [vmem:[%s8022 + $0xa0] sm:$0xff]
        %v8044 = vld [vmem:[%s8022 + $0xa8] sm:$0xff]
        %v8045 = vld [vmem:[%s8022 + $0xb0] sm:$0xff]
        %v8046 = vld [vmem:[%s8022 + $0xb8] sm:$0xff]
        %v8047 = vld [vmem:[%s8022 + $0xc0] sm:$0xff]
        %v8048 = vld [vmem:[%s8022 + $0xc8] sm:$0xff]
        %v8049 = vld [vmem:[%s8022 + $0xd0] sm:$0xff]
        %v8050 = vld [vmem:[%s8022 + $0xd8] sm:$0xff]
        %v8051 = vld [vmem:[%s8022 + $0xe0] sm:$0xff]
        %v8052 = vld [vmem:[%s8022 + $0xe8] sm:$0xff]
        %v8053 = vld [vmem:[%s8022 + $0xf0] sm:$0xff]
        %v8054 = vld [vmem:[%s8022 + $0xf8] sm:$0xff]
        %v8055 = vld [vmem:[%s8022 + $0x100] sm:$0xff]
        %v8056 = vld [vmem:[%s8022 + $0x108] sm:$0xff]
        %v8057 = vld [vmem:[%s8022 + $0x110] sm:$0xff]
        %v8058 = vld [vmem:[%s8022 + $0x118] sm:$0xff]
        %v8059 = vld [vmem:[%s8022 + $0x120] sm:$0xff]
        %v8060 = vld [vmem:[%s8022 + $0x128] sm:$0xff]
        %v8061 = vld [vmem:[%s8022 + $0x130] sm:$0xff]
        %v8062 = vld [vmem:[%s8022 + $0x138] sm:$0xff]
        %v8063 = vld [vmem:[%s8022 + $0x140] sm:$0xff]
        %v8064 = vld [vmem:[%s8022 + $0x148] sm:$0xff]
        %v8065 = vld [vmem:[%s8022 + $0x150] sm:$0xff]
        %v8066 = vld [vmem:[%s8022 + $0x158] sm:$0xff]
        %v8067 = vld [vmem:[%s8022 + $0x160] sm:$0xff]
        %v8068 = vld [vmem:[%s8022 + $0x168] sm:$0xff]
        %v8069 = vld [vmem:[%s8022 + $0x170] sm:$0xff]
        %v8070 = vld [vmem:[%s8022 + $0x178] sm:$0xff]
        %v8071 = vld [vmem:[%s8022 + $0x180] sm:$0xff]
        %v8072 = vld [vmem:[%s8022 + $0x188] sm:$0xff]
        %v8073 = vld [vmem:[%s8022 + $0x190] sm:$0xff]
        %v8074 = vld [vmem:[%s8022 + $0x198] sm:$0xff]
        %v8075 = vld [vmem:[%s8022 + $0x1a0] sm:$0xff]
        %v8076 = vld [vmem:[%s8022 + $0x1a8] sm:$0xff]
        %v8077 = vld [vmem:[%s8022 + $0x1b0] sm:$0xff]
        %v8078 = vld [vmem:[%s8022 + $0x1b8] sm:$0xff]
        %v8079 = vld [vmem:[%s8022 + $0x1c0] sm:$0xff]
        %v8080 = vld [vmem:[%s8022 + $0x1c8] sm:$0xff]
        %v8081 = vld [vmem:[%s8022 + $0x1d0] sm:$0xff]
        %v8082 = vld [vmem:[%s8022 + $0x1d8] sm:$0xff]
        %v8083 = vld [vmem:[%s8022 + $0x1e0] sm:$0xff]
        %v8084 = vld [vmem:[%s8022 + $0x1e8] sm:$0xff]
        %v8085 = vld [vmem:[%s8022 + $0x1f0] sm:$0xff]
        %v8086 = vld [vmem:[%s8022 + $0x1f8] sm:$0xff]
        %v8087 = vpack.c.bf16 %v8018, %v8018
        %v8088 = vpack.c.bf16 %v8019, %v8019
        %v8089 = vpack.c.bf16 %v8020, %v8020
        %v8090 = vpack.c.bf16 %v8021, %v8021
        %s8091 = scalar_lea.vmem [#allocation20], 4
        %v8092 = vld [vmem:[%s8091] sm:$0x3]
        %v8094 = vlaneseq
        %v8095 = vshrl.u32 %v8094, 7
        %v8096 = vsub.s32 0, %v8095
        %v8097 = vrot.slane %v8092, %v8096
        %v8098 = vlaneseq
        %v8099 = vshrl.u32 %v8098, 7
        %v8100 = vsub.s32 1, %v8099
        %v8101 = vrot.slane %v8092, %v8100
        %v8168 = vunpack.c.l.b16 %v8023
        %v8169 = vunpack.c.h.b16 %v8023
        %v8170 = vunpack.c.l.b16 %v8024
        %v8171 = vunpack.c.h.b16 %v8024
        %v8172 = vunpack.c.l.b16 %v8025
        %v8173 = vunpack.c.h.b16 %v8025
        %v8174 = vunpack.c.l.b16 %v8026
        %v8175 = vunpack.c.h.b16 %v8026
        %v8176 = vunpack.c.l.b16 %v8027
        %v8177 = vunpack.c.h.b16 %v8027
        %v8178 = vunpack.c.l.b16 %v8028
        %v8179 = vunpack.c.h.b16 %v8028
        %v8180 = vunpack.c.l.b16 %v8029
        %v8181 = vunpack.c.h.b16 %v8029
        %v8182 = vunpack.c.l.b16 %v8030
        %v8183 = vunpack.c.h.b16 %v8030
        %v8184 = vunpack.c.l.b16 %v8031
        %v8185 = vunpack.c.h.b16 %v8031
        %v8186 = vunpack.c.l.b16 %v8032
        %v8187 = vunpack.c.h.b16 %v8032
        %v8188 = vunpack.c.l.b16 %v8033
        %v8189 = vunpack.c.h.b16 %v8033
        %v8190 = vunpack.c.l.b16 %v8034
        %v8191 = vunpack.c.h.b16 %v8034
        %v8192 = vunpack.c.l.b16 %v8035
        %v8193 = vunpack.c.h.b16 %v8035
        %v8194 = vunpack.c.l.b16 %v8036
        %v8195 = vunpack.c.h.b16 %v8036
        %v8196 = vunpack.c.l.b16 %v8037
        %v8197 = vunpack.c.h.b16 %v8037
        %v8198 = vunpack.c.l.b16 %v8038
        %v8199 = vunpack.c.h.b16 %v8038
        %v8200 = vunpack.c.l.b16 %v8039
        %v8201 = vunpack.c.h.b16 %v8039
        %v8202 = vunpack.c.l.b16 %v8040
        %v8203 = vunpack.c.h.b16 %v8040
        %v8204 = vunpack.c.l.b16 %v8041
        %v8205 = vunpack.c.h.b16 %v8041
        %v8206 = vunpack.c.l.b16 %v8042
        %v8207 = vunpack.c.h.b16 %v8042
        %v8208 = vunpack.c.l.b16 %v8043
        %v8209 = vunpack.c.h.b16 %v8043
        %v8210 = vunpack.c.l.b16 %v8044
        %v8211 = vunpack.c.h.b16 %v8044
        %v8212 = vunpack.c.l.b16 %v8045
        %v8213 = vunpack.c.h.b16 %v8045
        %v8214 = vunpack.c.l.b16 %v8046
        %v8215 = vunpack.c.h.b16 %v8046
        %v8216 = vunpack.c.l.b16 %v8047
        %v8217 = vunpack.c.h.b16 %v8047
        %v8218 = vunpack.c.l.b16 %v8048
        %v8219 = vunpack.c.h.b16 %v8048
        %v8220 = vunpack.c.l.b16 %v8049
        %v8221 = vunpack.c.h.b16 %v8049
        %v8222 = vunpack.c.l.b16 %v8050
        %v8223 = vunpack.c.h.b16 %v8050
        %v8224 = vunpack.c.l.b16 %v8051
        %v8225 = vunpack.c.h.b16 %v8051
        %v8226 = vunpack.c.l.b16 %v8052
        %v8227 = vunpack.c.h.b16 %v8052
        %v8228 = vunpack.c.l.b16 %v8053
        %v8229 = vunpack.c.h.b16 %v8053
        %v8230 = vunpack.c.l.b16 %v8054
        %v8231 = vunpack.c.h.b16 %v8054
        %v8232 = vunpack.c.l.b16 %v8055
        %v8233 = vunpack.c.h.b16 %v8055
        %v8234 = vunpack.c.l.b16 %v8056
        %v8235 = vunpack.c.h.b16 %v8056
        %v8236 = vunpack.c.l.b16 %v8057
        %v8237 = vunpack.c.h.b16 %v8057
        %v8238 = vunpack.c.l.b16 %v8058
        %v8239 = vunpack.c.h.b16 %v8058
        %v8240 = vunpack.c.l.b16 %v8059
        %v8241 = vunpack.c.h.b16 %v8059
        %v8242 = vunpack.c.l.b16 %v8060
        %v8243 = vunpack.c.h.b16 %v8060
        %v8244 = vunpack.c.l.b16 %v8061
        %v8245 = vunpack.c.h.b16 %v8061
        %v8246 = vunpack.c.l.b16 %v8062
        %v8247 = vunpack.c.h.b16 %v8062
        %v8248 = vunpack.c.l.b16 %v8063
        %v8249 = vunpack.c.h.b16 %v8063
        %v8250 = vunpack.c.l.b16 %v8064
        %v8251 = vunpack.c.h.b16 %v8064
        %v8252 = vunpack.c.l.b16 %v8065
        %v8253 = vunpack.c.h.b16 %v8065
        %v8254 = vunpack.c.l.b16 %v8066
        %v8255 = vunpack.c.h.b16 %v8066
        %v8256 = vunpack.c.l.b16 %v8067
        %v8257 = vunpack.c.h.b16 %v8067
        %v8258 = vunpack.c.l.b16 %v8068
        %v8259 = vunpack.c.h.b16 %v8068
        %v8260 = vunpack.c.l.b16 %v8069
        %v8261 = vunpack.c.h.b16 %v8069
        %v8262 = vunpack.c.l.b16 %v8070
        %v8263 = vunpack.c.h.b16 %v8070
        %v8264 = vunpack.c.l.b16 %v8071
        %v8265 = vunpack.c.h.b16 %v8071
        %v8266 = vunpack.c.l.b16 %v8072
        %v8267 = vunpack.c.h.b16 %v8072
        %v8268 = vunpack.c.l.b16 %v8073
        %v8269 = vunpack.c.h.b16 %v8073
        %v8270 = vunpack.c.l.b16 %v8074
        %v8271 = vunpack.c.h.b16 %v8074
        %v8272 = vunpack.c.l.b16 %v8075
        %v8273 = vunpack.c.h.b16 %v8075
        %v8274 = vunpack.c.l.b16 %v8076
        %v8275 = vunpack.c.h.b16 %v8076
        %v8276 = vunpack.c.l.b16 %v8077
        %v8277 = vunpack.c.h.b16 %v8077
        %v8278 = vunpack.c.l.b16 %v8078
        %v8279 = vunpack.c.h.b16 %v8078
        %v8280 = vunpack.c.l.b16 %v8079
        %v8281 = vunpack.c.h.b16 %v8079
        %v8282 = vunpack.c.l.b16 %v8080
        %v8283 = vunpack.c.h.b16 %v8080
        %v8284 = vunpack.c.l.b16 %v8081
        %v8285 = vunpack.c.h.b16 %v8081
        %v8286 = vunpack.c.l.b16 %v8082
        %v8287 = vunpack.c.h.b16 %v8082
        %v8288 = vunpack.c.l.b16 %v8083
        %v8289 = vunpack.c.h.b16 %v8083
        %v8290 = vunpack.c.l.b16 %v8084
        %v8291 = vunpack.c.h.b16 %v8084
        %v8292 = vunpack.c.l.b16 %v8085
        %v8293 = vunpack.c.h.b16 %v8085
        %v8294 = vunpack.c.l.b16 %v8086
        %v8295 = vunpack.c.h.b16 %v8086
        %v8296 = vpack.c.b16 %v8170, %v8168
        %v8297 = vpack.c.b16 %v8171, %v8169
        %v8298 = vpack.c.b16 %v8174, %v8172
        %v8299 = vpack.c.b16 %v8175, %v8173
        %v8300 = vpack.c.b16 %v8178, %v8176
        %v8301 = vpack.c.b16 %v8179, %v8177
        %v8302 = vpack.c.b16 %v8182, %v8180
        %v8303 = vpack.c.b16 %v8183, %v8181
        %v8304 = vpack.c.b16 %v8186, %v8184
        %v8305 = vpack.c.b16 %v8187, %v8185
        %v8306 = vpack.c.b16 %v8190, %v8188
        %v8307 = vpack.c.b16 %v8191, %v8189
        %v8308 = vpack.c.b16 %v8194, %v8192
        %v8309 = vpack.c.b16 %v8195, %v8193
        %v8310 = vpack.c.b16 %v8198, %v8196
        %v8311 = vpack.c.b16 %v8199, %v8197
        %v8312 = vpack.c.b16 %v8202, %v8200
        %v8313 = vpack.c.b16 %v8203, %v8201
        %v8314 = vpack.c.b16 %v8206, %v8204
        %v8315 = vpack.c.b16 %v8207, %v8205
        %v8316 = vpack.c.b16 %v8210, %v8208
        %v8317 = vpack.c.b16 %v8211, %v8209
        %v8318 = vpack.c.b16 %v8214, %v8212
        %v8319 = vpack.c.b16 %v8215, %v8213
        %v8320 = vpack.c.b16 %v8218, %v8216
        %v8321 = vpack.c.b16 %v8219, %v8217
        %v8322 = vpack.c.b16 %v8222, %v8220
        %v8323 = vpack.c.b16 %v8223, %v8221
        %v8324 = vpack.c.b16 %v8226, %v8224
        %v8325 = vpack.c.b16 %v8227, %v8225
        %v8326 = vpack.c.b16 %v8230, %v8228
        %v8327 = vpack.c.b16 %v8231, %v8229
        %v8328 = vpack.c.b16 %v8234, %v8232
        %v8329 = vpack.c.b16 %v8235, %v8233
        %v8330 = vpack.c.b16 %v8238, %v8236
        %v8331 = vpack.c.b16 %v8239, %v8237
        %v8332 = vpack.c.b16 %v8242, %v8240
        %v8333 = vpack.c.b16 %v8243, %v8241
        %v8334 = vpack.c.b16 %v8246, %v8244
        %v8335 = vpack.c.b16 %v8247, %v8245
        %v8336 = vpack.c.b16 %v8250, %v8248
        %v8337 = vpack.c.b16 %v8251, %v8249
        %v8338 = vpack.c.b16 %v8254, %v8252
        %v8339 = vpack.c.b16 %v8255, %v8253
        %v8340 = vpack.c.b16 %v8258, %v8256
        %v8341 = vpack.c.b16 %v8259, %v8257
        %v8342 = vpack.c.b16 %v8262, %v8260
        %v8343 = vpack.c.b16 %v8263, %v8261
        %v8344 = vpack.c.b16 %v8266, %v8264
        %v8345 = vpack.c.b16 %v8267, %v8265
        %v8346 = vpack.c.b16 %v8270, %v8268
        %v8347 = vpack.c.b16 %v8271, %v8269
        %v8348 = vpack.c.b16 %v8274, %v8272
        %v8349 = vpack.c.b16 %v8275, %v8273
        %v8350 = vpack.c.b16 %v8278, %v8276
        %v8351 = vpack.c.b16 %v8279, %v8277
        %v8352 = vpack.c.b16 %v8282, %v8280
        %v8353 = vpack.c.b16 %v8283, %v8281
        %v8354 = vpack.c.b16 %v8286, %v8284
        %v8355 = vpack.c.b16 %v8287, %v8285
        %v8356 = vpack.c.b16 %v8290, %v8288
        %v8357 = vpack.c.b16 %v8291, %v8289
        %v8358 = vpack.c.b16 %v8294, %v8292
        %v8359 = vpack.c.b16 %v8295, %v8293
        %8424 = vmatprep.subr.bf16.mxu0 %v8297
        %8425 = vmatpush1.bf16.msra.mxu0 %v8296
        %8426 = vmatprep.subr.bf16.mxu0 %v8299
        %8427 = vmatpush1.bf16.msra.mxu0 %v8298
        %8428 = vmatprep.subr.bf16.mxu0 %v8301
        %8429 = vmatpush1.bf16.msra.mxu0 %v8300
        %8430 = vmatprep.subr.bf16.mxu0 %v8303
        %8431 = vmatpush1.bf16.msra.mxu0 %v8302
        %8432 = vmatprep.subr.bf16.mxu0 %v8305
        %8433 = vmatpush1.bf16.msra.mxu0 %v8304
        %8434 = vmatprep.subr.bf16.mxu0 %v8307
        %8435 = vmatpush1.bf16.msra.mxu0 %v8306
        %8436 = vmatprep.subr.bf16.mxu0 %v8309
        %8437 = vmatpush1.bf16.msra.mxu0 %v8308
        %8438 = vmatprep.subr.bf16.mxu0 %v8311
        %8439 = vmatpush1.bf16.msra.mxu0 %v8310
        %8440 = vmatprep.subr.bf16.mxu0 %v8313
        %8441 = vmatpush1.bf16.msra.mxu0 %v8312
        %8442 = vmatprep.subr.bf16.mxu0 %v8315
        %8443 = vmatpush1.bf16.msra.mxu0 %v8314
        %8444 = vmatprep.subr.bf16.mxu0 %v8317
        %8445 = vmatpush1.bf16.msra.mxu0 %v8316
        %8446 = vmatprep.subr.bf16.mxu0 %v8319
        %8447 = vmatpush1.bf16.msra.mxu0 %v8318
        %8448 = vmatprep.subr.bf16.mxu0 %v8321
        %8449 = vmatpush1.bf16.msra.mxu0 %v8320
        %8450 = vmatprep.subr.bf16.mxu0 %v8323
        %8451 = vmatpush1.bf16.msra.mxu0 %v8322
        %8452 = vmatprep.subr.bf16.mxu0 %v8325
        %8453 = vmatpush1.bf16.msra.mxu0 %v8324
        %8454 = vmatprep.subr.bf16.mxu0 %v8327
        %8455 = vmatpush1.bf16.msra.mxu0 %v8326
        %8456 = vmatprep.mubr.bf16.mxu0 %v8088
        %8457 = vmatmul.mubr.bf16.gmra.mrb[0].mxu0 %v8087
        %v8458 = vpop.f32.mrb[0].mxu0
        %v8459 = vadd.f32 %v8097, %v8458
        %v8460 = vpop.f32.mrb[0].mxu0
        %v8461 = vadd.f32 %v8101, %v8460
        %v8462 = vpop.f32.mrb[0].mxu0
        %v8463 = vpop.f32.mrb[0].mxu0
        %8464 = vdwg.mxu0
        %8465 = vmatprep.subr.bf16.mxu0 %v8329
        %8466 = vmatpush1.bf16.msra.mxu0 %v8328
        %8467 = vmatprep.subr.bf16.mxu0 %v8331
        %8468 = vmatpush1.bf16.msra.mxu0 %v8330
        %8469 = vmatprep.subr.bf16.mxu0 %v8333
        %8470 = vmatpush1.bf16.msra.mxu0 %v8332
        %8471 = vmatprep.subr.bf16.mxu0 %v8335
        %8472 = vmatpush1.bf16.msra.mxu0 %v8334
        %8473 = vmatprep.subr.bf16.mxu0 %v8337
        %8474 = vmatpush1.bf16.msra.mxu0 %v8336
        %8475 = vmatprep.subr.bf16.mxu0 %v8339
        %8476 = vmatpush1.bf16.msra.mxu0 %v8338
        %8477 = vmatprep.subr.bf16.mxu0 %v8341
        %8478 = vmatpush1.bf16.msra.mxu0 %v8340
        %8479 = vmatprep.subr.bf16.mxu0 %v8343
        %8480 = vmatpush1.bf16.msra.mxu0 %v8342
        %8481 = vmatprep.subr.bf16.mxu0 %v8345
        %8482 = vmatpush1.bf16.msra.mxu0 %v8344
        %8483 = vmatprep.subr.bf16.mxu0 %v8347
        %8484 = vmatpush1.bf16.msra.mxu0 %v8346
        %8485 = vmatprep.subr.bf16.mxu0 %v8349
        %8486 = vmatpush1.bf16.msra.mxu0 %v8348
        %8487 = vmatprep.subr.bf16.mxu0 %v8351
        %8488 = vmatpush1.bf16.msra.mxu0 %v8350
        %8489 = vmatprep.subr.bf16.mxu0 %v8353
        %8490 = vmatpush1.bf16.msra.mxu0 %v8352
        %8491 = vmatprep.subr.bf16.mxu0 %v8355
        %8492 = vmatpush1.bf16.msra.mxu0 %v8354
        %8493 = vmatprep.subr.bf16.mxu0 %v8357
        %8494 = vmatpush1.bf16.msra.mxu0 %v8356
        %8495 = vmatprep.subr.bf16.mxu0 %v8359
        %8496 = vmatpush1.bf16.msra.mxu0 %v8358
        %8497 = vmatprep.mubr.bf16.mxu0 %v8090
        %8498 = vmatmul.mubr.bf16.gmra.mrb[0].mxu0 %v8089
        %v8499 = vpop.f32.mrb[0].mxu0
        %v8500 = vadd.f32 %v8459, %v8499
        %v8501 = vpop.f32.mrb[0].mxu0
        %v8502 = vadd.f32 %v8461, %v8501
        %v8503 = vpop.f32.mrb[0].mxu0
        %v8504 = vpop.f32.mrb[0].mxu0
        %8505 = vdwg.mxu0
        %v8506 = vadd.f32 %v7524, %v8500
        %v8507 = vadd.f32 %v7525, %v8502
        %s8508 = scalar_lea.vmem [#allocation22], 4
        %v8509 = vld [vmem:[%s8508] sm:$0x3]
        %s8510 = scalar_lea.vmem [#allocation23], 4
        %v8511 = vld [vmem:[%s8510] sm:$0x3]
        %v8512 = vadd.f32 %v8506, %v8507
        %8513 = vadd.xlane.f32.xlu0 %v8512
        %v8514 = vpop.xlane.xlu0 %8513
        %v8515 = vmul.f32 %v8514, %v2456
        %v8516 = vsub.f32 %v8506, %v8515
        %v8517 = vsub.f32 %v8507, %v8515
        %v8518 = vmul.f32 %v8516, %v8516
        %v8519 = vmul.f32 %v8517, %v8517
        %v8520 = vadd.f32 %v8518, %v8519
        %8521 = vadd.xlane.f32.xlu0 %v8520
        %v8522 = vpop.xlane.xlu0 %8521
        %v8523 = vmul.f32 %v8522, %v2456
        %v8524 = vadd.f32 %v8523, 1e-05
        %v8525 = vrsqrt.pop %v8524
        %v8526 = vmul.f32 %v8516, %v8525
        %v8527 = vmul.f32 %v8517, %v8525
        %v8529 = vlaneseq
        %v8530 = vshrl.u32 %v8529, 7
        %v8531 = vsub.s32 0, %v8530
        %v8532 = vrot.slane %v8509, %v8531
        %v8533 = vlaneseq
        %v8534 = vshrl.u32 %v8533, 7
        %v8535 = vsub.s32 1, %v8534
        %v8536 = vrot.slane %v8509, %v8535
        %v8539 = vmul.f32 %v8526, %v8532
        %v8540 = vmul.f32 %v8527, %v8536
        %v8542 = vlaneseq
        %v8543 = vshrl.u32 %v8542, 7
        %v8544 = vsub.s32 0, %v8543
        %v8545 = vrot.slane %v8511, %v8544
        %v8546 = vlaneseq
        %v8547 = vshrl.u32 %v8546, 7
        %v8548 = vsub.s32 1, %v8547
        %v8549 = vrot.slane %v8511, %v8548
        %v8552 = vadd.f32 %v8539, %v8545
        %v8553 = vadd.f32 %v8540, %v8549
        %v8554 = vld [vmem:[#allocation25] sm:$0xff]
        %v8555 = vld [vmem:[#allocation25 + $0x8] sm:$0xff]
        %v8556 = vld [vmem:[#allocation25 + $0x10] sm:$0xff]
        %v8557 = vld [vmem:[#allocation25 + $0x18] sm:$0xff]
        %v8558 = vld [vmem:[#allocation25 + $0x20] sm:$0xff]
        %v8559 = vld [vmem:[#allocation25 + $0x28] sm:$0xff]
        %v8560 = vld [vmem:[#allocation25 + $0x30] sm:$0xff]
        %v8561 = vld [vmem:[#allocation25 + $0x38] sm:$0xff]
        %v8562 = vld [vmem:[#allocation25 + $0x40] sm:$0xff]
        %v8563 = vld [vmem:[#allocation25 + $0x48] sm:$0xff]
        %v8564 = vld [vmem:[#allocation25 + $0x50] sm:$0xff]
        %v8565 = vld [vmem:[#allocation25 + $0x58] sm:$0xff]
        %v8566 = vld [vmem:[#allocation25 + $0x60] sm:$0xff]
        %v8567 = vld [vmem:[#allocation25 + $0x68] sm:$0xff]
        %v8568 = vld [vmem:[#allocation25 + $0x70] sm:$0xff]
        %v8569 = vld [vmem:[#allocation25 + $0x78] sm:$0xff]
        %v8570 = vld [vmem:[#allocation25 + $0x80] sm:$0xff]
        %v8571 = vld [vmem:[#allocation25 + $0x88] sm:$0xff]
        %v8572 = vld [vmem:[#allocation25 + $0x90] sm:$0xff]
        %v8573 = vld [vmem:[#allocation25 + $0x98] sm:$0xff]
        %v8574 = vld [vmem:[#allocation25 + $0xa0] sm:$0xff]
        %v8575 = vld [vmem:[#allocation25 + $0xa8] sm:$0xff]
        %v8576 = vld [vmem:[#allocation25 + $0xb0] sm:$0xff]
        %v8577 = vld [vmem:[#allocation25 + $0xb8] sm:$0xff]
        %v8578 = vld [vmem:[#allocation25 + $0xc0] sm:$0xff]
        %v8579 = vld [vmem:[#allocation25 + $0xc8] sm:$0xff]
        %v8580 = vld [vmem:[#allocation25 + $0xd0] sm:$0xff]
        %v8581 = vld [vmem:[#allocation25 + $0xd8] sm:$0xff]
        %v8582 = vld [vmem:[#allocation25 + $0xe0] sm:$0xff]
        %v8583 = vld [vmem:[#allocation25 + $0xe8] sm:$0xff]
        %v8584 = vld [vmem:[#allocation25 + $0xf0] sm:$0xff]
        %v8585 = vld [vmem:[#allocation25 + $0xf8] sm:$0xff]
        %v8586 = vld [vmem:[#allocation25 + $0x100] sm:$0xff]
        %v8587 = vld [vmem:[#allocation25 + $0x108] sm:$0xff]
        %v8588 = vld [vmem:[#allocation25 + $0x110] sm:$0xff]
        %v8589 = vld [vmem:[#allocation25 + $0x118] sm:$0xff]
        %v8590 = vld [vmem:[#allocation25 + $0x120] sm:$0xff]
        %v8591 = vld [vmem:[#allocation25 + $0x128] sm:$0xff]
        %v8592 = vld [vmem:[#allocation25 + $0x130] sm:$0xff]
        %v8593 = vld [vmem:[#allocation25 + $0x138] sm:$0xff]
        %v8594 = vld [vmem:[#allocation25 + $0x140] sm:$0xff]
        %v8595 = vld [vmem:[#allocation25 + $0x148] sm:$0xff]
        %v8596 = vld [vmem:[#allocation25 + $0x150] sm:$0xff]
        %v8597 = vld [vmem:[#allocation25 + $0x158] sm:$0xff]
        %v8598 = vld [vmem:[#allocation25 + $0x160] sm:$0xff]
        %v8599 = vld [vmem:[#allocation25 + $0x168] sm:$0xff]
        %v8600 = vld [vmem:[#allocation25 + $0x170] sm:$0xff]
        %v8601 = vld [vmem:[#allocation25 + $0x178] sm:$0xff]
        %v8602 = vld [vmem:[#allocation25 + $0x180] sm:$0xff]
        %v8603 = vld [vmem:[#allocation25 + $0x188] sm:$0xff]
        %v8604 = vld [vmem:[#allocation25 + $0x190] sm:$0xff]
        %v8605 = vld [vmem:[#allocation25 + $0x198] sm:$0xff]
        %v8606 = vld [vmem:[#allocation25 + $0x1a0] sm:$0xff]
        %v8607 = vld [vmem:[#allocation25 + $0x1a8] sm:$0xff]
        %v8608 = vld [vmem:[#allocation25 + $0x1b0] sm:$0xff]
        %v8609 = vld [vmem:[#allocation25 + $0x1b8] sm:$0xff]
        %v8610 = vld [vmem:[#allocation25 + $0x1c0] sm:$0xff]
        %v8611 = vld [vmem:[#allocation25 + $0x1c8] sm:$0xff]
        %v8612 = vld [vmem:[#allocation25 + $0x1d0] sm:$0xff]
        %v8613 = vld [vmem:[#allocation25 + $0x1d8] sm:$0xff]
        %v8614 = vld [vmem:[#allocation25 + $0x1e0] sm:$0xff]
        %v8615 = vld [vmem:[#allocation25 + $0x1e8] sm:$0xff]
        %v8616 = vld [vmem:[#allocation25 + $0x1f0] sm:$0xff]
        %v8617 = vld [vmem:[#allocation25 + $0x1f8] sm:$0xff]
        %v8618 = vld [vmem:[#allocation25 + $0x200] sm:$0xff]
        %v8619 = vld [vmem:[#allocation25 + $0x208] sm:$0xff]
        %v8620 = vld [vmem:[#allocation25 + $0x210] sm:$0xff]
        %v8621 = vld [vmem:[#allocation25 + $0x218] sm:$0xff]
        %v8622 = vld [vmem:[#allocation25 + $0x220] sm:$0xff]
        %v8623 = vld [vmem:[#allocation25 + $0x228] sm:$0xff]
        %v8624 = vld [vmem:[#allocation25 + $0x230] sm:$0xff]
        %v8625 = vld [vmem:[#allocation25 + $0x238] sm:$0xff]
        %v8626 = vld [vmem:[#allocation25 + $0x240] sm:$0xff]
        %v8627 = vld [vmem:[#allocation25 + $0x248] sm:$0xff]
        %v8628 = vld [vmem:[#allocation25 + $0x250] sm:$0xff]
        %v8629 = vld [vmem:[#allocation25 + $0x258] sm:$0xff]
        %v8630 = vld [vmem:[#allocation25 + $0x260] sm:$0xff]
        %v8631 = vld [vmem:[#allocation25 + $0x268] sm:$0xff]
        %v8632 = vld [vmem:[#allocation25 + $0x270] sm:$0xff]
        %v8633 = vld [vmem:[#allocation25 + $0x278] sm:$0xff]
        %v8634 = vld [vmem:[#allocation25 + $0x280] sm:$0xff]
        %v8635 = vld [vmem:[#allocation25 + $0x288] sm:$0xff]
        %v8636 = vld [vmem:[#allocation25 + $0x290] sm:$0xff]
        %v8637 = vld [vmem:[#allocation25 + $0x298] sm:$0xff]
        %v8638 = vld [vmem:[#allocation25 + $0x2a0] sm:$0xff]
        %v8639 = vld [vmem:[#allocation25 + $0x2a8] sm:$0xff]
        %v8640 = vld [vmem:[#allocation25 + $0x2b0] sm:$0xff]
        %v8641 = vld [vmem:[#allocation25 + $0x2b8] sm:$0xff]
        %v8642 = vld [vmem:[#allocation25 + $0x2c0] sm:$0xff]
        %v8643 = vld [vmem:[#allocation25 + $0x2c8] sm:$0xff]
        %v8644 = vld [vmem:[#allocation25 + $0x2d0] sm:$0xff]
        %v8645 = vld [vmem:[#allocation25 + $0x2d8] sm:$0xff]
        %v8646 = vld [vmem:[#allocation25 + $0x2e0] sm:$0xff]
        %v8647 = vld [vmem:[#allocation25 + $0x2e8] sm:$0xff]
        %v8648 = vld [vmem:[#allocation25 + $0x2f0] sm:$0xff]
        %v8649 = vld [vmem:[#allocation25 + $0x2f8] sm:$0xff]
        %v8650 = vpack.c.bf16 %v8552, %v8552
        %v8651 = vpack.c.bf16 %v8553, %v8553
        %v8652 = vld [vmem:[#allocation26] sm:$0x3f]
        %v8654 = vlaneseq
        %v8655 = vshrl.u32 %v8654, 7
        %v8656 = vsub.s32 0, %v8655
        %v8657 = vrot.slane %v8652, %v8656
        %v8658 = vlaneseq
        %v8659 = vshrl.u32 %v8658, 7
        %v8660 = vsub.s32 1, %v8659
        %v8661 = vrot.slane %v8652, %v8660
        %v8662 = vlaneseq
        %v8663 = vshrl.u32 %v8662, 7
        %v8664 = vsub.s32 2, %v8663
        %v8665 = vrot.slane %v8652, %v8664
        %v8666 = vlaneseq
        %v8667 = vshrl.u32 %v8666, 7
        %v8668 = vsub.s32 3, %v8667
        %v8669 = vrot.slane %v8652, %v8668
        %v8670 = vlaneseq
        %v8671 = vshrl.u32 %v8670, 7
        %v8672 = vsub.s32 4, %v8671
        %v8673 = vrot.slane %v8652, %v8672
        %v8674 = vlaneseq
        %v8675 = vshrl.u32 %v8674, 7
        %v8676 = vsub.s32 5, %v8675
        %v8677 = vrot.slane %v8652, %v8676
        %v8780 = vunpack.c.l.b16 %v8554
        %v8781 = vunpack.c.h.b16 %v8554
        %v8782 = vunpack.c.l.b16 %v8555
        %v8783 = vunpack.c.h.b16 %v8555
        %v8784 = vunpack.c.l.b16 %v8556
        %v8785 = vunpack.c.h.b16 %v8556
        %v8786 = vunpack.c.l.b16 %v8557
        %v8787 = vunpack.c.h.b16 %v8557
        %v8788 = vunpack.c.l.b16 %v8558
        %v8789 = vunpack.c.h.b16 %v8558
        %v8790 = vunpack.c.l.b16 %v8559
        %v8791 = vunpack.c.h.b16 %v8559
        %v8792 = vunpack.c.l.b16 %v8560
        %v8793 = vunpack.c.h.b16 %v8560
        %v8794 = vunpack.c.l.b16 %v8561
        %v8795 = vunpack.c.h.b16 %v8561
        %v8796 = vunpack.c.l.b16 %v8562
        %v8797 = vunpack.c.h.b16 %v8562
        %v8798 = vunpack.c.l.b16 %v8563
        %v8799 = vunpack.c.h.b16 %v8563
        %v8800 = vunpack.c.l.b16 %v8564
        %v8801 = vunpack.c.h.b16 %v8564
        %v8802 = vunpack.c.l.b16 %v8565
        %v8803 = vunpack.c.h.b16 %v8565
        %v8804 = vunpack.c.l.b16 %v8566
        %v8805 = vunpack.c.h.b16 %v8566
        %v8806 = vunpack.c.l.b16 %v8567
        %v8807 = vunpack.c.h.b16 %v8567
        %v8808 = vunpack.c.l.b16 %v8568
        %v8809 = vunpack.c.h.b16 %v8568
        %v8810 = vunpack.c.l.b16 %v8569
        %v8811 = vunpack.c.h.b16 %v8569
        %v8812 = vunpack.c.l.b16 %v8570
        %v8813 = vunpack.c.h.b16 %v8570
        %v8814 = vunpack.c.l.b16 %v8571
        %v8815 = vunpack.c.h.b16 %v8571
        %v8816 = vunpack.c.l.b16 %v8572
        %v8817 = vunpack.c.h.b16 %v8572
        %v8818 = vunpack.c.l.b16 %v8573
        %v8819 = vunpack.c.h.b16 %v8573
        %v8820 = vunpack.c.l.b16 %v8574
        %v8821 = vunpack.c.h.b16 %v8574
        %v8822 = vunpack.c.l.b16 %v8575
        %v8823 = vunpack.c.h.b16 %v8575
        %v8824 = vunpack.c.l.b16 %v8576
        %v8825 = vunpack.c.h.b16 %v8576
        %v8826 = vunpack.c.l.b16 %v8577
        %v8827 = vunpack.c.h.b16 %v8577
        %v8828 = vunpack.c.l.b16 %v8578
        %v8829 = vunpack.c.h.b16 %v8578
        %v8830 = vunpack.c.l.b16 %v8579
        %v8831 = vunpack.c.h.b16 %v8579
        %v8832 = vunpack.c.l.b16 %v8580
        %v8833 = vunpack.c.h.b16 %v8580
        %v8834 = vunpack.c.l.b16 %v8581
        %v8835 = vunpack.c.h.b16 %v8581
        %v8836 = vunpack.c.l.b16 %v8582
        %v8837 = vunpack.c.h.b16 %v8582
        %v8838 = vunpack.c.l.b16 %v8583
        %v8839 = vunpack.c.h.b16 %v8583
        %v8840 = vunpack.c.l.b16 %v8584
        %v8841 = vunpack.c.h.b16 %v8584
        %v8842 = vunpack.c.l.b16 %v8585
        %v8843 = vunpack.c.h.b16 %v8585
        %v8844 = vunpack.c.l.b16 %v8586
        %v8845 = vunpack.c.h.b16 %v8586
        %v8846 = vunpack.c.l.b16 %v8587
        %v8847 = vunpack.c.h.b16 %v8587
        %v8848 = vunpack.c.l.b16 %v8588
        %v8849 = vunpack.c.h.b16 %v8588
        %v8850 = vunpack.c.l.b16 %v8589
        %v8851 = vunpack.c.h.b16 %v8589
        %v8852 = vunpack.c.l.b16 %v8590
        %v8853 = vunpack.c.h.b16 %v8590
        %v8854 = vunpack.c.l.b16 %v8591
        %v8855 = vunpack.c.h.b16 %v8591
        %v8856 = vunpack.c.l.b16 %v8592
        %v8857 = vunpack.c.h.b16 %v8592
        %v8858 = vunpack.c.l.b16 %v8593
        %v8859 = vunpack.c.h.b16 %v8593
        %v8860 = vunpack.c.l.b16 %v8594
        %v8861 = vunpack.c.h.b16 %v8594
        %v8862 = vunpack.c.l.b16 %v8595
        %v8863 = vunpack.c.h.b16 %v8595
        %v8864 = vunpack.c.l.b16 %v8596
        %v8865 = vunpack.c.h.b16 %v8596
        %v8866 = vunpack.c.l.b16 %v8597
        %v8867 = vunpack.c.h.b16 %v8597
        %v8868 = vunpack.c.l.b16 %v8598
        %v8869 = vunpack.c.h.b16 %v8598
        %v8870 = vunpack.c.l.b16 %v8599
        %v8871 = vunpack.c.h.b16 %v8599
        %v8872 = vunpack.c.l.b16 %v8600
        %v8873 = vunpack.c.h.b16 %v8600
        %v8874 = vunpack.c.l.b16 %v8601
        %v8875 = vunpack.c.h.b16 %v8601
        %v8876 = vunpack.c.l.b16 %v8602
        %v8877 = vunpack.c.h.b16 %v8602
        %v8878 = vunpack.c.l.b16 %v8603
        %v8879 = vunpack.c.h.b16 %v8603
        %v8880 = vunpack.c.l.b16 %v8604
        %v8881 = vunpack.c.h.b16 %v8604
        %v8882 = vunpack.c.l.b16 %v8605
        %v8883 = vunpack.c.h.b16 %v8605
        %v8884 = vunpack.c.l.b16 %v8606
        %v8885 = vunpack.c.h.b16 %v8606
        %v8886 = vunpack.c.l.b16 %v8607
        %v8887 = vunpack.c.h.b16 %v8607
        %v8888 = vunpack.c.l.b16 %v8608
        %v8889 = vunpack.c.h.b16 %v8608
        %v8890 = vunpack.c.l.b16 %v8609
        %v8891 = vunpack.c.h.b16 %v8609
        %v8892 = vunpack.c.l.b16 %v8610
        %v8893 = vunpack.c.h.b16 %v8610
        %v8894 = vunpack.c.l.b16 %v8611
        %v8895 = vunpack.c.h.b16 %v8611
        %v8896 = vunpack.c.l.b16 %v8612
        %v8897 = vunpack.c.h.b16 %v8612
        %v8898 = vunpack.c.l.b16 %v8613
        %v8899 = vunpack.c.h.b16 %v8613
        %v8900 = vunpack.c.l.b16 %v8614
        %v8901 = vunpack.c.h.b16 %v8614
        %v8902 = vunpack.c.l.b16 %v8615
        %v8903 = vunpack.c.h.b16 %v8615
        %v8904 = vunpack.c.l.b16 %v8616
        %v8905 = vunpack.c.h.b16 %v8616
        %v8906 = vunpack.c.l.b16 %v8617
        %v8907 = vunpack.c.h.b16 %v8617
        %v8908 = vunpack.c.l.b16 %v8618
        %v8909 = vunpack.c.h.b16 %v8618
        %v8910 = vunpack.c.l.b16 %v8619
        %v8911 = vunpack.c.h.b16 %v8619
        %v8912 = vunpack.c.l.b16 %v8620
        %v8913 = vunpack.c.h.b16 %v8620
        %v8914 = vunpack.c.l.b16 %v8621
        %v8915 = vunpack.c.h.b16 %v8621
        %v8916 = vunpack.c.l.b16 %v8622
        %v8917 = vunpack.c.h.b16 %v8622
        %v8918 = vunpack.c.l.b16 %v8623
        %v8919 = vunpack.c.h.b16 %v8623
        %v8920 = vunpack.c.l.b16 %v8624
        %v8921 = vunpack.c.h.b16 %v8624
        %v8922 = vunpack.c.l.b16 %v8625
        %v8923 = vunpack.c.h.b16 %v8625
        %v8924 = vunpack.c.l.b16 %v8626
        %v8925 = vunpack.c.h.b16 %v8626
        %v8926 = vunpack.c.l.b16 %v8627
        %v8927 = vunpack.c.h.b16 %v8627
        %v8928 = vunpack.c.l.b16 %v8628
        %v8929 = vunpack.c.h.b16 %v8628
        %v8930 = vunpack.c.l.b16 %v8629
        %v8931 = vunpack.c.h.b16 %v8629
        %v8932 = vunpack.c.l.b16 %v8630
        %v8933 = vunpack.c.h.b16 %v8630
        %v8934 = vunpack.c.l.b16 %v8631
        %v8935 = vunpack.c.h.b16 %v8631
        %v8936 = vunpack.c.l.b16 %v8632
        %v8937 = vunpack.c.h.b16 %v8632
        %v8938 = vunpack.c.l.b16 %v8633
        %v8939 = vunpack.c.h.b16 %v8633
        %v8940 = vunpack.c.l.b16 %v8634
        %v8941 = vunpack.c.h.b16 %v8634
        %v8942 = vunpack.c.l.b16 %v8635
        %v8943 = vunpack.c.h.b16 %v8635
        %v8944 = vunpack.c.l.b16 %v8636
        %v8945 = vunpack.c.h.b16 %v8636
        %v8946 = vunpack.c.l.b16 %v8637
        %v8947 = vunpack.c.h.b16 %v8637
        %v8948 = vunpack.c.l.b16 %v8638
        %v8949 = vunpack.c.h.b16 %v8638
        %v8950 = vunpack.c.l.b16 %v8639
        %v8951 = vunpack.c.h.b16 %v8639
        %v8952 = vunpack.c.l.b16 %v8640
        %v8953 = vunpack.c.h.b16 %v8640
        %v8954 = vunpack.c.l.b16 %v8641
        %v8955 = vunpack.c.h.b16 %v8641
        %v8956 = vunpack.c.l.b16 %v8642
        %v8957 = vunpack.c.h.b16 %v8642
        %v8958 = vunpack.c.l.b16 %v8643
        %v8959 = vunpack.c.h.b16 %v8643
        %v8960 = vunpack.c.l.b16 %v8644
        %v8961 = vunpack.c.h.b16 %v8644
        %v8962 = vunpack.c.l.b16 %v8645
        %v8963 = vunpack.c.h.b16 %v8645
        %v8964 = vunpack.c.l.b16 %v8646
        %v8965 = vunpack.c.h.b16 %v8646
        %v8966 = vunpack.c.l.b16 %v8647
        %v8967 = vunpack.c.h.b16 %v8647
        %v8968 = vunpack.c.l.b16 %v8648
        %v8969 = vunpack.c.h.b16 %v8648
        %v8970 = vunpack.c.l.b16 %v8649
        %v8971 = vunpack.c.h.b16 %v8649
        %v8972 = vpack.c.b16 %v8786, %v8780
        %v8973 = vpack.c.b16 %v8787, %v8781
        %v8974 = vpack.c.b16 %v8788, %v8782
        %v8975 = vpack.c.b16 %v8789, %v8783
        %v8976 = vpack.c.b16 %v8790, %v8784
        %v8977 = vpack.c.b16 %v8791, %v8785
        %v8978 = vpack.c.b16 %v8798, %v8792
        %v8979 = vpack.c.b16 %v8799, %v8793
        %v8980 = vpack.c.b16 %v8800, %v8794
        %v8981 = vpack.c.b16 %v8801, %v8795
        %v8982 = vpack.c.b16 %v8802, %v8796
        %v8983 = vpack.c.b16 %v8803, %v8797
        %v8984 = vpack.c.b16 %v8810, %v8804
        %v8985 = vpack.c.b16 %v8811, %v8805
        %v8986 = vpack.c.b16 %v8812, %v8806
        %v8987 = vpack.c.b16 %v8813, %v8807
        %v8988 = vpack.c.b16 %v8814, %v8808
        %v8989 = vpack.c.b16 %v8815, %v8809
        %v8990 = vpack.c.b16 %v8822, %v8816
        %v8991 = vpack.c.b16 %v8823, %v8817
        %v8992 = vpack.c.b16 %v8824, %v8818
        %v8993 = vpack.c.b16 %v8825, %v8819
        %v8994 = vpack.c.b16 %v8826, %v8820
        %v8995 = vpack.c.b16 %v8827, %v8821
        %v8996 = vpack.c.b16 %v8834, %v8828
        %v8997 = vpack.c.b16 %v8835, %v8829
        %v8998 = vpack.c.b16 %v8836, %v8830
        %v8999 = vpack.c.b16 %v8837, %v8831
        %v9000 = vpack.c.b16 %v8838, %v8832
        %v9001 = vpack.c.b16 %v8839, %v8833
        %v9002 = vpack.c.b16 %v8846, %v8840
        %v9003 = vpack.c.b16 %v8847, %v8841
        %v9004 = vpack.c.b16 %v8848, %v8842
        %v9005 = vpack.c.b16 %v8849, %v8843
        %v9006 = vpack.c.b16 %v8850, %v8844
        %v9007 = vpack.c.b16 %v8851, %v8845
        %v9008 = vpack.c.b16 %v8858, %v8852
        %v9009 = vpack.c.b16 %v8859, %v8853
        %v9010 = vpack.c.b16 %v8860, %v8854
        %v9011 = vpack.c.b16 %v8861, %v8855
        %v9012 = vpack.c.b16 %v8862, %v8856
        %v9013 = vpack.c.b16 %v8863, %v8857
        %v9014 = vpack.c.b16 %v8870, %v8864
        %v9015 = vpack.c.b16 %v8871, %v8865
        %v9016 = vpack.c.b16 %v8872, %v8866
        %v9017 = vpack.c.b16 %v8873, %v8867
        %v9018 = vpack.c.b16 %v8874, %v8868
        %v9019 = vpack.c.b16 %v8875, %v8869
        %v9020 = vpack.c.b16 %v8882, %v8876
        %v9021 = vpack.c.b16 %v8883, %v8877
        %v9022 = vpack.c.b16 %v8884, %v8878
        %v9023 = vpack.c.b16 %v8885, %v8879
        %v9024 = vpack.c.b16 %v8886, %v8880
        %v9025 = vpack.c.b16 %v8887, %v8881
        %v9026 = vpack.c.b16 %v8894, %v8888
        %v9027 = vpack.c.b16 %v8895, %v8889
        %v9028 = vpack.c.b16 %v8896, %v8890
        %v9029 = vpack.c.b16 %v8897, %v8891
        %v9030 = vpack.c.b16 %v8898, %v8892
        %v9031 = vpack.c.b16 %v8899, %v8893
        %v9032 = vpack.c.b16 %v8906, %v8900
        %v9033 = vpack.c.b16 %v8907, %v8901
        %v9034 = vpack.c.b16 %v8908, %v8902
        %v9035 = vpack.c.b16 %v8909, %v8903
        %v9036 = vpack.c.b16 %v8910, %v8904
        %v9037 = vpack.c.b16 %v8911, %v8905
        %v9038 = vpack.c.b16 %v8918, %v8912
        %v9039 = vpack.c.b16 %v8919, %v8913
        %v9040 = vpack.c.b16 %v8920, %v8914
        %v9041 = vpack.c.b16 %v8921, %v8915
        %v9042 = vpack.c.b16 %v8922, %v8916
        %v9043 = vpack.c.b16 %v8923, %v8917
        %v9044 = vpack.c.b16 %v8930, %v8924
        %v9045 = vpack.c.b16 %v8931, %v8925
        %v9046 = vpack.c.b16 %v8932, %v8926
        %v9047 = vpack.c.b16 %v8933, %v8927
        %v9048 = vpack.c.b16 %v8934, %v8928
        %v9049 = vpack.c.b16 %v8935, %v8929
        %v9050 = vpack.c.b16 %v8942, %v8936
        %v9051 = vpack.c.b16 %v8943, %v8937
        %v9052 = vpack.c.b16 %v8944, %v8938
        %v9053 = vpack.c.b16 %v8945, %v8939
        %v9054 = vpack.c.b16 %v8946, %v8940
        %v9055 = vpack.c.b16 %v8947, %v8941
        %v9056 = vpack.c.b16 %v8954, %v8948
        %v9057 = vpack.c.b16 %v8955, %v8949
        %v9058 = vpack.c.b16 %v8956, %v8950
        %v9059 = vpack.c.b16 %v8957, %v8951
        %v9060 = vpack.c.b16 %v8958, %v8952
        %v9061 = vpack.c.b16 %v8959, %v8953
        %v9062 = vpack.c.b16 %v8966, %v8960
        %v9063 = vpack.c.b16 %v8967, %v8961
        %v9064 = vpack.c.b16 %v8968, %v8962
        %v9065 = vpack.c.b16 %v8969, %v8963
        %v9066 = vpack.c.b16 %v8970, %v8964
        %v9067 = vpack.c.b16 %v8971, %v8965
        %9164 = vmatprep.subr.bf16.mxu0 %v8973
        %9165 = vmatpush1.bf16.msra.mxu0 %v8972
        %9166 = vmatprep.subr.bf16.mxu0 %v8979
        %9167 = vmatpush1.bf16.msra.mxu0 %v8978
        %9168 = vmatprep.subr.bf16.mxu0 %v8985
        %9169 = vmatpush1.bf16.msra.mxu0 %v8984
        %9170 = vmatprep.subr.bf16.mxu0 %v8991
        %9171 = vmatpush1.bf16.msra.mxu0 %v8990
        %9172 = vmatprep.subr.bf16.mxu0 %v8997
        %9173 = vmatpush1.bf16.msra.mxu0 %v8996
        %9174 = vmatprep.subr.bf16.mxu0 %v9003
        %9175 = vmatpush1.bf16.msra.mxu0 %v9002
        %9176 = vmatprep.subr.bf16.mxu0 %v9009
        %9177 = vmatpush1.bf16.msra.mxu0 %v9008
        %9178 = vmatprep.subr.bf16.mxu0 %v9015
        %9179 = vmatpush1.bf16.msra.mxu0 %v9014
        %9180 = vmatprep.subr.bf16.mxu0 %v9021
        %9181 = vmatpush1.bf16.msra.mxu0 %v9020
        %9182 = vmatprep.subr.bf16.mxu0 %v9027
        %9183 = vmatpush1.bf16.msra.mxu0 %v9026
        %9184 = vmatprep.subr.bf16.mxu0 %v9033
        %9185 = vmatpush1.bf16.msra.mxu0 %v9032
        %9186 = vmatprep.subr.bf16.mxu0 %v9039
        %9187 = vmatpush1.bf16.msra.mxu0 %v9038
        %9188 = vmatprep.subr.bf16.mxu0 %v9045
        %9189 = vmatpush1.bf16.msra.mxu0 %v9044
        %9190 = vmatprep.subr.bf16.mxu0 %v9051
        %9191 = vmatpush1.bf16.msra.mxu0 %v9050
        %9192 = vmatprep.subr.bf16.mxu0 %v9057
        %9193 = vmatpush1.bf16.msra.mxu0 %v9056
        %9194 = vmatprep.subr.bf16.mxu0 %v9063
        %9195 = vmatpush1.bf16.msra.mxu0 %v9062
        %9196 = vmatprep.mubr.bf16.mxu0 %v8651
        %9197 = vmatmul.mubr.bf16.gmra.mrb[0].mxu0 %v8650
        %v9198 = vpop.f32.mrb[0].mxu0
        %v9199 = vadd.f32 %v8657, %v9198
        %v9200 = vpop.f32.mrb[0].mxu0
        %v9201 = vadd.f32 %v8661, %v9200
        %v9202 = vpop.f32.mrb[0].mxu0
        %v9203 = vpop.f32.mrb[0].mxu0
        %9204 = vdwg.mxu0
        %9205 = vmatprep.subr.bf16.mxu0 %v8975
        %9206 = vmatpush1.bf16.msra.mxu0 %v8974
        %9207 = vmatprep.subr.bf16.mxu0 %v8981
        %9208 = vmatpush1.bf16.msra.mxu0 %v8980
        %9209 = vmatprep.subr.bf16.mxu0 %v8987
        %9210 = vmatpush1.bf16.msra.mxu0 %v8986
        %9211 = vmatprep.subr.bf16.mxu0 %v8993
        %9212 = vmatpush1.bf16.msra.mxu0 %v8992
        %9213 = vmatprep.subr.bf16.mxu0 %v8999
        %9214 = vmatpush1.bf16.msra.mxu0 %v8998
        %9215 = vmatprep.subr.bf16.mxu0 %v9005
        %9216 = vmatpush1.bf16.msra.mxu0 %v9004
        %9217 = vmatprep.subr.bf16.mxu0 %v9011
        %9218 = vmatpush1.bf16.msra.mxu0 %v9010
        %9219 = vmatprep.subr.bf16.mxu0 %v9017
        %9220 = vmatpush1.bf16.msra.mxu0 %v9016
        %9221 = vmatprep.subr.bf16.mxu0 %v9023
        %9222 = vmatpush1.bf16.msra.mxu0 %v9022
        %9223 = vmatprep.subr.bf16.mxu0 %v9029
        %9224 = vmatpush1.bf16.msra.mxu0 %v9028
        %9225 = vmatprep.subr.bf16.mxu0 %v9035
        %9226 = vmatpush1.bf16.msra.mxu0 %v9034
        %9227 = vmatprep.subr.bf16.mxu0 %v9041
        %9228 = vmatpush1.bf16.msra.mxu0 %v9040
        %9229 = vmatprep.subr.bf16.mxu0 %v9047
        %9230 = vmatpush1.bf16.msra.mxu0 %v9046
        %9231 = vmatprep.subr.bf16.mxu0 %v9053
        %9232 = vmatpush1.bf16.msra.mxu0 %v9052
        %9233 = vmatprep.subr.bf16.mxu0 %v9059
        %9234 = vmatpush1.bf16.msra.mxu0 %v9058
        %9235 = vmatprep.subr.bf16.mxu0 %v9065
        %9236 = vmatpush1.bf16.msra.mxu0 %v9064
        %9237 = vmatprep.mubr.bf16.mxu0 %v8651
        %9238 = vmatmul.mubr.bf16.gmra.mrb[0].mxu0 %v8650
        %v9239 = vpop.f32.mrb[0].mxu0
        %v9240 = vadd.f32 %v8665, %v9239
        %v9241 = vpop.f32.mrb[0].mxu0
        %v9242 = vadd.f32 %v8669, %v9241
        %v9243 = vpop.f32.mrb[0].mxu0
        %v9244 = vpop.f32.mrb[0].mxu0
        %9245 = vdwg.mxu0
        %9246 = vmatprep.subr.bf16.mxu0 %v8977
        %9247 = vmatpush1.bf16.msra.mxu0 %v8976
        %9248 = vmatprep.subr.bf16.mxu0 %v8983
        %9249 = vmatpush1.bf16.msra.mxu0 %v8982
        %9250 = vmatprep.subr.bf16.mxu0 %v8989
        %9251 = vmatpush1.bf16.msra.mxu0 %v8988
        %9252 = vmatprep.subr.bf16.mxu0 %v8995
        %9253 = vmatpush1.bf16.msra.mxu0 %v8994
        %9254 = vmatprep.subr.bf16.mxu0 %v9001
        %9255 = vmatpush1.bf16.msra.mxu0 %v9000
        %9256 = vmatprep.subr.bf16.mxu0 %v9007
        %9257 = vmatpush1.bf16.msra.mxu0 %v9006
        %9258 = vmatprep.subr.bf16.mxu0 %v9013
        %9259 = vmatpush1.bf16.msra.mxu0 %v9012
        %9260 = vmatprep.subr.bf16.mxu0 %v9019
        %9261 = vmatpush1.bf16.msra.mxu0 %v9018
        %9262 = vmatprep.subr.bf16.mxu0 %v9025
        %9263 = vmatpush1.bf16.msra.mxu0 %v9024
        %9264 = vmatprep.subr.bf16.mxu0 %v9031
        %9265 = vmatpush1.bf16.msra.mxu0 %v9030
        %9266 = vmatprep.subr.bf16.mxu0 %v9037
        %9267 = vmatpush1.bf16.msra.mxu0 %v9036
        %9268 = vmatprep.subr.bf16.mxu0 %v9043
        %9269 = vmatpush1.bf16.msra.mxu0 %v9042
        %9270 = vmatprep.subr.bf16.mxu0 %v9049
        %9271 = vmatpush1.bf16.msra.mxu0 %v9048
        %9272 = vmatprep.subr.bf16.mxu0 %v9055
        %9273 = vmatpush1.bf16.msra.mxu0 %v9054
        %9274 = vmatprep.subr.bf16.mxu0 %v9061
        %9275 = vmatpush1.bf16.msra.mxu0 %v9060
        %9276 = vmatprep.subr.bf16.mxu0 %v9067
        %9277 = vmatpush1.bf16.msra.mxu0 %v9066
        %9278 = vmatprep.mubr.bf16.mxu0 %v8651
        %9279 = vmatmul.mubr.bf16.gmra.mrb[0].mxu0 %v8650
        %v9280 = vpop.f32.mrb[0].mxu0
        %v9281 = vadd.f32 %v8673, %v9280
        %v9282 = vpop.f32.mrb[0].mxu0
        %v9283 = vadd.f32 %v8677, %v9282
        %v9284 = vpop.f32.mrb[0].mxu0
        %v9285 = vpop.f32.mrb[0].mxu0
        %9286 = vdwg.mxu0
        %v9287 = vld [vmem:[#allocation28] sm:$0x3f]
        %v9289 = vlaneseq
        %v9290 = vshrl.u32 %v9289, 7
        %v9291 = vsub.s32 0, %v9290
        %v9292 = vrot.slane %v9287, %v9291
        %v9293 = vlaneseq
        %v9294 = vshrl.u32 %v9293, 7
        %v9295 = vsub.s32 1, %v9294
        %v9296 = vrot.slane %v9287, %v9295
        %v9297 = vlaneseq
        %v9298 = vshrl.u32 %v9297, 7
        %v9299 = vsub.s32 2, %v9298
        %v9300 = vrot.slane %v9287, %v9299
        %v9301 = vlaneseq
        %v9302 = vshrl.u32 %v9301, 7
        %v9303 = vsub.s32 3, %v9302
        %v9304 = vrot.slane %v9287, %v9303
        %v9305 = vlaneseq
        %v9306 = vshrl.u32 %v9305, 7
        %v9307 = vsub.s32 4, %v9306
        %v9308 = vrot.slane %v9287, %v9307
        %v9309 = vlaneseq
        %v9310 = vshrl.u32 %v9309, 7
        %v9311 = vsub.s32 5, %v9310
        %v9312 = vrot.slane %v9287, %v9311
        %v9319 = vmul.f32 %v9199, %v9292
        %v9320 = vmul.f32 %v9201, %v9296
        %v9321 = vmul.f32 %v9240, %v9300
        %v9322 = vmul.f32 %v9242, %v9304
        %v9323 = vmul.f32 %v9281, %v9308
        %v9324 = vmul.f32 %v9283, %v9312
        %v9325 = vadd.f32 %v9319, %v9320
        %v9326 = vadd.f32 %v9325, %v9321
        %v9327 = vadd.f32 %v9326, %v9322
        %v9328 = vadd.f32 %v9327, %v9323
        %v9329 = vadd.f32 %v9328, %v9324
        %9330 = vadd.xlane.f32.xlu0 %v9329
        %v9331 = vpop.xlane.xlu0 %9330
        %v9332 = vld [vmem:[#allocation2] sm:$0x1]
        %v9334 = vlaneseq
        %v9335 = vshrl.u32 %v9334, 7
        %v9336 = vsub.s32 0, %v9335
        %v9337 = vrot.slane %v9332, %v9336
        %v9339 = vadd.f32 %v9331, %v9337
        %v9340 = vmul.f32 %v9339, 0.03608439
        %vm9341 = vcmask 7168
        %v9342 = vsel %vm9341, %v9340, -inf
        %v9343 = vrot.slane %v9342, 4
        %v9344 = vmax.f32 %v9342, %v9343
        %v9345 = vrot.slane %v9344, 2
        %v9346 = vmax.f32 %v9344, %v9345
        %v9347 = vrot.slane %v9346, 1
        %v9348 = vmax.f32 %v9346, %v9347
        %v9349 = vsub.f32 %v9340, %v9348
        %v9350 = vmul.f32 %v9349, 1.442695
        %v9351 = vpow.pop %v9350
        %v9352 = vsel %vm9341, %v9351, 0.0
        %v9353 = vrot.slane %v9352, 4
        %v9354 = vadd.f32 %v9352, %v9353
        %v9355 = vrot.slane %v9354, 2
        %v9356 = vadd.f32 %v9354, %v9355
        %v9357 = vrot.slane %v9356, 1
        %v9358 = vadd.f32 %v9356, %v9357
        %v9359 = vrcp.pop %v9358
        %v9360 = vmul.f32 %v9351, %v9359
        %9362 = vset.pattern.permute.xlu0 0
        %9363 = vperm.xlu0 %9362, %v9360
        %v9364 = vpop.permute.xlu0 %9363
        %v9366 = vmul.f32 %v9199, %v9364
        %v9367 = vmul.f32 %v9201, %v9364
        %v9368 = vmul.f32 %v9240, %v9364
        %v9369 = vmul.f32 %v9242, %v9364
        %v9370 = vmul.f32 %v9281, %v9364
        %v9371 = vmul.f32 %v9283, %v9364
        %v9372 = vrot.slane %v9366, 4
        %v9373 = vadd.f32 %v9366, %v9372
        %v9374 = vrot.slane %v9373, 2
        %v9375 = vadd.f32 %v9373, %v9374
        %v9376 = vrot.slane %v9375, 1
        %v9377 = vadd.f32 %v9375, %v9376
        %v9378 = vrot.slane %v9367, 4
        %v9379 = vadd.f32 %v9367, %v9378
        %v9380 = vrot.slane %v9379, 2
        %v9381 = vadd.f32 %v9379, %v9380
        %v9382 = vrot.slane %v9381, 1
        %v9383 = vadd.f32 %v9381, %v9382
        %v9384 = vrot.slane %v9368, 4
        %v9385 = vadd.f32 %v9368, %v9384
        %v9386 = vrot.slane %v9385, 2
        %v9387 = vadd.f32 %v9385, %v9386
        %v9388 = vrot.slane %v9387, 1
        %v9389 = vadd.f32 %v9387, %v9388
        %v9390 = vrot.slane %v9369, 4
        %v9391 = vadd.f32 %v9369, %v9390
        %v9392 = vrot.slane %v9391, 2
        %v9393 = vadd.f32 %v9391, %v9392
        %v9394 = vrot.slane %v9393, 1
        %v9395 = vadd.f32 %v9393, %v9394
        %v9396 = vrot.slane %v9370, 4
        %v9397 = vadd.f32 %v9370, %v9396
        %v9398 = vrot.slane %v9397, 2
        %v9399 = vadd.f32 %v9397, %v9398
        %v9400 = vrot.slane %v9399, 1
        %v9401 = vadd.f32 %v9399, %v9400
        %v9402 = vrot.slane %v9371, 4
        %v9403 = vadd.f32 %v9371, %v9402
        %v9404 = vrot.slane %v9403, 2
        %v9405 = vadd.f32 %v9403, %v9404
        %v9406 = vrot.slane %v9405, 1
        %v9407 = vadd.f32 %v9405, %v9406
        %v9414 = vcombine.low %v9377, %v9383
        %v9415 = vcombine.low %v9389, %v9395
        %v9416 = vcombine.low %v9401, %v9407
        %v9418 = vunpack.c.l.s4 1966171168
        %v9419 = vunpack.c.0.s8 %v9418
        %v9420 = vlaneseq
        %v9421 = vshrl.u32 %v9420, 7
        %v9422 = vsub.s32 %v9419, %v9421
        %v9423 = vrot.slane %v9414, %v9422
        %v9425 = vunpack.c.l.s4 1966171168
        %v9426 = vunpack.c.0.s8 %v9425
        %v9427 = vlaneseq
        %v9428 = vshrl.u32 %v9427, 7
        %v9429 = vsub.s32 %v9426, %v9428
        %v9430 = vrot.slane %v9415, %v9429
        %v9432 = vunpack.c.l.s4 1966171168
        %v9433 = vunpack.c.0.s8 %v9432
        %v9434 = vlaneseq
        %v9435 = vshrl.u32 %v9434, 7
        %v9436 = vsub.s32 %v9433, %v9435
        %v9437 = vrot.slane %v9416, %v9436
        %v9438 = vcombine.low %v9423, %v9430
        %v9440 = vunpack.c.l.s4 1966171168
        %v9441 = vunpack.c.0.s8 %v9440
        %v9442 = vlaneseq
        %v9443 = vshrl.u32 %v9442, 7
        %v9444 = vsub.s32 %v9441, %v9443
        %v9445 = vrot.slane %v9438, %v9444
        %v9447 = vunpack.c.l.s4 1966171168
        %v9448 = vunpack.c.0.s8 %v9447
        %v9449 = vlaneseq
        %v9450 = vshrl.u32 %v9449, 7
        %v9451 = vsub.s32 %v9448, %v9450
        %v9452 = vrot.slane %v9437, %v9451
        %v9453 = vcombine.low %v9445, %v9452
        %v9455 = vlaneseq
        %vm9456 = vcmp.ge.s32.totalorder %v9455, 0
        %vm9457 = vcmp.lt.s32.totalorder %v9455, 768
        %vm9458 = vmand %vm9456, %vm9457
        %9459 = vst.msk [vmem:[%s894] sm:$0x3f] %vm9458, %v9453
        %p9460 = scmp.lt.s32.totalorder %s43, 1
        %s9461 = scalar_select %p9460, %s43, 1
        %s9462 = smul.addr %s9461, 6
        %s9463 = scalar_lea.vmem %s21, %s9462
        // Predicated region
        $region173: #{sentence_decoder_forward.1} parent=103 // pred_check
          %p9464 = pneg %p507
        $region174: #{sentence_decoder_forward.1} parent=103 // pred_check_branch
          %9466 = sbr.rel (%p9464) target = $region176
        $region175: #{sentence_decoder_forward.1} parent=103 // pred_region
          _
        $region176: #{sentence_decoder_forward.1} parent=103 // pred_fallthru
          _
      $region104: #{sentence_decoder_forward.1} parent=5 // pred_fallthru
        _
      %p9467 = scmp.le.s32.totalorder 2, %s38
      // Predicated region
      $region177: #{sentence_decoder_forward.1} parent=5 // pred_check
        %p9468 = pneg %p9467
      $region178: #{sentence_decoder_forward.1} parent=5 // pred_check_branch
        %9470 = sbr.rel (%p9468) target = $region180
      $region179: #{sentence_decoder_forward.1} parent=5 // pred_region
        %s9471 = ssub.s32 %s38, 2
        // Predicated region
        $region181: #{sentence_decoder_forward.1} parent=179 // pred_check
          %p9472 = pneg %p513
        $region182: #{sentence_decoder_forward.1} parent=179 // pred_check_branch
          %9474 = sbr.rel (%p9472) target = $region184
        $region183: #{sentence_decoder_forward.1} parent=179 // pred_region
          %p9475 = scmp.lt.s32.totalorder %s44, 1
          %s9476 = scalar_select %p9475, %s44, 1
          %s9477 = smul.addr %s9476, 6
          %s9478 = scalar_lea.vmem %s21, %s9477
        $region184: #{sentence_decoder_forward.1} parent=179 // pred_fallthru
          _
      $region180: #{sentence_decoder_forward.1} parent=5 // pred_fallthru
        _
    $region6: #{sentence_decoder_forward.1} parent=1 // loop_footer
      %s42 = sadd.s32 1, %s38
    $region7: #{sentence_decoder_forward.1} parent=1 // loop_footer_branch
      %37 = sbr.rel target = $region3
    $region8: #{sentence_decoder_forward.1} parent=1 // loop_exit
      _
    %9479 = vsyncpa [#allocation4], 1
    %s9480 = scalar_lea.sflag [#allocation4], 1
    %9481 = vsyncpa %s9480, 1
    %9482 = vsyncpa [#allocation6], 1
    %9483 = vsyncpa [#allocation9], 1
    %9484 = vsyncpa [#allocation12], 1
    %9485 = vsyncpa [#allocation15], 1
    %9486 = vsyncpa [#allocation18], 1
    %9487 = vsyncpa [#allocation21], 1
    %9488 = vsyncpa [#allocation24], 1
    %9489 = vsyncpa [#allocation27], 1

</llo_original>
